<compile_context>
chip_gen: v6e
topology: v6e:2x2x1
jax: 0.10.0
libtpu: 0.0.40
codegen_flags: <defaults>
</compile_context>

<pallas_src>
import jax
import jax.numpy as jnp
from jax.experimental import pallas as pl
from jax.experimental.pallas import tpu as pltpu

EPS = 1e-6

# Scoped-VMEM limit: above v5e's 16 MiB / v6e's 32 MiB defaults, with headroom
# below v7x's 64 MiB physical VMEM.
_VMEM_LIMIT_BYTES = 48 * 1024 * 1024
# Per-step tile budget (double-buffered input tile + f32 elementwise temps).
_TILE_BUDGET_BYTES = 40 * 1024 * 1024


def _int_pow(x, n):
    """x ** n for small positive integer n via plain VPU multiplies (trace-time unroll)."""
    assert n >= 1
    result = None
    base = x
    while n:
        if n & 1:
            result = base if result is None else result * base
        n >>= 1
        if n:
            base = base * base
    return result


def _make_head_kernel(p, eps):
    """Build the GeM-pool + linear-head kernel for a static GeM exponent p."""
    p = float(p)
    p_int = int(round(p))
    int_fast_path = abs(p - p_int) < 1e-12 and 1 <= p_int <= 8
    inv_p = 1.0 / p

    def kernel(x_ref, w_ref, b_ref, o_ref):
        # x_ref: (TB, C, S) VMEM — backbone feature tile (full C, full S = H*W)
        # w_ref: (1, C)  f32 VMEM — Linear weight row (channels on the lane axis)
        # b_ref: (1,)    f32 SMEM — Linear bias (num_classes == 1)
        # o_ref: (TB, 1) f32 VMEM — logits for this batch tile
        x = x_ref[...].astype(jnp.float32)       # in-kernel upcast; no extra HBM pass
        xc = jnp.maximum(x, eps)                 # x.clamp(min=eps)
        if int_fast_path:
            # p == 3 for ISIC checkpoints: 2 VPU multiplies per element instead of
            # exp(p*log(x)) — removes the per-pixel EUP bottleneck.
            xp = _int_pow(xc, p_int)
        else:
            xp = jnp.exp(p * jnp.log(xc))        # general static-p path (xc >= eps > 0)
        pooled = jnp.mean(xp, axis=-1)           # avg_pool2d over full HxW -> (TB, C)
        # .pow(1/p) touches only TB*C elements — EUP cost here is negligible.
        gem = jnp.exp(inv_p * jnp.log(pooled))   # pooled >= eps**p > 0
        # 5 eval-mode dropouts are identity -> mean of 5 identical linears == 1 linear.
        # num_classes == 1: VPU multiply + lane reduce; an MXU matmul would be >99% idle.
        o_ref[...] = jnp.sum(gem * w_ref[...], axis=-1, keepdims=True) + b_ref[0]

    return kernel


def _pick_tb(B, C, S, feat_itemsize, budget_bytes):
    """Largest legal batch tile whose pipelined footprint fits the VMEM budget."""
    # 2 double-buffered input-dtype buffers + ~2x f32 elementwise temporaries.
    per_row = C * S * (2 * feat_itemsize + 2 * 4)
    # Output block is (tb, 1): its second-to-last dim must be a multiple of 8 or == B.
    cands = sorted({d for d in range(8, B + 1, 8) if B % d == 0} | {B}, reverse=True)
    fitting = [d for d in cands if d * per_row <= budget_bytes]
    tb = fitting[0] if fitting else min(cands)
    # v7x has 2 TensorCores: keep the "parallel" batch axis at >= 2 grid steps when possible.
    if tb == B and B > 1:
        proper = [d for d in cands if d < B and d * per_row <= budget_bytes]
        if proper:
            tb = proper[0]
    return tb


def isic_forward(features_nchw, w, b, *, p=3.0, eps=EPS):
    """ISICModel (efficientnetv2 branch) head on a backbone feature map.

    features_nchw: [B, C, H, W] backbone output (any float dtype; streamed as-is).
    w: (C, 1) Linear weight (torch `linear.weight.T`); b: (1,) bias.
    p: GeM exponent as a static Python float (the learned checkpoint value).
    Returns squeezed logits, matching `output.squeeze()`.
    """
    assert p > 0.0, "GeM exponent p must be positive"
    B, C, H, W = features_nchw.shape
    S = H * W
    NC = w.shape[1]
    assert NC == 1, "ISICModel head uses num_classes=1"

    # Stream features in their native dtype (a standalone wrapper-side cast would
    # add a full extra HBM read+write pass).
    x = features_nchw.reshape(B, C, S)
    w_row = w.astype(jnp.float32).T              # (1, C): channels on the lane axis
    b = b.astype(jnp.float32).reshape(1)

    tb = _pick_tb(B, C, S, x.dtype.itemsize, _TILE_BUDGET_BYTES)
    grid = (B // tb,)                            # 1-D batch grid; full C per tile, so
                                                 # no channel reduction / accumulator.

    kernel = _make_head_kernel(p, eps)
    out = pl.pallas_call(
        kernel,
        out_shape=jax.ShapeDtypeStruct((B, NC), jnp.float32),
        grid=grid,
        in_specs=[
            pl.BlockSpec((tb, C, S), lambda bi: (bi, 0, 0)),      # feature tile
            pl.BlockSpec((1, C), lambda bi: (0, 0)),              # weight row
            pl.BlockSpec(memory_space=pltpu.MemorySpace.SMEM),    # bias scalar
        ],
        out_specs=pl.BlockSpec((tb, NC), lambda bi: (bi, 0)),
        compiler_params=pltpu.CompilerParams(
            dimension_semantics=("parallel",),
            vmem_limit_bytes=_VMEM_LIMIT_BYTES),
    )(x, w_row, b)

    return jnp.squeeze(out)                      # matches `output.squeeze()`


if __name__ == "__main__":
    # Stand-in shapes for the EfficientNetV2 feature map (post-trunk, pre-pool),
    # kept small but tiling-friendly: B=16, C=256, 16x16 spatial.
    B, C, H, W = 16, 256, 16, 16
    NUM_CLASSES = 1
    P = 3.0                                      # GeM init: ones(1) * 3

    key = jax.random.PRNGKey(0)
    k1, k2, k3 = jax.random.split(key, 3)

    features = jax.random.uniform(k1, (B, C, H, W), dtype=jnp.float32)

    # nn.Linear(C, num_classes) default torch init ~ U(-1/sqrt(C), 1/sqrt(C))
    bound = 1.0 / (C ** 0.5)
    w = jax.random.uniform(k2, (C, NUM_CLASSES), jnp.float32, -bound, bound)
    b = jax.random.uniform(k3, (NUM_CLASSES,), jnp.float32, -bound, bound)

    out = jax.block_until_ready(isic_forward(features, w, b, p=P))

    # Exact f32 reference of the PyTorch head (eval-mode dropout == identity).
    xp_ref = jnp.clip(features, EPS, None) ** P
    pooled_ref = jnp.mean(xp_ref.reshape(B, C, -1), axis=-1) ** (1.0 / P)
    ref = jnp.sum(pooled_ref * w[:, 0][None, :], axis=-1) + b[0]

    assert out.shape == ref.shape == (B,)
    assert jnp.allclose(out, ref, atol=1e-3, rtol=1e-3), (out, ref)

    print("KERNEL_OK")
</pallas_src>

<mosaic_0001>
module attributes {stable_mosaic.version = 11 : i64} {
  func.func @kernel(%arg0: i32, %arg1: memref<8x256x256xf32, #tpu.memory_space<vmem>>, %arg2: memref<1x256xf32, #tpu.memory_space<vmem>>, %arg3: memref<1xf32, #tpu.memory_space<smem>>, %arg4: memref<8x1xf32, #tpu.memory_space<vmem>>) attributes {dimension_semantics = [#tpu.dimension_semantics<parallel>], iteration_bounds = array<i64: 2>, scalar_prefetch = 0 : i64, scratch_operands = 0 : i64, tpu.core_type = #tpu.core_type<tc>, window_params = [{transform_indices = @transform_0, window_bounds = array<i64: 8, 256, 256>}, {pipeline_mode = #tpu.pipeline_mode<synchronous>, transform_indices = @transform_1, window_bounds = array<i64: 1, 256>}, {transform_indices = @transform_2, window_bounds = array<i64: 1>}, {transform_indices = @transform_3, window_bounds = array<i64: 8, 1>}]} {
    %c0 = arith.constant 0 : index
    %c0_0 = arith.constant 0 : index
    %c0_1 = arith.constant 0 : index
    %0 = vector.load %arg1[%c0, %c0_0, %c0_1] : memref<8x256x256xf32, #tpu.memory_space<vmem>>, vector<8x256x256xf32>
    %cst = arith.constant 9.99999997E-7 : f32
    %1 = vector.broadcast %cst : f32 to vector<8x256x256xf32>
    %2 = arith.maximumf %0, %1 : vector<8x256x256xf32>
    %3 = arith.mulf %2, %2 : vector<8x256x256xf32>
    %4 = arith.mulf %2, %3 : vector<8x256x256xf32>
    %cst_2 = arith.constant dense<0.000000e+00> : vector<8x256xf32>
    %5 = vector.multi_reduction <add>, %4, %cst_2 [2] : vector<8x256x256xf32> to vector<8x256xf32>
    %cst_3 = arith.constant 2.560000e+02 : f32
    %6 = vector.broadcast %cst_3 : f32 to vector<8x256xf32>
    %7 = arith.divf %5, %6 : vector<8x256xf32>
    %8 = math.log %7 : vector<8x256xf32>
    %cst_4 = arith.constant 0.333333343 : f32
    %9 = vector.broadcast %cst_4 : f32 to vector<8x256xf32>
    %10 = arith.mulf %9, %8 : vector<8x256xf32>
    %11 = math.exp %10 : vector<8x256xf32>
    %c0_5 = arith.constant 0 : index
    %c0_6 = arith.constant 0 : index
    %12 = vector.load %arg2[%c0_5, %c0_6] : memref<1x256xf32, #tpu.memory_space<vmem>>, vector<1x256xf32>
    %13 = vector.broadcast %12 : vector<1x256xf32> to vector<8x256xf32>
    %14 = arith.mulf %11, %13 : vector<8x256xf32>
    %cst_7 = arith.constant dense<0.000000e+00> : vector<8xf32>
    %15 = vector.multi_reduction <add>, %14, %cst_7 [1] : vector<8x256xf32> to vector<8xf32>
    %16 = vector.shape_cast %15 : vector<8xf32> to vector<8x1xf32>
    %c0_8 = arith.constant 0 : index
    %17 = memref.load %arg3[%c0_8] : memref<1xf32, #tpu.memory_space<smem>>
    %18 = vector.broadcast %17 : f32 to vector<8x1xf32>
    %19 = arith.addf %16, %18 : vector<8x1xf32>
    %c0_9 = arith.constant 0 : index
    %c0_10 = arith.constant 0 : index
    %20 = vector.load %arg4[%c0_9, %c0_10] : memref<8x1xf32, #tpu.memory_space<vmem>>, vector<8x1xf32>
    tpu.vector_store %arg4[%c0_9, %c0_10], %19 {strides = array<i32>} : memref<8x1xf32, #tpu.memory_space<vmem>>, vector<8x1xf32>,
    return
  }
  func.func @transform_0(%arg0: i32) -> (i32, i32, i32) {
    %c0_i32 = arith.constant 0 : i32
    %c0_i32_0 = arith.constant 0 : i32
    %c0_i32_1 = arith.constant 0 : i32
    return %arg0, %c0_i32, %c0_i32_0 : i32, i32, i32
  }
  func.func @transform_1(%arg0: i32) -> (i32, i32) {
    %c0_i32 = arith.constant 0 : i32
    %c0_i32_0 = arith.constant 0 : i32
    %c0_i32_1 = arith.constant 0 : i32
    return %c0_i32, %c0_i32_0 : i32, i32
  }
  func.func @transform_2(%arg0: i32) -> i32 {
    %c0_i32 = arith.constant 0 : i32
    %c0_i32_0 = arith.constant 0 : i32
    return %c0_i32 : i32
  }
  func.func @transform_3(%arg0: i32) -> (i32, i32) {
    %c0_i32 = arith.constant 0 : i32
    %c0_i32_0 = arith.constant 0 : i32
    return %arg0, %c0_i32 : i32, i32
  }
}

</mosaic_0001>

<llo_original>
// kernel: tpu_custom_call.1
$region0: #{tpu_custom_call.1}
  #allocation0 [shape = 'u32[]', space=smem, size = 0x4, offset = 0x4, fixed_abs, tag = 'smem constant byte address 0x4 - core index']
  #allocation1 [shape = 'u32[144,128]{1,0:T(1,128)}', space=vmem, size = 0x12000, scoped, tag = 'internal scratch']
  #allocation2 [shape = 'f32[1]{0:T(128)S(6)}', space=smem, size = 0x200, scoped, tag = 'scoped memory for tpu_custom_call.1']
  %s0 = inlined_call_operand.hbm [shape: f32[16,256,256], index: 0, kind: input, shape index: {}]
  %s1 = inlined_call_operand.hbm [shape: f32[1,256], index: 1, kind: input, shape index: {}]
  %s2 = inlined_call_operand.<no memory space> [shape: f32[1], index: 2, kind: input, shape index: {}]
  %s3 = inlined_call_operand.vmem [shape: f32[16,1], index: 3, kind: output, shape index: {}]
  %s4 = sld [smem:[#allocation0]]
  $region53: #{tpu_custom_call.1} parent=0
    _
  %s6 = ssub.s32 1, %s4
  %s7 = scalar_select 0, %s6, %s4
  %8 = sst [smem:[#allocation2]] %s2
  $region1: #{tpu_custom_call.1} parent=0
    #allocation3 [shape = 'u8[4194304]{0}', space=vmem, size = 0x400000, scoped, tag = 'input window, operand 0']
    #allocation4 [shape = 's32[2]{0}', space=sflag, size = 0x8, scoped, tag = 'scoped memory for tpu_custom_call.1']
    #allocation5 [shape = 'u8[1024]{0}', space=vmem, size = 0x400, scoped, tag = 'input window, operand 1, single buffered']
    #allocation6 [shape = 's32[1]{0}', space=sflag, size = 0x4, scoped, tag = 'scoped memory for tpu_custom_call.1']
    %9 = vsyncpa [#allocation4], 0
    %s10 = scalar_lea.sflag [#allocation4], 1
    %11 = vsyncpa %s10, 0
    %12 = vsyncpa [#allocation6], 0
    loop: start=0, step=1, limit=4
    $region2: #{tpu_custom_call.1} parent=1 // loop_pre_header
      _
    $region3: #{tpu_custom_call.1} parent=1 // loop_header
      %s14 = sphi 0, %s18
      %p15 = scmp.ge.s32.totalorder %s14, 4
      %s24 = sphi 0, %s26
      %s27 = sphi 0, %s24
      %s28 = sphi 0, %s27
      %s44 = sphi 0, %s28
      %s48 = sphi 0, %s48
      %s50 = sphi 0, %s48
      %s51 = sphi 0, %s50
      %s65 = sphi 0, %s51
      %s69 = sphi 0, %s69
      %s71 = sphi 0, %s69
      %s72 = sphi 0, %s71
      %s86 = sphi 0, %s72
      %s92 = sphi 0, %s94
      %s95 = sphi 0, %s92
      %s96 = sphi 0, %s95
      %s112 = sphi 0, %s96
    $region4: #{tpu_custom_call.1} parent=1 // loop_header_branch
      %17 = sbr.rel (%p15) target = $region8
    $region5: #{tpu_custom_call.1} parent=1 // loop_body
      %s19 = ssub.s32 %s14, 1
      %s20 = ssub.s32 %s14, 2
      %s21 = sadd.s32 %s14, 1
      %s22 = ssub.s32 %s14, %s21
      %p23 = scmp.eq.s32.totalorder %s22, 0
      %s25 = sadd.s32 %s24, 1
      %s26 = scalar_select %p23, %s24, %s25
      %p29 = pneg %p23
      %p30 = scmp.eq.s32.totalorder %s14, 1
      %p31 = por %p29, %p30
      %p32 = scmp.ne.s32.totalorder %s24, %s27
      %p33 = scmp.eq.s32.totalorder %s14, 0
      %p34 = por %p32, %p33
      %p35 = scmp.ne.s32.totalorder %s24, %s27
      %p36 = scmp.eq.s32.totalorder %s19, 1
      %p37 = por %p35, %p36
      %p38 = scmp.ne.s32.totalorder %s27, %s28
      %p39 = scmp.eq.s32.totalorder %s19, 0
      %p40 = por %p38, %p39
      %p41 = scmp.ne.s32.totalorder %s27, %s28
      %p42 = scmp.eq.s32.totalorder %s20, 1
      %p43 = por %p41, %p42
      %p45 = scmp.ne.s32.totalorder %s28, %s44
      %p46 = scmp.eq.s32.totalorder %s20, 0
      %p47 = por %p45, %p46
      %s49 = sadd.s32 %s48, 1
      %p52 = scmp.eq.s32.totalorder %s14, 1
      %p53 = scmp.ne.s32.totalorder %s48, %s50
      %p54 = scmp.eq.s32.totalorder %s14, 0
      %p55 = por %p53, %p54
      %p56 = scmp.ne.s32.totalorder %s48, %s50
      %p57 = scmp.eq.s32.totalorder %s19, 1
      %p58 = por %p56, %p57
      %p59 = scmp.ne.s32.totalorder %s50, %s51
      %p60 = scmp.eq.s32.totalorder %s19, 0
      %p61 = por %p59, %p60
      %p62 = scmp.ne.s32.totalorder %s50, %s51
      %p63 = scmp.eq.s32.totalorder %s20, 1
      %p64 = por %p62, %p63
      %p66 = scmp.ne.s32.totalorder %s51, %s65
      %p67 = scmp.eq.s32.totalorder %s20, 0
      %p68 = por %p66, %p67
      %s70 = sadd.s32 %s69, 1
      %p73 = scmp.eq.s32.totalorder %s14, 1
      %p74 = scmp.ne.s32.totalorder %s69, %s71
      %p75 = scmp.eq.s32.totalorder %s14, 0
      %p76 = por %p74, %p75
      %p77 = scmp.ne.s32.totalorder %s69, %s71
      %p78 = scmp.eq.s32.totalorder %s19, 1
      %p79 = por %p77, %p78
      %p80 = scmp.ne.s32.totalorder %s71, %s72
      %p81 = scmp.eq.s32.totalorder %s19, 0
      %p82 = por %p80, %p81
      %p83 = scmp.ne.s32.totalorder %s71, %s72
      %p84 = scmp.eq.s32.totalorder %s20, 1
      %p85 = por %p83, %p84
      %p87 = scmp.ne.s32.totalorder %s72, %s86
      %p88 = scmp.eq.s32.totalorder %s20, 0
      %p89 = por %p87, %p88
      %s90 = ssub.s32 %s14, %s21
      %p91 = scmp.eq.s32.totalorder %s90, 0
      %s93 = sadd.s32 %s92, 1
      %s94 = scalar_select %p91, %s92, %s93
      %p97 = pneg %p91
      %p98 = scmp.eq.s32.totalorder %s14, 1
      %p99 = por %p97, %p98
      %p100 = scmp.ne.s32.totalorder %s92, %s95
      %p101 = scmp.eq.s32.totalorder %s14, 0
      %p102 = por %p100, %p101
      %p103 = scmp.ne.s32.totalorder %s92, %s95
      %p104 = scmp.eq.s32.totalorder %s19, 1
      %p105 = por %p103, %p104
      %p106 = scmp.ne.s32.totalorder %s95, %s96
      %p107 = scmp.eq.s32.totalorder %s19, 0
      %p108 = por %p106, %p107
      %p109 = scmp.ne.s32.totalorder %s95, %s96
      %p110 = scmp.eq.s32.totalorder %s20, 1
      %p111 = por %p109, %p110
      %p113 = scmp.ne.s32.totalorder %s96, %s112
      %p114 = scmp.eq.s32.totalorder %s20, 0
      %p115 = por %p113, %p114
      %p116 = scmp.le.s32.totalorder 1, %s14
      %p117 = scmp.lt.s32.totalorder %s14, 3
      %p118 = pnand %p116, %p117
      %p119 = pneg %p118
      // Predicated region
      $region9: #{tpu_custom_call.1} parent=5 // pred_check
        _
      $region10: #{tpu_custom_call.1} parent=5 // pred_check_branch
        %121 = sbr.rel (%p118) target = $region12
      $region11: #{tpu_custom_call.1} parent=5 // pred_region
        %s122 = ssub.s32 %s14, 1
        // Predicated region
        $region13: #{tpu_custom_call.1} parent=11 // pred_check
          %p123 = pneg %p61
        $region14: #{tpu_custom_call.1} parent=11 // pred_check_branch
          %125 = sbr.rel (%p123) target = $region16
        $region15: #{tpu_custom_call.1} parent=11 // pred_region
          %s127 = ssub.s32 32, 32
          %128 = vsyncadd [#allocation6], %s127
          %s130 = sshll.u32 [#allocation5], 4
          %s131 = int_to_ptr.vmem [resolvable:$true] %s130
          %133 = dma.hbm_to_vmem [thread:$0]  %s1, 32, %s131, [#allocation6]
        $region16: #{tpu_custom_call.1} parent=11 // pred_fallthru
          _
        // Predicated region
        $region17: #{tpu_custom_call.1} parent=11 // pred_check
          %p134 = pneg %p82
        $region18: #{tpu_custom_call.1} parent=11 // pred_check_branch
          %136 = sbr.rel (%p134) target = $region20
        $region19: #{tpu_custom_call.1} parent=11 // pred_region
          _
        $region20: #{tpu_custom_call.1} parent=11 // pred_fallthru
          _
      $region12: #{tpu_custom_call.1} parent=5 // pred_fallthru
        _
      %p137 = scmp.lt.s32.totalorder %s14, 2
      // Predicated region
      $region21: #{tpu_custom_call.1} parent=5 // pred_check
        %p138 = pneg %p137
      $region22: #{tpu_custom_call.1} parent=5 // pred_check_branch
        %140 = sbr.rel (%p138) target = $region24
      $region23: #{tpu_custom_call.1} parent=5 // pred_region
        // Predicated region
        $region25: #{tpu_custom_call.1} parent=23 // pred_check
          %p141 = pneg %p34
        $region26: #{tpu_custom_call.1} parent=23 // pred_check_branch
          %143 = sbr.rel (%p141) target = $region28
        $region27: #{tpu_custom_call.1} parent=23 // pred_region
          %s144 = sand.u32 %s24, 1
          %s145 = scalar_lea.sflag [#allocation4], %s144
          %s146 = sand.u32 %s24, 1
          %s147 = smul.addr %s146, 4096
          %s148 = scalar_lea.vmem [#allocation3], %s147
          %s149 = smul.u32 8, %s14
          %s151 = ssub.s32 65536, 65536
          %152 = vsyncadd %s145, %s151
          %s153 = smul.addr %s149, 64
          %s154 = smul.addr %s153, 128
          %s155 = scalar_lea.hbm %s0, %s154
          %s156 = sshll.u32 %s148, 4
          %s157 = int_to_ptr.vmem [resolvable:$true] %s156
          %162 = dma.hbm_to_vmem [thread:$0]  %s155, 65536, %s157, %s145, 256, 256, 16
        $region28: #{tpu_custom_call.1} parent=23 // pred_fallthru
          _
      $region24: #{tpu_custom_call.1} parent=5 // pred_fallthru
        _
      %p163 = scmp.le.s32.totalorder 1, %s14
      %p164 = scmp.lt.s32.totalorder %s14, 3
      %p165 = pnand %p163, %p164
      %p166 = pneg %p165
      // Predicated region
      $region29: #{tpu_custom_call.1} parent=5 // pred_check
        _
      $region30: #{tpu_custom_call.1} parent=5 // pred_check_branch
        %168 = sbr.rel (%p165) target = $region32
      $region31: #{tpu_custom_call.1} parent=5 // pred_region
        %s169 = ssub.s32 %s14, 1
        %s170 = sand.u32 %s27, 1
        %s171 = scalar_lea.sflag [#allocation4], %s170
        %s172 = sand.u32 %s27, 1
        %s173 = smul.addr %s172, 4096
        %s174 = scalar_lea.vmem [#allocation3], %s173
        // Predicated region
        $region33: #{tpu_custom_call.1} parent=31 // pred_check
          %p175 = pneg %p40
        $region34: #{tpu_custom_call.1} parent=31 // pred_check_branch
          %177 = sbr.rel (%p175) target = $region36
        $region35: #{tpu_custom_call.1} parent=31 // pred_region
          %178 = dma.done %s171, 65536
        $region36: #{tpu_custom_call.1} parent=31 // pred_fallthru
          _
        // Predicated region
        $region37: #{tpu_custom_call.1} parent=31 // pred_check
          %p179 = pneg %p61
        $region38: #{tpu_custom_call.1} parent=31 // pred_check_branch
          %181 = sbr.rel (%p179) target = $region40
        $region39: #{tpu_custom_call.1} parent=31 // pred_region
          %182 = dma.done [#allocation6], 32
        $region40: #{tpu_custom_call.1} parent=31 // pred_fallthru
          _
        %s183 = sand.u32 %s27, 1
        %s184 = scalar_lea.sflag [#allocation4], %s183
        %s185 = sand.u32 %s27, 1
        %s186 = smul.addr %s185, 4096
        %s187 = scalar_lea.vmem [#allocation3], %s186
        %p188 = pneg %p40
        %p189 = pneg %p37
        %p190 = pneg %p61
        %p191 = pneg %p58
        %p192 = pneg %p82
        %p193 = pneg %p79
        %p194 = pneg %p108
        %p195 = pneg %p105
        %p196 = scmp.lt.s32.totalorder %s19, 1
        %s197 = scalar_select %p196, %s19, 1
        %s198 = smul.addr %s197, 8
        %s199 = scalar_lea.vmem %s3, %s198
        %s200 = smul.u32 8, %s19
        %p201 = scmp.lt.s32.totalorder %s19, 1
        %s202 = scalar_select %p201, %s19, 1
        %s203 = smul.addr %s202, 8
        %s204 = scalar_lea.vmem %s3, %s203
        %v205 = vld [vmem:[%s174] sm:$0xff]
        %v206 = vld [vmem:[%s174 + $0x8] sm:$0xff]
        %v207 = vld [vmem:[%s174 + $0x10] sm:$0xff]
        %v208 = vld [vmem:[%s174 + $0x18] sm:$0xff]
        %v209 = vld [vmem:[%s174 + $0x20] sm:$0xff]
        %v210 = vld [vmem:[%s174 + $0x28] sm:$0xff]
        %v211 = vld [vmem:[%s174 + $0x30] sm:$0xff]
        %v212 = vld [vmem:[%s174 + $0x38] sm:$0xff]
        %v213 = vld [vmem:[%s174 + $0x40] sm:$0xff]
        %v214 = vld [vmem:[%s174 + $0x48] sm:$0xff]
        %v215 = vld [vmem:[%s174 + $0x50] sm:$0xff]
        %v216 = vld [vmem:[%s174 + $0x58] sm:$0xff]
        %v217 = vld [vmem:[%s174 + $0x60] sm:$0xff]
        %v218 = vld [vmem:[%s174 + $0x68] sm:$0xff]
        %v219 = vld [vmem:[%s174 + $0x70] sm:$0xff]
        %v220 = vld [vmem:[%s174 + $0x78] sm:$0xff]
        %v221 = vld [vmem:[%s174 + $0x80] sm:$0xff]
        %v222 = vld [vmem:[%s174 + $0x88] sm:$0xff]
        %v223 = vld [vmem:[%s174 + $0x90] sm:$0xff]
        %v224 = vld [vmem:[%s174 + $0x98] sm:$0xff]
        %v225 = vld [vmem:[%s174 + $0xa0] sm:$0xff]
        %v226 = vld [vmem:[%s174 + $0xa8] sm:$0xff]
        %v227 = vld [vmem:[%s174 + $0xb0] sm:$0xff]
        %v228 = vld [vmem:[%s174 + $0xb8] sm:$0xff]
        %v229 = vld [vmem:[%s174 + $0xc0] sm:$0xff]
        %v230 = vld [vmem:[%s174 + $0xc8] sm:$0xff]
        %v231 = vld [vmem:[%s174 + $0xd0] sm:$0xff]
        %v232 = vld [vmem:[%s174 + $0xd8] sm:$0xff]
        %v233 = vld [vmem:[%s174 + $0xe0] sm:$0xff]
        %v234 = vld [vmem:[%s174 + $0xe8] sm:$0xff]
        %v235 = vld [vmem:[%s174 + $0xf0] sm:$0xff]
        %v236 = vld [vmem:[%s174 + $0xf8] sm:$0xff]
        %v237 = vld [vmem:[%s174 + $0x100] sm:$0xff]
        %v238 = vld [vmem:[%s174 + $0x108] sm:$0xff]
        %v239 = vld [vmem:[%s174 + $0x110] sm:$0xff]
        %v240 = vld [vmem:[%s174 + $0x118] sm:$0xff]
        %v241 = vld [vmem:[%s174 + $0x120] sm:$0xff]
        %v242 = vld [vmem:[%s174 + $0x128] sm:$0xff]
        %v243 = vld [vmem:[%s174 + $0x130] sm:$0xff]
        %v244 = vld [vmem:[%s174 + $0x138] sm:$0xff]
        %v245 = vld [vmem:[%s174 + $0x140] sm:$0xff]
        %v246 = vld [vmem:[%s174 + $0x148] sm:$0xff]
        %v247 = vld [vmem:[%s174 + $0x150] sm:$0xff]
        %v248 = vld [vmem:[%s174 + $0x158] sm:$0xff]
        %v249 = vld [vmem:[%s174 + $0x160] sm:$0xff]
        %v250 = vld [vmem:[%s174 + $0x168] sm:$0xff]
        %v251 = vld [vmem:[%s174 + $0x170] sm:$0xff]
        %v252 = vld [vmem:[%s174 + $0x178] sm:$0xff]
        %v253 = vld [vmem:[%s174 + $0x180] sm:$0xff]
        %v254 = vld [vmem:[%s174 + $0x188] sm:$0xff]
        %v255 = vld [vmem:[%s174 + $0x190] sm:$0xff]
        %v256 = vld [vmem:[%s174 + $0x198] sm:$0xff]
        %v257 = vld [vmem:[%s174 + $0x1a0] sm:$0xff]
        %v258 = vld [vmem:[%s174 + $0x1a8] sm:$0xff]
        %v259 = vld [vmem:[%s174 + $0x1b0] sm:$0xff]
        %v260 = vld [vmem:[%s174 + $0x1b8] sm:$0xff]
        %v261 = vld [vmem:[%s174 + $0x1c0] sm:$0xff]
        %v262 = vld [vmem:[%s174 + $0x1c8] sm:$0xff]
        %v263 = vld [vmem:[%s174 + $0x1d0] sm:$0xff]
        %v264 = vld [vmem:[%s174 + $0x1d8] sm:$0xff]
        %v265 = vld [vmem:[%s174 + $0x1e0] sm:$0xff]
        %v266 = vld [vmem:[%s174 + $0x1e8] sm:$0xff]
        %v267 = vld [vmem:[%s174 + $0x1f0] sm:$0xff]
        %v268 = vld [vmem:[%s174 + $0x1f8] sm:$0xff]
        %v269 = vld [vmem:[%s174 + $0x200] sm:$0xff]
        %v270 = vld [vmem:[%s174 + $0x208] sm:$0xff]
        %v271 = vld [vmem:[%s174 + $0x210] sm:$0xff]
        %v272 = vld [vmem:[%s174 + $0x218] sm:$0xff]
        %v273 = vld [vmem:[%s174 + $0x220] sm:$0xff]
        %v274 = vld [vmem:[%s174 + $0x228] sm:$0xff]
        %v275 = vld [vmem:[%s174 + $0x230] sm:$0xff]
        %v276 = vld [vmem:[%s174 + $0x238] sm:$0xff]
        %v277 = vld [vmem:[%s174 + $0x240] sm:$0xff]
        %v278 = vld [vmem:[%s174 + $0x248] sm:$0xff]
        %v279 = vld [vmem:[%s174 + $0x250] sm:$0xff]
        %v280 = vld [vmem:[%s174 + $0x258] sm:$0xff]
        %v281 = vld [vmem:[%s174 + $0x260] sm:$0xff]
        %v282 = vld [vmem:[%s174 + $0x268] sm:$0xff]
        %v283 = vld [vmem:[%s174 + $0x270] sm:$0xff]
        %v284 = vld [vmem:[%s174 + $0x278] sm:$0xff]
        %v285 = vld [vmem:[%s174 + $0x280] sm:$0xff]
        %v286 = vld [vmem:[%s174 + $0x288] sm:$0xff]
        %v287 = vld [vmem:[%s174 + $0x290] sm:$0xff]
        %v288 = vld [vmem:[%s174 + $0x298] sm:$0xff]
        %v289 = vld [vmem:[%s174 + $0x2a0] sm:$0xff]
        %v290 = vld [vmem:[%s174 + $0x2a8] sm:$0xff]
        %v291 = vld [vmem:[%s174 + $0x2b0] sm:$0xff]
        %v292 = vld [vmem:[%s174 + $0x2b8] sm:$0xff]
        %v293 = vld [vmem:[%s174 + $0x2c0] sm:$0xff]
        %v294 = vld [vmem:[%s174 + $0x2c8] sm:$0xff]
        %v295 = vld [vmem:[%s174 + $0x2d0] sm:$0xff]
        %v296 = vld [vmem:[%s174 + $0x2d8] sm:$0xff]
        %v297 = vld [vmem:[%s174 + $0x2e0] sm:$0xff]
        %v298 = vld [vmem:[%s174 + $0x2e8] sm:$0xff]
        %v299 = vld [vmem:[%s174 + $0x2f0] sm:$0xff]
        %v300 = vld [vmem:[%s174 + $0x2f8] sm:$0xff]
        %v301 = vld [vmem:[%s174 + $0x300] sm:$0xff]
        %v302 = vld [vmem:[%s174 + $0x308] sm:$0xff]
        %v303 = vld [vmem:[%s174 + $0x310] sm:$0xff]
        %v304 = vld [vmem:[%s174 + $0x318] sm:$0xff]
        %v305 = vld [vmem:[%s174 + $0x320] sm:$0xff]
        %v306 = vld [vmem:[%s174 + $0x328] sm:$0xff]
        %v307 = vld [vmem:[%s174 + $0x330] sm:$0xff]
        %v308 = vld [vmem:[%s174 + $0x338] sm:$0xff]
        %v309 = vld [vmem:[%s174 + $0x340] sm:$0xff]
        %v310 = vld [vmem:[%s174 + $0x348] sm:$0xff]
        %v311 = vld [vmem:[%s174 + $0x350] sm:$0xff]
        %v312 = vld [vmem:[%s174 + $0x358] sm:$0xff]
        %v313 = vld [vmem:[%s174 + $0x360] sm:$0xff]
        %v314 = vld [vmem:[%s174 + $0x368] sm:$0xff]
        %v315 = vld [vmem:[%s174 + $0x370] sm:$0xff]
        %v316 = vld [vmem:[%s174 + $0x378] sm:$0xff]
        %v317 = vld [vmem:[%s174 + $0x380] sm:$0xff]
        %v318 = vld [vmem:[%s174 + $0x388] sm:$0xff]
        %v319 = vld [vmem:[%s174 + $0x390] sm:$0xff]
        %v320 = vld [vmem:[%s174 + $0x398] sm:$0xff]
        %v321 = vld [vmem:[%s174 + $0x3a0] sm:$0xff]
        %v322 = vld [vmem:[%s174 + $0x3a8] sm:$0xff]
        %v323 = vld [vmem:[%s174 + $0x3b0] sm:$0xff]
        %v324 = vld [vmem:[%s174 + $0x3b8] sm:$0xff]
        %v325 = vld [vmem:[%s174 + $0x3c0] sm:$0xff]
        %v326 = vld [vmem:[%s174 + $0x3c8] sm:$0xff]
        %v327 = vld [vmem:[%s174 + $0x3d0] sm:$0xff]
        %v328 = vld [vmem:[%s174 + $0x3d8] sm:$0xff]
        %v329 = vld [vmem:[%s174 + $0x3e0] sm:$0xff]
        %v330 = vld [vmem:[%s174 + $0x3e8] sm:$0xff]
        %v331 = vld [vmem:[%s174 + $0x3f0] sm:$0xff]
        %v332 = vld [vmem:[%s174 + $0x3f8] sm:$0xff]
        %v333 = vld [vmem:[%s174 + $0x400] sm:$0xff]
        %v334 = vld [vmem:[%s174 + $0x408] sm:$0xff]
        %v335 = vld [vmem:[%s174 + $0x410] sm:$0xff]
        %v336 = vld [vmem:[%s174 + $0x418] sm:$0xff]
        %v337 = vld [vmem:[%s174 + $0x420] sm:$0xff]
        %v338 = vld [vmem:[%s174 + $0x428] sm:$0xff]
        %v339 = vld [vmem:[%s174 + $0x430] sm:$0xff]
        %v340 = vld [vmem:[%s174 + $0x438] sm:$0xff]
        %v341 = vld [vmem:[%s174 + $0x440] sm:$0xff]
        %v342 = vld [vmem:[%s174 + $0x448] sm:$0xff]
        %v343 = vld [vmem:[%s174 + $0x450] sm:$0xff]
        %v344 = vld [vmem:[%s174 + $0x458] sm:$0xff]
        %v345 = vld [vmem:[%s174 + $0x460] sm:$0xff]
        %v346 = vld [vmem:[%s174 + $0x468] sm:$0xff]
        %v347 = vld [vmem:[%s174 + $0x470] sm:$0xff]
        %v348 = vld [vmem:[%s174 + $0x478] sm:$0xff]
        %v349 = vld [vmem:[%s174 + $0x480] sm:$0xff]
        %v350 = vld [vmem:[%s174 + $0x488] sm:$0xff]
        %v351 = vld [vmem:[%s174 + $0x490] sm:$0xff]
        %v352 = vld [vmem:[%s174 + $0x498] sm:$0xff]
        %v353 = vld [vmem:[%s174 + $0x4a0] sm:$0xff]
        %v354 = vld [vmem:[%s174 + $0x4a8] sm:$0xff]
        %v355 = vld [vmem:[%s174 + $0x4b0] sm:$0xff]
        %v356 = vld [vmem:[%s174 + $0x4b8] sm:$0xff]
        %v357 = vld [vmem:[%s174 + $0x4c0] sm:$0xff]
        %v358 = vld [vmem:[%s174 + $0x4c8] sm:$0xff]
        %v359 = vld [vmem:[%s174 + $0x4d0] sm:$0xff]
        %v360 = vld [vmem:[%s174 + $0x4d8] sm:$0xff]
        %v361 = vld [vmem:[%s174 + $0x4e0] sm:$0xff]
        %v362 = vld [vmem:[%s174 + $0x4e8] sm:$0xff]
        %v363 = vld [vmem:[%s174 + $0x4f0] sm:$0xff]
        %v364 = vld [vmem:[%s174 + $0x4f8] sm:$0xff]
        %v365 = vld [vmem:[%s174 + $0x500] sm:$0xff]
        %v366 = vld [vmem:[%s174 + $0x508] sm:$0xff]
        %v367 = vld [vmem:[%s174 + $0x510] sm:$0xff]
        %v368 = vld [vmem:[%s174 + $0x518] sm:$0xff]
        %v369 = vld [vmem:[%s174 + $0x520] sm:$0xff]
        %v370 = vld [vmem:[%s174 + $0x528] sm:$0xff]
        %v371 = vld [vmem:[%s174 + $0x530] sm:$0xff]
        %v372 = vld [vmem:[%s174 + $0x538] sm:$0xff]
        %v373 = vld [vmem:[%s174 + $0x540] sm:$0xff]
        %v374 = vld [vmem:[%s174 + $0x548] sm:$0xff]
        %v375 = vld [vmem:[%s174 + $0x550] sm:$0xff]
        %v376 = vld [vmem:[%s174 + $0x558] sm:$0xff]
        %v377 = vld [vmem:[%s174 + $0x560] sm:$0xff]
        %v378 = vld [vmem:[%s174 + $0x568] sm:$0xff]
        %v379 = vld [vmem:[%s174 + $0x570] sm:$0xff]
        %v380 = vld [vmem:[%s174 + $0x578] sm:$0xff]
        %v381 = vld [vmem:[%s174 + $0x580] sm:$0xff]
        %v382 = vld [vmem:[%s174 + $0x588] sm:$0xff]
        %v383 = vld [vmem:[%s174 + $0x590] sm:$0xff]
        %v384 = vld [vmem:[%s174 + $0x598] sm:$0xff]
        %v385 = vld [vmem:[%s174 + $0x5a0] sm:$0xff]
        %v386 = vld [vmem:[%s174 + $0x5a8] sm:$0xff]
        %v387 = vld [vmem:[%s174 + $0x5b0] sm:$0xff]
        %v388 = vld [vmem:[%s174 + $0x5b8] sm:$0xff]
        %v389 = vld [vmem:[%s174 + $0x5c0] sm:$0xff]
        %v390 = vld [vmem:[%s174 + $0x5c8] sm:$0xff]
        %v391 = vld [vmem:[%s174 + $0x5d0] sm:$0xff]
        %v392 = vld [vmem:[%s174 + $0x5d8] sm:$0xff]
        %v393 = vld [vmem:[%s174 + $0x5e0] sm:$0xff]
        %v394 = vld [vmem:[%s174 + $0x5e8] sm:$0xff]
        %v395 = vld [vmem:[%s174 + $0x5f0] sm:$0xff]
        %v396 = vld [vmem:[%s174 + $0x5f8] sm:$0xff]
        %v397 = vld [vmem:[%s174 + $0x600] sm:$0xff]
        %v398 = vld [vmem:[%s174 + $0x608] sm:$0xff]
        %v399 = vld [vmem:[%s174 + $0x610] sm:$0xff]
        %v400 = vld [vmem:[%s174 + $0x618] sm:$0xff]
        %v401 = vld [vmem:[%s174 + $0x620] sm:$0xff]
        %v402 = vld [vmem:[%s174 + $0x628] sm:$0xff]
        %v403 = vld [vmem:[%s174 + $0x630] sm:$0xff]
        %v404 = vld [vmem:[%s174 + $0x638] sm:$0xff]
        %v405 = vld [vmem:[%s174 + $0x640] sm:$0xff]
        %v406 = vld [vmem:[%s174 + $0x648] sm:$0xff]
        %v407 = vld [vmem:[%s174 + $0x650] sm:$0xff]
        %v408 = vld [vmem:[%s174 + $0x658] sm:$0xff]
        %v409 = vld [vmem:[%s174 + $0x660] sm:$0xff]
        %v410 = vld [vmem:[%s174 + $0x668] sm:$0xff]
        %v411 = vld [vmem:[%s174 + $0x670] sm:$0xff]
        %v412 = vld [vmem:[%s174 + $0x678] sm:$0xff]
        %v413 = vld [vmem:[%s174 + $0x680] sm:$0xff]
        %v414 = vld [vmem:[%s174 + $0x688] sm:$0xff]
        %v415 = vld [vmem:[%s174 + $0x690] sm:$0xff]
        %v416 = vld [vmem:[%s174 + $0x698] sm:$0xff]
        %v417 = vld [vmem:[%s174 + $0x6a0] sm:$0xff]
        %v418 = vld [vmem:[%s174 + $0x6a8] sm:$0xff]
        %v419 = vld [vmem:[%s174 + $0x6b0] sm:$0xff]
        %v420 = vld [vmem:[%s174 + $0x6b8] sm:$0xff]
        %v421 = vld [vmem:[%s174 + $0x6c0] sm:$0xff]
        %v422 = vld [vmem:[%s174 + $0x6c8] sm:$0xff]
        %v423 = vld [vmem:[%s174 + $0x6d0] sm:$0xff]
        %v424 = vld [vmem:[%s174 + $0x6d8] sm:$0xff]
        %v425 = vld [vmem:[%s174 + $0x6e0] sm:$0xff]
        %v426 = vld [vmem:[%s174 + $0x6e8] sm:$0xff]
        %v427 = vld [vmem:[%s174 + $0x6f0] sm:$0xff]
        %v428 = vld [vmem:[%s174 + $0x6f8] sm:$0xff]
        %v429 = vld [vmem:[%s174 + $0x700] sm:$0xff]
        %v430 = vld [vmem:[%s174 + $0x708] sm:$0xff]
        %v431 = vld [vmem:[%s174 + $0x710] sm:$0xff]
        %v432 = vld [vmem:[%s174 + $0x718] sm:$0xff]
        %v433 = vld [vmem:[%s174 + $0x720] sm:$0xff]
        %v434 = vld [vmem:[%s174 + $0x728] sm:$0xff]
        %v435 = vld [vmem:[%s174 + $0x730] sm:$0xff]
        %v436 = vld [vmem:[%s174 + $0x738] sm:$0xff]
        %v437 = vld [vmem:[%s174 + $0x740] sm:$0xff]
        %v438 = vld [vmem:[%s174 + $0x748] sm:$0xff]
        %v439 = vld [vmem:[%s174 + $0x750] sm:$0xff]
        %v440 = vld [vmem:[%s174 + $0x758] sm:$0xff]
        %v441 = vld [vmem:[%s174 + $0x760] sm:$0xff]
        %v442 = vld [vmem:[%s174 + $0x768] sm:$0xff]
        %v443 = vld [vmem:[%s174 + $0x770] sm:$0xff]
        %v444 = vld [vmem:[%s174 + $0x778] sm:$0xff]
        %v445 = vld [vmem:[%s174 + $0x780] sm:$0xff]
        %v446 = vld [vmem:[%s174 + $0x788] sm:$0xff]
        %v447 = vld [vmem:[%s174 + $0x790] sm:$0xff]
        %v448 = vld [vmem:[%s174 + $0x798] sm:$0xff]
        %v449 = vld [vmem:[%s174 + $0x7a0] sm:$0xff]
        %v450 = vld [vmem:[%s174 + $0x7a8] sm:$0xff]
        %v451 = vld [vmem:[%s174 + $0x7b0] sm:$0xff]
        %v452 = vld [vmem:[%s174 + $0x7b8] sm:$0xff]
        %v453 = vld [vmem:[%s174 + $0x7c0] sm:$0xff]
        %v454 = vld [vmem:[%s174 + $0x7c8] sm:$0xff]
        %v455 = vld [vmem:[%s174 + $0x7d0] sm:$0xff]
        %v456 = vld [vmem:[%s174 + $0x7d8] sm:$0xff]
        %v457 = vld [vmem:[%s174 + $0x7e0] sm:$0xff]
        %v458 = vld [vmem:[%s174 + $0x7e8] sm:$0xff]
        %v459 = vld [vmem:[%s174 + $0x7f0] sm:$0xff]
        %v460 = vld [vmem:[%s174 + $0x7f8] sm:$0xff]
        %v461 = vld [vmem:[%s174 + $0x800] sm:$0xff]
        %v462 = vld [vmem:[%s174 + $0x808] sm:$0xff]
        %v463 = vld [vmem:[%s174 + $0x810] sm:$0xff]
        %v464 = vld [vmem:[%s174 + $0x818] sm:$0xff]
        %v465 = vld [vmem:[%s174 + $0x820] sm:$0xff]
        %v466 = vld [vmem:[%s174 + $0x828] sm:$0xff]
        %v467 = vld [vmem:[%s174 + $0x830] sm:$0xff]
        %v468 = vld [vmem:[%s174 + $0x838] sm:$0xff]
        %v469 = vld [vmem:[%s174 + $0x840] sm:$0xff]
        %v470 = vld [vmem:[%s174 + $0x848] sm:$0xff]
        %v471 = vld [vmem:[%s174 + $0x850] sm:$0xff]
        %v472 = vld [vmem:[%s174 + $0x858] sm:$0xff]
        %v473 = vld [vmem:[%s174 + $0x860] sm:$0xff]
        %v474 = vld [vmem:[%s174 + $0x868] sm:$0xff]
        %v475 = vld [vmem:[%s174 + $0x870] sm:$0xff]
        %v476 = vld [vmem:[%s174 + $0x878] sm:$0xff]
        %v477 = vld [vmem:[%s174 + $0x880] sm:$0xff]
        %v478 = vld [vmem:[%s174 + $0x888] sm:$0xff]
        %v479 = vld [vmem:[%s174 + $0x890] sm:$0xff]
        %v480 = vld [vmem:[%s174 + $0x898] sm:$0xff]
        %v481 = vld [vmem:[%s174 + $0x8a0] sm:$0xff]
        %v482 = vld [vmem:[%s174 + $0x8a8] sm:$0xff]
        %v483 = vld [vmem:[%s174 + $0x8b0] sm:$0xff]
        %v484 = vld [vmem:[%s174 + $0x8b8] sm:$0xff]
        %v485 = vld [vmem:[%s174 + $0x8c0] sm:$0xff]
        %v486 = vld [vmem:[%s174 + $0x8c8] sm:$0xff]
        %v487 = vld [vmem:[%s174 + $0x8d0] sm:$0xff]
        %v488 = vld [vmem:[%s174 + $0x8d8] sm:$0xff]
        %v489 = vld [vmem:[%s174 + $0x8e0] sm:$0xff]
        %v490 = vld [vmem:[%s174 + $0x8e8] sm:$0xff]
        %v491 = vld [vmem:[%s174 + $0x8f0] sm:$0xff]
        %v492 = vld [vmem:[%s174 + $0x8f8] sm:$0xff]
        %v493 = vld [vmem:[%s174 + $0x900] sm:$0xff]
        %v494 = vld [vmem:[%s174 + $0x908] sm:$0xff]
        %v495 = vld [vmem:[%s174 + $0x910] sm:$0xff]
        %v496 = vld [vmem:[%s174 + $0x918] sm:$0xff]
        %v497 = vld [vmem:[%s174 + $0x920] sm:$0xff]
        %v498 = vld [vmem:[%s174 + $0x928] sm:$0xff]
        %v499 = vld [vmem:[%s174 + $0x930] sm:$0xff]
        %v500 = vld [vmem:[%s174 + $0x938] sm:$0xff]
        %v501 = vld [vmem:[%s174 + $0x940] sm:$0xff]
        %v502 = vld [vmem:[%s174 + $0x948] sm:$0xff]
        %v503 = vld [vmem:[%s174 + $0x950] sm:$0xff]
        %v504 = vld [vmem:[%s174 + $0x958] sm:$0xff]
        %v505 = vld [vmem:[%s174 + $0x960] sm:$0xff]
        %v506 = vld [vmem:[%s174 + $0x968] sm:$0xff]
        %v507 = vld [vmem:[%s174 + $0x970] sm:$0xff]
        %v508 = vld [vmem:[%s174 + $0x978] sm:$0xff]
        %v509 = vld [vmem:[%s174 + $0x980] sm:$0xff]
        %v510 = vld [vmem:[%s174 + $0x988] sm:$0xff]
        %v511 = vld [vmem:[%s174 + $0x990] sm:$0xff]
        %v512 = vld [vmem:[%s174 + $0x998] sm:$0xff]
        %v513 = vld [vmem:[%s174 + $0x9a0] sm:$0xff]
        %v514 = vld [vmem:[%s174 + $0x9a8] sm:$0xff]
        %v515 = vld [vmem:[%s174 + $0x9b0] sm:$0xff]
        %v516 = vld [vmem:[%s174 + $0x9b8] sm:$0xff]
        %v517 = vld [vmem:[%s174 + $0x9c0] sm:$0xff]
        %v518 = vld [vmem:[%s174 + $0x9c8] sm:$0xff]
        %v519 = vld [vmem:[%s174 + $0x9d0] sm:$0xff]
        %v520 = vld [vmem:[%s174 + $0x9d8] sm:$0xff]
        %v521 = vld [vmem:[%s174 + $0x9e0] sm:$0xff]
        %v522 = vld [vmem:[%s174 + $0x9e8] sm:$0xff]
        %v523 = vld [vmem:[%s174 + $0x9f0] sm:$0xff]
        %v524 = vld [vmem:[%s174 + $0x9f8] sm:$0xff]
        %v525 = vld [vmem:[%s174 + $0xa00] sm:$0xff]
        %v526 = vld [vmem:[%s174 + $0xa08] sm:$0xff]
        %v527 = vld [vmem:[%s174 + $0xa10] sm:$0xff]
        %v528 = vld [vmem:[%s174 + $0xa18] sm:$0xff]
        %v529 = vld [vmem:[%s174 + $0xa20] sm:$0xff]
        %v530 = vld [vmem:[%s174 + $0xa28] sm:$0xff]
        %v531 = vld [vmem:[%s174 + $0xa30] sm:$0xff]
        %v532 = vld [vmem:[%s174 + $0xa38] sm:$0xff]
        %v533 = vld [vmem:[%s174 + $0xa40] sm:$0xff]
        %v534 = vld [vmem:[%s174 + $0xa48] sm:$0xff]
        %v535 = vld [vmem:[%s174 + $0xa50] sm:$0xff]
        %v536 = vld [vmem:[%s174 + $0xa58] sm:$0xff]
        %v537 = vld [vmem:[%s174 + $0xa60] sm:$0xff]
        %v538 = vld [vmem:[%s174 + $0xa68] sm:$0xff]
        %v539 = vld [vmem:[%s174 + $0xa70] sm:$0xff]
        %v540 = vld [vmem:[%s174 + $0xa78] sm:$0xff]
        %v541 = vld [vmem:[%s174 + $0xa80] sm:$0xff]
        %v542 = vld [vmem:[%s174 + $0xa88] sm:$0xff]
        %v543 = vld [vmem:[%s174 + $0xa90] sm:$0xff]
        %v544 = vld [vmem:[%s174 + $0xa98] sm:$0xff]
        %v545 = vld [vmem:[%s174 + $0xaa0] sm:$0xff]
        %v546 = vld [vmem:[%s174 + $0xaa8] sm:$0xff]
        %v547 = vld [vmem:[%s174 + $0xab0] sm:$0xff]
        %v548 = vld [vmem:[%s174 + $0xab8] sm:$0xff]
        %v549 = vld [vmem:[%s174 + $0xac0] sm:$0xff]
        %v550 = vld [vmem:[%s174 + $0xac8] sm:$0xff]
        %v551 = vld [vmem:[%s174 + $0xad0] sm:$0xff]
        %v552 = vld [vmem:[%s174 + $0xad8] sm:$0xff]
        %v553 = vld [vmem:[%s174 + $0xae0] sm:$0xff]
        %v554 = vld [vmem:[%s174 + $0xae8] sm:$0xff]
        %v555 = vld [vmem:[%s174 + $0xaf0] sm:$0xff]
        %v556 = vld [vmem:[%s174 + $0xaf8] sm:$0xff]
        %v557 = vld [vmem:[%s174 + $0xb00] sm:$0xff]
        %v558 = vld [vmem:[%s174 + $0xb08] sm:$0xff]
        %v559 = vld [vmem:[%s174 + $0xb10] sm:$0xff]
        %v560 = vld [vmem:[%s174 + $0xb18] sm:$0xff]
        %v561 = vld [vmem:[%s174 + $0xb20] sm:$0xff]
        %v562 = vld [vmem:[%s174 + $0xb28] sm:$0xff]
        %v563 = vld [vmem:[%s174 + $0xb30] sm:$0xff]
        %v564 = vld [vmem:[%s174 + $0xb38] sm:$0xff]
        %v565 = vld [vmem:[%s174 + $0xb40] sm:$0xff]
        %v566 = vld [vmem:[%s174 + $0xb48] sm:$0xff]
        %v567 = vld [vmem:[%s174 + $0xb50] sm:$0xff]
        %v568 = vld [vmem:[%s174 + $0xb58] sm:$0xff]
        %v569 = vld [vmem:[%s174 + $0xb60] sm:$0xff]
        %v570 = vld [vmem:[%s174 + $0xb68] sm:$0xff]
        %v571 = vld [vmem:[%s174 + $0xb70] sm:$0xff]
        %v572 = vld [vmem:[%s174 + $0xb78] sm:$0xff]
        %v573 = vld [vmem:[%s174 + $0xb80] sm:$0xff]
        %v574 = vld [vmem:[%s174 + $0xb88] sm:$0xff]
        %v575 = vld [vmem:[%s174 + $0xb90] sm:$0xff]
        %v576 = vld [vmem:[%s174 + $0xb98] sm:$0xff]
        %v577 = vld [vmem:[%s174 + $0xba0] sm:$0xff]
        %v578 = vld [vmem:[%s174 + $0xba8] sm:$0xff]
        %v579 = vld [vmem:[%s174 + $0xbb0] sm:$0xff]
        %v580 = vld [vmem:[%s174 + $0xbb8] sm:$0xff]
        %v581 = vld [vmem:[%s174 + $0xbc0] sm:$0xff]
        %v582 = vld [vmem:[%s174 + $0xbc8] sm:$0xff]
        %v583 = vld [vmem:[%s174 + $0xbd0] sm:$0xff]
        %v584 = vld [vmem:[%s174 + $0xbd8] sm:$0xff]
        %v585 = vld [vmem:[%s174 + $0xbe0] sm:$0xff]
        %v586 = vld [vmem:[%s174 + $0xbe8] sm:$0xff]
        %v587 = vld [vmem:[%s174 + $0xbf0] sm:$0xff]
        %v588 = vld [vmem:[%s174 + $0xbf8] sm:$0xff]
        %v589 = vld [vmem:[%s174 + $0xc00] sm:$0xff]
        %v590 = vld [vmem:[%s174 + $0xc08] sm:$0xff]
        %v591 = vld [vmem:[%s174 + $0xc10] sm:$0xff]
        %v592 = vld [vmem:[%s174 + $0xc18] sm:$0xff]
        %v593 = vld [vmem:[%s174 + $0xc20] sm:$0xff]
        %v594 = vld [vmem:[%s174 + $0xc28] sm:$0xff]
        %v595 = vld [vmem:[%s174 + $0xc30] sm:$0xff]
        %v596 = vld [vmem:[%s174 + $0xc38] sm:$0xff]
        %v597 = vld [vmem:[%s174 + $0xc40] sm:$0xff]
        %v598 = vld [vmem:[%s174 + $0xc48] sm:$0xff]
        %v599 = vld [vmem:[%s174 + $0xc50] sm:$0xff]
        %v600 = vld [vmem:[%s174 + $0xc58] sm:$0xff]
        %v601 = vld [vmem:[%s174 + $0xc60] sm:$0xff]
        %v602 = vld [vmem:[%s174 + $0xc68] sm:$0xff]
        %v603 = vld [vmem:[%s174 + $0xc70] sm:$0xff]
        %v604 = vld [vmem:[%s174 + $0xc78] sm:$0xff]
        %v605 = vld [vmem:[%s174 + $0xc80] sm:$0xff]
        %v606 = vld [vmem:[%s174 + $0xc88] sm:$0xff]
        %v607 = vld [vmem:[%s174 + $0xc90] sm:$0xff]
        %v608 = vld [vmem:[%s174 + $0xc98] sm:$0xff]
        %v609 = vld [vmem:[%s174 + $0xca0] sm:$0xff]
        %v610 = vld [vmem:[%s174 + $0xca8] sm:$0xff]
        %v611 = vld [vmem:[%s174 + $0xcb0] sm:$0xff]
        %v612 = vld [vmem:[%s174 + $0xcb8] sm:$0xff]
        %v613 = vld [vmem:[%s174 + $0xcc0] sm:$0xff]
        %v614 = vld [vmem:[%s174 + $0xcc8] sm:$0xff]
        %v615 = vld [vmem:[%s174 + $0xcd0] sm:$0xff]
        %v616 = vld [vmem:[%s174 + $0xcd8] sm:$0xff]
        %v617 = vld [vmem:[%s174 + $0xce0] sm:$0xff]
        %v618 = vld [vmem:[%s174 + $0xce8] sm:$0xff]
        %v619 = vld [vmem:[%s174 + $0xcf0] sm:$0xff]
        %v620 = vld [vmem:[%s174 + $0xcf8] sm:$0xff]
        %v621 = vld [vmem:[%s174 + $0xd00] sm:$0xff]
        %v622 = vld [vmem:[%s174 + $0xd08] sm:$0xff]
        %v623 = vld [vmem:[%s174 + $0xd10] sm:$0xff]
        %v624 = vld [vmem:[%s174 + $0xd18] sm:$0xff]
        %v625 = vld [vmem:[%s174 + $0xd20] sm:$0xff]
        %v626 = vld [vmem:[%s174 + $0xd28] sm:$0xff]
        %v627 = vld [vmem:[%s174 + $0xd30] sm:$0xff]
        %v628 = vld [vmem:[%s174 + $0xd38] sm:$0xff]
        %v629 = vld [vmem:[%s174 + $0xd40] sm:$0xff]
        %v630 = vld [vmem:[%s174 + $0xd48] sm:$0xff]
        %v631 = vld [vmem:[%s174 + $0xd50] sm:$0xff]
        %v632 = vld [vmem:[%s174 + $0xd58] sm:$0xff]
        %v633 = vld [vmem:[%s174 + $0xd60] sm:$0xff]
        %v634 = vld [vmem:[%s174 + $0xd68] sm:$0xff]
        %v635 = vld [vmem:[%s174 + $0xd70] sm:$0xff]
        %v636 = vld [vmem:[%s174 + $0xd78] sm:$0xff]
        %v637 = vld [vmem:[%s174 + $0xd80] sm:$0xff]
        %v638 = vld [vmem:[%s174 + $0xd88] sm:$0xff]
        %v639 = vld [vmem:[%s174 + $0xd90] sm:$0xff]
        %v640 = vld [vmem:[%s174 + $0xd98] sm:$0xff]
        %v641 = vld [vmem:[%s174 + $0xda0] sm:$0xff]
        %v642 = vld [vmem:[%s174 + $0xda8] sm:$0xff]
        %v643 = vld [vmem:[%s174 + $0xdb0] sm:$0xff]
        %v644 = vld [vmem:[%s174 + $0xdb8] sm:$0xff]
        %v645 = vld [vmem:[%s174 + $0xdc0] sm:$0xff]
        %v646 = vld [vmem:[%s174 + $0xdc8] sm:$0xff]
        %v647 = vld [vmem:[%s174 + $0xdd0] sm:$0xff]
        %v648 = vld [vmem:[%s174 + $0xdd8] sm:$0xff]
        %v649 = vld [vmem:[%s174 + $0xde0] sm:$0xff]
        %v650 = vld [vmem:[%s174 + $0xde8] sm:$0xff]
        %v651 = vld [vmem:[%s174 + $0xdf0] sm:$0xff]
        %v652 = vld [vmem:[%s174 + $0xdf8] sm:$0xff]
        %v653 = vld [vmem:[%s174 + $0xe00] sm:$0xff]
        %v654 = vld [vmem:[%s174 + $0xe08] sm:$0xff]
        %v655 = vld [vmem:[%s174 + $0xe10] sm:$0xff]
        %v656 = vld [vmem:[%s174 + $0xe18] sm:$0xff]
        %v657 = vld [vmem:[%s174 + $0xe20] sm:$0xff]
        %v658 = vld [vmem:[%s174 + $0xe28] sm:$0xff]
        %v659 = vld [vmem:[%s174 + $0xe30] sm:$0xff]
        %v660 = vld [vmem:[%s174 + $0xe38] sm:$0xff]
        %v661 = vld [vmem:[%s174 + $0xe40] sm:$0xff]
        %v662 = vld [vmem:[%s174 + $0xe48] sm:$0xff]
        %v663 = vld [vmem:[%s174 + $0xe50] sm:$0xff]
        %v664 = vld [vmem:[%s174 + $0xe58] sm:$0xff]
        %v665 = vld [vmem:[%s174 + $0xe60] sm:$0xff]
        %v666 = vld [vmem:[%s174 + $0xe68] sm:$0xff]
        %v667 = vld [vmem:[%s174 + $0xe70] sm:$0xff]
        %v668 = vld [vmem:[%s174 + $0xe78] sm:$0xff]
        %v669 = vld [vmem:[%s174 + $0xe80] sm:$0xff]
        %v670 = vld [vmem:[%s174 + $0xe88] sm:$0xff]
        %v671 = vld [vmem:[%s174 + $0xe90] sm:$0xff]
        %v672 = vld [vmem:[%s174 + $0xe98] sm:$0xff]
        %v673 = vld [vmem:[%s174 + $0xea0] sm:$0xff]
        %v674 = vld [vmem:[%s174 + $0xea8] sm:$0xff]
        %v675 = vld [vmem:[%s174 + $0xeb0] sm:$0xff]
        %v676 = vld [vmem:[%s174 + $0xeb8] sm:$0xff]
        %v677 = vld [vmem:[%s174 + $0xec0] sm:$0xff]
        %v678 = vld [vmem:[%s174 + $0xec8] sm:$0xff]
        %v679 = vld [vmem:[%s174 + $0xed0] sm:$0xff]
        %v680 = vld [vmem:[%s174 + $0xed8] sm:$0xff]
        %v681 = vld [vmem:[%s174 + $0xee0] sm:$0xff]
        %v682 = vld [vmem:[%s174 + $0xee8] sm:$0xff]
        %v683 = vld [vmem:[%s174 + $0xef0] sm:$0xff]
        %v684 = vld [vmem:[%s174 + $0xef8] sm:$0xff]
        %v685 = vld [vmem:[%s174 + $0xf00] sm:$0xff]
        %v686 = vld [vmem:[%s174 + $0xf08] sm:$0xff]
        %v687 = vld [vmem:[%s174 + $0xf10] sm:$0xff]
        %v688 = vld [vmem:[%s174 + $0xf18] sm:$0xff]
        %v689 = vld [vmem:[%s174 + $0xf20] sm:$0xff]
        %v690 = vld [vmem:[%s174 + $0xf28] sm:$0xff]
        %v691 = vld [vmem:[%s174 + $0xf30] sm:$0xff]
        %v692 = vld [vmem:[%s174 + $0xf38] sm:$0xff]
        %v693 = vld [vmem:[%s174 + $0xf40] sm:$0xff]
        %v694 = vld [vmem:[%s174 + $0xf48] sm:$0xff]
        %v695 = vld [vmem:[%s174 + $0xf50] sm:$0xff]
        %v696 = vld [vmem:[%s174 + $0xf58] sm:$0xff]
        %v697 = vld [vmem:[%s174 + $0xf60] sm:$0xff]
        %v698 = vld [vmem:[%s174 + $0xf68] sm:$0xff]
        %v699 = vld [vmem:[%s174 + $0xf70] sm:$0xff]
        %v700 = vld [vmem:[%s174 + $0xf78] sm:$0xff]
        %v701 = vld [vmem:[%s174 + $0xf80] sm:$0xff]
        %v702 = vld [vmem:[%s174 + $0xf88] sm:$0xff]
        %v703 = vld [vmem:[%s174 + $0xf90] sm:$0xff]
        %v704 = vld [vmem:[%s174 + $0xf98] sm:$0xff]
        %v705 = vld [vmem:[%s174 + $0xfa0] sm:$0xff]
        %v706 = vld [vmem:[%s174 + $0xfa8] sm:$0xff]
        %v707 = vld [vmem:[%s174 + $0xfb0] sm:$0xff]
        %v708 = vld [vmem:[%s174 + $0xfb8] sm:$0xff]
        %v709 = vld [vmem:[%s174 + $0xfc0] sm:$0xff]
        %v710 = vld [vmem:[%s174 + $0xfc8] sm:$0xff]
        %v711 = vld [vmem:[%s174 + $0xfd0] sm:$0xff]
        %v712 = vld [vmem:[%s174 + $0xfd8] sm:$0xff]
        %v713 = vld [vmem:[%s174 + $0xfe0] sm:$0xff]
        %v714 = vld [vmem:[%s174 + $0xfe8] sm:$0xff]
        %v715 = vld [vmem:[%s174 + $0xff0] sm:$0xff]
        %v716 = vld [vmem:[%s174 + $0xff8] sm:$0xff]
        %v717 = vmax.f32 %v205, 1e-06
        %v718 = vmax.f32 %v206, 1e-06
        %v719 = vmax.f32 %v207, 1e-06
        %v720 = vmax.f32 %v208, 1e-06
        %v721 = vmax.f32 %v209, 1e-06
        %v722 = vmax.f32 %v210, 1e-06
        %v723 = vmax.f32 %v211, 1e-06
        %v724 = vmax.f32 %v212, 1e-06
        %v725 = vmax.f32 %v213, 1e-06
        %v726 = vmax.f32 %v214, 1e-06
        %v727 = vmax.f32 %v215, 1e-06
        %v728 = vmax.f32 %v216, 1e-06
        %v729 = vmax.f32 %v217, 1e-06
        %v730 = vmax.f32 %v218, 1e-06
        %v731 = vmax.f32 %v219, 1e-06
        %v732 = vmax.f32 %v220, 1e-06
        %v733 = vmax.f32 %v221, 1e-06
        %v734 = vmax.f32 %v222, 1e-06
        %v735 = vmax.f32 %v223, 1e-06
        %v736 = vmax.f32 %v224, 1e-06
        %v737 = vmax.f32 %v225, 1e-06
        %v738 = vmax.f32 %v226, 1e-06
        %v739 = vmax.f32 %v227, 1e-06
        %v740 = vmax.f32 %v228, 1e-06
        %v741 = vmax.f32 %v229, 1e-06
        %v742 = vmax.f32 %v230, 1e-06
        %v743 = vmax.f32 %v231, 1e-06
        %v744 = vmax.f32 %v232, 1e-06
        %v745 = vmax.f32 %v233, 1e-06
        %v746 = vmax.f32 %v234, 1e-06
        %v747 = vmax.f32 %v235, 1e-06
        %v748 = vmax.f32 %v236, 1e-06
        %v749 = vmax.f32 %v237, 1e-06
        %v750 = vmax.f32 %v238, 1e-06
        %v751 = vmax.f32 %v239, 1e-06
        %v752 = vmax.f32 %v240, 1e-06
        %v753 = vmax.f32 %v241, 1e-06
        %v754 = vmax.f32 %v242, 1e-06
        %v755 = vmax.f32 %v243, 1e-06
        %v756 = vmax.f32 %v244, 1e-06
        %v757 = vmax.f32 %v245, 1e-06
        %v758 = vmax.f32 %v246, 1e-06
        %v759 = vmax.f32 %v247, 1e-06
        %v760 = vmax.f32 %v248, 1e-06
        %v761 = vmax.f32 %v249, 1e-06
        %v762 = vmax.f32 %v250, 1e-06
        %v763 = vmax.f32 %v251, 1e-06
        %v764 = vmax.f32 %v252, 1e-06
        %v765 = vmax.f32 %v253, 1e-06
        %v766 = vmax.f32 %v254, 1e-06
        %v767 = vmax.f32 %v255, 1e-06
        %v768 = vmax.f32 %v256, 1e-06
        %v769 = vmax.f32 %v257, 1e-06
        %v770 = vmax.f32 %v258, 1e-06
        %v771 = vmax.f32 %v259, 1e-06
        %v772 = vmax.f32 %v260, 1e-06
        %v773 = vmax.f32 %v261, 1e-06
        %v774 = vmax.f32 %v262, 1e-06
        %v775 = vmax.f32 %v263, 1e-06
        %v776 = vmax.f32 %v264, 1e-06
        %v777 = vmax.f32 %v265, 1e-06
        %v778 = vmax.f32 %v266, 1e-06
        %v779 = vmax.f32 %v267, 1e-06
        %v780 = vmax.f32 %v268, 1e-06
        %v781 = vmax.f32 %v269, 1e-06
        %v782 = vmax.f32 %v270, 1e-06
        %v783 = vmax.f32 %v271, 1e-06
        %v784 = vmax.f32 %v272, 1e-06
        %v785 = vmax.f32 %v273, 1e-06
        %v786 = vmax.f32 %v274, 1e-06
        %v787 = vmax.f32 %v275, 1e-06
        %v788 = vmax.f32 %v276, 1e-06
        %v789 = vmax.f32 %v277, 1e-06
        %v790 = vmax.f32 %v278, 1e-06
        %v791 = vmax.f32 %v279, 1e-06
        %v792 = vmax.f32 %v280, 1e-06
        %v793 = vmax.f32 %v281, 1e-06
        %v794 = vmax.f32 %v282, 1e-06
        %v795 = vmax.f32 %v283, 1e-06
        %v796 = vmax.f32 %v284, 1e-06
        %v797 = vmax.f32 %v285, 1e-06
        %v798 = vmax.f32 %v286, 1e-06
        %v799 = vmax.f32 %v287, 1e-06
        %v800 = vmax.f32 %v288, 1e-06
        %v801 = vmax.f32 %v289, 1e-06
        %v802 = vmax.f32 %v290, 1e-06
        %v803 = vmax.f32 %v291, 1e-06
        %v804 = vmax.f32 %v292, 1e-06
        %v805 = vmax.f32 %v293, 1e-06
        %v806 = vmax.f32 %v294, 1e-06
        %v807 = vmax.f32 %v295, 1e-06
        %v808 = vmax.f32 %v296, 1e-06
        %v809 = vmax.f32 %v297, 1e-06
        %v810 = vmax.f32 %v298, 1e-06
        %v811 = vmax.f32 %v299, 1e-06
        %v812 = vmax.f32 %v300, 1e-06
        %v813 = vmax.f32 %v301, 1e-06
        %v814 = vmax.f32 %v302, 1e-06
        %v815 = vmax.f32 %v303, 1e-06
        %v816 = vmax.f32 %v304, 1e-06
        %v817 = vmax.f32 %v305, 1e-06
        %v818 = vmax.f32 %v306, 1e-06
        %v819 = vmax.f32 %v307, 1e-06
        %v820 = vmax.f32 %v308, 1e-06
        %v821 = vmax.f32 %v309, 1e-06
        %v822 = vmax.f32 %v310, 1e-06
        %v823 = vmax.f32 %v311, 1e-06
        %v824 = vmax.f32 %v312, 1e-06
        %v825 = vmax.f32 %v313, 1e-06
        %v826 = vmax.f32 %v314, 1e-06
        %v827 = vmax.f32 %v315, 1e-06
        %v828 = vmax.f32 %v316, 1e-06
        %v829 = vmax.f32 %v317, 1e-06
        %v830 = vmax.f32 %v318, 1e-06
        %v831 = vmax.f32 %v319, 1e-06
        %v832 = vmax.f32 %v320, 1e-06
        %v833 = vmax.f32 %v321, 1e-06
        %v834 = vmax.f32 %v322, 1e-06
        %v835 = vmax.f32 %v323, 1e-06
        %v836 = vmax.f32 %v324, 1e-06
        %v837 = vmax.f32 %v325, 1e-06
        %v838 = vmax.f32 %v326, 1e-06
        %v839 = vmax.f32 %v327, 1e-06
        %v840 = vmax.f32 %v328, 1e-06
        %v841 = vmax.f32 %v329, 1e-06
        %v842 = vmax.f32 %v330, 1e-06
        %v843 = vmax.f32 %v331, 1e-06
        %v844 = vmax.f32 %v332, 1e-06
        %v845 = vmax.f32 %v333, 1e-06
        %v846 = vmax.f32 %v334, 1e-06
        %v847 = vmax.f32 %v335, 1e-06
        %v848 = vmax.f32 %v336, 1e-06
        %v849 = vmax.f32 %v337, 1e-06
        %v850 = vmax.f32 %v338, 1e-06
        %v851 = vmax.f32 %v339, 1e-06
        %v852 = vmax.f32 %v340, 1e-06
        %v853 = vmax.f32 %v341, 1e-06
        %v854 = vmax.f32 %v342, 1e-06
        %v855 = vmax.f32 %v343, 1e-06
        %v856 = vmax.f32 %v344, 1e-06
        %v857 = vmax.f32 %v345, 1e-06
        %v858 = vmax.f32 %v346, 1e-06
        %v859 = vmax.f32 %v347, 1e-06
        %v860 = vmax.f32 %v348, 1e-06
        %v861 = vmax.f32 %v349, 1e-06
        %v862 = vmax.f32 %v350, 1e-06
        %v863 = vmax.f32 %v351, 1e-06
        %v864 = vmax.f32 %v352, 1e-06
        %v865 = vmax.f32 %v353, 1e-06
        %v866 = vmax.f32 %v354, 1e-06
        %v867 = vmax.f32 %v355, 1e-06
        %v868 = vmax.f32 %v356, 1e-06
        %v869 = vmax.f32 %v357, 1e-06
        %v870 = vmax.f32 %v358, 1e-06
        %v871 = vmax.f32 %v359, 1e-06
        %v872 = vmax.f32 %v360, 1e-06
        %v873 = vmax.f32 %v361, 1e-06
        %v874 = vmax.f32 %v362, 1e-06
        %v875 = vmax.f32 %v363, 1e-06
        %v876 = vmax.f32 %v364, 1e-06
        %v877 = vmax.f32 %v365, 1e-06
        %v878 = vmax.f32 %v366, 1e-06
        %v879 = vmax.f32 %v367, 1e-06
        %v880 = vmax.f32 %v368, 1e-06
        %v881 = vmax.f32 %v369, 1e-06
        %v882 = vmax.f32 %v370, 1e-06
        %v883 = vmax.f32 %v371, 1e-06
        %v884 = vmax.f32 %v372, 1e-06
        %v885 = vmax.f32 %v373, 1e-06
        %v886 = vmax.f32 %v374, 1e-06
        %v887 = vmax.f32 %v375, 1e-06
        %v888 = vmax.f32 %v376, 1e-06
        %v889 = vmax.f32 %v377, 1e-06
        %v890 = vmax.f32 %v378, 1e-06
        %v891 = vmax.f32 %v379, 1e-06
        %v892 = vmax.f32 %v380, 1e-06
        %v893 = vmax.f32 %v381, 1e-06
        %v894 = vmax.f32 %v382, 1e-06
        %v895 = vmax.f32 %v383, 1e-06
        %v896 = vmax.f32 %v384, 1e-06
        %v897 = vmax.f32 %v385, 1e-06
        %v898 = vmax.f32 %v386, 1e-06
        %v899 = vmax.f32 %v387, 1e-06
        %v900 = vmax.f32 %v388, 1e-06
        %v901 = vmax.f32 %v389, 1e-06
        %v902 = vmax.f32 %v390, 1e-06
        %v903 = vmax.f32 %v391, 1e-06
        %v904 = vmax.f32 %v392, 1e-06
        %v905 = vmax.f32 %v393, 1e-06
        %v906 = vmax.f32 %v394, 1e-06
        %v907 = vmax.f32 %v395, 1e-06
        %v908 = vmax.f32 %v396, 1e-06
        %v909 = vmax.f32 %v397, 1e-06
        %v910 = vmax.f32 %v398, 1e-06
        %v911 = vmax.f32 %v399, 1e-06
        %v912 = vmax.f32 %v400, 1e-06
        %v913 = vmax.f32 %v401, 1e-06
        %v914 = vmax.f32 %v402, 1e-06
        %v915 = vmax.f32 %v403, 1e-06
        %v916 = vmax.f32 %v404, 1e-06
        %v917 = vmax.f32 %v405, 1e-06
        %v918 = vmax.f32 %v406, 1e-06
        %v919 = vmax.f32 %v407, 1e-06
        %v920 = vmax.f32 %v408, 1e-06
        %v921 = vmax.f32 %v409, 1e-06
        %v922 = vmax.f32 %v410, 1e-06
        %v923 = vmax.f32 %v411, 1e-06
        %v924 = vmax.f32 %v412, 1e-06
        %v925 = vmax.f32 %v413, 1e-06
        %v926 = vmax.f32 %v414, 1e-06
        %v927 = vmax.f32 %v415, 1e-06
        %v928 = vmax.f32 %v416, 1e-06
        %v929 = vmax.f32 %v417, 1e-06
        %v930 = vmax.f32 %v418, 1e-06
        %v931 = vmax.f32 %v419, 1e-06
        %v932 = vmax.f32 %v420, 1e-06
        %v933 = vmax.f32 %v421, 1e-06
        %v934 = vmax.f32 %v422, 1e-06
        %v935 = vmax.f32 %v423, 1e-06
        %v936 = vmax.f32 %v424, 1e-06
        %v937 = vmax.f32 %v425, 1e-06
        %v938 = vmax.f32 %v426, 1e-06
        %v939 = vmax.f32 %v427, 1e-06
        %v940 = vmax.f32 %v428, 1e-06
        %v941 = vmax.f32 %v429, 1e-06
        %v942 = vmax.f32 %v430, 1e-06
        %v943 = vmax.f32 %v431, 1e-06
        %v944 = vmax.f32 %v432, 1e-06
        %v945 = vmax.f32 %v433, 1e-06
        %v946 = vmax.f32 %v434, 1e-06
        %v947 = vmax.f32 %v435, 1e-06
        %v948 = vmax.f32 %v436, 1e-06
        %v949 = vmax.f32 %v437, 1e-06
        %v950 = vmax.f32 %v438, 1e-06
        %v951 = vmax.f32 %v439, 1e-06
        %v952 = vmax.f32 %v440, 1e-06
        %v953 = vmax.f32 %v441, 1e-06
        %v954 = vmax.f32 %v442, 1e-06
        %v955 = vmax.f32 %v443, 1e-06
        %v956 = vmax.f32 %v444, 1e-06
        %v957 = vmax.f32 %v445, 1e-06
        %v958 = vmax.f32 %v446, 1e-06
        %v959 = vmax.f32 %v447, 1e-06
        %v960 = vmax.f32 %v448, 1e-06
        %v961 = vmax.f32 %v449, 1e-06
        %v962 = vmax.f32 %v450, 1e-06
        %v963 = vmax.f32 %v451, 1e-06
        %v964 = vmax.f32 %v452, 1e-06
        %v965 = vmax.f32 %v453, 1e-06
        %v966 = vmax.f32 %v454, 1e-06
        %v967 = vmax.f32 %v455, 1e-06
        %v968 = vmax.f32 %v456, 1e-06
        %v969 = vmax.f32 %v457, 1e-06
        %v970 = vmax.f32 %v458, 1e-06
        %v971 = vmax.f32 %v459, 1e-06
        %v972 = vmax.f32 %v460, 1e-06
        %v973 = vmax.f32 %v461, 1e-06
        %v974 = vmax.f32 %v462, 1e-06
        %v975 = vmax.f32 %v463, 1e-06
        %v976 = vmax.f32 %v464, 1e-06
        %v977 = vmax.f32 %v465, 1e-06
        %v978 = vmax.f32 %v466, 1e-06
        %v979 = vmax.f32 %v467, 1e-06
        %v980 = vmax.f32 %v468, 1e-06
        %v981 = vmax.f32 %v469, 1e-06
        %v982 = vmax.f32 %v470, 1e-06
        %v983 = vmax.f32 %v471, 1e-06
        %v984 = vmax.f32 %v472, 1e-06
        %v985 = vmax.f32 %v473, 1e-06
        %v986 = vmax.f32 %v474, 1e-06
        %v987 = vmax.f32 %v475, 1e-06
        %v988 = vmax.f32 %v476, 1e-06
        %v989 = vmax.f32 %v477, 1e-06
        %v990 = vmax.f32 %v478, 1e-06
        %v991 = vmax.f32 %v479, 1e-06
        %v992 = vmax.f32 %v480, 1e-06
        %v993 = vmax.f32 %v481, 1e-06
        %v994 = vmax.f32 %v482, 1e-06
        %v995 = vmax.f32 %v483, 1e-06
        %v996 = vmax.f32 %v484, 1e-06
        %v997 = vmax.f32 %v485, 1e-06
        %v998 = vmax.f32 %v486, 1e-06
        %v999 = vmax.f32 %v487, 1e-06
        %v1000 = vmax.f32 %v488, 1e-06
        %v1001 = vmax.f32 %v489, 1e-06
        %v1002 = vmax.f32 %v490, 1e-06
        %v1003 = vmax.f32 %v491, 1e-06
        %v1004 = vmax.f32 %v492, 1e-06
        %v1005 = vmax.f32 %v493, 1e-06
        %v1006 = vmax.f32 %v494, 1e-06
        %v1007 = vmax.f32 %v495, 1e-06
        %v1008 = vmax.f32 %v496, 1e-06
        %v1009 = vmax.f32 %v497, 1e-06
        %v1010 = vmax.f32 %v498, 1e-06
        %v1011 = vmax.f32 %v499, 1e-06
        %v1012 = vmax.f32 %v500, 1e-06
        %v1013 = vmax.f32 %v501, 1e-06
        %v1014 = vmax.f32 %v502, 1e-06
        %v1015 = vmax.f32 %v503, 1e-06
        %v1016 = vmax.f32 %v504, 1e-06
        %v1017 = vmax.f32 %v505, 1e-06
        %v1018 = vmax.f32 %v506, 1e-06
        %v1019 = vmax.f32 %v507, 1e-06
        %v1020 = vmax.f32 %v508, 1e-06
        %v1021 = vmax.f32 %v509, 1e-06
        %v1022 = vmax.f32 %v510, 1e-06
        %v1023 = vmax.f32 %v511, 1e-06
        %v1024 = vmax.f32 %v512, 1e-06
        %v1025 = vmax.f32 %v513, 1e-06
        %v1026 = vmax.f32 %v514, 1e-06
        %v1027 = vmax.f32 %v515, 1e-06
        %v1028 = vmax.f32 %v516, 1e-06
        %v1029 = vmax.f32 %v517, 1e-06
        %v1030 = vmax.f32 %v518, 1e-06
        %v1031 = vmax.f32 %v519, 1e-06
        %v1032 = vmax.f32 %v520, 1e-06
        %v1033 = vmax.f32 %v521, 1e-06
        %v1034 = vmax.f32 %v522, 1e-06
        %v1035 = vmax.f32 %v523, 1e-06
        %v1036 = vmax.f32 %v524, 1e-06
        %v1037 = vmax.f32 %v525, 1e-06
        %v1038 = vmax.f32 %v526, 1e-06
        %v1039 = vmax.f32 %v527, 1e-06
        %v1040 = vmax.f32 %v528, 1e-06
        %v1041 = vmax.f32 %v529, 1e-06
        %v1042 = vmax.f32 %v530, 1e-06
        %v1043 = vmax.f32 %v531, 1e-06
        %v1044 = vmax.f32 %v532, 1e-06
        %v1045 = vmax.f32 %v533, 1e-06
        %v1046 = vmax.f32 %v534, 1e-06
        %v1047 = vmax.f32 %v535, 1e-06
        %v1048 = vmax.f32 %v536, 1e-06
        %v1049 = vmax.f32 %v537, 1e-06
        %v1050 = vmax.f32 %v538, 1e-06
        %v1051 = vmax.f32 %v539, 1e-06
        %v1052 = vmax.f32 %v540, 1e-06
        %v1053 = vmax.f32 %v541, 1e-06
        %v1054 = vmax.f32 %v542, 1e-06
        %v1055 = vmax.f32 %v543, 1e-06
        %v1056 = vmax.f32 %v544, 1e-06
        %v1057 = vmax.f32 %v545, 1e-06
        %v1058 = vmax.f32 %v546, 1e-06
        %v1059 = vmax.f32 %v547, 1e-06
        %v1060 = vmax.f32 %v548, 1e-06
        %v1061 = vmax.f32 %v549, 1e-06
        %v1062 = vmax.f32 %v550, 1e-06
        %v1063 = vmax.f32 %v551, 1e-06
        %v1064 = vmax.f32 %v552, 1e-06
        %v1065 = vmax.f32 %v553, 1e-06
        %v1066 = vmax.f32 %v554, 1e-06
        %v1067 = vmax.f32 %v555, 1e-06
        %v1068 = vmax.f32 %v556, 1e-06
        %v1069 = vmax.f32 %v557, 1e-06
        %v1070 = vmax.f32 %v558, 1e-06
        %v1071 = vmax.f32 %v559, 1e-06
        %v1072 = vmax.f32 %v560, 1e-06
        %v1073 = vmax.f32 %v561, 1e-06
        %v1074 = vmax.f32 %v562, 1e-06
        %v1075 = vmax.f32 %v563, 1e-06
        %v1076 = vmax.f32 %v564, 1e-06
        %v1077 = vmax.f32 %v565, 1e-06
        %v1078 = vmax.f32 %v566, 1e-06
        %v1079 = vmax.f32 %v567, 1e-06
        %v1080 = vmax.f32 %v568, 1e-06
        %v1081 = vmax.f32 %v569, 1e-06
        %v1082 = vmax.f32 %v570, 1e-06
        %v1083 = vmax.f32 %v571, 1e-06
        %v1084 = vmax.f32 %v572, 1e-06
        %v1085 = vmax.f32 %v573, 1e-06
        %v1086 = vmax.f32 %v574, 1e-06
        %v1087 = vmax.f32 %v575, 1e-06
        %v1088 = vmax.f32 %v576, 1e-06
        %v1089 = vmax.f32 %v577, 1e-06
        %v1090 = vmax.f32 %v578, 1e-06
        %v1091 = vmax.f32 %v579, 1e-06
        %v1092 = vmax.f32 %v580, 1e-06
        %v1093 = vmax.f32 %v581, 1e-06
        %v1094 = vmax.f32 %v582, 1e-06
        %v1095 = vmax.f32 %v583, 1e-06
        %v1096 = vmax.f32 %v584, 1e-06
        %v1097 = vmax.f32 %v585, 1e-06
        %v1098 = vmax.f32 %v586, 1e-06
        %v1099 = vmax.f32 %v587, 1e-06
        %v1100 = vmax.f32 %v588, 1e-06
        %v1101 = vmax.f32 %v589, 1e-06
        %v1102 = vmax.f32 %v590, 1e-06
        %v1103 = vmax.f32 %v591, 1e-06
        %v1104 = vmax.f32 %v592, 1e-06
        %v1105 = vmax.f32 %v593, 1e-06
        %v1106 = vmax.f32 %v594, 1e-06
        %v1107 = vmax.f32 %v595, 1e-06
        %v1108 = vmax.f32 %v596, 1e-06
        %v1109 = vmax.f32 %v597, 1e-06
        %v1110 = vmax.f32 %v598, 1e-06
        %v1111 = vmax.f32 %v599, 1e-06
        %v1112 = vmax.f32 %v600, 1e-06
        %v1113 = vmax.f32 %v601, 1e-06
        %v1114 = vmax.f32 %v602, 1e-06
        %v1115 = vmax.f32 %v603, 1e-06
        %v1116 = vmax.f32 %v604, 1e-06
        %v1117 = vmax.f32 %v605, 1e-06
        %v1118 = vmax.f32 %v606, 1e-06
        %v1119 = vmax.f32 %v607, 1e-06
        %v1120 = vmax.f32 %v608, 1e-06
        %v1121 = vmax.f32 %v609, 1e-06
        %v1122 = vmax.f32 %v610, 1e-06
        %v1123 = vmax.f32 %v611, 1e-06
        %v1124 = vmax.f32 %v612, 1e-06
        %v1125 = vmax.f32 %v613, 1e-06
        %v1126 = vmax.f32 %v614, 1e-06
        %v1127 = vmax.f32 %v615, 1e-06
        %v1128 = vmax.f32 %v616, 1e-06
        %v1129 = vmax.f32 %v617, 1e-06
        %v1130 = vmax.f32 %v618, 1e-06
        %v1131 = vmax.f32 %v619, 1e-06
        %v1132 = vmax.f32 %v620, 1e-06
        %v1133 = vmax.f32 %v621, 1e-06
        %v1134 = vmax.f32 %v622, 1e-06
        %v1135 = vmax.f32 %v623, 1e-06
        %v1136 = vmax.f32 %v624, 1e-06
        %v1137 = vmax.f32 %v625, 1e-06
        %v1138 = vmax.f32 %v626, 1e-06
        %v1139 = vmax.f32 %v627, 1e-06
        %v1140 = vmax.f32 %v628, 1e-06
        %v1141 = vmax.f32 %v629, 1e-06
        %v1142 = vmax.f32 %v630, 1e-06
        %v1143 = vmax.f32 %v631, 1e-06
        %v1144 = vmax.f32 %v632, 1e-06
        %v1145 = vmax.f32 %v633, 1e-06
        %v1146 = vmax.f32 %v634, 1e-06
        %v1147 = vmax.f32 %v635, 1e-06
        %v1148 = vmax.f32 %v636, 1e-06
        %v1149 = vmax.f32 %v637, 1e-06
        %v1150 = vmax.f32 %v638, 1e-06
        %v1151 = vmax.f32 %v639, 1e-06
        %v1152 = vmax.f32 %v640, 1e-06
        %v1153 = vmax.f32 %v641, 1e-06
        %v1154 = vmax.f32 %v642, 1e-06
        %v1155 = vmax.f32 %v643, 1e-06
        %v1156 = vmax.f32 %v644, 1e-06
        %v1157 = vmax.f32 %v645, 1e-06
        %v1158 = vmax.f32 %v646, 1e-06
        %v1159 = vmax.f32 %v647, 1e-06
        %v1160 = vmax.f32 %v648, 1e-06
        %v1161 = vmax.f32 %v649, 1e-06
        %v1162 = vmax.f32 %v650, 1e-06
        %v1163 = vmax.f32 %v651, 1e-06
        %v1164 = vmax.f32 %v652, 1e-06
        %v1165 = vmax.f32 %v653, 1e-06
        %v1166 = vmax.f32 %v654, 1e-06
        %v1167 = vmax.f32 %v655, 1e-06
        %v1168 = vmax.f32 %v656, 1e-06
        %v1169 = vmax.f32 %v657, 1e-06
        %v1170 = vmax.f32 %v658, 1e-06
        %v1171 = vmax.f32 %v659, 1e-06
        %v1172 = vmax.f32 %v660, 1e-06
        %v1173 = vmax.f32 %v661, 1e-06
        %v1174 = vmax.f32 %v662, 1e-06
        %v1175 = vmax.f32 %v663, 1e-06
        %v1176 = vmax.f32 %v664, 1e-06
        %v1177 = vmax.f32 %v665, 1e-06
        %v1178 = vmax.f32 %v666, 1e-06
        %v1179 = vmax.f32 %v667, 1e-06
        %v1180 = vmax.f32 %v668, 1e-06
        %v1181 = vmax.f32 %v669, 1e-06
        %v1182 = vmax.f32 %v670, 1e-06
        %v1183 = vmax.f32 %v671, 1e-06
        %v1184 = vmax.f32 %v672, 1e-06
        %v1185 = vmax.f32 %v673, 1e-06
        %v1186 = vmax.f32 %v674, 1e-06
        %v1187 = vmax.f32 %v675, 1e-06
        %v1188 = vmax.f32 %v676, 1e-06
        %v1189 = vmax.f32 %v677, 1e-06
        %v1190 = vmax.f32 %v678, 1e-06
        %v1191 = vmax.f32 %v679, 1e-06
        %v1192 = vmax.f32 %v680, 1e-06
        %v1193 = vmax.f32 %v681, 1e-06
        %v1194 = vmax.f32 %v682, 1e-06
        %v1195 = vmax.f32 %v683, 1e-06
        %v1196 = vmax.f32 %v684, 1e-06
        %v1197 = vmax.f32 %v685, 1e-06
        %v1198 = vmax.f32 %v686, 1e-06
        %v1199 = vmax.f32 %v687, 1e-06
        %v1200 = vmax.f32 %v688, 1e-06
        %v1201 = vmax.f32 %v689, 1e-06
        %v1202 = vmax.f32 %v690, 1e-06
        %v1203 = vmax.f32 %v691, 1e-06
        %v1204 = vmax.f32 %v692, 1e-06
        %v1205 = vmax.f32 %v693, 1e-06
        %v1206 = vmax.f32 %v694, 1e-06
        %v1207 = vmax.f32 %v695, 1e-06
        %v1208 = vmax.f32 %v696, 1e-06
        %v1209 = vmax.f32 %v697, 1e-06
        %v1210 = vmax.f32 %v698, 1e-06
        %v1211 = vmax.f32 %v699, 1e-06
        %v1212 = vmax.f32 %v700, 1e-06
        %v1213 = vmax.f32 %v701, 1e-06
        %v1214 = vmax.f32 %v702, 1e-06
        %v1215 = vmax.f32 %v703, 1e-06
        %v1216 = vmax.f32 %v704, 1e-06
        %v1217 = vmax.f32 %v705, 1e-06
        %v1218 = vmax.f32 %v706, 1e-06
        %v1219 = vmax.f32 %v707, 1e-06
        %v1220 = vmax.f32 %v708, 1e-06
        %v1221 = vmax.f32 %v709, 1e-06
        %v1222 = vmax.f32 %v710, 1e-06
        %v1223 = vmax.f32 %v711, 1e-06
        %v1224 = vmax.f32 %v712, 1e-06
        %v1225 = vmax.f32 %v713, 1e-06
        %v1226 = vmax.f32 %v714, 1e-06
        %v1227 = vmax.f32 %v715, 1e-06
        %v1228 = vmax.f32 %v716, 1e-06
        %v1229 = vmul.f32 %v717, %v717
        %v1230 = vmul.f32 %v718, %v718
        %v1231 = vmul.f32 %v719, %v719
        %v1232 = vmul.f32 %v720, %v720
        %v1233 = vmul.f32 %v721, %v721
        %v1234 = vmul.f32 %v722, %v722
        %v1235 = vmul.f32 %v723, %v723
        %v1236 = vmul.f32 %v724, %v724
        %v1237 = vmul.f32 %v725, %v725
        %v1238 = vmul.f32 %v726, %v726
        %v1239 = vmul.f32 %v727, %v727
        %v1240 = vmul.f32 %v728, %v728
        %v1241 = vmul.f32 %v729, %v729
        %v1242 = vmul.f32 %v730, %v730
        %v1243 = vmul.f32 %v731, %v731
        %v1244 = vmul.f32 %v732, %v732
        %v1245 = vmul.f32 %v733, %v733
        %v1246 = vmul.f32 %v734, %v734
        %v1247 = vmul.f32 %v735, %v735
        %v1248 = vmul.f32 %v736, %v736
        %v1249 = vmul.f32 %v737, %v737
        %v1250 = vmul.f32 %v738, %v738
        %v1251 = vmul.f32 %v739, %v739
        %v1252 = vmul.f32 %v740, %v740
        %v1253 = vmul.f32 %v741, %v741
        %v1254 = vmul.f32 %v742, %v742
        %v1255 = vmul.f32 %v743, %v743
        %v1256 = vmul.f32 %v744, %v744
        %v1257 = vmul.f32 %v745, %v745
        %v1258 = vmul.f32 %v746, %v746
        %v1259 = vmul.f32 %v747, %v747
        %v1260 = vmul.f32 %v748, %v748
        %v1261 = vmul.f32 %v749, %v749
        %v1262 = vmul.f32 %v750, %v750
        %v1263 = vmul.f32 %v751, %v751
        %v1264 = vmul.f32 %v752, %v752
        %v1265 = vmul.f32 %v753, %v753
        %v1266 = vmul.f32 %v754, %v754
        %v1267 = vmul.f32 %v755, %v755
        %v1268 = vmul.f32 %v756, %v756
        %v1269 = vmul.f32 %v757, %v757
        %v1270 = vmul.f32 %v758, %v758
        %v1271 = vmul.f32 %v759, %v759
        %v1272 = vmul.f32 %v760, %v760
        %v1273 = vmul.f32 %v761, %v761
        %v1274 = vmul.f32 %v762, %v762
        %v1275 = vmul.f32 %v763, %v763
        %v1276 = vmul.f32 %v764, %v764
        %v1277 = vmul.f32 %v765, %v765
        %v1278 = vmul.f32 %v766, %v766
        %v1279 = vmul.f32 %v767, %v767
        %v1280 = vmul.f32 %v768, %v768
        %v1281 = vmul.f32 %v769, %v769
        %v1282 = vmul.f32 %v770, %v770
        %v1283 = vmul.f32 %v771, %v771
        %v1284 = vmul.f32 %v772, %v772
        %v1285 = vmul.f32 %v773, %v773
        %v1286 = vmul.f32 %v774, %v774
        %v1287 = vmul.f32 %v775, %v775
        %v1288 = vmul.f32 %v776, %v776
        %v1289 = vmul.f32 %v777, %v777
        %v1290 = vmul.f32 %v778, %v778
        %v1291 = vmul.f32 %v779, %v779
        %v1292 = vmul.f32 %v780, %v780
        %v1293 = vmul.f32 %v781, %v781
        %v1294 = vmul.f32 %v782, %v782
        %v1295 = vmul.f32 %v783, %v783
        %v1296 = vmul.f32 %v784, %v784
        %v1297 = vmul.f32 %v785, %v785
        %v1298 = vmul.f32 %v786, %v786
        %v1299 = vmul.f32 %v787, %v787
        %v1300 = vmul.f32 %v788, %v788
        %v1301 = vmul.f32 %v789, %v789
        %v1302 = vmul.f32 %v790, %v790
        %v1303 = vmul.f32 %v791, %v791
        %v1304 = vmul.f32 %v792, %v792
        %v1305 = vmul.f32 %v793, %v793
        %v1306 = vmul.f32 %v794, %v794
        %v1307 = vmul.f32 %v795, %v795
        %v1308 = vmul.f32 %v796, %v796
        %v1309 = vmul.f32 %v797, %v797
        %v1310 = vmul.f32 %v798, %v798
        %v1311 = vmul.f32 %v799, %v799
        %v1312 = vmul.f32 %v800, %v800
        %v1313 = vmul.f32 %v801, %v801
        %v1314 = vmul.f32 %v802, %v802
        %v1315 = vmul.f32 %v803, %v803
        %v1316 = vmul.f32 %v804, %v804
        %v1317 = vmul.f32 %v805, %v805
        %v1318 = vmul.f32 %v806, %v806
        %v1319 = vmul.f32 %v807, %v807
        %v1320 = vmul.f32 %v808, %v808
        %v1321 = vmul.f32 %v809, %v809
        %v1322 = vmul.f32 %v810, %v810
        %v1323 = vmul.f32 %v811, %v811
        %v1324 = vmul.f32 %v812, %v812
        %v1325 = vmul.f32 %v813, %v813
        %v1326 = vmul.f32 %v814, %v814
        %v1327 = vmul.f32 %v815, %v815
        %v1328 = vmul.f32 %v816, %v816
        %v1329 = vmul.f32 %v817, %v817
        %v1330 = vmul.f32 %v818, %v818
        %v1331 = vmul.f32 %v819, %v819
        %v1332 = vmul.f32 %v820, %v820
        %v1333 = vmul.f32 %v821, %v821
        %v1334 = vmul.f32 %v822, %v822
        %v1335 = vmul.f32 %v823, %v823
        %v1336 = vmul.f32 %v824, %v824
        %v1337 = vmul.f32 %v825, %v825
        %v1338 = vmul.f32 %v826, %v826
        %v1339 = vmul.f32 %v827, %v827
        %v1340 = vmul.f32 %v828, %v828
        %v1341 = vmul.f32 %v829, %v829
        %v1342 = vmul.f32 %v830, %v830
        %v1343 = vmul.f32 %v831, %v831
        %v1344 = vmul.f32 %v832, %v832
        %v1345 = vmul.f32 %v833, %v833
        %v1346 = vmul.f32 %v834, %v834
        %v1347 = vmul.f32 %v835, %v835
        %v1348 = vmul.f32 %v836, %v836
        %v1349 = vmul.f32 %v837, %v837
        %v1350 = vmul.f32 %v838, %v838
        %v1351 = vmul.f32 %v839, %v839
        %v1352 = vmul.f32 %v840, %v840
        %v1353 = vmul.f32 %v841, %v841
        %v1354 = vmul.f32 %v842, %v842
        %v1355 = vmul.f32 %v843, %v843
        %v1356 = vmul.f32 %v844, %v844
        %v1357 = vmul.f32 %v845, %v845
        %v1358 = vmul.f32 %v846, %v846
        %v1359 = vmul.f32 %v847, %v847
        %v1360 = vmul.f32 %v848, %v848
        %v1361 = vmul.f32 %v849, %v849
        %v1362 = vmul.f32 %v850, %v850
        %v1363 = vmul.f32 %v851, %v851
        %v1364 = vmul.f32 %v852, %v852
        %v1365 = vmul.f32 %v853, %v853
        %v1366 = vmul.f32 %v854, %v854
        %v1367 = vmul.f32 %v855, %v855
        %v1368 = vmul.f32 %v856, %v856
        %v1369 = vmul.f32 %v857, %v857
        %v1370 = vmul.f32 %v858, %v858
        %v1371 = vmul.f32 %v859, %v859
        %v1372 = vmul.f32 %v860, %v860
        %v1373 = vmul.f32 %v861, %v861
        %v1374 = vmul.f32 %v862, %v862
        %v1375 = vmul.f32 %v863, %v863
        %v1376 = vmul.f32 %v864, %v864
        %v1377 = vmul.f32 %v865, %v865
        %v1378 = vmul.f32 %v866, %v866
        %v1379 = vmul.f32 %v867, %v867
        %v1380 = vmul.f32 %v868, %v868
        %v1381 = vmul.f32 %v869, %v869
        %v1382 = vmul.f32 %v870, %v870
        %v1383 = vmul.f32 %v871, %v871
        %v1384 = vmul.f32 %v872, %v872
        %v1385 = vmul.f32 %v873, %v873
        %v1386 = vmul.f32 %v874, %v874
        %v1387 = vmul.f32 %v875, %v875
        %v1388 = vmul.f32 %v876, %v876
        %v1389 = vmul.f32 %v877, %v877
        %v1390 = vmul.f32 %v878, %v878
        %v1391 = vmul.f32 %v879, %v879
        %v1392 = vmul.f32 %v880, %v880
        %v1393 = vmul.f32 %v881, %v881
        %v1394 = vmul.f32 %v882, %v882
        %v1395 = vmul.f32 %v883, %v883
        %v1396 = vmul.f32 %v884, %v884
        %v1397 = vmul.f32 %v885, %v885
        %v1398 = vmul.f32 %v886, %v886
        %v1399 = vmul.f32 %v887, %v887
        %v1400 = vmul.f32 %v888, %v888
        %v1401 = vmul.f32 %v889, %v889
        %v1402 = vmul.f32 %v890, %v890
        %v1403 = vmul.f32 %v891, %v891
        %v1404 = vmul.f32 %v892, %v892
        %v1405 = vmul.f32 %v893, %v893
        %v1406 = vmul.f32 %v894, %v894
        %v1407 = vmul.f32 %v895, %v895
        %v1408 = vmul.f32 %v896, %v896
        %v1409 = vmul.f32 %v897, %v897
        %v1410 = vmul.f32 %v898, %v898
        %v1411 = vmul.f32 %v899, %v899
        %v1412 = vmul.f32 %v900, %v900
        %v1413 = vmul.f32 %v901, %v901
        %v1414 = vmul.f32 %v902, %v902
        %v1415 = vmul.f32 %v903, %v903
        %v1416 = vmul.f32 %v904, %v904
        %v1417 = vmul.f32 %v905, %v905
        %v1418 = vmul.f32 %v906, %v906
        %v1419 = vmul.f32 %v907, %v907
        %v1420 = vmul.f32 %v908, %v908
        %v1421 = vmul.f32 %v909, %v909
        %v1422 = vmul.f32 %v910, %v910
        %v1423 = vmul.f32 %v911, %v911
        %v1424 = vmul.f32 %v912, %v912
        %v1425 = vmul.f32 %v913, %v913
        %v1426 = vmul.f32 %v914, %v914
        %v1427 = vmul.f32 %v915, %v915
        %v1428 = vmul.f32 %v916, %v916
        %v1429 = vmul.f32 %v917, %v917
        %v1430 = vmul.f32 %v918, %v918
        %v1431 = vmul.f32 %v919, %v919
        %v1432 = vmul.f32 %v920, %v920
        %v1433 = vmul.f32 %v921, %v921
        %v1434 = vmul.f32 %v922, %v922
        %v1435 = vmul.f32 %v923, %v923
        %v1436 = vmul.f32 %v924, %v924
        %v1437 = vmul.f32 %v925, %v925
        %v1438 = vmul.f32 %v926, %v926
        %v1439 = vmul.f32 %v927, %v927
        %v1440 = vmul.f32 %v928, %v928
        %v1441 = vmul.f32 %v929, %v929
        %v1442 = vmul.f32 %v930, %v930
        %v1443 = vmul.f32 %v931, %v931
        %v1444 = vmul.f32 %v932, %v932
        %v1445 = vmul.f32 %v933, %v933
        %v1446 = vmul.f32 %v934, %v934
        %v1447 = vmul.f32 %v935, %v935
        %v1448 = vmul.f32 %v936, %v936
        %v1449 = vmul.f32 %v937, %v937
        %v1450 = vmul.f32 %v938, %v938
        %v1451 = vmul.f32 %v939, %v939
        %v1452 = vmul.f32 %v940, %v940
        %v1453 = vmul.f32 %v941, %v941
        %v1454 = vmul.f32 %v942, %v942
        %v1455 = vmul.f32 %v943, %v943
        %v1456 = vmul.f32 %v944, %v944
        %v1457 = vmul.f32 %v945, %v945
        %v1458 = vmul.f32 %v946, %v946
        %v1459 = vmul.f32 %v947, %v947
        %v1460 = vmul.f32 %v948, %v948
        %v1461 = vmul.f32 %v949, %v949
        %v1462 = vmul.f32 %v950, %v950
        %v1463 = vmul.f32 %v951, %v951
        %v1464 = vmul.f32 %v952, %v952
        %v1465 = vmul.f32 %v953, %v953
        %v1466 = vmul.f32 %v954, %v954
        %v1467 = vmul.f32 %v955, %v955
        %v1468 = vmul.f32 %v956, %v956
        %v1469 = vmul.f32 %v957, %v957
        %v1470 = vmul.f32 %v958, %v958
        %v1471 = vmul.f32 %v959, %v959
        %v1472 = vmul.f32 %v960, %v960
        %v1473 = vmul.f32 %v961, %v961
        %v1474 = vmul.f32 %v962, %v962
        %v1475 = vmul.f32 %v963, %v963
        %v1476 = vmul.f32 %v964, %v964
        %v1477 = vmul.f32 %v965, %v965
        %v1478 = vmul.f32 %v966, %v966
        %v1479 = vmul.f32 %v967, %v967
        %v1480 = vmul.f32 %v968, %v968
        %v1481 = vmul.f32 %v969, %v969
        %v1482 = vmul.f32 %v970, %v970
        %v1483 = vmul.f32 %v971, %v971
        %v1484 = vmul.f32 %v972, %v972
        %v1485 = vmul.f32 %v973, %v973
        %v1486 = vmul.f32 %v974, %v974
        %v1487 = vmul.f32 %v975, %v975
        %v1488 = vmul.f32 %v976, %v976
        %v1489 = vmul.f32 %v977, %v977
        %v1490 = vmul.f32 %v978, %v978
        %v1491 = vmul.f32 %v979, %v979
        %v1492 = vmul.f32 %v980, %v980
        %v1493 = vmul.f32 %v981, %v981
        %v1494 = vmul.f32 %v982, %v982
        %v1495 = vmul.f32 %v983, %v983
        %v1496 = vmul.f32 %v984, %v984
        %v1497 = vmul.f32 %v985, %v985
        %v1498 = vmul.f32 %v986, %v986
        %v1499 = vmul.f32 %v987, %v987
        %v1500 = vmul.f32 %v988, %v988
        %v1501 = vmul.f32 %v989, %v989
        %v1502 = vmul.f32 %v990, %v990
        %v1503 = vmul.f32 %v991, %v991
        %v1504 = vmul.f32 %v992, %v992
        %v1505 = vmul.f32 %v993, %v993
        %v1506 = vmul.f32 %v994, %v994
        %v1507 = vmul.f32 %v995, %v995
        %v1508 = vmul.f32 %v996, %v996
        %v1509 = vmul.f32 %v997, %v997
        %v1510 = vmul.f32 %v998, %v998
        %v1511 = vmul.f32 %v999, %v999
        %v1512 = vmul.f32 %v1000, %v1000
        %v1513 = vmul.f32 %v1001, %v1001
        %v1514 = vmul.f32 %v1002, %v1002
        %v1515 = vmul.f32 %v1003, %v1003
        %v1516 = vmul.f32 %v1004, %v1004
        %v1517 = vmul.f32 %v1005, %v1005
        %v1518 = vmul.f32 %v1006, %v1006
        %v1519 = vmul.f32 %v1007, %v1007
        %v1520 = vmul.f32 %v1008, %v1008
        %v1521 = vmul.f32 %v1009, %v1009
        %v1522 = vmul.f32 %v1010, %v1010
        %v1523 = vmul.f32 %v1011, %v1011
        %v1524 = vmul.f32 %v1012, %v1012
        %v1525 = vmul.f32 %v1013, %v1013
        %v1526 = vmul.f32 %v1014, %v1014
        %v1527 = vmul.f32 %v1015, %v1015
        %v1528 = vmul.f32 %v1016, %v1016
        %v1529 = vmul.f32 %v1017, %v1017
        %v1530 = vmul.f32 %v1018, %v1018
        %v1531 = vmul.f32 %v1019, %v1019
        %v1532 = vmul.f32 %v1020, %v1020
        %v1533 = vmul.f32 %v1021, %v1021
        %v1534 = vmul.f32 %v1022, %v1022
        %v1535 = vmul.f32 %v1023, %v1023
        %v1536 = vmul.f32 %v1024, %v1024
        %v1537 = vmul.f32 %v1025, %v1025
        %v1538 = vmul.f32 %v1026, %v1026
        %v1539 = vmul.f32 %v1027, %v1027
        %v1540 = vmul.f32 %v1028, %v1028
        %v1541 = vmul.f32 %v1029, %v1029
        %v1542 = vmul.f32 %v1030, %v1030
        %v1543 = vmul.f32 %v1031, %v1031
        %v1544 = vmul.f32 %v1032, %v1032
        %v1545 = vmul.f32 %v1033, %v1033
        %v1546 = vmul.f32 %v1034, %v1034
        %v1547 = vmul.f32 %v1035, %v1035
        %v1548 = vmul.f32 %v1036, %v1036
        %v1549 = vmul.f32 %v1037, %v1037
        %v1550 = vmul.f32 %v1038, %v1038
        %v1551 = vmul.f32 %v1039, %v1039
        %v1552 = vmul.f32 %v1040, %v1040
        %v1553 = vmul.f32 %v1041, %v1041
        %v1554 = vmul.f32 %v1042, %v1042
        %v1555 = vmul.f32 %v1043, %v1043
        %v1556 = vmul.f32 %v1044, %v1044
        %v1557 = vmul.f32 %v1045, %v1045
        %v1558 = vmul.f32 %v1046, %v1046
        %v1559 = vmul.f32 %v1047, %v1047
        %v1560 = vmul.f32 %v1048, %v1048
        %v1561 = vmul.f32 %v1049, %v1049
        %v1562 = vmul.f32 %v1050, %v1050
        %v1563 = vmul.f32 %v1051, %v1051
        %v1564 = vmul.f32 %v1052, %v1052
        %v1565 = vmul.f32 %v1053, %v1053
        %v1566 = vmul.f32 %v1054, %v1054
        %v1567 = vmul.f32 %v1055, %v1055
        %v1568 = vmul.f32 %v1056, %v1056
        %v1569 = vmul.f32 %v1057, %v1057
        %v1570 = vmul.f32 %v1058, %v1058
        %v1571 = vmul.f32 %v1059, %v1059
        %v1572 = vmul.f32 %v1060, %v1060
        %v1573 = vmul.f32 %v1061, %v1061
        %v1574 = vmul.f32 %v1062, %v1062
        %v1575 = vmul.f32 %v1063, %v1063
        %v1576 = vmul.f32 %v1064, %v1064
        %v1577 = vmul.f32 %v1065, %v1065
        %v1578 = vmul.f32 %v1066, %v1066
        %v1579 = vmul.f32 %v1067, %v1067
        %v1580 = vmul.f32 %v1068, %v1068
        %v1581 = vmul.f32 %v1069, %v1069
        %v1582 = vmul.f32 %v1070, %v1070
        %v1583 = vmul.f32 %v1071, %v1071
        %v1584 = vmul.f32 %v1072, %v1072
        %v1585 = vmul.f32 %v1073, %v1073
        %v1586 = vmul.f32 %v1074, %v1074
        %v1587 = vmul.f32 %v1075, %v1075
        %v1588 = vmul.f32 %v1076, %v1076
        %v1589 = vmul.f32 %v1077, %v1077
        %v1590 = vmul.f32 %v1078, %v1078
        %v1591 = vmul.f32 %v1079, %v1079
        %v1592 = vmul.f32 %v1080, %v1080
        %v1593 = vmul.f32 %v1081, %v1081
        %v1594 = vmul.f32 %v1082, %v1082
        %v1595 = vmul.f32 %v1083, %v1083
        %v1596 = vmul.f32 %v1084, %v1084
        %v1597 = vmul.f32 %v1085, %v1085
        %v1598 = vmul.f32 %v1086, %v1086
        %v1599 = vmul.f32 %v1087, %v1087
        %v1600 = vmul.f32 %v1088, %v1088
        %v1601 = vmul.f32 %v1089, %v1089
        %v1602 = vmul.f32 %v1090, %v1090
        %v1603 = vmul.f32 %v1091, %v1091
        %v1604 = vmul.f32 %v1092, %v1092
        %v1605 = vmul.f32 %v1093, %v1093
        %v1606 = vmul.f32 %v1094, %v1094
        %v1607 = vmul.f32 %v1095, %v1095
        %v1608 = vmul.f32 %v1096, %v1096
        %v1609 = vmul.f32 %v1097, %v1097
        %v1610 = vmul.f32 %v1098, %v1098
        %v1611 = vmul.f32 %v1099, %v1099
        %v1612 = vmul.f32 %v1100, %v1100
        %v1613 = vmul.f32 %v1101, %v1101
        %v1614 = vmul.f32 %v1102, %v1102
        %v1615 = vmul.f32 %v1103, %v1103
        %v1616 = vmul.f32 %v1104, %v1104
        %v1617 = vmul.f32 %v1105, %v1105
        %v1618 = vmul.f32 %v1106, %v1106
        %v1619 = vmul.f32 %v1107, %v1107
        %v1620 = vmul.f32 %v1108, %v1108
        %v1621 = vmul.f32 %v1109, %v1109
        %v1622 = vmul.f32 %v1110, %v1110
        %v1623 = vmul.f32 %v1111, %v1111
        %v1624 = vmul.f32 %v1112, %v1112
        %v1625 = vmul.f32 %v1113, %v1113
        %v1626 = vmul.f32 %v1114, %v1114
        %v1627 = vmul.f32 %v1115, %v1115
        %v1628 = vmul.f32 %v1116, %v1116
        %v1629 = vmul.f32 %v1117, %v1117
        %v1630 = vmul.f32 %v1118, %v1118
        %v1631 = vmul.f32 %v1119, %v1119
        %v1632 = vmul.f32 %v1120, %v1120
        %v1633 = vmul.f32 %v1121, %v1121
        %v1634 = vmul.f32 %v1122, %v1122
        %v1635 = vmul.f32 %v1123, %v1123
        %v1636 = vmul.f32 %v1124, %v1124
        %v1637 = vmul.f32 %v1125, %v1125
        %v1638 = vmul.f32 %v1126, %v1126
        %v1639 = vmul.f32 %v1127, %v1127
        %v1640 = vmul.f32 %v1128, %v1128
        %v1641 = vmul.f32 %v1129, %v1129
        %v1642 = vmul.f32 %v1130, %v1130
        %v1643 = vmul.f32 %v1131, %v1131
        %v1644 = vmul.f32 %v1132, %v1132
        %v1645 = vmul.f32 %v1133, %v1133
        %v1646 = vmul.f32 %v1134, %v1134
        %v1647 = vmul.f32 %v1135, %v1135
        %v1648 = vmul.f32 %v1136, %v1136
        %v1649 = vmul.f32 %v1137, %v1137
        %v1650 = vmul.f32 %v1138, %v1138
        %v1651 = vmul.f32 %v1139, %v1139
        %v1652 = vmul.f32 %v1140, %v1140
        %v1653 = vmul.f32 %v1141, %v1141
        %v1654 = vmul.f32 %v1142, %v1142
        %v1655 = vmul.f32 %v1143, %v1143
        %v1656 = vmul.f32 %v1144, %v1144
        %v1657 = vmul.f32 %v1145, %v1145
        %v1658 = vmul.f32 %v1146, %v1146
        %v1659 = vmul.f32 %v1147, %v1147
        %v1660 = vmul.f32 %v1148, %v1148
        %v1661 = vmul.f32 %v1149, %v1149
        %v1662 = vmul.f32 %v1150, %v1150
        %v1663 = vmul.f32 %v1151, %v1151
        %v1664 = vmul.f32 %v1152, %v1152
        %v1665 = vmul.f32 %v1153, %v1153
        %v1666 = vmul.f32 %v1154, %v1154
        %v1667 = vmul.f32 %v1155, %v1155
        %v1668 = vmul.f32 %v1156, %v1156
        %v1669 = vmul.f32 %v1157, %v1157
        %v1670 = vmul.f32 %v1158, %v1158
        %v1671 = vmul.f32 %v1159, %v1159
        %v1672 = vmul.f32 %v1160, %v1160
        %v1673 = vmul.f32 %v1161, %v1161
        %v1674 = vmul.f32 %v1162, %v1162
        %v1675 = vmul.f32 %v1163, %v1163
        %v1676 = vmul.f32 %v1164, %v1164
        %v1677 = vmul.f32 %v1165, %v1165
        %v1678 = vmul.f32 %v1166, %v1166
        %v1679 = vmul.f32 %v1167, %v1167
        %v1680 = vmul.f32 %v1168, %v1168
        %v1681 = vmul.f32 %v1169, %v1169
        %v1682 = vmul.f32 %v1170, %v1170
        %v1683 = vmul.f32 %v1171, %v1171
        %v1684 = vmul.f32 %v1172, %v1172
        %v1685 = vmul.f32 %v1173, %v1173
        %v1686 = vmul.f32 %v1174, %v1174
        %v1687 = vmul.f32 %v1175, %v1175
        %v1688 = vmul.f32 %v1176, %v1176
        %v1689 = vmul.f32 %v1177, %v1177
        %v1690 = vmul.f32 %v1178, %v1178
        %v1691 = vmul.f32 %v1179, %v1179
        %v1692 = vmul.f32 %v1180, %v1180
        %v1693 = vmul.f32 %v1181, %v1181
        %v1694 = vmul.f32 %v1182, %v1182
        %v1695 = vmul.f32 %v1183, %v1183
        %v1696 = vmul.f32 %v1184, %v1184
        %v1697 = vmul.f32 %v1185, %v1185
        %v1698 = vmul.f32 %v1186, %v1186
        %v1699 = vmul.f32 %v1187, %v1187
        %v1700 = vmul.f32 %v1188, %v1188
        %v1701 = vmul.f32 %v1189, %v1189
        %v1702 = vmul.f32 %v1190, %v1190
        %v1703 = vmul.f32 %v1191, %v1191
        %v1704 = vmul.f32 %v1192, %v1192
        %v1705 = vmul.f32 %v1193, %v1193
        %v1706 = vmul.f32 %v1194, %v1194
        %v1707 = vmul.f32 %v1195, %v1195
        %v1708 = vmul.f32 %v1196, %v1196
        %v1709 = vmul.f32 %v1197, %v1197
        %v1710 = vmul.f32 %v1198, %v1198
        %v1711 = vmul.f32 %v1199, %v1199
        %v1712 = vmul.f32 %v1200, %v1200
        %v1713 = vmul.f32 %v1201, %v1201
        %v1714 = vmul.f32 %v1202, %v1202
        %v1715 = vmul.f32 %v1203, %v1203
        %v1716 = vmul.f32 %v1204, %v1204
        %v1717 = vmul.f32 %v1205, %v1205
        %v1718 = vmul.f32 %v1206, %v1206
        %v1719 = vmul.f32 %v1207, %v1207
        %v1720 = vmul.f32 %v1208, %v1208
        %v1721 = vmul.f32 %v1209, %v1209
        %v1722 = vmul.f32 %v1210, %v1210
        %v1723 = vmul.f32 %v1211, %v1211
        %v1724 = vmul.f32 %v1212, %v1212
        %v1725 = vmul.f32 %v1213, %v1213
        %v1726 = vmul.f32 %v1214, %v1214
        %v1727 = vmul.f32 %v1215, %v1215
        %v1728 = vmul.f32 %v1216, %v1216
        %v1729 = vmul.f32 %v1217, %v1217
        %v1730 = vmul.f32 %v1218, %v1218
        %v1731 = vmul.f32 %v1219, %v1219
        %v1732 = vmul.f32 %v1220, %v1220
        %v1733 = vmul.f32 %v1221, %v1221
        %v1734 = vmul.f32 %v1222, %v1222
        %v1735 = vmul.f32 %v1223, %v1223
        %v1736 = vmul.f32 %v1224, %v1224
        %v1737 = vmul.f32 %v1225, %v1225
        %v1738 = vmul.f32 %v1226, %v1226
        %v1739 = vmul.f32 %v1227, %v1227
        %v1740 = vmul.f32 %v1228, %v1228
        %v1741 = vmul.f32 %v717, %v1229
        %v1742 = vmul.f32 %v718, %v1230
        %v1743 = vmul.f32 %v719, %v1231
        %v1744 = vmul.f32 %v720, %v1232
        %v1745 = vmul.f32 %v721, %v1233
        %v1746 = vmul.f32 %v722, %v1234
        %v1747 = vmul.f32 %v723, %v1235
        %v1748 = vmul.f32 %v724, %v1236
        %v1749 = vmul.f32 %v725, %v1237
        %v1750 = vmul.f32 %v726, %v1238
        %v1751 = vmul.f32 %v727, %v1239
        %v1752 = vmul.f32 %v728, %v1240
        %v1753 = vmul.f32 %v729, %v1241
        %v1754 = vmul.f32 %v730, %v1242
        %v1755 = vmul.f32 %v731, %v1243
        %v1756 = vmul.f32 %v732, %v1244
        %v1757 = vmul.f32 %v733, %v1245
        %v1758 = vmul.f32 %v734, %v1246
        %v1759 = vmul.f32 %v735, %v1247
        %v1760 = vmul.f32 %v736, %v1248
        %v1761 = vmul.f32 %v737, %v1249
        %v1762 = vmul.f32 %v738, %v1250
        %v1763 = vmul.f32 %v739, %v1251
        %v1764 = vmul.f32 %v740, %v1252
        %v1765 = vmul.f32 %v741, %v1253
        %v1766 = vmul.f32 %v742, %v1254
        %v1767 = vmul.f32 %v743, %v1255
        %v1768 = vmul.f32 %v744, %v1256
        %v1769 = vmul.f32 %v745, %v1257
        %v1770 = vmul.f32 %v746, %v1258
        %v1771 = vmul.f32 %v747, %v1259
        %v1772 = vmul.f32 %v748, %v1260
        %v1773 = vmul.f32 %v749, %v1261
        %v1774 = vmul.f32 %v750, %v1262
        %v1775 = vmul.f32 %v751, %v1263
        %v1776 = vmul.f32 %v752, %v1264
        %v1777 = vmul.f32 %v753, %v1265
        %v1778 = vmul.f32 %v754, %v1266
        %v1779 = vmul.f32 %v755, %v1267
        %v1780 = vmul.f32 %v756, %v1268
        %v1781 = vmul.f32 %v757, %v1269
        %v1782 = vmul.f32 %v758, %v1270
        %v1783 = vmul.f32 %v759, %v1271
        %v1784 = vmul.f32 %v760, %v1272
        %v1785 = vmul.f32 %v761, %v1273
        %v1786 = vmul.f32 %v762, %v1274
        %v1787 = vmul.f32 %v763, %v1275
        %v1788 = vmul.f32 %v764, %v1276
        %v1789 = vmul.f32 %v765, %v1277
        %v1790 = vmul.f32 %v766, %v1278
        %v1791 = vmul.f32 %v767, %v1279
        %v1792 = vmul.f32 %v768, %v1280
        %v1793 = vmul.f32 %v769, %v1281
        %v1794 = vmul.f32 %v770, %v1282
        %v1795 = vmul.f32 %v771, %v1283
        %v1796 = vmul.f32 %v772, %v1284
        %v1797 = vmul.f32 %v773, %v1285
        %v1798 = vmul.f32 %v774, %v1286
        %v1799 = vmul.f32 %v775, %v1287
        %v1800 = vmul.f32 %v776, %v1288
        %v1801 = vmul.f32 %v777, %v1289
        %v1802 = vmul.f32 %v778, %v1290
        %v1803 = vmul.f32 %v779, %v1291
        %v1804 = vmul.f32 %v780, %v1292
        %v1805 = vmul.f32 %v781, %v1293
        %v1806 = vmul.f32 %v782, %v1294
        %v1807 = vmul.f32 %v783, %v1295
        %v1808 = vmul.f32 %v784, %v1296
        %v1809 = vmul.f32 %v785, %v1297
        %v1810 = vmul.f32 %v786, %v1298
        %v1811 = vmul.f32 %v787, %v1299
        %v1812 = vmul.f32 %v788, %v1300
        %v1813 = vmul.f32 %v789, %v1301
        %v1814 = vmul.f32 %v790, %v1302
        %v1815 = vmul.f32 %v791, %v1303
        %v1816 = vmul.f32 %v792, %v1304
        %v1817 = vmul.f32 %v793, %v1305
        %v1818 = vmul.f32 %v794, %v1306
        %v1819 = vmul.f32 %v795, %v1307
        %v1820 = vmul.f32 %v796, %v1308
        %v1821 = vmul.f32 %v797, %v1309
        %v1822 = vmul.f32 %v798, %v1310
        %v1823 = vmul.f32 %v799, %v1311
        %v1824 = vmul.f32 %v800, %v1312
        %v1825 = vmul.f32 %v801, %v1313
        %v1826 = vmul.f32 %v802, %v1314
        %v1827 = vmul.f32 %v803, %v1315
        %v1828 = vmul.f32 %v804, %v1316
        %v1829 = vmul.f32 %v805, %v1317
        %v1830 = vmul.f32 %v806, %v1318
        %v1831 = vmul.f32 %v807, %v1319
        %v1832 = vmul.f32 %v808, %v1320
        %v1833 = vmul.f32 %v809, %v1321
        %v1834 = vmul.f32 %v810, %v1322
        %v1835 = vmul.f32 %v811, %v1323
        %v1836 = vmul.f32 %v812, %v1324
        %v1837 = vmul.f32 %v813, %v1325
        %v1838 = vmul.f32 %v814, %v1326
        %v1839 = vmul.f32 %v815, %v1327
        %v1840 = vmul.f32 %v816, %v1328
        %v1841 = vmul.f32 %v817, %v1329
        %v1842 = vmul.f32 %v818, %v1330
        %v1843 = vmul.f32 %v819, %v1331
        %v1844 = vmul.f32 %v820, %v1332
        %v1845 = vmul.f32 %v821, %v1333
        %v1846 = vmul.f32 %v822, %v1334
        %v1847 = vmul.f32 %v823, %v1335
        %v1848 = vmul.f32 %v824, %v1336
        %v1849 = vmul.f32 %v825, %v1337
        %v1850 = vmul.f32 %v826, %v1338
        %v1851 = vmul.f32 %v827, %v1339
        %v1852 = vmul.f32 %v828, %v1340
        %v1853 = vmul.f32 %v829, %v1341
        %v1854 = vmul.f32 %v830, %v1342
        %v1855 = vmul.f32 %v831, %v1343
        %v1856 = vmul.f32 %v832, %v1344
        %v1857 = vmul.f32 %v833, %v1345
        %v1858 = vmul.f32 %v834, %v1346
        %v1859 = vmul.f32 %v835, %v1347
        %v1860 = vmul.f32 %v836, %v1348
        %v1861 = vmul.f32 %v837, %v1349
        %v1862 = vmul.f32 %v838, %v1350
        %v1863 = vmul.f32 %v839, %v1351
        %v1864 = vmul.f32 %v840, %v1352
        %v1865 = vmul.f32 %v841, %v1353
        %v1866 = vmul.f32 %v842, %v1354
        %v1867 = vmul.f32 %v843, %v1355
        %v1868 = vmul.f32 %v844, %v1356
        %v1869 = vmul.f32 %v845, %v1357
        %v1870 = vmul.f32 %v846, %v1358
        %v1871 = vmul.f32 %v847, %v1359
        %v1872 = vmul.f32 %v848, %v1360
        %v1873 = vmul.f32 %v849, %v1361
        %v1874 = vmul.f32 %v850, %v1362
        %v1875 = vmul.f32 %v851, %v1363
        %v1876 = vmul.f32 %v852, %v1364
        %v1877 = vmul.f32 %v853, %v1365
        %v1878 = vmul.f32 %v854, %v1366
        %v1879 = vmul.f32 %v855, %v1367
        %v1880 = vmul.f32 %v856, %v1368
        %v1881 = vmul.f32 %v857, %v1369
        %v1882 = vmul.f32 %v858, %v1370
        %v1883 = vmul.f32 %v859, %v1371
        %v1884 = vmul.f32 %v860, %v1372
        %v1885 = vmul.f32 %v861, %v1373
        %v1886 = vmul.f32 %v862, %v1374
        %v1887 = vmul.f32 %v863, %v1375
        %v1888 = vmul.f32 %v864, %v1376
        %v1889 = vmul.f32 %v865, %v1377
        %v1890 = vmul.f32 %v866, %v1378
        %v1891 = vmul.f32 %v867, %v1379
        %v1892 = vmul.f32 %v868, %v1380
        %v1893 = vmul.f32 %v869, %v1381
        %v1894 = vmul.f32 %v870, %v1382
        %v1895 = vmul.f32 %v871, %v1383
        %v1896 = vmul.f32 %v872, %v1384
        %v1897 = vmul.f32 %v873, %v1385
        %v1898 = vmul.f32 %v874, %v1386
        %v1899 = vmul.f32 %v875, %v1387
        %v1900 = vmul.f32 %v876, %v1388
        %v1901 = vmul.f32 %v877, %v1389
        %v1902 = vmul.f32 %v878, %v1390
        %v1903 = vmul.f32 %v879, %v1391
        %v1904 = vmul.f32 %v880, %v1392
        %v1905 = vmul.f32 %v881, %v1393
        %v1906 = vmul.f32 %v882, %v1394
        %v1907 = vmul.f32 %v883, %v1395
        %v1908 = vmul.f32 %v884, %v1396
        %v1909 = vmul.f32 %v885, %v1397
        %v1910 = vmul.f32 %v886, %v1398
        %v1911 = vmul.f32 %v887, %v1399
        %v1912 = vmul.f32 %v888, %v1400
        %v1913 = vmul.f32 %v889, %v1401
        %v1914 = vmul.f32 %v890, %v1402
        %v1915 = vmul.f32 %v891, %v1403
        %v1916 = vmul.f32 %v892, %v1404
        %v1917 = vmul.f32 %v893, %v1405
        %v1918 = vmul.f32 %v894, %v1406
        %v1919 = vmul.f32 %v895, %v1407
        %v1920 = vmul.f32 %v896, %v1408
        %v1921 = vmul.f32 %v897, %v1409
        %v1922 = vmul.f32 %v898, %v1410
        %v1923 = vmul.f32 %v899, %v1411
        %v1924 = vmul.f32 %v900, %v1412
        %v1925 = vmul.f32 %v901, %v1413
        %v1926 = vmul.f32 %v902, %v1414
        %v1927 = vmul.f32 %v903, %v1415
        %v1928 = vmul.f32 %v904, %v1416
        %v1929 = vmul.f32 %v905, %v1417
        %v1930 = vmul.f32 %v906, %v1418
        %v1931 = vmul.f32 %v907, %v1419
        %v1932 = vmul.f32 %v908, %v1420
        %v1933 = vmul.f32 %v909, %v1421
        %v1934 = vmul.f32 %v910, %v1422
        %v1935 = vmul.f32 %v911, %v1423
        %v1936 = vmul.f32 %v912, %v1424
        %v1937 = vmul.f32 %v913, %v1425
        %v1938 = vmul.f32 %v914, %v1426
        %v1939 = vmul.f32 %v915, %v1427
        %v1940 = vmul.f32 %v916, %v1428
        %v1941 = vmul.f32 %v917, %v1429
        %v1942 = vmul.f32 %v918, %v1430
        %v1943 = vmul.f32 %v919, %v1431
        %v1944 = vmul.f32 %v920, %v1432
        %v1945 = vmul.f32 %v921, %v1433
        %v1946 = vmul.f32 %v922, %v1434
        %v1947 = vmul.f32 %v923, %v1435
        %v1948 = vmul.f32 %v924, %v1436
        %v1949 = vmul.f32 %v925, %v1437
        %v1950 = vmul.f32 %v926, %v1438
        %v1951 = vmul.f32 %v927, %v1439
        %v1952 = vmul.f32 %v928, %v1440
        %v1953 = vmul.f32 %v929, %v1441
        %v1954 = vmul.f32 %v930, %v1442
        %v1955 = vmul.f32 %v931, %v1443
        %v1956 = vmul.f32 %v932, %v1444
        %v1957 = vmul.f32 %v933, %v1445
        %v1958 = vmul.f32 %v934, %v1446
        %v1959 = vmul.f32 %v935, %v1447
        %v1960 = vmul.f32 %v936, %v1448
        %v1961 = vmul.f32 %v937, %v1449
        %v1962 = vmul.f32 %v938, %v1450
        %v1963 = vmul.f32 %v939, %v1451
        %v1964 = vmul.f32 %v940, %v1452
        %v1965 = vmul.f32 %v941, %v1453
        %v1966 = vmul.f32 %v942, %v1454
        %v1967 = vmul.f32 %v943, %v1455
        %v1968 = vmul.f32 %v944, %v1456
        %v1969 = vmul.f32 %v945, %v1457
        %v1970 = vmul.f32 %v946, %v1458
        %v1971 = vmul.f32 %v947, %v1459
        %v1972 = vmul.f32 %v948, %v1460
        %v1973 = vmul.f32 %v949, %v1461
        %v1974 = vmul.f32 %v950, %v1462
        %v1975 = vmul.f32 %v951, %v1463
        %v1976 = vmul.f32 %v952, %v1464
        %v1977 = vmul.f32 %v953, %v1465
        %v1978 = vmul.f32 %v954, %v1466
        %v1979 = vmul.f32 %v955, %v1467
        %v1980 = vmul.f32 %v956, %v1468
        %v1981 = vmul.f32 %v957, %v1469
        %v1982 = vmul.f32 %v958, %v1470
        %v1983 = vmul.f32 %v959, %v1471
        %v1984 = vmul.f32 %v960, %v1472
        %v1985 = vmul.f32 %v961, %v1473
        %v1986 = vmul.f32 %v962, %v1474
        %v1987 = vmul.f32 %v963, %v1475
        %v1988 = vmul.f32 %v964, %v1476
        %v1989 = vmul.f32 %v965, %v1477
        %v1990 = vmul.f32 %v966, %v1478
        %v1991 = vmul.f32 %v967, %v1479
        %v1992 = vmul.f32 %v968, %v1480
        %v1993 = vmul.f32 %v969, %v1481
        %v1994 = vmul.f32 %v970, %v1482
        %v1995 = vmul.f32 %v971, %v1483
        %v1996 = vmul.f32 %v972, %v1484
        %v1997 = vmul.f32 %v973, %v1485
        %v1998 = vmul.f32 %v974, %v1486
        %v1999 = vmul.f32 %v975, %v1487
        %v2000 = vmul.f32 %v976, %v1488
        %v2001 = vmul.f32 %v977, %v1489
        %v2002 = vmul.f32 %v978, %v1490
        %v2003 = vmul.f32 %v979, %v1491
        %v2004 = vmul.f32 %v980, %v1492
        %v2005 = vmul.f32 %v981, %v1493
        %v2006 = vmul.f32 %v982, %v1494
        %v2007 = vmul.f32 %v983, %v1495
        %v2008 = vmul.f32 %v984, %v1496
        %v2009 = vmul.f32 %v985, %v1497
        %v2010 = vmul.f32 %v986, %v1498
        %v2011 = vmul.f32 %v987, %v1499
        %v2012 = vmul.f32 %v988, %v1500
        %v2013 = vmul.f32 %v989, %v1501
        %v2014 = vmul.f32 %v990, %v1502
        %v2015 = vmul.f32 %v991, %v1503
        %v2016 = vmul.f32 %v992, %v1504
        %v2017 = vmul.f32 %v993, %v1505
        %v2018 = vmul.f32 %v994, %v1506
        %v2019 = vmul.f32 %v995, %v1507
        %v2020 = vmul.f32 %v996, %v1508
        %v2021 = vmul.f32 %v997, %v1509
        %v2022 = vmul.f32 %v998, %v1510
        %v2023 = vmul.f32 %v999, %v1511
        %v2024 = vmul.f32 %v1000, %v1512
        %v2025 = vmul.f32 %v1001, %v1513
        %v2026 = vmul.f32 %v1002, %v1514
        %v2027 = vmul.f32 %v1003, %v1515
        %v2028 = vmul.f32 %v1004, %v1516
        %v2029 = vmul.f32 %v1005, %v1517
        %v2030 = vmul.f32 %v1006, %v1518
        %v2031 = vmul.f32 %v1007, %v1519
        %v2032 = vmul.f32 %v1008, %v1520
        %v2033 = vmul.f32 %v1009, %v1521
        %v2034 = vmul.f32 %v1010, %v1522
        %v2035 = vmul.f32 %v1011, %v1523
        %v2036 = vmul.f32 %v1012, %v1524
        %v2037 = vmul.f32 %v1013, %v1525
        %v2038 = vmul.f32 %v1014, %v1526
        %v2039 = vmul.f32 %v1015, %v1527
        %v2040 = vmul.f32 %v1016, %v1528
        %v2041 = vmul.f32 %v1017, %v1529
        %v2042 = vmul.f32 %v1018, %v1530
        %v2043 = vmul.f32 %v1019, %v1531
        %v2044 = vmul.f32 %v1020, %v1532
        %v2045 = vmul.f32 %v1021, %v1533
        %v2046 = vmul.f32 %v1022, %v1534
        %v2047 = vmul.f32 %v1023, %v1535
        %v2048 = vmul.f32 %v1024, %v1536
        %v2049 = vmul.f32 %v1025, %v1537
        %v2050 = vmul.f32 %v1026, %v1538
        %v2051 = vmul.f32 %v1027, %v1539
        %v2052 = vmul.f32 %v1028, %v1540
        %v2053 = vmul.f32 %v1029, %v1541
        %v2054 = vmul.f32 %v1030, %v1542
        %v2055 = vmul.f32 %v1031, %v1543
        %v2056 = vmul.f32 %v1032, %v1544
        %v2057 = vmul.f32 %v1033, %v1545
        %v2058 = vmul.f32 %v1034, %v1546
        %v2059 = vmul.f32 %v1035, %v1547
        %v2060 = vmul.f32 %v1036, %v1548
        %v2061 = vmul.f32 %v1037, %v1549
        %v2062 = vmul.f32 %v1038, %v1550
        %v2063 = vmul.f32 %v1039, %v1551
        %v2064 = vmul.f32 %v1040, %v1552
        %v2065 = vmul.f32 %v1041, %v1553
        %v2066 = vmul.f32 %v1042, %v1554
        %v2067 = vmul.f32 %v1043, %v1555
        %v2068 = vmul.f32 %v1044, %v1556
        %v2069 = vmul.f32 %v1045, %v1557
        %v2070 = vmul.f32 %v1046, %v1558
        %v2071 = vmul.f32 %v1047, %v1559
        %v2072 = vmul.f32 %v1048, %v1560
        %v2073 = vmul.f32 %v1049, %v1561
        %v2074 = vmul.f32 %v1050, %v1562
        %v2075 = vmul.f32 %v1051, %v1563
        %v2076 = vmul.f32 %v1052, %v1564
        %v2077 = vmul.f32 %v1053, %v1565
        %v2078 = vmul.f32 %v1054, %v1566
        %v2079 = vmul.f32 %v1055, %v1567
        %v2080 = vmul.f32 %v1056, %v1568
        %v2081 = vmul.f32 %v1057, %v1569
        %v2082 = vmul.f32 %v1058, %v1570
        %v2083 = vmul.f32 %v1059, %v1571
        %v2084 = vmul.f32 %v1060, %v1572
        %v2085 = vmul.f32 %v1061, %v1573
        %v2086 = vmul.f32 %v1062, %v1574
        %v2087 = vmul.f32 %v1063, %v1575
        %v2088 = vmul.f32 %v1064, %v1576
        %v2089 = vmul.f32 %v1065, %v1577
        %v2090 = vmul.f32 %v1066, %v1578
        %v2091 = vmul.f32 %v1067, %v1579
        %v2092 = vmul.f32 %v1068, %v1580
        %v2093 = vmul.f32 %v1069, %v1581
        %v2094 = vmul.f32 %v1070, %v1582
        %v2095 = vmul.f32 %v1071, %v1583
        %v2096 = vmul.f32 %v1072, %v1584
        %v2097 = vmul.f32 %v1073, %v1585
        %v2098 = vmul.f32 %v1074, %v1586
        %v2099 = vmul.f32 %v1075, %v1587
        %v2100 = vmul.f32 %v1076, %v1588
        %v2101 = vmul.f32 %v1077, %v1589
        %v2102 = vmul.f32 %v1078, %v1590
        %v2103 = vmul.f32 %v1079, %v1591
        %v2104 = vmul.f32 %v1080, %v1592
        %v2105 = vmul.f32 %v1081, %v1593
        %v2106 = vmul.f32 %v1082, %v1594
        %v2107 = vmul.f32 %v1083, %v1595
        %v2108 = vmul.f32 %v1084, %v1596
        %v2109 = vmul.f32 %v1085, %v1597
        %v2110 = vmul.f32 %v1086, %v1598
        %v2111 = vmul.f32 %v1087, %v1599
        %v2112 = vmul.f32 %v1088, %v1600
        %v2113 = vmul.f32 %v1089, %v1601
        %v2114 = vmul.f32 %v1090, %v1602
        %v2115 = vmul.f32 %v1091, %v1603
        %v2116 = vmul.f32 %v1092, %v1604
        %v2117 = vmul.f32 %v1093, %v1605
        %v2118 = vmul.f32 %v1094, %v1606
        %v2119 = vmul.f32 %v1095, %v1607
        %v2120 = vmul.f32 %v1096, %v1608
        %v2121 = vmul.f32 %v1097, %v1609
        %v2122 = vmul.f32 %v1098, %v1610
        %v2123 = vmul.f32 %v1099, %v1611
        %v2124 = vmul.f32 %v1100, %v1612
        %v2125 = vmul.f32 %v1101, %v1613
        %v2126 = vmul.f32 %v1102, %v1614
        %v2127 = vmul.f32 %v1103, %v1615
        %v2128 = vmul.f32 %v1104, %v1616
        %v2129 = vmul.f32 %v1105, %v1617
        %v2130 = vmul.f32 %v1106, %v1618
        %v2131 = vmul.f32 %v1107, %v1619
        %v2132 = vmul.f32 %v1108, %v1620
        %v2133 = vmul.f32 %v1109, %v1621
        %v2134 = vmul.f32 %v1110, %v1622
        %v2135 = vmul.f32 %v1111, %v1623
        %v2136 = vmul.f32 %v1112, %v1624
        %v2137 = vmul.f32 %v1113, %v1625
        %v2138 = vmul.f32 %v1114, %v1626
        %v2139 = vmul.f32 %v1115, %v1627
        %v2140 = vmul.f32 %v1116, %v1628
        %v2141 = vmul.f32 %v1117, %v1629
        %v2142 = vmul.f32 %v1118, %v1630
        %v2143 = vmul.f32 %v1119, %v1631
        %v2144 = vmul.f32 %v1120, %v1632
        %v2145 = vmul.f32 %v1121, %v1633
        %v2146 = vmul.f32 %v1122, %v1634
        %v2147 = vmul.f32 %v1123, %v1635
        %v2148 = vmul.f32 %v1124, %v1636
        %v2149 = vmul.f32 %v1125, %v1637
        %v2150 = vmul.f32 %v1126, %v1638
        %v2151 = vmul.f32 %v1127, %v1639
        %v2152 = vmul.f32 %v1128, %v1640
        %v2153 = vmul.f32 %v1129, %v1641
        %v2154 = vmul.f32 %v1130, %v1642
        %v2155 = vmul.f32 %v1131, %v1643
        %v2156 = vmul.f32 %v1132, %v1644
        %v2157 = vmul.f32 %v1133, %v1645
        %v2158 = vmul.f32 %v1134, %v1646
        %v2159 = vmul.f32 %v1135, %v1647
        %v2160 = vmul.f32 %v1136, %v1648
        %v2161 = vmul.f32 %v1137, %v1649
        %v2162 = vmul.f32 %v1138, %v1650
        %v2163 = vmul.f32 %v1139, %v1651
        %v2164 = vmul.f32 %v1140, %v1652
        %v2165 = vmul.f32 %v1141, %v1653
        %v2166 = vmul.f32 %v1142, %v1654
        %v2167 = vmul.f32 %v1143, %v1655
        %v2168 = vmul.f32 %v1144, %v1656
        %v2169 = vmul.f32 %v1145, %v1657
        %v2170 = vmul.f32 %v1146, %v1658
        %v2171 = vmul.f32 %v1147, %v1659
        %v2172 = vmul.f32 %v1148, %v1660
        %v2173 = vmul.f32 %v1149, %v1661
        %v2174 = vmul.f32 %v1150, %v1662
        %v2175 = vmul.f32 %v1151, %v1663
        %v2176 = vmul.f32 %v1152, %v1664
        %v2177 = vmul.f32 %v1153, %v1665
        %v2178 = vmul.f32 %v1154, %v1666
        %v2179 = vmul.f32 %v1155, %v1667
        %v2180 = vmul.f32 %v1156, %v1668
        %v2181 = vmul.f32 %v1157, %v1669
        %v2182 = vmul.f32 %v1158, %v1670
        %v2183 = vmul.f32 %v1159, %v1671
        %v2184 = vmul.f32 %v1160, %v1672
        %v2185 = vmul.f32 %v1161, %v1673
        %v2186 = vmul.f32 %v1162, %v1674
        %v2187 = vmul.f32 %v1163, %v1675
        %v2188 = vmul.f32 %v1164, %v1676
        %v2189 = vmul.f32 %v1165, %v1677
        %v2190 = vmul.f32 %v1166, %v1678
        %v2191 = vmul.f32 %v1167, %v1679
        %v2192 = vmul.f32 %v1168, %v1680
        %v2193 = vmul.f32 %v1169, %v1681
        %v2194 = vmul.f32 %v1170, %v1682
        %v2195 = vmul.f32 %v1171, %v1683
        %v2196 = vmul.f32 %v1172, %v1684
        %v2197 = vmul.f32 %v1173, %v1685
        %v2198 = vmul.f32 %v1174, %v1686
        %v2199 = vmul.f32 %v1175, %v1687
        %v2200 = vmul.f32 %v1176, %v1688
        %v2201 = vmul.f32 %v1177, %v1689
        %v2202 = vmul.f32 %v1178, %v1690
        %v2203 = vmul.f32 %v1179, %v1691
        %v2204 = vmul.f32 %v1180, %v1692
        %v2205 = vmul.f32 %v1181, %v1693
        %v2206 = vmul.f32 %v1182, %v1694
        %v2207 = vmul.f32 %v1183, %v1695
        %v2208 = vmul.f32 %v1184, %v1696
        %v2209 = vmul.f32 %v1185, %v1697
        %v2210 = vmul.f32 %v1186, %v1698
        %v2211 = vmul.f32 %v1187, %v1699
        %v2212 = vmul.f32 %v1188, %v1700
        %v2213 = vmul.f32 %v1189, %v1701
        %v2214 = vmul.f32 %v1190, %v1702
        %v2215 = vmul.f32 %v1191, %v1703
        %v2216 = vmul.f32 %v1192, %v1704
        %v2217 = vmul.f32 %v1193, %v1705
        %v2218 = vmul.f32 %v1194, %v1706
        %v2219 = vmul.f32 %v1195, %v1707
        %v2220 = vmul.f32 %v1196, %v1708
        %v2221 = vmul.f32 %v1197, %v1709
        %v2222 = vmul.f32 %v1198, %v1710
        %v2223 = vmul.f32 %v1199, %v1711
        %v2224 = vmul.f32 %v1200, %v1712
        %v2225 = vmul.f32 %v1201, %v1713
        %v2226 = vmul.f32 %v1202, %v1714
        %v2227 = vmul.f32 %v1203, %v1715
        %v2228 = vmul.f32 %v1204, %v1716
        %v2229 = vmul.f32 %v1205, %v1717
        %v2230 = vmul.f32 %v1206, %v1718
        %v2231 = vmul.f32 %v1207, %v1719
        %v2232 = vmul.f32 %v1208, %v1720
        %v2233 = vmul.f32 %v1209, %v1721
        %v2234 = vmul.f32 %v1210, %v1722
        %v2235 = vmul.f32 %v1211, %v1723
        %v2236 = vmul.f32 %v1212, %v1724
        %v2237 = vmul.f32 %v1213, %v1725
        %v2238 = vmul.f32 %v1214, %v1726
        %v2239 = vmul.f32 %v1215, %v1727
        %v2240 = vmul.f32 %v1216, %v1728
        %v2241 = vmul.f32 %v1217, %v1729
        %v2242 = vmul.f32 %v1218, %v1730
        %v2243 = vmul.f32 %v1219, %v1731
        %v2244 = vmul.f32 %v1220, %v1732
        %v2245 = vmul.f32 %v1221, %v1733
        %v2246 = vmul.f32 %v1222, %v1734
        %v2247 = vmul.f32 %v1223, %v1735
        %v2248 = vmul.f32 %v1224, %v1736
        %v2249 = vmul.f32 %v1225, %v1737
        %v2250 = vmul.f32 %v1226, %v1738
        %v2251 = vmul.f32 %v1227, %v1739
        %v2252 = vmul.f32 %v1228, %v1740
        %v2253 = vadd.f32 %v1741, %v1742
        %2254 = vadd.xlane.f32.xlu0 %v2253
        %v2255 = vpop.xlane.xlu0 %2254
        %v2256 = vadd.f32 %v1743, %v1744
        %2257 = vadd.xlane.f32.xlu0 %v2256
        %v2258 = vpop.xlane.xlu0 %2257
        %v2259 = vadd.f32 %v1745, %v1746
        %2260 = vadd.xlane.f32.xlu0 %v2259
        %v2261 = vpop.xlane.xlu0 %2260
        %v2262 = vadd.f32 %v1747, %v1748
        %2263 = vadd.xlane.f32.xlu0 %v2262
        %v2264 = vpop.xlane.xlu0 %2263
        %v2265 = vadd.f32 %v1749, %v1750
        %2266 = vadd.xlane.f32.xlu0 %v2265
        %v2267 = vpop.xlane.xlu0 %2266
        %v2268 = vadd.f32 %v1751, %v1752
        %2269 = vadd.xlane.f32.xlu0 %v2268
        %v2270 = vpop.xlane.xlu0 %2269
        %v2271 = vadd.f32 %v1753, %v1754
        %2272 = vadd.xlane.f32.xlu0 %v2271
        %v2273 = vpop.xlane.xlu0 %2272
        %v2274 = vadd.f32 %v1755, %v1756
        %2275 = vadd.xlane.f32.xlu0 %v2274
        %v2276 = vpop.xlane.xlu0 %2275
        %v2277 = vadd.f32 %v1757, %v1758
        %2278 = vadd.xlane.f32.xlu0 %v2277
        %v2279 = vpop.xlane.xlu0 %2278
        %v2280 = vadd.f32 %v1759, %v1760
        %2281 = vadd.xlane.f32.xlu0 %v2280
        %v2282 = vpop.xlane.xlu0 %2281
        %v2283 = vadd.f32 %v1761, %v1762
        %2284 = vadd.xlane.f32.xlu0 %v2283
        %v2285 = vpop.xlane.xlu0 %2284
        %v2286 = vadd.f32 %v1763, %v1764
        %2287 = vadd.xlane.f32.xlu0 %v2286
        %v2288 = vpop.xlane.xlu0 %2287
        %v2289 = vadd.f32 %v1765, %v1766
        %2290 = vadd.xlane.f32.xlu0 %v2289
        %v2291 = vpop.xlane.xlu0 %2290
        %v2292 = vadd.f32 %v1767, %v1768
        %2293 = vadd.xlane.f32.xlu0 %v2292
        %v2294 = vpop.xlane.xlu0 %2293
        %v2295 = vadd.f32 %v1769, %v1770
        %2296 = vadd.xlane.f32.xlu0 %v2295
        %v2297 = vpop.xlane.xlu0 %2296
        %v2298 = vadd.f32 %v1771, %v1772
        %2299 = vadd.xlane.f32.xlu0 %v2298
        %v2300 = vpop.xlane.xlu0 %2299
        %v2301 = vadd.f32 %v1773, %v1774
        %2302 = vadd.xlane.f32.xlu0 %v2301
        %v2303 = vpop.xlane.xlu0 %2302
        %v2304 = vadd.f32 %v1775, %v1776
        %2305 = vadd.xlane.f32.xlu0 %v2304
        %v2306 = vpop.xlane.xlu0 %2305
        %v2307 = vadd.f32 %v1777, %v1778
        %2308 = vadd.xlane.f32.xlu0 %v2307
        %v2309 = vpop.xlane.xlu0 %2308
        %v2310 = vadd.f32 %v1779, %v1780
        %2311 = vadd.xlane.f32.xlu0 %v2310
        %v2312 = vpop.xlane.xlu0 %2311
        %v2313 = vadd.f32 %v1781, %v1782
        %2314 = vadd.xlane.f32.xlu0 %v2313
        %v2315 = vpop.xlane.xlu0 %2314
        %v2316 = vadd.f32 %v1783, %v1784
        %2317 = vadd.xlane.f32.xlu0 %v2316
        %v2318 = vpop.xlane.xlu0 %2317
        %v2319 = vadd.f32 %v1785, %v1786
        %2320 = vadd.xlane.f32.xlu0 %v2319
        %v2321 = vpop.xlane.xlu0 %2320
        %v2322 = vadd.f32 %v1787, %v1788
        %2323 = vadd.xlane.f32.xlu0 %v2322
        %v2324 = vpop.xlane.xlu0 %2323
        %v2325 = vadd.f32 %v1789, %v1790
        %2326 = vadd.xlane.f32.xlu0 %v2325
        %v2327 = vpop.xlane.xlu0 %2326
        %v2328 = vadd.f32 %v1791, %v1792
        %2329 = vadd.xlane.f32.xlu0 %v2328
        %v2330 = vpop.xlane.xlu0 %2329
        %v2331 = vadd.f32 %v1793, %v1794
        %2332 = vadd.xlane.f32.xlu0 %v2331
        %v2333 = vpop.xlane.xlu0 %2332
        %v2334 = vadd.f32 %v1795, %v1796
        %2335 = vadd.xlane.f32.xlu0 %v2334
        %v2336 = vpop.xlane.xlu0 %2335
        %v2337 = vadd.f32 %v1797, %v1798
        %2338 = vadd.xlane.f32.xlu0 %v2337
        %v2339 = vpop.xlane.xlu0 %2338
        %v2340 = vadd.f32 %v1799, %v1800
        %2341 = vadd.xlane.f32.xlu0 %v2340
        %v2342 = vpop.xlane.xlu0 %2341
        %v2343 = vadd.f32 %v1801, %v1802
        %2344 = vadd.xlane.f32.xlu0 %v2343
        %v2345 = vpop.xlane.xlu0 %2344
        %v2346 = vadd.f32 %v1803, %v1804
        %2347 = vadd.xlane.f32.xlu0 %v2346
        %v2348 = vpop.xlane.xlu0 %2347
        %v2349 = vadd.f32 %v1805, %v1806
        %2350 = vadd.xlane.f32.xlu0 %v2349
        %v2351 = vpop.xlane.xlu0 %2350
        %v2352 = vadd.f32 %v1807, %v1808
        %2353 = vadd.xlane.f32.xlu0 %v2352
        %v2354 = vpop.xlane.xlu0 %2353
        %v2355 = vadd.f32 %v1809, %v1810
        %2356 = vadd.xlane.f32.xlu0 %v2355
        %v2357 = vpop.xlane.xlu0 %2356
        %v2358 = vadd.f32 %v1811, %v1812
        %2359 = vadd.xlane.f32.xlu0 %v2358
        %v2360 = vpop.xlane.xlu0 %2359
        %v2361 = vadd.f32 %v1813, %v1814
        %2362 = vadd.xlane.f32.xlu0 %v2361
        %v2363 = vpop.xlane.xlu0 %2362
        %v2364 = vadd.f32 %v1815, %v1816
        %2365 = vadd.xlane.f32.xlu0 %v2364
        %v2366 = vpop.xlane.xlu0 %2365
        %v2367 = vadd.f32 %v1817, %v1818
        %2368 = vadd.xlane.f32.xlu0 %v2367
        %v2369 = vpop.xlane.xlu0 %2368
        %v2370 = vadd.f32 %v1819, %v1820
        %2371 = vadd.xlane.f32.xlu0 %v2370
        %v2372 = vpop.xlane.xlu0 %2371
        %v2373 = vadd.f32 %v1821, %v1822
        %2374 = vadd.xlane.f32.xlu0 %v2373
        %v2375 = vpop.xlane.xlu0 %2374
        %v2376 = vadd.f32 %v1823, %v1824
        %2377 = vadd.xlane.f32.xlu0 %v2376
        %v2378 = vpop.xlane.xlu0 %2377
        %v2379 = vadd.f32 %v1825, %v1826
        %2380 = vadd.xlane.f32.xlu0 %v2379
        %v2381 = vpop.xlane.xlu0 %2380
        %v2382 = vadd.f32 %v1827, %v1828
        %2383 = vadd.xlane.f32.xlu0 %v2382
        %v2384 = vpop.xlane.xlu0 %2383
        %v2385 = vadd.f32 %v1829, %v1830
        %2386 = vadd.xlane.f32.xlu0 %v2385
        %v2387 = vpop.xlane.xlu0 %2386
        %v2388 = vadd.f32 %v1831, %v1832
        %2389 = vadd.xlane.f32.xlu0 %v2388
        %v2390 = vpop.xlane.xlu0 %2389
        %v2391 = vadd.f32 %v1833, %v1834
        %2392 = vadd.xlane.f32.xlu0 %v2391
        %v2393 = vpop.xlane.xlu0 %2392
        %v2394 = vadd.f32 %v1835, %v1836
        %2395 = vadd.xlane.f32.xlu0 %v2394
        %v2396 = vpop.xlane.xlu0 %2395
        %v2397 = vadd.f32 %v1837, %v1838
        %2398 = vadd.xlane.f32.xlu0 %v2397
        %v2399 = vpop.xlane.xlu0 %2398
        %v2400 = vadd.f32 %v1839, %v1840
        %2401 = vadd.xlane.f32.xlu0 %v2400
        %v2402 = vpop.xlane.xlu0 %2401
        %v2403 = vadd.f32 %v1841, %v1842
        %2404 = vadd.xlane.f32.xlu0 %v2403
        %v2405 = vpop.xlane.xlu0 %2404
        %v2406 = vadd.f32 %v1843, %v1844
        %2407 = vadd.xlane.f32.xlu0 %v2406
        %v2408 = vpop.xlane.xlu0 %2407
        %v2409 = vadd.f32 %v1845, %v1846
        %2410 = vadd.xlane.f32.xlu0 %v2409
        %v2411 = vpop.xlane.xlu0 %2410
        %v2412 = vadd.f32 %v1847, %v1848
        %2413 = vadd.xlane.f32.xlu0 %v2412
        %v2414 = vpop.xlane.xlu0 %2413
        %v2415 = vadd.f32 %v1849, %v1850
        %2416 = vadd.xlane.f32.xlu0 %v2415
        %v2417 = vpop.xlane.xlu0 %2416
        %v2418 = vadd.f32 %v1851, %v1852
        %2419 = vadd.xlane.f32.xlu0 %v2418
        %v2420 = vpop.xlane.xlu0 %2419
        %v2421 = vadd.f32 %v1853, %v1854
        %2422 = vadd.xlane.f32.xlu0 %v2421
        %v2423 = vpop.xlane.xlu0 %2422
        %v2424 = vadd.f32 %v1855, %v1856
        %2425 = vadd.xlane.f32.xlu0 %v2424
        %v2426 = vpop.xlane.xlu0 %2425
        %v2427 = vadd.f32 %v1857, %v1858
        %2428 = vadd.xlane.f32.xlu0 %v2427
        %v2429 = vpop.xlane.xlu0 %2428
        %v2430 = vadd.f32 %v1859, %v1860
        %2431 = vadd.xlane.f32.xlu0 %v2430
        %v2432 = vpop.xlane.xlu0 %2431
        %v2433 = vadd.f32 %v1861, %v1862
        %2434 = vadd.xlane.f32.xlu0 %v2433
        %v2435 = vpop.xlane.xlu0 %2434
        %v2436 = vadd.f32 %v1863, %v1864
        %2437 = vadd.xlane.f32.xlu0 %v2436
        %v2438 = vpop.xlane.xlu0 %2437
        %v2439 = vadd.f32 %v1865, %v1866
        %2440 = vadd.xlane.f32.xlu0 %v2439
        %v2441 = vpop.xlane.xlu0 %2440
        %v2442 = vadd.f32 %v1867, %v1868
        %2443 = vadd.xlane.f32.xlu0 %v2442
        %v2444 = vpop.xlane.xlu0 %2443
        %v2445 = vadd.f32 %v1869, %v1870
        %2446 = vadd.xlane.f32.xlu0 %v2445
        %v2447 = vpop.xlane.xlu0 %2446
        %v2448 = vadd.f32 %v1871, %v1872
        %2449 = vadd.xlane.f32.xlu0 %v2448
        %v2450 = vpop.xlane.xlu0 %2449
        %v2451 = vadd.f32 %v1873, %v1874
        %2452 = vadd.xlane.f32.xlu0 %v2451
        %v2453 = vpop.xlane.xlu0 %2452
        %v2454 = vadd.f32 %v1875, %v1876
        %2455 = vadd.xlane.f32.xlu0 %v2454
        %v2456 = vpop.xlane.xlu0 %2455
        %v2457 = vadd.f32 %v1877, %v1878
        %2458 = vadd.xlane.f32.xlu0 %v2457
        %v2459 = vpop.xlane.xlu0 %2458
        %v2460 = vadd.f32 %v1879, %v1880
        %2461 = vadd.xlane.f32.xlu0 %v2460
        %v2462 = vpop.xlane.xlu0 %2461
        %v2463 = vadd.f32 %v1881, %v1882
        %2464 = vadd.xlane.f32.xlu0 %v2463
        %v2465 = vpop.xlane.xlu0 %2464
        %v2466 = vadd.f32 %v1883, %v1884
        %2467 = vadd.xlane.f32.xlu0 %v2466
        %v2468 = vpop.xlane.xlu0 %2467
        %v2469 = vadd.f32 %v1885, %v1886
        %2470 = vadd.xlane.f32.xlu0 %v2469
        %v2471 = vpop.xlane.xlu0 %2470
        %v2472 = vadd.f32 %v1887, %v1888
        %2473 = vadd.xlane.f32.xlu0 %v2472
        %v2474 = vpop.xlane.xlu0 %2473
        %v2475 = vadd.f32 %v1889, %v1890
        %2476 = vadd.xlane.f32.xlu0 %v2475
        %v2477 = vpop.xlane.xlu0 %2476
        %v2478 = vadd.f32 %v1891, %v1892
        %2479 = vadd.xlane.f32.xlu0 %v2478
        %v2480 = vpop.xlane.xlu0 %2479
        %v2481 = vadd.f32 %v1893, %v1894
        %2482 = vadd.xlane.f32.xlu0 %v2481
        %v2483 = vpop.xlane.xlu0 %2482
        %v2484 = vadd.f32 %v1895, %v1896
        %2485 = vadd.xlane.f32.xlu0 %v2484
        %v2486 = vpop.xlane.xlu0 %2485
        %v2487 = vadd.f32 %v1897, %v1898
        %2488 = vadd.xlane.f32.xlu0 %v2487
        %v2489 = vpop.xlane.xlu0 %2488
        %v2490 = vadd.f32 %v1899, %v1900
        %2491 = vadd.xlane.f32.xlu0 %v2490
        %v2492 = vpop.xlane.xlu0 %2491
        %v2493 = vadd.f32 %v1901, %v1902
        %2494 = vadd.xlane.f32.xlu0 %v2493
        %v2495 = vpop.xlane.xlu0 %2494
        %v2496 = vadd.f32 %v1903, %v1904
        %2497 = vadd.xlane.f32.xlu0 %v2496
        %v2498 = vpop.xlane.xlu0 %2497
        %v2499 = vadd.f32 %v1905, %v1906
        %2500 = vadd.xlane.f32.xlu0 %v2499
        %v2501 = vpop.xlane.xlu0 %2500
        %v2502 = vadd.f32 %v1907, %v1908
        %2503 = vadd.xlane.f32.xlu0 %v2502
        %v2504 = vpop.xlane.xlu0 %2503
        %v2505 = vadd.f32 %v1909, %v1910
        %2506 = vadd.xlane.f32.xlu0 %v2505
        %v2507 = vpop.xlane.xlu0 %2506
        %v2508 = vadd.f32 %v1911, %v1912
        %2509 = vadd.xlane.f32.xlu0 %v2508
        %v2510 = vpop.xlane.xlu0 %2509
        %v2511 = vadd.f32 %v1913, %v1914
        %2512 = vadd.xlane.f32.xlu0 %v2511
        %v2513 = vpop.xlane.xlu0 %2512
        %v2514 = vadd.f32 %v1915, %v1916
        %2515 = vadd.xlane.f32.xlu0 %v2514
        %v2516 = vpop.xlane.xlu0 %2515
        %v2517 = vadd.f32 %v1917, %v1918
        %2518 = vadd.xlane.f32.xlu0 %v2517
        %v2519 = vpop.xlane.xlu0 %2518
        %v2520 = vadd.f32 %v1919, %v1920
        %2521 = vadd.xlane.f32.xlu0 %v2520
        %v2522 = vpop.xlane.xlu0 %2521
        %v2523 = vadd.f32 %v1921, %v1922
        %2524 = vadd.xlane.f32.xlu0 %v2523
        %v2525 = vpop.xlane.xlu0 %2524
        %v2526 = vadd.f32 %v1923, %v1924
        %2527 = vadd.xlane.f32.xlu0 %v2526
        %v2528 = vpop.xlane.xlu0 %2527
        %v2529 = vadd.f32 %v1925, %v1926
        %2530 = vadd.xlane.f32.xlu0 %v2529
        %v2531 = vpop.xlane.xlu0 %2530
        %v2532 = vadd.f32 %v1927, %v1928
        %2533 = vadd.xlane.f32.xlu0 %v2532
        %v2534 = vpop.xlane.xlu0 %2533
        %v2535 = vadd.f32 %v1929, %v1930
        %2536 = vadd.xlane.f32.xlu0 %v2535
        %v2537 = vpop.xlane.xlu0 %2536
        %v2538 = vadd.f32 %v1931, %v1932
        %2539 = vadd.xlane.f32.xlu0 %v2538
        %v2540 = vpop.xlane.xlu0 %2539
        %v2541 = vadd.f32 %v1933, %v1934
        %2542 = vadd.xlane.f32.xlu0 %v2541
        %v2543 = vpop.xlane.xlu0 %2542
        %v2544 = vadd.f32 %v1935, %v1936
        %2545 = vadd.xlane.f32.xlu0 %v2544
        %v2546 = vpop.xlane.xlu0 %2545
        %v2547 = vadd.f32 %v1937, %v1938
        %2548 = vadd.xlane.f32.xlu0 %v2547
        %v2549 = vpop.xlane.xlu0 %2548
        %v2550 = vadd.f32 %v1939, %v1940
        %2551 = vadd.xlane.f32.xlu0 %v2550
        %v2552 = vpop.xlane.xlu0 %2551
        %v2553 = vadd.f32 %v1941, %v1942
        %2554 = vadd.xlane.f32.xlu0 %v2553
        %v2555 = vpop.xlane.xlu0 %2554
        %v2556 = vadd.f32 %v1943, %v1944
        %2557 = vadd.xlane.f32.xlu0 %v2556
        %v2558 = vpop.xlane.xlu0 %2557
        %v2559 = vadd.f32 %v1945, %v1946
        %2560 = vadd.xlane.f32.xlu0 %v2559
        %v2561 = vpop.xlane.xlu0 %2560
        %v2562 = vadd.f32 %v1947, %v1948
        %2563 = vadd.xlane.f32.xlu0 %v2562
        %v2564 = vpop.xlane.xlu0 %2563
        %v2565 = vadd.f32 %v1949, %v1950
        %2566 = vadd.xlane.f32.xlu0 %v2565
        %v2567 = vpop.xlane.xlu0 %2566
        %v2568 = vadd.f32 %v1951, %v1952
        %2569 = vadd.xlane.f32.xlu0 %v2568
        %v2570 = vpop.xlane.xlu0 %2569
        %v2571 = vadd.f32 %v1953, %v1954
        %2572 = vadd.xlane.f32.xlu0 %v2571
        %v2573 = vpop.xlane.xlu0 %2572
        %v2574 = vadd.f32 %v1955, %v1956
        %2575 = vadd.xlane.f32.xlu0 %v2574
        %v2576 = vpop.xlane.xlu0 %2575
        %v2577 = vadd.f32 %v1957, %v1958
        %2578 = vadd.xlane.f32.xlu0 %v2577
        %v2579 = vpop.xlane.xlu0 %2578
        %v2580 = vadd.f32 %v1959, %v1960
        %2581 = vadd.xlane.f32.xlu0 %v2580
        %v2582 = vpop.xlane.xlu0 %2581
        %v2583 = vadd.f32 %v1961, %v1962
        %2584 = vadd.xlane.f32.xlu0 %v2583
        %v2585 = vpop.xlane.xlu0 %2584
        %v2586 = vadd.f32 %v1963, %v1964
        %2587 = vadd.xlane.f32.xlu0 %v2586
        %v2588 = vpop.xlane.xlu0 %2587
        %v2589 = vadd.f32 %v1965, %v1966
        %2590 = vadd.xlane.f32.xlu0 %v2589
        %v2591 = vpop.xlane.xlu0 %2590
        %v2592 = vadd.f32 %v1967, %v1968
        %2593 = vadd.xlane.f32.xlu0 %v2592
        %v2594 = vpop.xlane.xlu0 %2593
        %v2595 = vadd.f32 %v1969, %v1970
        %2596 = vadd.xlane.f32.xlu0 %v2595
        %v2597 = vpop.xlane.xlu0 %2596
        %v2598 = vadd.f32 %v1971, %v1972
        %2599 = vadd.xlane.f32.xlu0 %v2598
        %v2600 = vpop.xlane.xlu0 %2599
        %v2601 = vadd.f32 %v1973, %v1974
        %2602 = vadd.xlane.f32.xlu0 %v2601
        %v2603 = vpop.xlane.xlu0 %2602
        %v2604 = vadd.f32 %v1975, %v1976
        %2605 = vadd.xlane.f32.xlu0 %v2604
        %v2606 = vpop.xlane.xlu0 %2605
        %v2607 = vadd.f32 %v1977, %v1978
        %2608 = vadd.xlane.f32.xlu0 %v2607
        %v2609 = vpop.xlane.xlu0 %2608
        %v2610 = vadd.f32 %v1979, %v1980
        %2611 = vadd.xlane.f32.xlu0 %v2610
        %v2612 = vpop.xlane.xlu0 %2611
        %v2613 = vadd.f32 %v1981, %v1982
        %2614 = vadd.xlane.f32.xlu0 %v2613
        %v2615 = vpop.xlane.xlu0 %2614
        %v2616 = vadd.f32 %v1983, %v1984
        %2617 = vadd.xlane.f32.xlu0 %v2616
        %v2618 = vpop.xlane.xlu0 %2617
        %v2619 = vadd.f32 %v1985, %v1986
        %2620 = vadd.xlane.f32.xlu0 %v2619
        %v2621 = vpop.xlane.xlu0 %2620
        %v2622 = vadd.f32 %v1987, %v1988
        %2623 = vadd.xlane.f32.xlu0 %v2622
        %v2624 = vpop.xlane.xlu0 %2623
        %v2625 = vadd.f32 %v1989, %v1990
        %2626 = vadd.xlane.f32.xlu0 %v2625
        %v2627 = vpop.xlane.xlu0 %2626
        %v2628 = vadd.f32 %v1991, %v1992
        %2629 = vadd.xlane.f32.xlu0 %v2628
        %v2630 = vpop.xlane.xlu0 %2629
        %v2631 = vadd.f32 %v1993, %v1994
        %2632 = vadd.xlane.f32.xlu0 %v2631
        %v2633 = vpop.xlane.xlu0 %2632
        %v2634 = vadd.f32 %v1995, %v1996
        %2635 = vadd.xlane.f32.xlu0 %v2634
        %v2636 = vpop.xlane.xlu0 %2635
        %v2637 = vadd.f32 %v1997, %v1998
        %2638 = vadd.xlane.f32.xlu0 %v2637
        %v2639 = vpop.xlane.xlu0 %2638
        %v2640 = vadd.f32 %v1999, %v2000
        %2641 = vadd.xlane.f32.xlu0 %v2640
        %v2642 = vpop.xlane.xlu0 %2641
        %v2643 = vadd.f32 %v2001, %v2002
        %2644 = vadd.xlane.f32.xlu0 %v2643
        %v2645 = vpop.xlane.xlu0 %2644
        %v2646 = vadd.f32 %v2003, %v2004
        %2647 = vadd.xlane.f32.xlu0 %v2646
        %v2648 = vpop.xlane.xlu0 %2647
        %v2649 = vadd.f32 %v2005, %v2006
        %2650 = vadd.xlane.f32.xlu0 %v2649
        %v2651 = vpop.xlane.xlu0 %2650
        %v2652 = vadd.f32 %v2007, %v2008
        %2653 = vadd.xlane.f32.xlu0 %v2652
        %v2654 = vpop.xlane.xlu0 %2653
        %v2655 = vadd.f32 %v2009, %v2010
        %2656 = vadd.xlane.f32.xlu0 %v2655
        %v2657 = vpop.xlane.xlu0 %2656
        %v2658 = vadd.f32 %v2011, %v2012
        %2659 = vadd.xlane.f32.xlu0 %v2658
        %v2660 = vpop.xlane.xlu0 %2659
        %v2661 = vadd.f32 %v2013, %v2014
        %2662 = vadd.xlane.f32.xlu0 %v2661
        %v2663 = vpop.xlane.xlu0 %2662
        %v2664 = vadd.f32 %v2015, %v2016
        %2665 = vadd.xlane.f32.xlu0 %v2664
        %v2666 = vpop.xlane.xlu0 %2665
        %v2667 = vadd.f32 %v2017, %v2018
        %2668 = vadd.xlane.f32.xlu0 %v2667
        %v2669 = vpop.xlane.xlu0 %2668
        %v2670 = vadd.f32 %v2019, %v2020
        %2671 = vadd.xlane.f32.xlu0 %v2670
        %v2672 = vpop.xlane.xlu0 %2671
        %v2673 = vadd.f32 %v2021, %v2022
        %2674 = vadd.xlane.f32.xlu0 %v2673
        %v2675 = vpop.xlane.xlu0 %2674
        %v2676 = vadd.f32 %v2023, %v2024
        %2677 = vadd.xlane.f32.xlu0 %v2676
        %v2678 = vpop.xlane.xlu0 %2677
        %v2679 = vadd.f32 %v2025, %v2026
        %2680 = vadd.xlane.f32.xlu0 %v2679
        %v2681 = vpop.xlane.xlu0 %2680
        %v2682 = vadd.f32 %v2027, %v2028
        %2683 = vadd.xlane.f32.xlu0 %v2682
        %v2684 = vpop.xlane.xlu0 %2683
        %v2685 = vadd.f32 %v2029, %v2030
        %2686 = vadd.xlane.f32.xlu0 %v2685
        %v2687 = vpop.xlane.xlu0 %2686
        %v2688 = vadd.f32 %v2031, %v2032
        %2689 = vadd.xlane.f32.xlu0 %v2688
        %v2690 = vpop.xlane.xlu0 %2689
        %v2691 = vadd.f32 %v2033, %v2034
        %2692 = vadd.xlane.f32.xlu0 %v2691
        %v2693 = vpop.xlane.xlu0 %2692
        %v2694 = vadd.f32 %v2035, %v2036
        %2695 = vadd.xlane.f32.xlu0 %v2694
        %v2696 = vpop.xlane.xlu0 %2695
        %v2697 = vadd.f32 %v2037, %v2038
        %2698 = vadd.xlane.f32.xlu0 %v2697
        %v2699 = vpop.xlane.xlu0 %2698
        %v2700 = vadd.f32 %v2039, %v2040
        %2701 = vadd.xlane.f32.xlu0 %v2700
        %v2702 = vpop.xlane.xlu0 %2701
        %v2703 = vadd.f32 %v2041, %v2042
        %2704 = vadd.xlane.f32.xlu0 %v2703
        %v2705 = vpop.xlane.xlu0 %2704
        %v2706 = vadd.f32 %v2043, %v2044
        %2707 = vadd.xlane.f32.xlu0 %v2706
        %v2708 = vpop.xlane.xlu0 %2707
        %v2709 = vadd.f32 %v2045, %v2046
        %2710 = vadd.xlane.f32.xlu0 %v2709
        %v2711 = vpop.xlane.xlu0 %2710
        %v2712 = vadd.f32 %v2047, %v2048
        %2713 = vadd.xlane.f32.xlu0 %v2712
        %v2714 = vpop.xlane.xlu0 %2713
        %v2715 = vadd.f32 %v2049, %v2050
        %2716 = vadd.xlane.f32.xlu0 %v2715
        %v2717 = vpop.xlane.xlu0 %2716
        %v2718 = vadd.f32 %v2051, %v2052
        %2719 = vadd.xlane.f32.xlu0 %v2718
        %v2720 = vpop.xlane.xlu0 %2719
        %v2721 = vadd.f32 %v2053, %v2054
        %2722 = vadd.xlane.f32.xlu0 %v2721
        %v2723 = vpop.xlane.xlu0 %2722
        %v2724 = vadd.f32 %v2055, %v2056
        %2725 = vadd.xlane.f32.xlu0 %v2724
        %v2726 = vpop.xlane.xlu0 %2725
        %v2727 = vadd.f32 %v2057, %v2058
        %2728 = vadd.xlane.f32.xlu0 %v2727
        %v2729 = vpop.xlane.xlu0 %2728
        %v2730 = vadd.f32 %v2059, %v2060
        %2731 = vadd.xlane.f32.xlu0 %v2730
        %v2732 = vpop.xlane.xlu0 %2731
        %v2733 = vadd.f32 %v2061, %v2062
        %2734 = vadd.xlane.f32.xlu0 %v2733
        %v2735 = vpop.xlane.xlu0 %2734
        %v2736 = vadd.f32 %v2063, %v2064
        %2737 = vadd.xlane.f32.xlu0 %v2736
        %v2738 = vpop.xlane.xlu0 %2737
        %v2739 = vadd.f32 %v2065, %v2066
        %2740 = vadd.xlane.f32.xlu0 %v2739
        %v2741 = vpop.xlane.xlu0 %2740
        %v2742 = vadd.f32 %v2067, %v2068
        %2743 = vadd.xlane.f32.xlu0 %v2742
        %v2744 = vpop.xlane.xlu0 %2743
        %v2745 = vadd.f32 %v2069, %v2070
        %2746 = vadd.xlane.f32.xlu0 %v2745
        %v2747 = vpop.xlane.xlu0 %2746
        %v2748 = vadd.f32 %v2071, %v2072
        %2749 = vadd.xlane.f32.xlu0 %v2748
        %v2750 = vpop.xlane.xlu0 %2749
        %v2751 = vadd.f32 %v2073, %v2074
        %2752 = vadd.xlane.f32.xlu0 %v2751
        %v2753 = vpop.xlane.xlu0 %2752
        %v2754 = vadd.f32 %v2075, %v2076
        %2755 = vadd.xlane.f32.xlu0 %v2754
        %v2756 = vpop.xlane.xlu0 %2755
        %v2757 = vadd.f32 %v2077, %v2078
        %2758 = vadd.xlane.f32.xlu0 %v2757
        %v2759 = vpop.xlane.xlu0 %2758
        %v2760 = vadd.f32 %v2079, %v2080
        %2761 = vadd.xlane.f32.xlu0 %v2760
        %v2762 = vpop.xlane.xlu0 %2761
        %v2763 = vadd.f32 %v2081, %v2082
        %2764 = vadd.xlane.f32.xlu0 %v2763
        %v2765 = vpop.xlane.xlu0 %2764
        %v2766 = vadd.f32 %v2083, %v2084
        %2767 = vadd.xlane.f32.xlu0 %v2766
        %v2768 = vpop.xlane.xlu0 %2767
        %v2769 = vadd.f32 %v2085, %v2086
        %2770 = vadd.xlane.f32.xlu0 %v2769
        %v2771 = vpop.xlane.xlu0 %2770
        %v2772 = vadd.f32 %v2087, %v2088
        %2773 = vadd.xlane.f32.xlu0 %v2772
        %v2774 = vpop.xlane.xlu0 %2773
        %v2775 = vadd.f32 %v2089, %v2090
        %2776 = vadd.xlane.f32.xlu0 %v2775
        %v2777 = vpop.xlane.xlu0 %2776
        %v2778 = vadd.f32 %v2091, %v2092
        %2779 = vadd.xlane.f32.xlu0 %v2778
        %v2780 = vpop.xlane.xlu0 %2779
        %v2781 = vadd.f32 %v2093, %v2094
        %2782 = vadd.xlane.f32.xlu0 %v2781
        %v2783 = vpop.xlane.xlu0 %2782
        %v2784 = vadd.f32 %v2095, %v2096
        %2785 = vadd.xlane.f32.xlu0 %v2784
        %v2786 = vpop.xlane.xlu0 %2785
        %v2787 = vadd.f32 %v2097, %v2098
        %2788 = vadd.xlane.f32.xlu0 %v2787
        %v2789 = vpop.xlane.xlu0 %2788
        %v2790 = vadd.f32 %v2099, %v2100
        %2791 = vadd.xlane.f32.xlu0 %v2790
        %v2792 = vpop.xlane.xlu0 %2791
        %v2793 = vadd.f32 %v2101, %v2102
        %2794 = vadd.xlane.f32.xlu0 %v2793
        %v2795 = vpop.xlane.xlu0 %2794
        %v2796 = vadd.f32 %v2103, %v2104
        %2797 = vadd.xlane.f32.xlu0 %v2796
        %v2798 = vpop.xlane.xlu0 %2797
        %v2799 = vadd.f32 %v2105, %v2106
        %2800 = vadd.xlane.f32.xlu0 %v2799
        %v2801 = vpop.xlane.xlu0 %2800
        %v2802 = vadd.f32 %v2107, %v2108
        %2803 = vadd.xlane.f32.xlu0 %v2802
        %v2804 = vpop.xlane.xlu0 %2803
        %v2805 = vadd.f32 %v2109, %v2110
        %2806 = vadd.xlane.f32.xlu0 %v2805
        %v2807 = vpop.xlane.xlu0 %2806
        %v2808 = vadd.f32 %v2111, %v2112
        %2809 = vadd.xlane.f32.xlu0 %v2808
        %v2810 = vpop.xlane.xlu0 %2809
        %v2811 = vadd.f32 %v2113, %v2114
        %2812 = vadd.xlane.f32.xlu0 %v2811
        %v2813 = vpop.xlane.xlu0 %2812
        %v2814 = vadd.f32 %v2115, %v2116
        %2815 = vadd.xlane.f32.xlu0 %v2814
        %v2816 = vpop.xlane.xlu0 %2815
        %v2817 = vadd.f32 %v2117, %v2118
        %2818 = vadd.xlane.f32.xlu0 %v2817
        %v2819 = vpop.xlane.xlu0 %2818
        %v2820 = vadd.f32 %v2119, %v2120
        %2821 = vadd.xlane.f32.xlu0 %v2820
        %v2822 = vpop.xlane.xlu0 %2821
        %v2823 = vadd.f32 %v2121, %v2122
        %2824 = vadd.xlane.f32.xlu0 %v2823
        %v2825 = vpop.xlane.xlu0 %2824
        %v2826 = vadd.f32 %v2123, %v2124
        %2827 = vadd.xlane.f32.xlu0 %v2826
        %v2828 = vpop.xlane.xlu0 %2827
        %v2829 = vadd.f32 %v2125, %v2126
        %2830 = vadd.xlane.f32.xlu0 %v2829
        %v2831 = vpop.xlane.xlu0 %2830
        %v2832 = vadd.f32 %v2127, %v2128
        %2833 = vadd.xlane.f32.xlu0 %v2832
        %v2834 = vpop.xlane.xlu0 %2833
        %v2835 = vadd.f32 %v2129, %v2130
        %2836 = vadd.xlane.f32.xlu0 %v2835
        %v2837 = vpop.xlane.xlu0 %2836
        %v2838 = vadd.f32 %v2131, %v2132
        %2839 = vadd.xlane.f32.xlu0 %v2838
        %v2840 = vpop.xlane.xlu0 %2839
        %v2841 = vadd.f32 %v2133, %v2134
        %2842 = vadd.xlane.f32.xlu0 %v2841
        %v2843 = vpop.xlane.xlu0 %2842
        %v2844 = vadd.f32 %v2135, %v2136
        %2845 = vadd.xlane.f32.xlu0 %v2844
        %v2846 = vpop.xlane.xlu0 %2845
        %v2847 = vadd.f32 %v2137, %v2138
        %2848 = vadd.xlane.f32.xlu0 %v2847
        %v2849 = vpop.xlane.xlu0 %2848
        %v2850 = vadd.f32 %v2139, %v2140
        %2851 = vadd.xlane.f32.xlu0 %v2850
        %v2852 = vpop.xlane.xlu0 %2851
        %v2853 = vadd.f32 %v2141, %v2142
        %2854 = vadd.xlane.f32.xlu0 %v2853
        %v2855 = vpop.xlane.xlu0 %2854
        %v2856 = vadd.f32 %v2143, %v2144
        %2857 = vadd.xlane.f32.xlu0 %v2856
        %v2858 = vpop.xlane.xlu0 %2857
        %v2859 = vadd.f32 %v2145, %v2146
        %2860 = vadd.xlane.f32.xlu0 %v2859
        %v2861 = vpop.xlane.xlu0 %2860
        %v2862 = vadd.f32 %v2147, %v2148
        %2863 = vadd.xlane.f32.xlu0 %v2862
        %v2864 = vpop.xlane.xlu0 %2863
        %v2865 = vadd.f32 %v2149, %v2150
        %2866 = vadd.xlane.f32.xlu0 %v2865
        %v2867 = vpop.xlane.xlu0 %2866
        %v2868 = vadd.f32 %v2151, %v2152
        %2869 = vadd.xlane.f32.xlu0 %v2868
        %v2870 = vpop.xlane.xlu0 %2869
        %v2871 = vadd.f32 %v2153, %v2154
        %2872 = vadd.xlane.f32.xlu0 %v2871
        %v2873 = vpop.xlane.xlu0 %2872
        %v2874 = vadd.f32 %v2155, %v2156
        %2875 = vadd.xlane.f32.xlu0 %v2874
        %v2876 = vpop.xlane.xlu0 %2875
        %v2877 = vadd.f32 %v2157, %v2158
        %2878 = vadd.xlane.f32.xlu0 %v2877
        %v2879 = vpop.xlane.xlu0 %2878
        %v2880 = vadd.f32 %v2159, %v2160
        %2881 = vadd.xlane.f32.xlu0 %v2880
        %v2882 = vpop.xlane.xlu0 %2881
        %v2883 = vadd.f32 %v2161, %v2162
        %2884 = vadd.xlane.f32.xlu0 %v2883
        %v2885 = vpop.xlane.xlu0 %2884
        %v2886 = vadd.f32 %v2163, %v2164
        %2887 = vadd.xlane.f32.xlu0 %v2886
        %v2888 = vpop.xlane.xlu0 %2887
        %v2889 = vadd.f32 %v2165, %v2166
        %2890 = vadd.xlane.f32.xlu0 %v2889
        %v2891 = vpop.xlane.xlu0 %2890
        %v2892 = vadd.f32 %v2167, %v2168
        %2893 = vadd.xlane.f32.xlu0 %v2892
        %v2894 = vpop.xlane.xlu0 %2893
        %v2895 = vadd.f32 %v2169, %v2170
        %2896 = vadd.xlane.f32.xlu0 %v2895
        %v2897 = vpop.xlane.xlu0 %2896
        %v2898 = vadd.f32 %v2171, %v2172
        %2899 = vadd.xlane.f32.xlu0 %v2898
        %v2900 = vpop.xlane.xlu0 %2899
        %v2901 = vadd.f32 %v2173, %v2174
        %2902 = vadd.xlane.f32.xlu0 %v2901
        %v2903 = vpop.xlane.xlu0 %2902
        %v2904 = vadd.f32 %v2175, %v2176
        %2905 = vadd.xlane.f32.xlu0 %v2904
        %v2906 = vpop.xlane.xlu0 %2905
        %v2907 = vadd.f32 %v2177, %v2178
        %2908 = vadd.xlane.f32.xlu0 %v2907
        %v2909 = vpop.xlane.xlu0 %2908
        %v2910 = vadd.f32 %v2179, %v2180
        %2911 = vadd.xlane.f32.xlu0 %v2910
        %v2912 = vpop.xlane.xlu0 %2911
        %v2913 = vadd.f32 %v2181, %v2182
        %2914 = vadd.xlane.f32.xlu0 %v2913
        %v2915 = vpop.xlane.xlu0 %2914
        %v2916 = vadd.f32 %v2183, %v2184
        %2917 = vadd.xlane.f32.xlu0 %v2916
        %v2918 = vpop.xlane.xlu0 %2917
        %v2919 = vadd.f32 %v2185, %v2186
        %2920 = vadd.xlane.f32.xlu0 %v2919
        %v2921 = vpop.xlane.xlu0 %2920
        %v2922 = vadd.f32 %v2187, %v2188
        %2923 = vadd.xlane.f32.xlu0 %v2922
        %v2924 = vpop.xlane.xlu0 %2923
        %v2925 = vadd.f32 %v2189, %v2190
        %2926 = vadd.xlane.f32.xlu0 %v2925
        %v2927 = vpop.xlane.xlu0 %2926
        %v2928 = vadd.f32 %v2191, %v2192
        %2929 = vadd.xlane.f32.xlu0 %v2928
        %v2930 = vpop.xlane.xlu0 %2929
        %v2931 = vadd.f32 %v2193, %v2194
        %2932 = vadd.xlane.f32.xlu0 %v2931
        %v2933 = vpop.xlane.xlu0 %2932
        %v2934 = vadd.f32 %v2195, %v2196
        %2935 = vadd.xlane.f32.xlu0 %v2934
        %v2936 = vpop.xlane.xlu0 %2935
        %v2937 = vadd.f32 %v2197, %v2198
        %2938 = vadd.xlane.f32.xlu0 %v2937
        %v2939 = vpop.xlane.xlu0 %2938
        %v2940 = vadd.f32 %v2199, %v2200
        %2941 = vadd.xlane.f32.xlu0 %v2940
        %v2942 = vpop.xlane.xlu0 %2941
        %v2943 = vadd.f32 %v2201, %v2202
        %2944 = vadd.xlane.f32.xlu0 %v2943
        %v2945 = vpop.xlane.xlu0 %2944
        %v2946 = vadd.f32 %v2203, %v2204
        %2947 = vadd.xlane.f32.xlu0 %v2946
        %v2948 = vpop.xlane.xlu0 %2947
        %v2949 = vadd.f32 %v2205, %v2206
        %2950 = vadd.xlane.f32.xlu0 %v2949
        %v2951 = vpop.xlane.xlu0 %2950
        %v2952 = vadd.f32 %v2207, %v2208
        %2953 = vadd.xlane.f32.xlu0 %v2952
        %v2954 = vpop.xlane.xlu0 %2953
        %v2955 = vadd.f32 %v2209, %v2210
        %2956 = vadd.xlane.f32.xlu0 %v2955
        %v2957 = vpop.xlane.xlu0 %2956
        %v2958 = vadd.f32 %v2211, %v2212
        %2959 = vadd.xlane.f32.xlu0 %v2958
        %v2960 = vpop.xlane.xlu0 %2959
        %v2961 = vadd.f32 %v2213, %v2214
        %2962 = vadd.xlane.f32.xlu0 %v2961
        %v2963 = vpop.xlane.xlu0 %2962
        %v2964 = vadd.f32 %v2215, %v2216
        %2965 = vadd.xlane.f32.xlu0 %v2964
        %v2966 = vpop.xlane.xlu0 %2965
        %v2967 = vadd.f32 %v2217, %v2218
        %2968 = vadd.xlane.f32.xlu0 %v2967
        %v2969 = vpop.xlane.xlu0 %2968
        %v2970 = vadd.f32 %v2219, %v2220
        %2971 = vadd.xlane.f32.xlu0 %v2970
        %v2972 = vpop.xlane.xlu0 %2971
        %v2973 = vadd.f32 %v2221, %v2222
        %2974 = vadd.xlane.f32.xlu0 %v2973
        %v2975 = vpop.xlane.xlu0 %2974
        %v2976 = vadd.f32 %v2223, %v2224
        %2977 = vadd.xlane.f32.xlu0 %v2976
        %v2978 = vpop.xlane.xlu0 %2977
        %v2979 = vadd.f32 %v2225, %v2226
        %2980 = vadd.xlane.f32.xlu0 %v2979
        %v2981 = vpop.xlane.xlu0 %2980
        %v2982 = vadd.f32 %v2227, %v2228
        %2983 = vadd.xlane.f32.xlu0 %v2982
        %v2984 = vpop.xlane.xlu0 %2983
        %v2985 = vadd.f32 %v2229, %v2230
        %2986 = vadd.xlane.f32.xlu0 %v2985
        %v2987 = vpop.xlane.xlu0 %2986
        %v2988 = vadd.f32 %v2231, %v2232
        %2989 = vadd.xlane.f32.xlu0 %v2988
        %v2990 = vpop.xlane.xlu0 %2989
        %v2991 = vadd.f32 %v2233, %v2234
        %2992 = vadd.xlane.f32.xlu0 %v2991
        %v2993 = vpop.xlane.xlu0 %2992
        %v2994 = vadd.f32 %v2235, %v2236
        %2995 = vadd.xlane.f32.xlu0 %v2994
        %v2996 = vpop.xlane.xlu0 %2995
        %v2997 = vadd.f32 %v2237, %v2238
        %2998 = vadd.xlane.f32.xlu0 %v2997
        %v2999 = vpop.xlane.xlu0 %2998
        %v3000 = vadd.f32 %v2239, %v2240
        %3001 = vadd.xlane.f32.xlu0 %v3000
        %v3002 = vpop.xlane.xlu0 %3001
        %v3003 = vadd.f32 %v2241, %v2242
        %3004 = vadd.xlane.f32.xlu0 %v3003
        %v3005 = vpop.xlane.xlu0 %3004
        %v3006 = vadd.f32 %v2243, %v2244
        %3007 = vadd.xlane.f32.xlu0 %v3006
        %v3008 = vpop.xlane.xlu0 %3007
        %v3009 = vadd.f32 %v2245, %v2246
        %3010 = vadd.xlane.f32.xlu0 %v3009
        %v3011 = vpop.xlane.xlu0 %3010
        %v3012 = vadd.f32 %v2247, %v2248
        %3013 = vadd.xlane.f32.xlu0 %v3012
        %v3014 = vpop.xlane.xlu0 %3013
        %v3015 = vadd.f32 %v2249, %v2250
        %3016 = vadd.xlane.f32.xlu0 %v3015
        %v3017 = vpop.xlane.xlu0 %3016
        %v3018 = vadd.f32 %v2251, %v2252
        %3019 = vadd.xlane.f32.xlu0 %v3018
        %v3020 = vpop.xlane.xlu0 %3019
        %v3021 = vrcp.pop 256.0
        %v3022 = vmul.f32 %v2255, %v3021
        %v3023 = vmul.f32 %v2258, %v3021
        %v3024 = vmul.f32 %v2261, %v3021
        %v3025 = vmul.f32 %v2264, %v3021
        %v3026 = vmul.f32 %v2267, %v3021
        %v3027 = vmul.f32 %v2270, %v3021
        %v3028 = vmul.f32 %v2273, %v3021
        %v3029 = vmul.f32 %v2276, %v3021
        %v3030 = vmul.f32 %v2279, %v3021
        %v3031 = vmul.f32 %v2282, %v3021
        %v3032 = vmul.f32 %v2285, %v3021
        %v3033 = vmul.f32 %v2288, %v3021
        %v3034 = vmul.f32 %v2291, %v3021
        %v3035 = vmul.f32 %v2294, %v3021
        %v3036 = vmul.f32 %v2297, %v3021
        %v3037 = vmul.f32 %v2300, %v3021
        %v3038 = vmul.f32 %v2303, %v3021
        %v3039 = vmul.f32 %v2306, %v3021
        %v3040 = vmul.f32 %v2309, %v3021
        %v3041 = vmul.f32 %v2312, %v3021
        %v3042 = vmul.f32 %v2315, %v3021
        %v3043 = vmul.f32 %v2318, %v3021
        %v3044 = vmul.f32 %v2321, %v3021
        %v3045 = vmul.f32 %v2324, %v3021
        %v3046 = vmul.f32 %v2327, %v3021
        %v3047 = vmul.f32 %v2330, %v3021
        %v3048 = vmul.f32 %v2333, %v3021
        %v3049 = vmul.f32 %v2336, %v3021
        %v3050 = vmul.f32 %v2339, %v3021
        %v3051 = vmul.f32 %v2342, %v3021
        %v3052 = vmul.f32 %v2345, %v3021
        %v3053 = vmul.f32 %v2348, %v3021
        %v3054 = vmul.f32 %v2351, %v3021
        %v3055 = vmul.f32 %v2354, %v3021
        %v3056 = vmul.f32 %v2357, %v3021
        %v3057 = vmul.f32 %v2360, %v3021
        %v3058 = vmul.f32 %v2363, %v3021
        %v3059 = vmul.f32 %v2366, %v3021
        %v3060 = vmul.f32 %v2369, %v3021
        %v3061 = vmul.f32 %v2372, %v3021
        %v3062 = vmul.f32 %v2375, %v3021
        %v3063 = vmul.f32 %v2378, %v3021
        %v3064 = vmul.f32 %v2381, %v3021
        %v3065 = vmul.f32 %v2384, %v3021
        %v3066 = vmul.f32 %v2387, %v3021
        %v3067 = vmul.f32 %v2390, %v3021
        %v3068 = vmul.f32 %v2393, %v3021
        %v3069 = vmul.f32 %v2396, %v3021
        %v3070 = vmul.f32 %v2399, %v3021
        %v3071 = vmul.f32 %v2402, %v3021
        %v3072 = vmul.f32 %v2405, %v3021
        %v3073 = vmul.f32 %v2408, %v3021
        %v3074 = vmul.f32 %v2411, %v3021
        %v3075 = vmul.f32 %v2414, %v3021
        %v3076 = vmul.f32 %v2417, %v3021
        %v3077 = vmul.f32 %v2420, %v3021
        %v3078 = vmul.f32 %v2423, %v3021
        %v3079 = vmul.f32 %v2426, %v3021
        %v3080 = vmul.f32 %v2429, %v3021
        %v3081 = vmul.f32 %v2432, %v3021
        %v3082 = vmul.f32 %v2435, %v3021
        %v3083 = vmul.f32 %v2438, %v3021
        %v3084 = vmul.f32 %v2441, %v3021
        %v3085 = vmul.f32 %v2444, %v3021
        %v3086 = vmul.f32 %v2447, %v3021
        %v3087 = vmul.f32 %v2450, %v3021
        %v3088 = vmul.f32 %v2453, %v3021
        %v3089 = vmul.f32 %v2456, %v3021
        %v3090 = vmul.f32 %v2459, %v3021
        %v3091 = vmul.f32 %v2462, %v3021
        %v3092 = vmul.f32 %v2465, %v3021
        %v3093 = vmul.f32 %v2468, %v3021
        %v3094 = vmul.f32 %v2471, %v3021
        %v3095 = vmul.f32 %v2474, %v3021
        %v3096 = vmul.f32 %v2477, %v3021
        %v3097 = vmul.f32 %v2480, %v3021
        %v3098 = vmul.f32 %v2483, %v3021
        %v3099 = vmul.f32 %v2486, %v3021
        %v3100 = vmul.f32 %v2489, %v3021
        %v3101 = vmul.f32 %v2492, %v3021
        %v3102 = vmul.f32 %v2495, %v3021
        %v3103 = vmul.f32 %v2498, %v3021
        %v3104 = vmul.f32 %v2501, %v3021
        %v3105 = vmul.f32 %v2504, %v3021
        %v3106 = vmul.f32 %v2507, %v3021
        %v3107 = vmul.f32 %v2510, %v3021
        %v3108 = vmul.f32 %v2513, %v3021
        %v3109 = vmul.f32 %v2516, %v3021
        %v3110 = vmul.f32 %v2519, %v3021
        %v3111 = vmul.f32 %v2522, %v3021
        %v3112 = vmul.f32 %v2525, %v3021
        %v3113 = vmul.f32 %v2528, %v3021
        %v3114 = vmul.f32 %v2531, %v3021
        %v3115 = vmul.f32 %v2534, %v3021
        %v3116 = vmul.f32 %v2537, %v3021
        %v3117 = vmul.f32 %v2540, %v3021
        %v3118 = vmul.f32 %v2543, %v3021
        %v3119 = vmul.f32 %v2546, %v3021
        %v3120 = vmul.f32 %v2549, %v3021
        %v3121 = vmul.f32 %v2552, %v3021
        %v3122 = vmul.f32 %v2555, %v3021
        %v3123 = vmul.f32 %v2558, %v3021
        %v3124 = vmul.f32 %v2561, %v3021
        %v3125 = vmul.f32 %v2564, %v3021
        %v3126 = vmul.f32 %v2567, %v3021
        %v3127 = vmul.f32 %v2570, %v3021
        %v3128 = vmul.f32 %v2573, %v3021
        %v3129 = vmul.f32 %v2576, %v3021
        %v3130 = vmul.f32 %v2579, %v3021
        %v3131 = vmul.f32 %v2582, %v3021
        %v3132 = vmul.f32 %v2585, %v3021
        %v3133 = vmul.f32 %v2588, %v3021
        %v3134 = vmul.f32 %v2591, %v3021
        %v3135 = vmul.f32 %v2594, %v3021
        %v3136 = vmul.f32 %v2597, %v3021
        %v3137 = vmul.f32 %v2600, %v3021
        %v3138 = vmul.f32 %v2603, %v3021
        %v3139 = vmul.f32 %v2606, %v3021
        %v3140 = vmul.f32 %v2609, %v3021
        %v3141 = vmul.f32 %v2612, %v3021
        %v3142 = vmul.f32 %v2615, %v3021
        %v3143 = vmul.f32 %v2618, %v3021
        %v3144 = vmul.f32 %v2621, %v3021
        %v3145 = vmul.f32 %v2624, %v3021
        %v3146 = vmul.f32 %v2627, %v3021
        %v3147 = vmul.f32 %v2630, %v3021
        %v3148 = vmul.f32 %v2633, %v3021
        %v3149 = vmul.f32 %v2636, %v3021
        %v3150 = vmul.f32 %v2639, %v3021
        %v3151 = vmul.f32 %v2642, %v3021
        %v3152 = vmul.f32 %v2645, %v3021
        %v3153 = vmul.f32 %v2648, %v3021
        %v3154 = vmul.f32 %v2651, %v3021
        %v3155 = vmul.f32 %v2654, %v3021
        %v3156 = vmul.f32 %v2657, %v3021
        %v3157 = vmul.f32 %v2660, %v3021
        %v3158 = vmul.f32 %v2663, %v3021
        %v3159 = vmul.f32 %v2666, %v3021
        %v3160 = vmul.f32 %v2669, %v3021
        %v3161 = vmul.f32 %v2672, %v3021
        %v3162 = vmul.f32 %v2675, %v3021
        %v3163 = vmul.f32 %v2678, %v3021
        %v3164 = vmul.f32 %v2681, %v3021
        %v3165 = vmul.f32 %v2684, %v3021
        %v3166 = vmul.f32 %v2687, %v3021
        %v3167 = vmul.f32 %v2690, %v3021
        %v3168 = vmul.f32 %v2693, %v3021
        %v3169 = vmul.f32 %v2696, %v3021
        %v3170 = vmul.f32 %v2699, %v3021
        %v3171 = vmul.f32 %v2702, %v3021
        %v3172 = vmul.f32 %v2705, %v3021
        %v3173 = vmul.f32 %v2708, %v3021
        %v3174 = vmul.f32 %v2711, %v3021
        %v3175 = vmul.f32 %v2714, %v3021
        %v3176 = vmul.f32 %v2717, %v3021
        %v3177 = vmul.f32 %v2720, %v3021
        %v3178 = vmul.f32 %v2723, %v3021
        %v3179 = vmul.f32 %v2726, %v3021
        %v3180 = vmul.f32 %v2729, %v3021
        %v3181 = vmul.f32 %v2732, %v3021
        %v3182 = vmul.f32 %v2735, %v3021
        %v3183 = vmul.f32 %v2738, %v3021
        %v3184 = vmul.f32 %v2741, %v3021
        %v3185 = vmul.f32 %v2744, %v3021
        %v3186 = vmul.f32 %v2747, %v3021
        %v3187 = vmul.f32 %v2750, %v3021
        %v3188 = vmul.f32 %v2753, %v3021
        %v3189 = vmul.f32 %v2756, %v3021
        %v3190 = vmul.f32 %v2759, %v3021
        %v3191 = vmul.f32 %v2762, %v3021
        %v3192 = vmul.f32 %v2765, %v3021
        %v3193 = vmul.f32 %v2768, %v3021
        %v3194 = vmul.f32 %v2771, %v3021
        %v3195 = vmul.f32 %v2774, %v3021
        %v3196 = vmul.f32 %v2777, %v3021
        %v3197 = vmul.f32 %v2780, %v3021
        %v3198 = vmul.f32 %v2783, %v3021
        %v3199 = vmul.f32 %v2786, %v3021
        %v3200 = vmul.f32 %v2789, %v3021
        %v3201 = vmul.f32 %v2792, %v3021
        %v3202 = vmul.f32 %v2795, %v3021
        %v3203 = vmul.f32 %v2798, %v3021
        %v3204 = vmul.f32 %v2801, %v3021
        %v3205 = vmul.f32 %v2804, %v3021
        %v3206 = vmul.f32 %v2807, %v3021
        %v3207 = vmul.f32 %v2810, %v3021
        %v3208 = vmul.f32 %v2813, %v3021
        %v3209 = vmul.f32 %v2816, %v3021
        %v3210 = vmul.f32 %v2819, %v3021
        %v3211 = vmul.f32 %v2822, %v3021
        %v3212 = vmul.f32 %v2825, %v3021
        %v3213 = vmul.f32 %v2828, %v3021
        %v3214 = vmul.f32 %v2831, %v3021
        %v3215 = vmul.f32 %v2834, %v3021
        %v3216 = vmul.f32 %v2837, %v3021
        %v3217 = vmul.f32 %v2840, %v3021
        %v3218 = vmul.f32 %v2843, %v3021
        %v3219 = vmul.f32 %v2846, %v3021
        %v3220 = vmul.f32 %v2849, %v3021
        %v3221 = vmul.f32 %v2852, %v3021
        %v3222 = vmul.f32 %v2855, %v3021
        %v3223 = vmul.f32 %v2858, %v3021
        %v3224 = vmul.f32 %v2861, %v3021
        %v3225 = vmul.f32 %v2864, %v3021
        %v3226 = vmul.f32 %v2867, %v3021
        %v3227 = vmul.f32 %v2870, %v3021
        %v3228 = vmul.f32 %v2873, %v3021
        %v3229 = vmul.f32 %v2876, %v3021
        %v3230 = vmul.f32 %v2879, %v3021
        %v3231 = vmul.f32 %v2882, %v3021
        %v3232 = vmul.f32 %v2885, %v3021
        %v3233 = vmul.f32 %v2888, %v3021
        %v3234 = vmul.f32 %v2891, %v3021
        %v3235 = vmul.f32 %v2894, %v3021
        %v3236 = vmul.f32 %v2897, %v3021
        %v3237 = vmul.f32 %v2900, %v3021
        %v3238 = vmul.f32 %v2903, %v3021
        %v3239 = vmul.f32 %v2906, %v3021
        %v3240 = vmul.f32 %v2909, %v3021
        %v3241 = vmul.f32 %v2912, %v3021
        %v3242 = vmul.f32 %v2915, %v3021
        %v3243 = vmul.f32 %v2918, %v3021
        %v3244 = vmul.f32 %v2921, %v3021
        %v3245 = vmul.f32 %v2924, %v3021
        %v3246 = vmul.f32 %v2927, %v3021
        %v3247 = vmul.f32 %v2930, %v3021
        %v3248 = vmul.f32 %v2933, %v3021
        %v3249 = vmul.f32 %v2936, %v3021
        %v3250 = vmul.f32 %v2939, %v3021
        %v3251 = vmul.f32 %v2942, %v3021
        %v3252 = vmul.f32 %v2945, %v3021
        %v3253 = vmul.f32 %v2948, %v3021
        %v3254 = vmul.f32 %v2951, %v3021
        %v3255 = vmul.f32 %v2954, %v3021
        %v3256 = vmul.f32 %v2957, %v3021
        %v3257 = vmul.f32 %v2960, %v3021
        %v3258 = vmul.f32 %v2963, %v3021
        %v3259 = vmul.f32 %v2966, %v3021
        %v3260 = vmul.f32 %v2969, %v3021
        %v3261 = vmul.f32 %v2972, %v3021
        %v3262 = vmul.f32 %v2975, %v3021
        %v3263 = vmul.f32 %v2978, %v3021
        %v3264 = vmul.f32 %v2981, %v3021
        %v3265 = vmul.f32 %v2984, %v3021
        %v3266 = vmul.f32 %v2987, %v3021
        %v3267 = vmul.f32 %v2990, %v3021
        %v3268 = vmul.f32 %v2993, %v3021
        %v3269 = vmul.f32 %v2996, %v3021
        %v3270 = vmul.f32 %v2999, %v3021
        %v3271 = vmul.f32 %v3002, %v3021
        %v3272 = vmul.f32 %v3005, %v3021
        %v3273 = vmul.f32 %v3008, %v3021
        %v3274 = vmul.f32 %v3011, %v3021
        %v3275 = vmul.f32 %v3014, %v3021
        %v3276 = vmul.f32 %v3017, %v3021
        %v3277 = vmul.f32 %v3020, %v3021
        %v3278 = vlog2.pop %v3022
        %v3279 = vmul.f32 %v3278, 0.6931472
        %v3280 = vlog2.pop %v3023
        %v3281 = vmul.f32 %v3280, 0.6931472
        %v3282 = vlog2.pop %v3024
        %v3283 = vmul.f32 %v3282, 0.6931472
        %v3284 = vlog2.pop %v3025
        %v3285 = vmul.f32 %v3284, 0.6931472
        %v3286 = vlog2.pop %v3026
        %v3287 = vmul.f32 %v3286, 0.6931472
        %v3288 = vlog2.pop %v3027
        %v3289 = vmul.f32 %v3288, 0.6931472
        %v3290 = vlog2.pop %v3028
        %v3291 = vmul.f32 %v3290, 0.6931472
        %v3292 = vlog2.pop %v3029
        %v3293 = vmul.f32 %v3292, 0.6931472
        %v3294 = vlog2.pop %v3030
        %v3295 = vmul.f32 %v3294, 0.6931472
        %v3296 = vlog2.pop %v3031
        %v3297 = vmul.f32 %v3296, 0.6931472
        %v3298 = vlog2.pop %v3032
        %v3299 = vmul.f32 %v3298, 0.6931472
        %v3300 = vlog2.pop %v3033
        %v3301 = vmul.f32 %v3300, 0.6931472
        %v3302 = vlog2.pop %v3034
        %v3303 = vmul.f32 %v3302, 0.6931472
        %v3304 = vlog2.pop %v3035
        %v3305 = vmul.f32 %v3304, 0.6931472
        %v3306 = vlog2.pop %v3036
        %v3307 = vmul.f32 %v3306, 0.6931472
        %v3308 = vlog2.pop %v3037
        %v3309 = vmul.f32 %v3308, 0.6931472
        %v3310 = vlog2.pop %v3038
        %v3311 = vmul.f32 %v3310, 0.6931472
        %v3312 = vlog2.pop %v3039
        %v3313 = vmul.f32 %v3312, 0.6931472
        %v3314 = vlog2.pop %v3040
        %v3315 = vmul.f32 %v3314, 0.6931472
        %v3316 = vlog2.pop %v3041
        %v3317 = vmul.f32 %v3316, 0.6931472
        %v3318 = vlog2.pop %v3042
        %v3319 = vmul.f32 %v3318, 0.6931472
        %v3320 = vlog2.pop %v3043
        %v3321 = vmul.f32 %v3320, 0.6931472
        %v3322 = vlog2.pop %v3044
        %v3323 = vmul.f32 %v3322, 0.6931472
        %v3324 = vlog2.pop %v3045
        %v3325 = vmul.f32 %v3324, 0.6931472
        %v3326 = vlog2.pop %v3046
        %v3327 = vmul.f32 %v3326, 0.6931472
        %v3328 = vlog2.pop %v3047
        %v3329 = vmul.f32 %v3328, 0.6931472
        %v3330 = vlog2.pop %v3048
        %v3331 = vmul.f32 %v3330, 0.6931472
        %v3332 = vlog2.pop %v3049
        %v3333 = vmul.f32 %v3332, 0.6931472
        %v3334 = vlog2.pop %v3050
        %v3335 = vmul.f32 %v3334, 0.6931472
        %v3336 = vlog2.pop %v3051
        %v3337 = vmul.f32 %v3336, 0.6931472
        %v3338 = vlog2.pop %v3052
        %v3339 = vmul.f32 %v3338, 0.6931472
        %v3340 = vlog2.pop %v3053
        %v3341 = vmul.f32 %v3340, 0.6931472
        %v3342 = vlog2.pop %v3054
        %v3343 = vmul.f32 %v3342, 0.6931472
        %v3344 = vlog2.pop %v3055
        %v3345 = vmul.f32 %v3344, 0.6931472
        %v3346 = vlog2.pop %v3056
        %v3347 = vmul.f32 %v3346, 0.6931472
        %v3348 = vlog2.pop %v3057
        %v3349 = vmul.f32 %v3348, 0.6931472
        %v3350 = vlog2.pop %v3058
        %v3351 = vmul.f32 %v3350, 0.6931472
        %v3352 = vlog2.pop %v3059
        %v3353 = vmul.f32 %v3352, 0.6931472
        %v3354 = vlog2.pop %v3060
        %v3355 = vmul.f32 %v3354, 0.6931472
        %v3356 = vlog2.pop %v3061
        %v3357 = vmul.f32 %v3356, 0.6931472
        %v3358 = vlog2.pop %v3062
        %v3359 = vmul.f32 %v3358, 0.6931472
        %v3360 = vlog2.pop %v3063
        %v3361 = vmul.f32 %v3360, 0.6931472
        %v3362 = vlog2.pop %v3064
        %v3363 = vmul.f32 %v3362, 0.6931472
        %v3364 = vlog2.pop %v3065
        %v3365 = vmul.f32 %v3364, 0.6931472
        %v3366 = vlog2.pop %v3066
        %v3367 = vmul.f32 %v3366, 0.6931472
        %v3368 = vlog2.pop %v3067
        %v3369 = vmul.f32 %v3368, 0.6931472
        %v3370 = vlog2.pop %v3068
        %v3371 = vmul.f32 %v3370, 0.6931472
        %v3372 = vlog2.pop %v3069
        %v3373 = vmul.f32 %v3372, 0.6931472
        %v3374 = vlog2.pop %v3070
        %v3375 = vmul.f32 %v3374, 0.6931472
        %v3376 = vlog2.pop %v3071
        %v3377 = vmul.f32 %v3376, 0.6931472
        %v3378 = vlog2.pop %v3072
        %v3379 = vmul.f32 %v3378, 0.6931472
        %v3380 = vlog2.pop %v3073
        %v3381 = vmul.f32 %v3380, 0.6931472
        %v3382 = vlog2.pop %v3074
        %v3383 = vmul.f32 %v3382, 0.6931472
        %v3384 = vlog2.pop %v3075
        %v3385 = vmul.f32 %v3384, 0.6931472
        %v3386 = vlog2.pop %v3076
        %v3387 = vmul.f32 %v3386, 0.6931472
        %v3388 = vlog2.pop %v3077
        %v3389 = vmul.f32 %v3388, 0.6931472
        %v3390 = vlog2.pop %v3078
        %v3391 = vmul.f32 %v3390, 0.6931472
        %v3392 = vlog2.pop %v3079
        %v3393 = vmul.f32 %v3392, 0.6931472
        %v3394 = vlog2.pop %v3080
        %v3395 = vmul.f32 %v3394, 0.6931472
        %v3396 = vlog2.pop %v3081
        %v3397 = vmul.f32 %v3396, 0.6931472
        %v3398 = vlog2.pop %v3082
        %v3399 = vmul.f32 %v3398, 0.6931472
        %v3400 = vlog2.pop %v3083
        %v3401 = vmul.f32 %v3400, 0.6931472
        %v3402 = vlog2.pop %v3084
        %v3403 = vmul.f32 %v3402, 0.6931472
        %v3404 = vlog2.pop %v3085
        %v3405 = vmul.f32 %v3404, 0.6931472
        %v3406 = vlog2.pop %v3086
        %v3407 = vmul.f32 %v3406, 0.6931472
        %v3408 = vlog2.pop %v3087
        %v3409 = vmul.f32 %v3408, 0.6931472
        %v3410 = vlog2.pop %v3088
        %v3411 = vmul.f32 %v3410, 0.6931472
        %v3412 = vlog2.pop %v3089
        %v3413 = vmul.f32 %v3412, 0.6931472
        %v3414 = vlog2.pop %v3090
        %v3415 = vmul.f32 %v3414, 0.6931472
        %v3416 = vlog2.pop %v3091
        %v3417 = vmul.f32 %v3416, 0.6931472
        %v3418 = vlog2.pop %v3092
        %v3419 = vmul.f32 %v3418, 0.6931472
        %v3420 = vlog2.pop %v3093
        %v3421 = vmul.f32 %v3420, 0.6931472
        %v3422 = vlog2.pop %v3094
        %v3423 = vmul.f32 %v3422, 0.6931472
        %v3424 = vlog2.pop %v3095
        %v3425 = vmul.f32 %v3424, 0.6931472
        %v3426 = vlog2.pop %v3096
        %v3427 = vmul.f32 %v3426, 0.6931472
        %v3428 = vlog2.pop %v3097
        %v3429 = vmul.f32 %v3428, 0.6931472
        %v3430 = vlog2.pop %v3098
        %v3431 = vmul.f32 %v3430, 0.6931472
        %v3432 = vlog2.pop %v3099
        %v3433 = vmul.f32 %v3432, 0.6931472
        %v3434 = vlog2.pop %v3100
        %v3435 = vmul.f32 %v3434, 0.6931472
        %v3436 = vlog2.pop %v3101
        %v3437 = vmul.f32 %v3436, 0.6931472
        %v3438 = vlog2.pop %v3102
        %v3439 = vmul.f32 %v3438, 0.6931472
        %v3440 = vlog2.pop %v3103
        %v3441 = vmul.f32 %v3440, 0.6931472
        %v3442 = vlog2.pop %v3104
        %v3443 = vmul.f32 %v3442, 0.6931472
        %v3444 = vlog2.pop %v3105
        %v3445 = vmul.f32 %v3444, 0.6931472
        %v3446 = vlog2.pop %v3106
        %v3447 = vmul.f32 %v3446, 0.6931472
        %v3448 = vlog2.pop %v3107
        %v3449 = vmul.f32 %v3448, 0.6931472
        %v3450 = vlog2.pop %v3108
        %v3451 = vmul.f32 %v3450, 0.6931472
        %v3452 = vlog2.pop %v3109
        %v3453 = vmul.f32 %v3452, 0.6931472
        %v3454 = vlog2.pop %v3110
        %v3455 = vmul.f32 %v3454, 0.6931472
        %v3456 = vlog2.pop %v3111
        %v3457 = vmul.f32 %v3456, 0.6931472
        %v3458 = vlog2.pop %v3112
        %v3459 = vmul.f32 %v3458, 0.6931472
        %v3460 = vlog2.pop %v3113
        %v3461 = vmul.f32 %v3460, 0.6931472
        %v3462 = vlog2.pop %v3114
        %v3463 = vmul.f32 %v3462, 0.6931472
        %v3464 = vlog2.pop %v3115
        %v3465 = vmul.f32 %v3464, 0.6931472
        %v3466 = vlog2.pop %v3116
        %v3467 = vmul.f32 %v3466, 0.6931472
        %v3468 = vlog2.pop %v3117
        %v3469 = vmul.f32 %v3468, 0.6931472
        %v3470 = vlog2.pop %v3118
        %v3471 = vmul.f32 %v3470, 0.6931472
        %v3472 = vlog2.pop %v3119
        %v3473 = vmul.f32 %v3472, 0.6931472
        %v3474 = vlog2.pop %v3120
        %v3475 = vmul.f32 %v3474, 0.6931472
        %v3476 = vlog2.pop %v3121
        %v3477 = vmul.f32 %v3476, 0.6931472
        %v3478 = vlog2.pop %v3122
        %v3479 = vmul.f32 %v3478, 0.6931472
        %v3480 = vlog2.pop %v3123
        %v3481 = vmul.f32 %v3480, 0.6931472
        %v3482 = vlog2.pop %v3124
        %v3483 = vmul.f32 %v3482, 0.6931472
        %v3484 = vlog2.pop %v3125
        %v3485 = vmul.f32 %v3484, 0.6931472
        %v3486 = vlog2.pop %v3126
        %v3487 = vmul.f32 %v3486, 0.6931472
        %v3488 = vlog2.pop %v3127
        %v3489 = vmul.f32 %v3488, 0.6931472
        %v3490 = vlog2.pop %v3128
        %v3491 = vmul.f32 %v3490, 0.6931472
        %v3492 = vlog2.pop %v3129
        %v3493 = vmul.f32 %v3492, 0.6931472
        %v3494 = vlog2.pop %v3130
        %v3495 = vmul.f32 %v3494, 0.6931472
        %v3496 = vlog2.pop %v3131
        %v3497 = vmul.f32 %v3496, 0.6931472
        %v3498 = vlog2.pop %v3132
        %v3499 = vmul.f32 %v3498, 0.6931472
        %v3500 = vlog2.pop %v3133
        %v3501 = vmul.f32 %v3500, 0.6931472
        %v3502 = vlog2.pop %v3134
        %v3503 = vmul.f32 %v3502, 0.6931472
        %v3504 = vlog2.pop %v3135
        %v3505 = vmul.f32 %v3504, 0.6931472
        %v3506 = vlog2.pop %v3136
        %v3507 = vmul.f32 %v3506, 0.6931472
        %v3508 = vlog2.pop %v3137
        %v3509 = vmul.f32 %v3508, 0.6931472
        %v3510 = vlog2.pop %v3138
        %v3511 = vmul.f32 %v3510, 0.6931472
        %v3512 = vlog2.pop %v3139
        %v3513 = vmul.f32 %v3512, 0.6931472
        %v3514 = vlog2.pop %v3140
        %v3515 = vmul.f32 %v3514, 0.6931472
        %v3516 = vlog2.pop %v3141
        %v3517 = vmul.f32 %v3516, 0.6931472
        %v3518 = vlog2.pop %v3142
        %v3519 = vmul.f32 %v3518, 0.6931472
        %v3520 = vlog2.pop %v3143
        %v3521 = vmul.f32 %v3520, 0.6931472
        %v3522 = vlog2.pop %v3144
        %v3523 = vmul.f32 %v3522, 0.6931472
        %v3524 = vlog2.pop %v3145
        %v3525 = vmul.f32 %v3524, 0.6931472
        %v3526 = vlog2.pop %v3146
        %v3527 = vmul.f32 %v3526, 0.6931472
        %v3528 = vlog2.pop %v3147
        %v3529 = vmul.f32 %v3528, 0.6931472
        %v3530 = vlog2.pop %v3148
        %v3531 = vmul.f32 %v3530, 0.6931472
        %v3532 = vlog2.pop %v3149
        %v3533 = vmul.f32 %v3532, 0.6931472
        %v3534 = vlog2.pop %v3150
        %v3535 = vmul.f32 %v3534, 0.6931472
        %v3536 = vlog2.pop %v3151
        %v3537 = vmul.f32 %v3536, 0.6931472
        %v3538 = vlog2.pop %v3152
        %v3539 = vmul.f32 %v3538, 0.6931472
        %v3540 = vlog2.pop %v3153
        %v3541 = vmul.f32 %v3540, 0.6931472
        %v3542 = vlog2.pop %v3154
        %v3543 = vmul.f32 %v3542, 0.6931472
        %v3544 = vlog2.pop %v3155
        %v3545 = vmul.f32 %v3544, 0.6931472
        %v3546 = vlog2.pop %v3156
        %v3547 = vmul.f32 %v3546, 0.6931472
        %v3548 = vlog2.pop %v3157
        %v3549 = vmul.f32 %v3548, 0.6931472
        %v3550 = vlog2.pop %v3158
        %v3551 = vmul.f32 %v3550, 0.6931472
        %v3552 = vlog2.pop %v3159
        %v3553 = vmul.f32 %v3552, 0.6931472
        %v3554 = vlog2.pop %v3160
        %v3555 = vmul.f32 %v3554, 0.6931472
        %v3556 = vlog2.pop %v3161
        %v3557 = vmul.f32 %v3556, 0.6931472
        %v3558 = vlog2.pop %v3162
        %v3559 = vmul.f32 %v3558, 0.6931472
        %v3560 = vlog2.pop %v3163
        %v3561 = vmul.f32 %v3560, 0.6931472
        %v3562 = vlog2.pop %v3164
        %v3563 = vmul.f32 %v3562, 0.6931472
        %v3564 = vlog2.pop %v3165
        %v3565 = vmul.f32 %v3564, 0.6931472
        %v3566 = vlog2.pop %v3166
        %v3567 = vmul.f32 %v3566, 0.6931472
        %v3568 = vlog2.pop %v3167
        %v3569 = vmul.f32 %v3568, 0.6931472
        %v3570 = vlog2.pop %v3168
        %v3571 = vmul.f32 %v3570, 0.6931472
        %v3572 = vlog2.pop %v3169
        %v3573 = vmul.f32 %v3572, 0.6931472
        %v3574 = vlog2.pop %v3170
        %v3575 = vmul.f32 %v3574, 0.6931472
        %v3576 = vlog2.pop %v3171
        %v3577 = vmul.f32 %v3576, 0.6931472
        %v3578 = vlog2.pop %v3172
        %v3579 = vmul.f32 %v3578, 0.6931472
        %v3580 = vlog2.pop %v3173
        %v3581 = vmul.f32 %v3580, 0.6931472
        %v3582 = vlog2.pop %v3174
        %v3583 = vmul.f32 %v3582, 0.6931472
        %v3584 = vlog2.pop %v3175
        %v3585 = vmul.f32 %v3584, 0.6931472
        %v3586 = vlog2.pop %v3176
        %v3587 = vmul.f32 %v3586, 0.6931472
        %v3588 = vlog2.pop %v3177
        %v3589 = vmul.f32 %v3588, 0.6931472
        %v3590 = vlog2.pop %v3178
        %v3591 = vmul.f32 %v3590, 0.6931472
        %v3592 = vlog2.pop %v3179
        %v3593 = vmul.f32 %v3592, 0.6931472
        %v3594 = vlog2.pop %v3180
        %v3595 = vmul.f32 %v3594, 0.6931472
        %v3596 = vlog2.pop %v3181
        %v3597 = vmul.f32 %v3596, 0.6931472
        %v3598 = vlog2.pop %v3182
        %v3599 = vmul.f32 %v3598, 0.6931472
        %v3600 = vlog2.pop %v3183
        %v3601 = vmul.f32 %v3600, 0.6931472
        %v3602 = vlog2.pop %v3184
        %v3603 = vmul.f32 %v3602, 0.6931472
        %v3604 = vlog2.pop %v3185
        %v3605 = vmul.f32 %v3604, 0.6931472
        %v3606 = vlog2.pop %v3186
        %v3607 = vmul.f32 %v3606, 0.6931472
        %v3608 = vlog2.pop %v3187
        %v3609 = vmul.f32 %v3608, 0.6931472
        %v3610 = vlog2.pop %v3188
        %v3611 = vmul.f32 %v3610, 0.6931472
        %v3612 = vlog2.pop %v3189
        %v3613 = vmul.f32 %v3612, 0.6931472
        %v3614 = vlog2.pop %v3190
        %v3615 = vmul.f32 %v3614, 0.6931472
        %v3616 = vlog2.pop %v3191
        %v3617 = vmul.f32 %v3616, 0.6931472
        %v3618 = vlog2.pop %v3192
        %v3619 = vmul.f32 %v3618, 0.6931472
        %v3620 = vlog2.pop %v3193
        %v3621 = vmul.f32 %v3620, 0.6931472
        %v3622 = vlog2.pop %v3194
        %v3623 = vmul.f32 %v3622, 0.6931472
        %v3624 = vlog2.pop %v3195
        %v3625 = vmul.f32 %v3624, 0.6931472
        %v3626 = vlog2.pop %v3196
        %v3627 = vmul.f32 %v3626, 0.6931472
        %v3628 = vlog2.pop %v3197
        %v3629 = vmul.f32 %v3628, 0.6931472
        %v3630 = vlog2.pop %v3198
        %v3631 = vmul.f32 %v3630, 0.6931472
        %v3632 = vlog2.pop %v3199
        %v3633 = vmul.f32 %v3632, 0.6931472
        %v3634 = vlog2.pop %v3200
        %v3635 = vmul.f32 %v3634, 0.6931472
        %v3636 = vlog2.pop %v3201
        %v3637 = vmul.f32 %v3636, 0.6931472
        %v3638 = vlog2.pop %v3202
        %v3639 = vmul.f32 %v3638, 0.6931472
        %v3640 = vlog2.pop %v3203
        %v3641 = vmul.f32 %v3640, 0.6931472
        %v3642 = vlog2.pop %v3204
        %v3643 = vmul.f32 %v3642, 0.6931472
        %v3644 = vlog2.pop %v3205
        %v3645 = vmul.f32 %v3644, 0.6931472
        %v3646 = vlog2.pop %v3206
        %v3647 = vmul.f32 %v3646, 0.6931472
        %v3648 = vlog2.pop %v3207
        %v3649 = vmul.f32 %v3648, 0.6931472
        %v3650 = vlog2.pop %v3208
        %v3651 = vmul.f32 %v3650, 0.6931472
        %v3652 = vlog2.pop %v3209
        %v3653 = vmul.f32 %v3652, 0.6931472
        %v3654 = vlog2.pop %v3210
        %v3655 = vmul.f32 %v3654, 0.6931472
        %v3656 = vlog2.pop %v3211
        %v3657 = vmul.f32 %v3656, 0.6931472
        %v3658 = vlog2.pop %v3212
        %v3659 = vmul.f32 %v3658, 0.6931472
        %v3660 = vlog2.pop %v3213
        %v3661 = vmul.f32 %v3660, 0.6931472
        %v3662 = vlog2.pop %v3214
        %v3663 = vmul.f32 %v3662, 0.6931472
        %v3664 = vlog2.pop %v3215
        %v3665 = vmul.f32 %v3664, 0.6931472
        %v3666 = vlog2.pop %v3216
        %v3667 = vmul.f32 %v3666, 0.6931472
        %v3668 = vlog2.pop %v3217
        %v3669 = vmul.f32 %v3668, 0.6931472
        %v3670 = vlog2.pop %v3218
        %v3671 = vmul.f32 %v3670, 0.6931472
        %v3672 = vlog2.pop %v3219
        %v3673 = vmul.f32 %v3672, 0.6931472
        %v3674 = vlog2.pop %v3220
        %v3675 = vmul.f32 %v3674, 0.6931472
        %v3676 = vlog2.pop %v3221
        %v3677 = vmul.f32 %v3676, 0.6931472
        %v3678 = vlog2.pop %v3222
        %v3679 = vmul.f32 %v3678, 0.6931472
        %v3680 = vlog2.pop %v3223
        %v3681 = vmul.f32 %v3680, 0.6931472
        %v3682 = vlog2.pop %v3224
        %v3683 = vmul.f32 %v3682, 0.6931472
        %v3684 = vlog2.pop %v3225
        %v3685 = vmul.f32 %v3684, 0.6931472
        %v3686 = vlog2.pop %v3226
        %v3687 = vmul.f32 %v3686, 0.6931472
        %v3688 = vlog2.pop %v3227
        %v3689 = vmul.f32 %v3688, 0.6931472
        %v3690 = vlog2.pop %v3228
        %v3691 = vmul.f32 %v3690, 0.6931472
        %v3692 = vlog2.pop %v3229
        %v3693 = vmul.f32 %v3692, 0.6931472
        %v3694 = vlog2.pop %v3230
        %v3695 = vmul.f32 %v3694, 0.6931472
        %v3696 = vlog2.pop %v3231
        %v3697 = vmul.f32 %v3696, 0.6931472
        %v3698 = vlog2.pop %v3232
        %v3699 = vmul.f32 %v3698, 0.6931472
        %v3700 = vlog2.pop %v3233
        %v3701 = vmul.f32 %v3700, 0.6931472
        %v3702 = vlog2.pop %v3234
        %v3703 = vmul.f32 %v3702, 0.6931472
        %v3704 = vlog2.pop %v3235
        %v3705 = vmul.f32 %v3704, 0.6931472
        %v3706 = vlog2.pop %v3236
        %v3707 = vmul.f32 %v3706, 0.6931472
        %v3708 = vlog2.pop %v3237
        %v3709 = vmul.f32 %v3708, 0.6931472
        %v3710 = vlog2.pop %v3238
        %v3711 = vmul.f32 %v3710, 0.6931472
        %v3712 = vlog2.pop %v3239
        %v3713 = vmul.f32 %v3712, 0.6931472
        %v3714 = vlog2.pop %v3240
        %v3715 = vmul.f32 %v3714, 0.6931472
        %v3716 = vlog2.pop %v3241
        %v3717 = vmul.f32 %v3716, 0.6931472
        %v3718 = vlog2.pop %v3242
        %v3719 = vmul.f32 %v3718, 0.6931472
        %v3720 = vlog2.pop %v3243
        %v3721 = vmul.f32 %v3720, 0.6931472
        %v3722 = vlog2.pop %v3244
        %v3723 = vmul.f32 %v3722, 0.6931472
        %v3724 = vlog2.pop %v3245
        %v3725 = vmul.f32 %v3724, 0.6931472
        %v3726 = vlog2.pop %v3246
        %v3727 = vmul.f32 %v3726, 0.6931472
        %v3728 = vlog2.pop %v3247
        %v3729 = vmul.f32 %v3728, 0.6931472
        %v3730 = vlog2.pop %v3248
        %v3731 = vmul.f32 %v3730, 0.6931472
        %v3732 = vlog2.pop %v3249
        %v3733 = vmul.f32 %v3732, 0.6931472
        %v3734 = vlog2.pop %v3250
        %v3735 = vmul.f32 %v3734, 0.6931472
        %v3736 = vlog2.pop %v3251
        %v3737 = vmul.f32 %v3736, 0.6931472
        %v3738 = vlog2.pop %v3252
        %v3739 = vmul.f32 %v3738, 0.6931472
        %v3740 = vlog2.pop %v3253
        %v3741 = vmul.f32 %v3740, 0.6931472
        %v3742 = vlog2.pop %v3254
        %v3743 = vmul.f32 %v3742, 0.6931472
        %v3744 = vlog2.pop %v3255
        %v3745 = vmul.f32 %v3744, 0.6931472
        %v3746 = vlog2.pop %v3256
        %v3747 = vmul.f32 %v3746, 0.6931472
        %v3748 = vlog2.pop %v3257
        %v3749 = vmul.f32 %v3748, 0.6931472
        %v3750 = vlog2.pop %v3258
        %v3751 = vmul.f32 %v3750, 0.6931472
        %v3752 = vlog2.pop %v3259
        %v3753 = vmul.f32 %v3752, 0.6931472
        %v3754 = vlog2.pop %v3260
        %v3755 = vmul.f32 %v3754, 0.6931472
        %v3756 = vlog2.pop %v3261
        %v3757 = vmul.f32 %v3756, 0.6931472
        %v3758 = vlog2.pop %v3262
        %v3759 = vmul.f32 %v3758, 0.6931472
        %v3760 = vlog2.pop %v3263
        %v3761 = vmul.f32 %v3760, 0.6931472
        %v3762 = vlog2.pop %v3264
        %v3763 = vmul.f32 %v3762, 0.6931472
        %v3764 = vlog2.pop %v3265
        %v3765 = vmul.f32 %v3764, 0.6931472
        %v3766 = vlog2.pop %v3266
        %v3767 = vmul.f32 %v3766, 0.6931472
        %v3768 = vlog2.pop %v3267
        %v3769 = vmul.f32 %v3768, 0.6931472
        %v3770 = vlog2.pop %v3268
        %v3771 = vmul.f32 %v3770, 0.6931472
        %v3772 = vlog2.pop %v3269
        %v3773 = vmul.f32 %v3772, 0.6931472
        %v3774 = vlog2.pop %v3270
        %v3775 = vmul.f32 %v3774, 0.6931472
        %v3776 = vlog2.pop %v3271
        %v3777 = vmul.f32 %v3776, 0.6931472
        %v3778 = vlog2.pop %v3272
        %v3779 = vmul.f32 %v3778, 0.6931472
        %v3780 = vlog2.pop %v3273
        %v3781 = vmul.f32 %v3780, 0.6931472
        %v3782 = vlog2.pop %v3274
        %v3783 = vmul.f32 %v3782, 0.6931472
        %v3784 = vlog2.pop %v3275
        %v3785 = vmul.f32 %v3784, 0.6931472
        %v3786 = vlog2.pop %v3276
        %v3787 = vmul.f32 %v3786, 0.6931472
        %v3788 = vlog2.pop %v3277
        %v3789 = vmul.f32 %v3788, 0.6931472
        %v3790 = vmul.f32 %v3279, 0.33333334
        %v3791 = vmul.f32 %v3281, 0.33333334
        %v3792 = vmul.f32 %v3283, 0.33333334
        %v3793 = vmul.f32 %v3285, 0.33333334
        %v3794 = vmul.f32 %v3287, 0.33333334
        %v3795 = vmul.f32 %v3289, 0.33333334
        %v3796 = vmul.f32 %v3291, 0.33333334
        %v3797 = vmul.f32 %v3293, 0.33333334
        %v3798 = vmul.f32 %v3295, 0.33333334
        %v3799 = vmul.f32 %v3297, 0.33333334
        %v3800 = vmul.f32 %v3299, 0.33333334
        %v3801 = vmul.f32 %v3301, 0.33333334
        %v3802 = vmul.f32 %v3303, 0.33333334
        %v3803 = vmul.f32 %v3305, 0.33333334
        %v3804 = vmul.f32 %v3307, 0.33333334
        %v3805 = vmul.f32 %v3309, 0.33333334
        %v3806 = vmul.f32 %v3311, 0.33333334
        %v3807 = vmul.f32 %v3313, 0.33333334
        %v3808 = vmul.f32 %v3315, 0.33333334
        %v3809 = vmul.f32 %v3317, 0.33333334
        %v3810 = vmul.f32 %v3319, 0.33333334
        %v3811 = vmul.f32 %v3321, 0.33333334
        %v3812 = vmul.f32 %v3323, 0.33333334
        %v3813 = vmul.f32 %v3325, 0.33333334
        %v3814 = vmul.f32 %v3327, 0.33333334
        %v3815 = vmul.f32 %v3329, 0.33333334
        %v3816 = vmul.f32 %v3331, 0.33333334
        %v3817 = vmul.f32 %v3333, 0.33333334
        %v3818 = vmul.f32 %v3335, 0.33333334
        %v3819 = vmul.f32 %v3337, 0.33333334
        %v3820 = vmul.f32 %v3339, 0.33333334
        %v3821 = vmul.f32 %v3341, 0.33333334
        %v3822 = vmul.f32 %v3343, 0.33333334
        %v3823 = vmul.f32 %v3345, 0.33333334
        %v3824 = vmul.f32 %v3347, 0.33333334
        %v3825 = vmul.f32 %v3349, 0.33333334
        %v3826 = vmul.f32 %v3351, 0.33333334
        %v3827 = vmul.f32 %v3353, 0.33333334
        %v3828 = vmul.f32 %v3355, 0.33333334
        %v3829 = vmul.f32 %v3357, 0.33333334
        %v3830 = vmul.f32 %v3359, 0.33333334
        %v3831 = vmul.f32 %v3361, 0.33333334
        %v3832 = vmul.f32 %v3363, 0.33333334
        %v3833 = vmul.f32 %v3365, 0.33333334
        %v3834 = vmul.f32 %v3367, 0.33333334
        %v3835 = vmul.f32 %v3369, 0.33333334
        %v3836 = vmul.f32 %v3371, 0.33333334
        %v3837 = vmul.f32 %v3373, 0.33333334
        %v3838 = vmul.f32 %v3375, 0.33333334
        %v3839 = vmul.f32 %v3377, 0.33333334
        %v3840 = vmul.f32 %v3379, 0.33333334
        %v3841 = vmul.f32 %v3381, 0.33333334
        %v3842 = vmul.f32 %v3383, 0.33333334
        %v3843 = vmul.f32 %v3385, 0.33333334
        %v3844 = vmul.f32 %v3387, 0.33333334
        %v3845 = vmul.f32 %v3389, 0.33333334
        %v3846 = vmul.f32 %v3391, 0.33333334
        %v3847 = vmul.f32 %v3393, 0.33333334
        %v3848 = vmul.f32 %v3395, 0.33333334
        %v3849 = vmul.f32 %v3397, 0.33333334
        %v3850 = vmul.f32 %v3399, 0.33333334
        %v3851 = vmul.f32 %v3401, 0.33333334
        %v3852 = vmul.f32 %v3403, 0.33333334
        %v3853 = vmul.f32 %v3405, 0.33333334
        %v3854 = vmul.f32 %v3407, 0.33333334
        %v3855 = vmul.f32 %v3409, 0.33333334
        %v3856 = vmul.f32 %v3411, 0.33333334
        %v3857 = vmul.f32 %v3413, 0.33333334
        %v3858 = vmul.f32 %v3415, 0.33333334
        %v3859 = vmul.f32 %v3417, 0.33333334
        %v3860 = vmul.f32 %v3419, 0.33333334
        %v3861 = vmul.f32 %v3421, 0.33333334
        %v3862 = vmul.f32 %v3423, 0.33333334
        %v3863 = vmul.f32 %v3425, 0.33333334
        %v3864 = vmul.f32 %v3427, 0.33333334
        %v3865 = vmul.f32 %v3429, 0.33333334
        %v3866 = vmul.f32 %v3431, 0.33333334
        %v3867 = vmul.f32 %v3433, 0.33333334
        %v3868 = vmul.f32 %v3435, 0.33333334
        %v3869 = vmul.f32 %v3437, 0.33333334
        %v3870 = vmul.f32 %v3439, 0.33333334
        %v3871 = vmul.f32 %v3441, 0.33333334
        %v3872 = vmul.f32 %v3443, 0.33333334
        %v3873 = vmul.f32 %v3445, 0.33333334
        %v3874 = vmul.f32 %v3447, 0.33333334
        %v3875 = vmul.f32 %v3449, 0.33333334
        %v3876 = vmul.f32 %v3451, 0.33333334
        %v3877 = vmul.f32 %v3453, 0.33333334
        %v3878 = vmul.f32 %v3455, 0.33333334
        %v3879 = vmul.f32 %v3457, 0.33333334
        %v3880 = vmul.f32 %v3459, 0.33333334
        %v3881 = vmul.f32 %v3461, 0.33333334
        %v3882 = vmul.f32 %v3463, 0.33333334
        %v3883 = vmul.f32 %v3465, 0.33333334
        %v3884 = vmul.f32 %v3467, 0.33333334
        %v3885 = vmul.f32 %v3469, 0.33333334
        %v3886 = vmul.f32 %v3471, 0.33333334
        %v3887 = vmul.f32 %v3473, 0.33333334
        %v3888 = vmul.f32 %v3475, 0.33333334
        %v3889 = vmul.f32 %v3477, 0.33333334
        %v3890 = vmul.f32 %v3479, 0.33333334
        %v3891 = vmul.f32 %v3481, 0.33333334
        %v3892 = vmul.f32 %v3483, 0.33333334
        %v3893 = vmul.f32 %v3485, 0.33333334
        %v3894 = vmul.f32 %v3487, 0.33333334
        %v3895 = vmul.f32 %v3489, 0.33333334
        %v3896 = vmul.f32 %v3491, 0.33333334
        %v3897 = vmul.f32 %v3493, 0.33333334
        %v3898 = vmul.f32 %v3495, 0.33333334
        %v3899 = vmul.f32 %v3497, 0.33333334
        %v3900 = vmul.f32 %v3499, 0.33333334
        %v3901 = vmul.f32 %v3501, 0.33333334
        %v3902 = vmul.f32 %v3503, 0.33333334
        %v3903 = vmul.f32 %v3505, 0.33333334
        %v3904 = vmul.f32 %v3507, 0.33333334
        %v3905 = vmul.f32 %v3509, 0.33333334
        %v3906 = vmul.f32 %v3511, 0.33333334
        %v3907 = vmul.f32 %v3513, 0.33333334
        %v3908 = vmul.f32 %v3515, 0.33333334
        %v3909 = vmul.f32 %v3517, 0.33333334
        %v3910 = vmul.f32 %v3519, 0.33333334
        %v3911 = vmul.f32 %v3521, 0.33333334
        %v3912 = vmul.f32 %v3523, 0.33333334
        %v3913 = vmul.f32 %v3525, 0.33333334
        %v3914 = vmul.f32 %v3527, 0.33333334
        %v3915 = vmul.f32 %v3529, 0.33333334
        %v3916 = vmul.f32 %v3531, 0.33333334
        %v3917 = vmul.f32 %v3533, 0.33333334
        %v3918 = vmul.f32 %v3535, 0.33333334
        %v3919 = vmul.f32 %v3537, 0.33333334
        %v3920 = vmul.f32 %v3539, 0.33333334
        %v3921 = vmul.f32 %v3541, 0.33333334
        %v3922 = vmul.f32 %v3543, 0.33333334
        %v3923 = vmul.f32 %v3545, 0.33333334
        %v3924 = vmul.f32 %v3547, 0.33333334
        %v3925 = vmul.f32 %v3549, 0.33333334
        %v3926 = vmul.f32 %v3551, 0.33333334
        %v3927 = vmul.f32 %v3553, 0.33333334
        %v3928 = vmul.f32 %v3555, 0.33333334
        %v3929 = vmul.f32 %v3557, 0.33333334
        %v3930 = vmul.f32 %v3559, 0.33333334
        %v3931 = vmul.f32 %v3561, 0.33333334
        %v3932 = vmul.f32 %v3563, 0.33333334
        %v3933 = vmul.f32 %v3565, 0.33333334
        %v3934 = vmul.f32 %v3567, 0.33333334
        %v3935 = vmul.f32 %v3569, 0.33333334
        %v3936 = vmul.f32 %v3571, 0.33333334
        %v3937 = vmul.f32 %v3573, 0.33333334
        %v3938 = vmul.f32 %v3575, 0.33333334
        %v3939 = vmul.f32 %v3577, 0.33333334
        %v3940 = vmul.f32 %v3579, 0.33333334
        %v3941 = vmul.f32 %v3581, 0.33333334
        %v3942 = vmul.f32 %v3583, 0.33333334
        %v3943 = vmul.f32 %v3585, 0.33333334
        %v3944 = vmul.f32 %v3587, 0.33333334
        %v3945 = vmul.f32 %v3589, 0.33333334
        %v3946 = vmul.f32 %v3591, 0.33333334
        %v3947 = vmul.f32 %v3593, 0.33333334
        %v3948 = vmul.f32 %v3595, 0.33333334
        %v3949 = vmul.f32 %v3597, 0.33333334
        %v3950 = vmul.f32 %v3599, 0.33333334
        %v3951 = vmul.f32 %v3601, 0.33333334
        %v3952 = vmul.f32 %v3603, 0.33333334
        %v3953 = vmul.f32 %v3605, 0.33333334
        %v3954 = vmul.f32 %v3607, 0.33333334
        %v3955 = vmul.f32 %v3609, 0.33333334
        %v3956 = vmul.f32 %v3611, 0.33333334
        %v3957 = vmul.f32 %v3613, 0.33333334
        %v3958 = vmul.f32 %v3615, 0.33333334
        %v3959 = vmul.f32 %v3617, 0.33333334
        %v3960 = vmul.f32 %v3619, 0.33333334
        %v3961 = vmul.f32 %v3621, 0.33333334
        %v3962 = vmul.f32 %v3623, 0.33333334
        %v3963 = vmul.f32 %v3625, 0.33333334
        %v3964 = vmul.f32 %v3627, 0.33333334
        %v3965 = vmul.f32 %v3629, 0.33333334
        %v3966 = vmul.f32 %v3631, 0.33333334
        %v3967 = vmul.f32 %v3633, 0.33333334
        %v3968 = vmul.f32 %v3635, 0.33333334
        %v3969 = vmul.f32 %v3637, 0.33333334
        %v3970 = vmul.f32 %v3639, 0.33333334
        %v3971 = vmul.f32 %v3641, 0.33333334
        %v3972 = vmul.f32 %v3643, 0.33333334
        %v3973 = vmul.f32 %v3645, 0.33333334
        %v3974 = vmul.f32 %v3647, 0.33333334
        %v3975 = vmul.f32 %v3649, 0.33333334
        %v3976 = vmul.f32 %v3651, 0.33333334
        %v3977 = vmul.f32 %v3653, 0.33333334
        %v3978 = vmul.f32 %v3655, 0.33333334
        %v3979 = vmul.f32 %v3657, 0.33333334
        %v3980 = vmul.f32 %v3659, 0.33333334
        %v3981 = vmul.f32 %v3661, 0.33333334
        %v3982 = vmul.f32 %v3663, 0.33333334
        %v3983 = vmul.f32 %v3665, 0.33333334
        %v3984 = vmul.f32 %v3667, 0.33333334
        %v3985 = vmul.f32 %v3669, 0.33333334
        %v3986 = vmul.f32 %v3671, 0.33333334
        %v3987 = vmul.f32 %v3673, 0.33333334
        %v3988 = vmul.f32 %v3675, 0.33333334
        %v3989 = vmul.f32 %v3677, 0.33333334
        %v3990 = vmul.f32 %v3679, 0.33333334
        %v3991 = vmul.f32 %v3681, 0.33333334
        %v3992 = vmul.f32 %v3683, 0.33333334
        %v3993 = vmul.f32 %v3685, 0.33333334
        %v3994 = vmul.f32 %v3687, 0.33333334
        %v3995 = vmul.f32 %v3689, 0.33333334
        %v3996 = vmul.f32 %v3691, 0.33333334
        %v3997 = vmul.f32 %v3693, 0.33333334
        %v3998 = vmul.f32 %v3695, 0.33333334
        %v3999 = vmul.f32 %v3697, 0.33333334
        %v4000 = vmul.f32 %v3699, 0.33333334
        %v4001 = vmul.f32 %v3701, 0.33333334
        %v4002 = vmul.f32 %v3703, 0.33333334
        %v4003 = vmul.f32 %v3705, 0.33333334
        %v4004 = vmul.f32 %v3707, 0.33333334
        %v4005 = vmul.f32 %v3709, 0.33333334
        %v4006 = vmul.f32 %v3711, 0.33333334
        %v4007 = vmul.f32 %v3713, 0.33333334
        %v4008 = vmul.f32 %v3715, 0.33333334
        %v4009 = vmul.f32 %v3717, 0.33333334
        %v4010 = vmul.f32 %v3719, 0.33333334
        %v4011 = vmul.f32 %v3721, 0.33333334
        %v4012 = vmul.f32 %v3723, 0.33333334
        %v4013 = vmul.f32 %v3725, 0.33333334
        %v4014 = vmul.f32 %v3727, 0.33333334
        %v4015 = vmul.f32 %v3729, 0.33333334
        %v4016 = vmul.f32 %v3731, 0.33333334
        %v4017 = vmul.f32 %v3733, 0.33333334
        %v4018 = vmul.f32 %v3735, 0.33333334
        %v4019 = vmul.f32 %v3737, 0.33333334
        %v4020 = vmul.f32 %v3739, 0.33333334
        %v4021 = vmul.f32 %v3741, 0.33333334
        %v4022 = vmul.f32 %v3743, 0.33333334
        %v4023 = vmul.f32 %v3745, 0.33333334
        %v4024 = vmul.f32 %v3747, 0.33333334
        %v4025 = vmul.f32 %v3749, 0.33333334
        %v4026 = vmul.f32 %v3751, 0.33333334
        %v4027 = vmul.f32 %v3753, 0.33333334
        %v4028 = vmul.f32 %v3755, 0.33333334
        %v4029 = vmul.f32 %v3757, 0.33333334
        %v4030 = vmul.f32 %v3759, 0.33333334
        %v4031 = vmul.f32 %v3761, 0.33333334
        %v4032 = vmul.f32 %v3763, 0.33333334
        %v4033 = vmul.f32 %v3765, 0.33333334
        %v4034 = vmul.f32 %v3767, 0.33333334
        %v4035 = vmul.f32 %v3769, 0.33333334
        %v4036 = vmul.f32 %v3771, 0.33333334
        %v4037 = vmul.f32 %v3773, 0.33333334
        %v4038 = vmul.f32 %v3775, 0.33333334
        %v4039 = vmul.f32 %v3777, 0.33333334
        %v4040 = vmul.f32 %v3779, 0.33333334
        %v4041 = vmul.f32 %v3781, 0.33333334
        %v4042 = vmul.f32 %v3783, 0.33333334
        %v4043 = vmul.f32 %v3785, 0.33333334
        %v4044 = vmul.f32 %v3787, 0.33333334
        %v4045 = vmul.f32 %v3789, 0.33333334
        %v4046 = vmul.f32 %v3790, 1.442695
        %v4047 = vpow.pop %v4046
        %v4048 = vmul.f32 %v3791, 1.442695
        %v4049 = vpow.pop %v4048
        %v4050 = vmul.f32 %v3792, 1.442695
        %v4051 = vpow.pop %v4050
        %v4052 = vmul.f32 %v3793, 1.442695
        %v4053 = vpow.pop %v4052
        %v4054 = vmul.f32 %v3794, 1.442695
        %v4055 = vpow.pop %v4054
        %v4056 = vmul.f32 %v3795, 1.442695
        %v4057 = vpow.pop %v4056
        %v4058 = vmul.f32 %v3796, 1.442695
        %v4059 = vpow.pop %v4058
        %v4060 = vmul.f32 %v3797, 1.442695
        %v4061 = vpow.pop %v4060
        %v4062 = vmul.f32 %v3798, 1.442695
        %v4063 = vpow.pop %v4062
        %v4064 = vmul.f32 %v3799, 1.442695
        %v4065 = vpow.pop %v4064
        %v4066 = vmul.f32 %v3800, 1.442695
        %v4067 = vpow.pop %v4066
        %v4068 = vmul.f32 %v3801, 1.442695
        %v4069 = vpow.pop %v4068
        %v4070 = vmul.f32 %v3802, 1.442695
        %v4071 = vpow.pop %v4070
        %v4072 = vmul.f32 %v3803, 1.442695
        %v4073 = vpow.pop %v4072
        %v4074 = vmul.f32 %v3804, 1.442695
        %v4075 = vpow.pop %v4074
        %v4076 = vmul.f32 %v3805, 1.442695
        %v4077 = vpow.pop %v4076
        %v4078 = vmul.f32 %v3806, 1.442695
        %v4079 = vpow.pop %v4078
        %v4080 = vmul.f32 %v3807, 1.442695
        %v4081 = vpow.pop %v4080
        %v4082 = vmul.f32 %v3808, 1.442695
        %v4083 = vpow.pop %v4082
        %v4084 = vmul.f32 %v3809, 1.442695
        %v4085 = vpow.pop %v4084
        %v4086 = vmul.f32 %v3810, 1.442695
        %v4087 = vpow.pop %v4086
        %v4088 = vmul.f32 %v3811, 1.442695
        %v4089 = vpow.pop %v4088
        %v4090 = vmul.f32 %v3812, 1.442695
        %v4091 = vpow.pop %v4090
        %v4092 = vmul.f32 %v3813, 1.442695
        %v4093 = vpow.pop %v4092
        %v4094 = vmul.f32 %v3814, 1.442695
        %v4095 = vpow.pop %v4094
        %v4096 = vmul.f32 %v3815, 1.442695
        %v4097 = vpow.pop %v4096
        %v4098 = vmul.f32 %v3816, 1.442695
        %v4099 = vpow.pop %v4098
        %v4100 = vmul.f32 %v3817, 1.442695
        %v4101 = vpow.pop %v4100
        %v4102 = vmul.f32 %v3818, 1.442695
        %v4103 = vpow.pop %v4102
        %v4104 = vmul.f32 %v3819, 1.442695
        %v4105 = vpow.pop %v4104
        %v4106 = vmul.f32 %v3820, 1.442695
        %v4107 = vpow.pop %v4106
        %v4108 = vmul.f32 %v3821, 1.442695
        %v4109 = vpow.pop %v4108
        %v4110 = vmul.f32 %v3822, 1.442695
        %v4111 = vpow.pop %v4110
        %v4112 = vmul.f32 %v3823, 1.442695
        %v4113 = vpow.pop %v4112
        %v4114 = vmul.f32 %v3824, 1.442695
        %v4115 = vpow.pop %v4114
        %v4116 = vmul.f32 %v3825, 1.442695
        %v4117 = vpow.pop %v4116
        %v4118 = vmul.f32 %v3826, 1.442695
        %v4119 = vpow.pop %v4118
        %v4120 = vmul.f32 %v3827, 1.442695
        %v4121 = vpow.pop %v4120
        %v4122 = vmul.f32 %v3828, 1.442695
        %v4123 = vpow.pop %v4122
        %v4124 = vmul.f32 %v3829, 1.442695
        %v4125 = vpow.pop %v4124
        %v4126 = vmul.f32 %v3830, 1.442695
        %v4127 = vpow.pop %v4126
        %v4128 = vmul.f32 %v3831, 1.442695
        %v4129 = vpow.pop %v4128
        %v4130 = vmul.f32 %v3832, 1.442695
        %v4131 = vpow.pop %v4130
        %v4132 = vmul.f32 %v3833, 1.442695
        %v4133 = vpow.pop %v4132
        %v4134 = vmul.f32 %v3834, 1.442695
        %v4135 = vpow.pop %v4134
        %v4136 = vmul.f32 %v3835, 1.442695
        %v4137 = vpow.pop %v4136
        %v4138 = vmul.f32 %v3836, 1.442695
        %v4139 = vpow.pop %v4138
        %v4140 = vmul.f32 %v3837, 1.442695
        %v4141 = vpow.pop %v4140
        %v4142 = vmul.f32 %v3838, 1.442695
        %v4143 = vpow.pop %v4142
        %v4144 = vmul.f32 %v3839, 1.442695
        %v4145 = vpow.pop %v4144
        %v4146 = vmul.f32 %v3840, 1.442695
        %v4147 = vpow.pop %v4146
        %v4148 = vmul.f32 %v3841, 1.442695
        %v4149 = vpow.pop %v4148
        %v4150 = vmul.f32 %v3842, 1.442695
        %v4151 = vpow.pop %v4150
        %v4152 = vmul.f32 %v3843, 1.442695
        %v4153 = vpow.pop %v4152
        %v4154 = vmul.f32 %v3844, 1.442695
        %v4155 = vpow.pop %v4154
        %v4156 = vmul.f32 %v3845, 1.442695
        %v4157 = vpow.pop %v4156
        %v4158 = vmul.f32 %v3846, 1.442695
        %v4159 = vpow.pop %v4158
        %v4160 = vmul.f32 %v3847, 1.442695
        %v4161 = vpow.pop %v4160
        %v4162 = vmul.f32 %v3848, 1.442695
        %v4163 = vpow.pop %v4162
        %v4164 = vmul.f32 %v3849, 1.442695
        %v4165 = vpow.pop %v4164
        %v4166 = vmul.f32 %v3850, 1.442695
        %v4167 = vpow.pop %v4166
        %v4168 = vmul.f32 %v3851, 1.442695
        %v4169 = vpow.pop %v4168
        %v4170 = vmul.f32 %v3852, 1.442695
        %v4171 = vpow.pop %v4170
        %v4172 = vmul.f32 %v3853, 1.442695
        %v4173 = vpow.pop %v4172
        %v4174 = vmul.f32 %v3854, 1.442695
        %v4175 = vpow.pop %v4174
        %v4176 = vmul.f32 %v3855, 1.442695
        %v4177 = vpow.pop %v4176
        %v4178 = vmul.f32 %v3856, 1.442695
        %v4179 = vpow.pop %v4178
        %v4180 = vmul.f32 %v3857, 1.442695
        %v4181 = vpow.pop %v4180
        %v4182 = vmul.f32 %v3858, 1.442695
        %v4183 = vpow.pop %v4182
        %v4184 = vmul.f32 %v3859, 1.442695
        %v4185 = vpow.pop %v4184
        %v4186 = vmul.f32 %v3860, 1.442695
        %v4187 = vpow.pop %v4186
        %v4188 = vmul.f32 %v3861, 1.442695
        %v4189 = vpow.pop %v4188
        %v4190 = vmul.f32 %v3862, 1.442695
        %v4191 = vpow.pop %v4190
        %v4192 = vmul.f32 %v3863, 1.442695
        %v4193 = vpow.pop %v4192
        %v4194 = vmul.f32 %v3864, 1.442695
        %v4195 = vpow.pop %v4194
        %v4196 = vmul.f32 %v3865, 1.442695
        %v4197 = vpow.pop %v4196
        %v4198 = vmul.f32 %v3866, 1.442695
        %v4199 = vpow.pop %v4198
        %v4200 = vmul.f32 %v3867, 1.442695
        %v4201 = vpow.pop %v4200
        %v4202 = vmul.f32 %v3868, 1.442695
        %v4203 = vpow.pop %v4202
        %v4204 = vmul.f32 %v3869, 1.442695
        %v4205 = vpow.pop %v4204
        %v4206 = vmul.f32 %v3870, 1.442695
        %v4207 = vpow.pop %v4206
        %v4208 = vmul.f32 %v3871, 1.442695
        %v4209 = vpow.pop %v4208
        %v4210 = vmul.f32 %v3872, 1.442695
        %v4211 = vpow.pop %v4210
        %v4212 = vmul.f32 %v3873, 1.442695
        %v4213 = vpow.pop %v4212
        %v4214 = vmul.f32 %v3874, 1.442695
        %v4215 = vpow.pop %v4214
        %v4216 = vmul.f32 %v3875, 1.442695
        %v4217 = vpow.pop %v4216
        %v4218 = vmul.f32 %v3876, 1.442695
        %v4219 = vpow.pop %v4218
        %v4220 = vmul.f32 %v3877, 1.442695
        %v4221 = vpow.pop %v4220
        %v4222 = vmul.f32 %v3878, 1.442695
        %v4223 = vpow.pop %v4222
        %v4224 = vmul.f32 %v3879, 1.442695
        %v4225 = vpow.pop %v4224
        %v4226 = vmul.f32 %v3880, 1.442695
        %v4227 = vpow.pop %v4226
        %v4228 = vmul.f32 %v3881, 1.442695
        %v4229 = vpow.pop %v4228
        %v4230 = vmul.f32 %v3882, 1.442695
        %v4231 = vpow.pop %v4230
        %v4232 = vmul.f32 %v3883, 1.442695
        %v4233 = vpow.pop %v4232
        %v4234 = vmul.f32 %v3884, 1.442695
        %v4235 = vpow.pop %v4234
        %v4236 = vmul.f32 %v3885, 1.442695
        %v4237 = vpow.pop %v4236
        %v4238 = vmul.f32 %v3886, 1.442695
        %v4239 = vpow.pop %v4238
        %v4240 = vmul.f32 %v3887, 1.442695
        %v4241 = vpow.pop %v4240
        %v4242 = vmul.f32 %v3888, 1.442695
        %v4243 = vpow.pop %v4242
        %v4244 = vmul.f32 %v3889, 1.442695
        %v4245 = vpow.pop %v4244
        %v4246 = vmul.f32 %v3890, 1.442695
        %v4247 = vpow.pop %v4246
        %v4248 = vmul.f32 %v3891, 1.442695
        %v4249 = vpow.pop %v4248
        %v4250 = vmul.f32 %v3892, 1.442695
        %v4251 = vpow.pop %v4250
        %v4252 = vmul.f32 %v3893, 1.442695
        %v4253 = vpow.pop %v4252
        %v4254 = vmul.f32 %v3894, 1.442695
        %v4255 = vpow.pop %v4254
        %v4256 = vmul.f32 %v3895, 1.442695
        %v4257 = vpow.pop %v4256
        %v4258 = vmul.f32 %v3896, 1.442695
        %v4259 = vpow.pop %v4258
        %v4260 = vmul.f32 %v3897, 1.442695
        %v4261 = vpow.pop %v4260
        %v4262 = vmul.f32 %v3898, 1.442695
        %v4263 = vpow.pop %v4262
        %v4264 = vmul.f32 %v3899, 1.442695
        %v4265 = vpow.pop %v4264
        %v4266 = vmul.f32 %v3900, 1.442695
        %v4267 = vpow.pop %v4266
        %v4268 = vmul.f32 %v3901, 1.442695
        %v4269 = vpow.pop %v4268
        %v4270 = vmul.f32 %v3902, 1.442695
        %v4271 = vpow.pop %v4270
        %v4272 = vmul.f32 %v3903, 1.442695
        %v4273 = vpow.pop %v4272
        %v4274 = vmul.f32 %v3904, 1.442695
        %v4275 = vpow.pop %v4274
        %v4276 = vmul.f32 %v3905, 1.442695
        %v4277 = vpow.pop %v4276
        %v4278 = vmul.f32 %v3906, 1.442695
        %v4279 = vpow.pop %v4278
        %v4280 = vmul.f32 %v3907, 1.442695
        %v4281 = vpow.pop %v4280
        %v4282 = vmul.f32 %v3908, 1.442695
        %v4283 = vpow.pop %v4282
        %v4284 = vmul.f32 %v3909, 1.442695
        %v4285 = vpow.pop %v4284
        %v4286 = vmul.f32 %v3910, 1.442695
        %v4287 = vpow.pop %v4286
        %v4288 = vmul.f32 %v3911, 1.442695
        %v4289 = vpow.pop %v4288
        %v4290 = vmul.f32 %v3912, 1.442695
        %v4291 = vpow.pop %v4290
        %v4292 = vmul.f32 %v3913, 1.442695
        %v4293 = vpow.pop %v4292
        %v4294 = vmul.f32 %v3914, 1.442695
        %v4295 = vpow.pop %v4294
        %v4296 = vmul.f32 %v3915, 1.442695
        %v4297 = vpow.pop %v4296
        %v4298 = vmul.f32 %v3916, 1.442695
        %v4299 = vpow.pop %v4298
        %v4300 = vmul.f32 %v3917, 1.442695
        %v4301 = vpow.pop %v4300
        %v4302 = vmul.f32 %v3918, 1.442695
        %v4303 = vpow.pop %v4302
        %v4304 = vmul.f32 %v3919, 1.442695
        %v4305 = vpow.pop %v4304
        %v4306 = vmul.f32 %v3920, 1.442695
        %v4307 = vpow.pop %v4306
        %v4308 = vmul.f32 %v3921, 1.442695
        %v4309 = vpow.pop %v4308
        %v4310 = vmul.f32 %v3922, 1.442695
        %v4311 = vpow.pop %v4310
        %v4312 = vmul.f32 %v3923, 1.442695
        %v4313 = vpow.pop %v4312
        %v4314 = vmul.f32 %v3924, 1.442695
        %v4315 = vpow.pop %v4314
        %v4316 = vmul.f32 %v3925, 1.442695
        %v4317 = vpow.pop %v4316
        %v4318 = vmul.f32 %v3926, 1.442695
        %v4319 = vpow.pop %v4318
        %v4320 = vmul.f32 %v3927, 1.442695
        %v4321 = vpow.pop %v4320
        %v4322 = vmul.f32 %v3928, 1.442695
        %v4323 = vpow.pop %v4322
        %v4324 = vmul.f32 %v3929, 1.442695
        %v4325 = vpow.pop %v4324
        %v4326 = vmul.f32 %v3930, 1.442695
        %v4327 = vpow.pop %v4326
        %v4328 = vmul.f32 %v3931, 1.442695
        %v4329 = vpow.pop %v4328
        %v4330 = vmul.f32 %v3932, 1.442695
        %v4331 = vpow.pop %v4330
        %v4332 = vmul.f32 %v3933, 1.442695
        %v4333 = vpow.pop %v4332
        %v4334 = vmul.f32 %v3934, 1.442695
        %v4335 = vpow.pop %v4334
        %v4336 = vmul.f32 %v3935, 1.442695
        %v4337 = vpow.pop %v4336
        %v4338 = vmul.f32 %v3936, 1.442695
        %v4339 = vpow.pop %v4338
        %v4340 = vmul.f32 %v3937, 1.442695
        %v4341 = vpow.pop %v4340
        %v4342 = vmul.f32 %v3938, 1.442695
        %v4343 = vpow.pop %v4342
        %v4344 = vmul.f32 %v3939, 1.442695
        %v4345 = vpow.pop %v4344
        %v4346 = vmul.f32 %v3940, 1.442695
        %v4347 = vpow.pop %v4346
        %v4348 = vmul.f32 %v3941, 1.442695
        %v4349 = vpow.pop %v4348
        %v4350 = vmul.f32 %v3942, 1.442695
        %v4351 = vpow.pop %v4350
        %v4352 = vmul.f32 %v3943, 1.442695
        %v4353 = vpow.pop %v4352
        %v4354 = vmul.f32 %v3944, 1.442695
        %v4355 = vpow.pop %v4354
        %v4356 = vmul.f32 %v3945, 1.442695
        %v4357 = vpow.pop %v4356
        %v4358 = vmul.f32 %v3946, 1.442695
        %v4359 = vpow.pop %v4358
        %v4360 = vmul.f32 %v3947, 1.442695
        %v4361 = vpow.pop %v4360
        %v4362 = vmul.f32 %v3948, 1.442695
        %v4363 = vpow.pop %v4362
        %v4364 = vmul.f32 %v3949, 1.442695
        %v4365 = vpow.pop %v4364
        %v4366 = vmul.f32 %v3950, 1.442695
        %v4367 = vpow.pop %v4366
        %v4368 = vmul.f32 %v3951, 1.442695
        %v4369 = vpow.pop %v4368
        %v4370 = vmul.f32 %v3952, 1.442695
        %v4371 = vpow.pop %v4370
        %v4372 = vmul.f32 %v3953, 1.442695
        %v4373 = vpow.pop %v4372
        %v4374 = vmul.f32 %v3954, 1.442695
        %v4375 = vpow.pop %v4374
        %v4376 = vmul.f32 %v3955, 1.442695
        %v4377 = vpow.pop %v4376
        %v4378 = vmul.f32 %v3956, 1.442695
        %v4379 = vpow.pop %v4378
        %v4380 = vmul.f32 %v3957, 1.442695
        %v4381 = vpow.pop %v4380
        %v4382 = vmul.f32 %v3958, 1.442695
        %v4383 = vpow.pop %v4382
        %v4384 = vmul.f32 %v3959, 1.442695
        %v4385 = vpow.pop %v4384
        %v4386 = vmul.f32 %v3960, 1.442695
        %v4387 = vpow.pop %v4386
        %v4388 = vmul.f32 %v3961, 1.442695
        %v4389 = vpow.pop %v4388
        %v4390 = vmul.f32 %v3962, 1.442695
        %v4391 = vpow.pop %v4390
        %v4392 = vmul.f32 %v3963, 1.442695
        %v4393 = vpow.pop %v4392
        %v4394 = vmul.f32 %v3964, 1.442695
        %v4395 = vpow.pop %v4394
        %v4396 = vmul.f32 %v3965, 1.442695
        %v4397 = vpow.pop %v4396
        %v4398 = vmul.f32 %v3966, 1.442695
        %v4399 = vpow.pop %v4398
        %v4400 = vmul.f32 %v3967, 1.442695
        %v4401 = vpow.pop %v4400
        %v4402 = vmul.f32 %v3968, 1.442695
        %v4403 = vpow.pop %v4402
        %v4404 = vmul.f32 %v3969, 1.442695
        %v4405 = vpow.pop %v4404
        %v4406 = vmul.f32 %v3970, 1.442695
        %v4407 = vpow.pop %v4406
        %v4408 = vmul.f32 %v3971, 1.442695
        %v4409 = vpow.pop %v4408
        %v4410 = vmul.f32 %v3972, 1.442695
        %v4411 = vpow.pop %v4410
        %v4412 = vmul.f32 %v3973, 1.442695
        %v4413 = vpow.pop %v4412
        %v4414 = vmul.f32 %v3974, 1.442695
        %v4415 = vpow.pop %v4414
        %v4416 = vmul.f32 %v3975, 1.442695
        %v4417 = vpow.pop %v4416
        %v4418 = vmul.f32 %v3976, 1.442695
        %v4419 = vpow.pop %v4418
        %v4420 = vmul.f32 %v3977, 1.442695
        %v4421 = vpow.pop %v4420
        %v4422 = vmul.f32 %v3978, 1.442695
        %v4423 = vpow.pop %v4422
        %v4424 = vmul.f32 %v3979, 1.442695
        %v4425 = vpow.pop %v4424
        %v4426 = vmul.f32 %v3980, 1.442695
        %v4427 = vpow.pop %v4426
        %v4428 = vmul.f32 %v3981, 1.442695
        %v4429 = vpow.pop %v4428
        %v4430 = vmul.f32 %v3982, 1.442695
        %v4431 = vpow.pop %v4430
        %v4432 = vmul.f32 %v3983, 1.442695
        %v4433 = vpow.pop %v4432
        %v4434 = vmul.f32 %v3984, 1.442695
        %v4435 = vpow.pop %v4434
        %v4436 = vmul.f32 %v3985, 1.442695
        %v4437 = vpow.pop %v4436
        %v4438 = vmul.f32 %v3986, 1.442695
        %v4439 = vpow.pop %v4438
        %v4440 = vmul.f32 %v3987, 1.442695
        %v4441 = vpow.pop %v4440
        %v4442 = vmul.f32 %v3988, 1.442695
        %v4443 = vpow.pop %v4442
        %v4444 = vmul.f32 %v3989, 1.442695
        %v4445 = vpow.pop %v4444
        %v4446 = vmul.f32 %v3990, 1.442695
        %v4447 = vpow.pop %v4446
        %v4448 = vmul.f32 %v3991, 1.442695
        %v4449 = vpow.pop %v4448
        %v4450 = vmul.f32 %v3992, 1.442695
        %v4451 = vpow.pop %v4450
        %v4452 = vmul.f32 %v3993, 1.442695
        %v4453 = vpow.pop %v4452
        %v4454 = vmul.f32 %v3994, 1.442695
        %v4455 = vpow.pop %v4454
        %v4456 = vmul.f32 %v3995, 1.442695
        %v4457 = vpow.pop %v4456
        %v4458 = vmul.f32 %v3996, 1.442695
        %v4459 = vpow.pop %v4458
        %v4460 = vmul.f32 %v3997, 1.442695
        %v4461 = vpow.pop %v4460
        %v4462 = vmul.f32 %v3998, 1.442695
        %v4463 = vpow.pop %v4462
        %v4464 = vmul.f32 %v3999, 1.442695
        %v4465 = vpow.pop %v4464
        %v4466 = vmul.f32 %v4000, 1.442695
        %v4467 = vpow.pop %v4466
        %v4468 = vmul.f32 %v4001, 1.442695
        %v4469 = vpow.pop %v4468
        %v4470 = vmul.f32 %v4002, 1.442695
        %v4471 = vpow.pop %v4470
        %v4472 = vmul.f32 %v4003, 1.442695
        %v4473 = vpow.pop %v4472
        %v4474 = vmul.f32 %v4004, 1.442695
        %v4475 = vpow.pop %v4474
        %v4476 = vmul.f32 %v4005, 1.442695
        %v4477 = vpow.pop %v4476
        %v4478 = vmul.f32 %v4006, 1.442695
        %v4479 = vpow.pop %v4478
        %v4480 = vmul.f32 %v4007, 1.442695
        %v4481 = vpow.pop %v4480
        %v4482 = vmul.f32 %v4008, 1.442695
        %v4483 = vpow.pop %v4482
        %v4484 = vmul.f32 %v4009, 1.442695
        %v4485 = vpow.pop %v4484
        %v4486 = vmul.f32 %v4010, 1.442695
        %v4487 = vpow.pop %v4486
        %v4488 = vmul.f32 %v4011, 1.442695
        %v4489 = vpow.pop %v4488
        %v4490 = vmul.f32 %v4012, 1.442695
        %v4491 = vpow.pop %v4490
        %v4492 = vmul.f32 %v4013, 1.442695
        %v4493 = vpow.pop %v4492
        %v4494 = vmul.f32 %v4014, 1.442695
        %v4495 = vpow.pop %v4494
        %v4496 = vmul.f32 %v4015, 1.442695
        %v4497 = vpow.pop %v4496
        %v4498 = vmul.f32 %v4016, 1.442695
        %v4499 = vpow.pop %v4498
        %v4500 = vmul.f32 %v4017, 1.442695
        %v4501 = vpow.pop %v4500
        %v4502 = vmul.f32 %v4018, 1.442695
        %v4503 = vpow.pop %v4502
        %v4504 = vmul.f32 %v4019, 1.442695
        %v4505 = vpow.pop %v4504
        %v4506 = vmul.f32 %v4020, 1.442695
        %v4507 = vpow.pop %v4506
        %v4508 = vmul.f32 %v4021, 1.442695
        %v4509 = vpow.pop %v4508
        %v4510 = vmul.f32 %v4022, 1.442695
        %v4511 = vpow.pop %v4510
        %v4512 = vmul.f32 %v4023, 1.442695
        %v4513 = vpow.pop %v4512
        %v4514 = vmul.f32 %v4024, 1.442695
        %v4515 = vpow.pop %v4514
        %v4516 = vmul.f32 %v4025, 1.442695
        %v4517 = vpow.pop %v4516
        %v4518 = vmul.f32 %v4026, 1.442695
        %v4519 = vpow.pop %v4518
        %v4520 = vmul.f32 %v4027, 1.442695
        %v4521 = vpow.pop %v4520
        %v4522 = vmul.f32 %v4028, 1.442695
        %v4523 = vpow.pop %v4522
        %v4524 = vmul.f32 %v4029, 1.442695
        %v4525 = vpow.pop %v4524
        %v4526 = vmul.f32 %v4030, 1.442695
        %v4527 = vpow.pop %v4526
        %v4528 = vmul.f32 %v4031, 1.442695
        %v4529 = vpow.pop %v4528
        %v4530 = vmul.f32 %v4032, 1.442695
        %v4531 = vpow.pop %v4530
        %v4532 = vmul.f32 %v4033, 1.442695
        %v4533 = vpow.pop %v4532
        %v4534 = vmul.f32 %v4034, 1.442695
        %v4535 = vpow.pop %v4534
        %v4536 = vmul.f32 %v4035, 1.442695
        %v4537 = vpow.pop %v4536
        %v4538 = vmul.f32 %v4036, 1.442695
        %v4539 = vpow.pop %v4538
        %v4540 = vmul.f32 %v4037, 1.442695
        %v4541 = vpow.pop %v4540
        %v4542 = vmul.f32 %v4038, 1.442695
        %v4543 = vpow.pop %v4542
        %v4544 = vmul.f32 %v4039, 1.442695
        %v4545 = vpow.pop %v4544
        %v4546 = vmul.f32 %v4040, 1.442695
        %v4547 = vpow.pop %v4546
        %v4548 = vmul.f32 %v4041, 1.442695
        %v4549 = vpow.pop %v4548
        %v4550 = vmul.f32 %v4042, 1.442695
        %v4551 = vpow.pop %v4550
        %v4552 = vmul.f32 %v4043, 1.442695
        %v4553 = vpow.pop %v4552
        %v4554 = vmul.f32 %v4044, 1.442695
        %v4555 = vpow.pop %v4554
        %v4556 = vmul.f32 %v4045, 1.442695
        %v4557 = vpow.pop %v4556
        %v4558 = vld [vmem:[#allocation5] sm:$0x3]
        %v4560 = vlaneseq
        %v4561 = vshrl.u32 %v4560, 7
        %v4562 = vsub.s32 0, %v4561
        %v4563 = vrot.slane %v4558, %v4562
        %v4564 = vlaneseq
        %v4565 = vshrl.u32 %v4564, 7
        %v4566 = vsub.s32 1, %v4565
        %v4567 = vrot.slane %v4558, %v4566
        %4569 = vbcast.lane.b32.xlu0 %v4563, 256
        %v4570 = vpop.permute.xlu0 %4569
        %s4572 = sor.u32 256, 8
        %4573 = vbcast.lane.b32.xlu0 %v4563, %s4572
        %v4574 = vpop.permute.xlu0 %4573
        %s4576 = sor.u32 256, 16
        %4577 = vbcast.lane.b32.xlu0 %v4563, %s4576
        %v4578 = vpop.permute.xlu0 %4577
        %s4580 = sor.u32 256, 24
        %4581 = vbcast.lane.b32.xlu0 %v4563, %s4580
        %v4582 = vpop.permute.xlu0 %4581
        %s4584 = sor.u32 256, 32
        %4585 = vbcast.lane.b32.xlu0 %v4563, %s4584
        %v4586 = vpop.permute.xlu0 %4585
        %s4588 = sor.u32 256, 40
        %4589 = vbcast.lane.b32.xlu0 %v4563, %s4588
        %v4590 = vpop.permute.xlu0 %4589
        %s4592 = sor.u32 256, 48
        %4593 = vbcast.lane.b32.xlu0 %v4563, %s4592
        %v4594 = vpop.permute.xlu0 %4593
        %s4596 = sor.u32 256, 56
        %4597 = vbcast.lane.b32.xlu0 %v4563, %s4596
        %v4598 = vpop.permute.xlu0 %4597
        %s4600 = sor.u32 256, 64
        %4601 = vbcast.lane.b32.xlu0 %v4563, %s4600
        %v4602 = vpop.permute.xlu0 %4601
        %s4604 = sor.u32 256, 72
        %4605 = vbcast.lane.b32.xlu0 %v4563, %s4604
        %v4606 = vpop.permute.xlu0 %4605
        %s4608 = sor.u32 256, 80
        %4609 = vbcast.lane.b32.xlu0 %v4563, %s4608
        %v4610 = vpop.permute.xlu0 %4609
        %s4612 = sor.u32 256, 88
        %4613 = vbcast.lane.b32.xlu0 %v4563, %s4612
        %v4614 = vpop.permute.xlu0 %4613
        %s4616 = sor.u32 256, 96
        %4617 = vbcast.lane.b32.xlu0 %v4563, %s4616
        %v4618 = vpop.permute.xlu0 %4617
        %s4620 = sor.u32 256, 104
        %4621 = vbcast.lane.b32.xlu0 %v4563, %s4620
        %v4622 = vpop.permute.xlu0 %4621
        %s4624 = sor.u32 256, 112
        %4625 = vbcast.lane.b32.xlu0 %v4563, %s4624
        %v4626 = vpop.permute.xlu0 %4625
        %s4628 = sor.u32 256, 120
        %4629 = vbcast.lane.b32.xlu0 %v4563, %s4628
        %v4630 = vpop.permute.xlu0 %4629
        %4632 = vbcast.lane.b32.xlu0 %v4567, 256
        %v4633 = vpop.permute.xlu0 %4632
        %s4635 = sor.u32 256, 8
        %4636 = vbcast.lane.b32.xlu0 %v4567, %s4635
        %v4637 = vpop.permute.xlu0 %4636
        %s4639 = sor.u32 256, 16
        %4640 = vbcast.lane.b32.xlu0 %v4567, %s4639
        %v4641 = vpop.permute.xlu0 %4640
        %s4643 = sor.u32 256, 24
        %4644 = vbcast.lane.b32.xlu0 %v4567, %s4643
        %v4645 = vpop.permute.xlu0 %4644
        %s4647 = sor.u32 256, 32
        %4648 = vbcast.lane.b32.xlu0 %v4567, %s4647
        %v4649 = vpop.permute.xlu0 %4648
        %s4651 = sor.u32 256, 40
        %4652 = vbcast.lane.b32.xlu0 %v4567, %s4651
        %v4653 = vpop.permute.xlu0 %4652
        %s4655 = sor.u32 256, 48
        %4656 = vbcast.lane.b32.xlu0 %v4567, %s4655
        %v4657 = vpop.permute.xlu0 %4656
        %s4659 = sor.u32 256, 56
        %4660 = vbcast.lane.b32.xlu0 %v4567, %s4659
        %v4661 = vpop.permute.xlu0 %4660
        %s4663 = sor.u32 256, 64
        %4664 = vbcast.lane.b32.xlu0 %v4567, %s4663
        %v4665 = vpop.permute.xlu0 %4664
        %s4667 = sor.u32 256, 72
        %4668 = vbcast.lane.b32.xlu0 %v4567, %s4667
        %v4669 = vpop.permute.xlu0 %4668
        %s4671 = sor.u32 256, 80
        %4672 = vbcast.lane.b32.xlu0 %v4567, %s4671
        %v4673 = vpop.permute.xlu0 %4672
        %s4675 = sor.u32 256, 88
        %4676 = vbcast.lane.b32.xlu0 %v4567, %s4675
        %v4677 = vpop.permute.xlu0 %4676
        %s4679 = sor.u32 256, 96
        %4680 = vbcast.lane.b32.xlu0 %v4567, %s4679
        %v4681 = vpop.permute.xlu0 %4680
        %s4683 = sor.u32 256, 104
        %4684 = vbcast.lane.b32.xlu0 %v4567, %s4683
        %v4685 = vpop.permute.xlu0 %4684
        %s4687 = sor.u32 256, 112
        %4688 = vbcast.lane.b32.xlu0 %v4567, %s4687
        %v4689 = vpop.permute.xlu0 %4688
        %s4691 = sor.u32 256, 120
        %4692 = vbcast.lane.b32.xlu0 %v4567, %s4691
        %v4693 = vpop.permute.xlu0 %4692
        %v4726 = vmul.f32 %v4047, %v4570
        %v4727 = vmul.f32 %v4049, %v4574
        %v4728 = vmul.f32 %v4051, %v4578
        %v4729 = vmul.f32 %v4053, %v4582
        %v4730 = vmul.f32 %v4055, %v4586
        %v4731 = vmul.f32 %v4057, %v4590
        %v4732 = vmul.f32 %v4059, %v4594
        %v4733 = vmul.f32 %v4061, %v4598
        %v4734 = vmul.f32 %v4063, %v4602
        %v4735 = vmul.f32 %v4065, %v4606
        %v4736 = vmul.f32 %v4067, %v4610
        %v4737 = vmul.f32 %v4069, %v4614
        %v4738 = vmul.f32 %v4071, %v4618
        %v4739 = vmul.f32 %v4073, %v4622
        %v4740 = vmul.f32 %v4075, %v4626
        %v4741 = vmul.f32 %v4077, %v4630
        %v4742 = vmul.f32 %v4079, %v4633
        %v4743 = vmul.f32 %v4081, %v4637
        %v4744 = vmul.f32 %v4083, %v4641
        %v4745 = vmul.f32 %v4085, %v4645
        %v4746 = vmul.f32 %v4087, %v4649
        %v4747 = vmul.f32 %v4089, %v4653
        %v4748 = vmul.f32 %v4091, %v4657
        %v4749 = vmul.f32 %v4093, %v4661
        %v4750 = vmul.f32 %v4095, %v4665
        %v4751 = vmul.f32 %v4097, %v4669
        %v4752 = vmul.f32 %v4099, %v4673
        %v4753 = vmul.f32 %v4101, %v4677
        %v4754 = vmul.f32 %v4103, %v4681
        %v4755 = vmul.f32 %v4105, %v4685
        %v4756 = vmul.f32 %v4107, %v4689
        %v4757 = vmul.f32 %v4109, %v4693
        %v4758 = vmul.f32 %v4111, %v4570
        %v4759 = vmul.f32 %v4113, %v4574
        %v4760 = vmul.f32 %v4115, %v4578
        %v4761 = vmul.f32 %v4117, %v4582
        %v4762 = vmul.f32 %v4119, %v4586
        %v4763 = vmul.f32 %v4121, %v4590
        %v4764 = vmul.f32 %v4123, %v4594
        %v4765 = vmul.f32 %v4125, %v4598
        %v4766 = vmul.f32 %v4127, %v4602
        %v4767 = vmul.f32 %v4129, %v4606
        %v4768 = vmul.f32 %v4131, %v4610
        %v4769 = vmul.f32 %v4133, %v4614
        %v4770 = vmul.f32 %v4135, %v4618
        %v4771 = vmul.f32 %v4137, %v4622
        %v4772 = vmul.f32 %v4139, %v4626
        %v4773 = vmul.f32 %v4141, %v4630
        %v4774 = vmul.f32 %v4143, %v4633
        %v4775 = vmul.f32 %v4145, %v4637
        %v4776 = vmul.f32 %v4147, %v4641
        %v4777 = vmul.f32 %v4149, %v4645
        %v4778 = vmul.f32 %v4151, %v4649
        %v4779 = vmul.f32 %v4153, %v4653
        %v4780 = vmul.f32 %v4155, %v4657
        %v4781 = vmul.f32 %v4157, %v4661
        %v4782 = vmul.f32 %v4159, %v4665
        %v4783 = vmul.f32 %v4161, %v4669
        %v4784 = vmul.f32 %v4163, %v4673
        %v4785 = vmul.f32 %v4165, %v4677
        %v4786 = vmul.f32 %v4167, %v4681
        %v4787 = vmul.f32 %v4169, %v4685
        %v4788 = vmul.f32 %v4171, %v4689
        %v4789 = vmul.f32 %v4173, %v4693
        %v4790 = vmul.f32 %v4175, %v4570
        %v4791 = vmul.f32 %v4177, %v4574
        %v4792 = vmul.f32 %v4179, %v4578
        %v4793 = vmul.f32 %v4181, %v4582
        %v4794 = vmul.f32 %v4183, %v4586
        %v4795 = vmul.f32 %v4185, %v4590
        %v4796 = vmul.f32 %v4187, %v4594
        %v4797 = vmul.f32 %v4189, %v4598
        %v4798 = vmul.f32 %v4191, %v4602
        %v4799 = vmul.f32 %v4193, %v4606
        %v4800 = vmul.f32 %v4195, %v4610
        %v4801 = vmul.f32 %v4197, %v4614
        %v4802 = vmul.f32 %v4199, %v4618
        %v4803 = vmul.f32 %v4201, %v4622
        %v4804 = vmul.f32 %v4203, %v4626
        %v4805 = vmul.f32 %v4205, %v4630
        %v4806 = vmul.f32 %v4207, %v4633
        %v4807 = vmul.f32 %v4209, %v4637
        %v4808 = vmul.f32 %v4211, %v4641
        %v4809 = vmul.f32 %v4213, %v4645
        %v4810 = vmul.f32 %v4215, %v4649
        %v4811 = vmul.f32 %v4217, %v4653
        %v4812 = vmul.f32 %v4219, %v4657
        %v4813 = vmul.f32 %v4221, %v4661
        %v4814 = vmul.f32 %v4223, %v4665
        %v4815 = vmul.f32 %v4225, %v4669
        %v4816 = vmul.f32 %v4227, %v4673
        %v4817 = vmul.f32 %v4229, %v4677
        %v4818 = vmul.f32 %v4231, %v4681
        %v4819 = vmul.f32 %v4233, %v4685
        %v4820 = vmul.f32 %v4235, %v4689
        %v4821 = vmul.f32 %v4237, %v4693
        %v4822 = vmul.f32 %v4239, %v4570
        %v4823 = vmul.f32 %v4241, %v4574
        %v4824 = vmul.f32 %v4243, %v4578
        %v4825 = vmul.f32 %v4245, %v4582
        %v4826 = vmul.f32 %v4247, %v4586
        %v4827 = vmul.f32 %v4249, %v4590
        %v4828 = vmul.f32 %v4251, %v4594
        %v4829 = vmul.f32 %v4253, %v4598
        %v4830 = vmul.f32 %v4255, %v4602
        %v4831 = vmul.f32 %v4257, %v4606
        %v4832 = vmul.f32 %v4259, %v4610
        %v4833 = vmul.f32 %v4261, %v4614
        %v4834 = vmul.f32 %v4263, %v4618
        %v4835 = vmul.f32 %v4265, %v4622
        %v4836 = vmul.f32 %v4267, %v4626
        %v4837 = vmul.f32 %v4269, %v4630
        %v4838 = vmul.f32 %v4271, %v4633
        %v4839 = vmul.f32 %v4273, %v4637
        %v4840 = vmul.f32 %v4275, %v4641
        %v4841 = vmul.f32 %v4277, %v4645
        %v4842 = vmul.f32 %v4279, %v4649
        %v4843 = vmul.f32 %v4281, %v4653
        %v4844 = vmul.f32 %v4283, %v4657
        %v4845 = vmul.f32 %v4285, %v4661
        %v4846 = vmul.f32 %v4287, %v4665
        %v4847 = vmul.f32 %v4289, %v4669
        %v4848 = vmul.f32 %v4291, %v4673
        %v4849 = vmul.f32 %v4293, %v4677
        %v4850 = vmul.f32 %v4295, %v4681
        %v4851 = vmul.f32 %v4297, %v4685
        %v4852 = vmul.f32 %v4299, %v4689
        %v4853 = vmul.f32 %v4301, %v4693
        %v4854 = vmul.f32 %v4303, %v4570
        %v4855 = vmul.f32 %v4305, %v4574
        %v4856 = vmul.f32 %v4307, %v4578
        %v4857 = vmul.f32 %v4309, %v4582
        %v4858 = vmul.f32 %v4311, %v4586
        %v4859 = vmul.f32 %v4313, %v4590
        %v4860 = vmul.f32 %v4315, %v4594
        %v4861 = vmul.f32 %v4317, %v4598
        %v4862 = vmul.f32 %v4319, %v4602
        %v4863 = vmul.f32 %v4321, %v4606
        %v4864 = vmul.f32 %v4323, %v4610
        %v4865 = vmul.f32 %v4325, %v4614
        %v4866 = vmul.f32 %v4327, %v4618
        %v4867 = vmul.f32 %v4329, %v4622
        %v4868 = vmul.f32 %v4331, %v4626
        %v4869 = vmul.f32 %v4333, %v4630
        %v4870 = vmul.f32 %v4335, %v4633
        %v4871 = vmul.f32 %v4337, %v4637
        %v4872 = vmul.f32 %v4339, %v4641
        %v4873 = vmul.f32 %v4341, %v4645
        %v4874 = vmul.f32 %v4343, %v4649
        %v4875 = vmul.f32 %v4345, %v4653
        %v4876 = vmul.f32 %v4347, %v4657
        %v4877 = vmul.f32 %v4349, %v4661
        %v4878 = vmul.f32 %v4351, %v4665
        %v4879 = vmul.f32 %v4353, %v4669
        %v4880 = vmul.f32 %v4355, %v4673
        %v4881 = vmul.f32 %v4357, %v4677
        %v4882 = vmul.f32 %v4359, %v4681
        %v4883 = vmul.f32 %v4361, %v4685
        %v4884 = vmul.f32 %v4363, %v4689
        %v4885 = vmul.f32 %v4365, %v4693
        %v4886 = vmul.f32 %v4367, %v4570
        %v4887 = vmul.f32 %v4369, %v4574
        %v4888 = vmul.f32 %v4371, %v4578
        %v4889 = vmul.f32 %v4373, %v4582
        %v4890 = vmul.f32 %v4375, %v4586
        %v4891 = vmul.f32 %v4377, %v4590
        %v4892 = vmul.f32 %v4379, %v4594
        %v4893 = vmul.f32 %v4381, %v4598
        %v4894 = vmul.f32 %v4383, %v4602
        %v4895 = vmul.f32 %v4385, %v4606
        %v4896 = vmul.f32 %v4387, %v4610
        %v4897 = vmul.f32 %v4389, %v4614
        %v4898 = vmul.f32 %v4391, %v4618
        %v4899 = vmul.f32 %v4393, %v4622
        %v4900 = vmul.f32 %v4395, %v4626
        %v4901 = vmul.f32 %v4397, %v4630
        %v4902 = vmul.f32 %v4399, %v4633
        %v4903 = vmul.f32 %v4401, %v4637
        %v4904 = vmul.f32 %v4403, %v4641
        %v4905 = vmul.f32 %v4405, %v4645
        %v4906 = vmul.f32 %v4407, %v4649
        %v4907 = vmul.f32 %v4409, %v4653
        %v4908 = vmul.f32 %v4411, %v4657
        %v4909 = vmul.f32 %v4413, %v4661
        %v4910 = vmul.f32 %v4415, %v4665
        %v4911 = vmul.f32 %v4417, %v4669
        %v4912 = vmul.f32 %v4419, %v4673
        %v4913 = vmul.f32 %v4421, %v4677
        %v4914 = vmul.f32 %v4423, %v4681
        %v4915 = vmul.f32 %v4425, %v4685
        %v4916 = vmul.f32 %v4427, %v4689
        %v4917 = vmul.f32 %v4429, %v4693
        %v4918 = vmul.f32 %v4431, %v4570
        %v4919 = vmul.f32 %v4433, %v4574
        %v4920 = vmul.f32 %v4435, %v4578
        %v4921 = vmul.f32 %v4437, %v4582
        %v4922 = vmul.f32 %v4439, %v4586
        %v4923 = vmul.f32 %v4441, %v4590
        %v4924 = vmul.f32 %v4443, %v4594
        %v4925 = vmul.f32 %v4445, %v4598
        %v4926 = vmul.f32 %v4447, %v4602
        %v4927 = vmul.f32 %v4449, %v4606
        %v4928 = vmul.f32 %v4451, %v4610
        %v4929 = vmul.f32 %v4453, %v4614
        %v4930 = vmul.f32 %v4455, %v4618
        %v4931 = vmul.f32 %v4457, %v4622
        %v4932 = vmul.f32 %v4459, %v4626
        %v4933 = vmul.f32 %v4461, %v4630
        %v4934 = vmul.f32 %v4463, %v4633
        %v4935 = vmul.f32 %v4465, %v4637
        %v4936 = vmul.f32 %v4467, %v4641
        %v4937 = vmul.f32 %v4469, %v4645
        %v4938 = vmul.f32 %v4471, %v4649
        %v4939 = vmul.f32 %v4473, %v4653
        %v4940 = vmul.f32 %v4475, %v4657
        %v4941 = vmul.f32 %v4477, %v4661
        %v4942 = vmul.f32 %v4479, %v4665
        %v4943 = vmul.f32 %v4481, %v4669
        %v4944 = vmul.f32 %v4483, %v4673
        %v4945 = vmul.f32 %v4485, %v4677
        %v4946 = vmul.f32 %v4487, %v4681
        %v4947 = vmul.f32 %v4489, %v4685
        %v4948 = vmul.f32 %v4491, %v4689
        %v4949 = vmul.f32 %v4493, %v4693
        %v4950 = vmul.f32 %v4495, %v4570
        %v4951 = vmul.f32 %v4497, %v4574
        %v4952 = vmul.f32 %v4499, %v4578
        %v4953 = vmul.f32 %v4501, %v4582
        %v4954 = vmul.f32 %v4503, %v4586
        %v4955 = vmul.f32 %v4505, %v4590
        %v4956 = vmul.f32 %v4507, %v4594
        %v4957 = vmul.f32 %v4509, %v4598
        %v4958 = vmul.f32 %v4511, %v4602
        %v4959 = vmul.f32 %v4513, %v4606
        %v4960 = vmul.f32 %v4515, %v4610
        %v4961 = vmul.f32 %v4517, %v4614
        %v4962 = vmul.f32 %v4519, %v4618
        %v4963 = vmul.f32 %v4521, %v4622
        %v4964 = vmul.f32 %v4523, %v4626
        %v4965 = vmul.f32 %v4525, %v4630
        %v4966 = vmul.f32 %v4527, %v4633
        %v4967 = vmul.f32 %v4529, %v4637
        %v4968 = vmul.f32 %v4531, %v4641
        %v4969 = vmul.f32 %v4533, %v4645
        %v4970 = vmul.f32 %v4535, %v4649
        %v4971 = vmul.f32 %v4537, %v4653
        %v4972 = vmul.f32 %v4539, %v4657
        %v4973 = vmul.f32 %v4541, %v4661
        %v4974 = vmul.f32 %v4543, %v4665
        %v4975 = vmul.f32 %v4545, %v4669
        %v4976 = vmul.f32 %v4547, %v4673
        %v4977 = vmul.f32 %v4549, %v4677
        %v4978 = vmul.f32 %v4551, %v4681
        %v4979 = vmul.f32 %v4553, %v4685
        %v4980 = vmul.f32 %v4555, %v4689
        %v4981 = vmul.f32 %v4557, %v4693
        %5238 = vset.pattern.permute.xlu0 0
        %5239 = vperm.xlu0 %5238, %v4726
        %v5240 = vpop.permute.xlu0 %5239
        %5241 = vset.pattern.permute.xlu0 0
        %5242 = vperm.xlu0 %5241, %v4727
        %v5243 = vpop.permute.xlu0 %5242
        %5244 = vset.pattern.permute.xlu0 0
        %5245 = vperm.xlu0 %5244, %v4728
        %v5246 = vpop.permute.xlu0 %5245
        %5247 = vset.pattern.permute.xlu0 0
        %5248 = vperm.xlu0 %5247, %v4729
        %v5249 = vpop.permute.xlu0 %5248
        %5250 = vset.pattern.permute.xlu0 0
        %5251 = vperm.xlu0 %5250, %v4730
        %v5252 = vpop.permute.xlu0 %5251
        %5253 = vset.pattern.permute.xlu0 0
        %5254 = vperm.xlu0 %5253, %v4731
        %v5255 = vpop.permute.xlu0 %5254
        %5256 = vset.pattern.permute.xlu0 0
        %5257 = vperm.xlu0 %5256, %v4732
        %v5258 = vpop.permute.xlu0 %5257
        %5259 = vset.pattern.permute.xlu0 0
        %5260 = vperm.xlu0 %5259, %v4733
        %v5261 = vpop.permute.xlu0 %5260
        %5262 = vset.pattern.permute.xlu0 0
        %5263 = vperm.xlu0 %5262, %v4734
        %v5264 = vpop.permute.xlu0 %5263
        %5265 = vset.pattern.permute.xlu0 0
        %5266 = vperm.xlu0 %5265, %v4735
        %v5267 = vpop.permute.xlu0 %5266
        %5268 = vset.pattern.permute.xlu0 0
        %5269 = vperm.xlu0 %5268, %v4736
        %v5270 = vpop.permute.xlu0 %5269
        %5271 = vset.pattern.permute.xlu0 0
        %5272 = vperm.xlu0 %5271, %v4737
        %v5273 = vpop.permute.xlu0 %5272
        %5274 = vset.pattern.permute.xlu0 0
        %5275 = vperm.xlu0 %5274, %v4738
        %v5276 = vpop.permute.xlu0 %5275
        %5277 = vset.pattern.permute.xlu0 0
        %5278 = vperm.xlu0 %5277, %v4739
        %v5279 = vpop.permute.xlu0 %5278
        %5280 = vset.pattern.permute.xlu0 0
        %5281 = vperm.xlu0 %5280, %v4740
        %v5282 = vpop.permute.xlu0 %5281
        %5283 = vset.pattern.permute.xlu0 0
        %5284 = vperm.xlu0 %5283, %v4741
        %v5285 = vpop.permute.xlu0 %5284
        %5286 = vset.pattern.permute.xlu0 0
        %5287 = vperm.xlu0 %5286, %v4742
        %v5288 = vpop.permute.xlu0 %5287
        %5289 = vset.pattern.permute.xlu0 0
        %5290 = vperm.xlu0 %5289, %v4743
        %v5291 = vpop.permute.xlu0 %5290
        %5292 = vset.pattern.permute.xlu0 0
        %5293 = vperm.xlu0 %5292, %v4744
        %v5294 = vpop.permute.xlu0 %5293
        %5295 = vset.pattern.permute.xlu0 0
        %5296 = vperm.xlu0 %5295, %v4745
        %v5297 = vpop.permute.xlu0 %5296
        %5298 = vset.pattern.permute.xlu0 0
        %5299 = vperm.xlu0 %5298, %v4746
        %v5300 = vpop.permute.xlu0 %5299
        %5301 = vset.pattern.permute.xlu0 0
        %5302 = vperm.xlu0 %5301, %v4747
        %v5303 = vpop.permute.xlu0 %5302
        %5304 = vset.pattern.permute.xlu0 0
        %5305 = vperm.xlu0 %5304, %v4748
        %v5306 = vpop.permute.xlu0 %5305
        %5307 = vset.pattern.permute.xlu0 0
        %5308 = vperm.xlu0 %5307, %v4749
        %v5309 = vpop.permute.xlu0 %5308
        %5310 = vset.pattern.permute.xlu0 0
        %5311 = vperm.xlu0 %5310, %v4750
        %v5312 = vpop.permute.xlu0 %5311
        %5313 = vset.pattern.permute.xlu0 0
        %5314 = vperm.xlu0 %5313, %v4751
        %v5315 = vpop.permute.xlu0 %5314
        %5316 = vset.pattern.permute.xlu0 0
        %5317 = vperm.xlu0 %5316, %v4752
        %v5318 = vpop.permute.xlu0 %5317
        %5319 = vset.pattern.permute.xlu0 0
        %5320 = vperm.xlu0 %5319, %v4753
        %v5321 = vpop.permute.xlu0 %5320
        %5322 = vset.pattern.permute.xlu0 0
        %5323 = vperm.xlu0 %5322, %v4754
        %v5324 = vpop.permute.xlu0 %5323
        %5325 = vset.pattern.permute.xlu0 0
        %5326 = vperm.xlu0 %5325, %v4755
        %v5327 = vpop.permute.xlu0 %5326
        %5328 = vset.pattern.permute.xlu0 0
        %5329 = vperm.xlu0 %5328, %v4756
        %v5330 = vpop.permute.xlu0 %5329
        %5331 = vset.pattern.permute.xlu0 0
        %5332 = vperm.xlu0 %5331, %v4757
        %v5333 = vpop.permute.xlu0 %5332
        %5334 = vset.pattern.permute.xlu0 0
        %5335 = vperm.xlu0 %5334, %v4758
        %v5336 = vpop.permute.xlu0 %5335
        %5337 = vset.pattern.permute.xlu0 0
        %5338 = vperm.xlu0 %5337, %v4759
        %v5339 = vpop.permute.xlu0 %5338
        %5340 = vset.pattern.permute.xlu0 0
        %5341 = vperm.xlu0 %5340, %v4760
        %v5342 = vpop.permute.xlu0 %5341
        %5343 = vset.pattern.permute.xlu0 0
        %5344 = vperm.xlu0 %5343, %v4761
        %v5345 = vpop.permute.xlu0 %5344
        %5346 = vset.pattern.permute.xlu0 0
        %5347 = vperm.xlu0 %5346, %v4762
        %v5348 = vpop.permute.xlu0 %5347
        %5349 = vset.pattern.permute.xlu0 0
        %5350 = vperm.xlu0 %5349, %v4763
        %v5351 = vpop.permute.xlu0 %5350
        %5352 = vset.pattern.permute.xlu0 0
        %5353 = vperm.xlu0 %5352, %v4764
        %v5354 = vpop.permute.xlu0 %5353
        %5355 = vset.pattern.permute.xlu0 0
        %5356 = vperm.xlu0 %5355, %v4765
        %v5357 = vpop.permute.xlu0 %5356
        %5358 = vset.pattern.permute.xlu0 0
        %5359 = vperm.xlu0 %5358, %v4766
        %v5360 = vpop.permute.xlu0 %5359
        %5361 = vset.pattern.permute.xlu0 0
        %5362 = vperm.xlu0 %5361, %v4767
        %v5363 = vpop.permute.xlu0 %5362
        %5364 = vset.pattern.permute.xlu0 0
        %5365 = vperm.xlu0 %5364, %v4768
        %v5366 = vpop.permute.xlu0 %5365
        %5367 = vset.pattern.permute.xlu0 0
        %5368 = vperm.xlu0 %5367, %v4769
        %v5369 = vpop.permute.xlu0 %5368
        %5370 = vset.pattern.permute.xlu0 0
        %5371 = vperm.xlu0 %5370, %v4770
        %v5372 = vpop.permute.xlu0 %5371
        %5373 = vset.pattern.permute.xlu0 0
        %5374 = vperm.xlu0 %5373, %v4771
        %v5375 = vpop.permute.xlu0 %5374
        %5376 = vset.pattern.permute.xlu0 0
        %5377 = vperm.xlu0 %5376, %v4772
        %v5378 = vpop.permute.xlu0 %5377
        %5379 = vset.pattern.permute.xlu0 0
        %5380 = vperm.xlu0 %5379, %v4773
        %v5381 = vpop.permute.xlu0 %5380
        %5382 = vset.pattern.permute.xlu0 0
        %5383 = vperm.xlu0 %5382, %v4774
        %v5384 = vpop.permute.xlu0 %5383
        %5385 = vset.pattern.permute.xlu0 0
        %5386 = vperm.xlu0 %5385, %v4775
        %v5387 = vpop.permute.xlu0 %5386
        %5388 = vset.pattern.permute.xlu0 0
        %5389 = vperm.xlu0 %5388, %v4776
        %v5390 = vpop.permute.xlu0 %5389
        %5391 = vset.pattern.permute.xlu0 0
        %5392 = vperm.xlu0 %5391, %v4777
        %v5393 = vpop.permute.xlu0 %5392
        %5394 = vset.pattern.permute.xlu0 0
        %5395 = vperm.xlu0 %5394, %v4778
        %v5396 = vpop.permute.xlu0 %5395
        %5397 = vset.pattern.permute.xlu0 0
        %5398 = vperm.xlu0 %5397, %v4779
        %v5399 = vpop.permute.xlu0 %5398
        %5400 = vset.pattern.permute.xlu0 0
        %5401 = vperm.xlu0 %5400, %v4780
        %v5402 = vpop.permute.xlu0 %5401
        %5403 = vset.pattern.permute.xlu0 0
        %5404 = vperm.xlu0 %5403, %v4781
        %v5405 = vpop.permute.xlu0 %5404
        %5406 = vset.pattern.permute.xlu0 0
        %5407 = vperm.xlu0 %5406, %v4782
        %v5408 = vpop.permute.xlu0 %5407
        %5409 = vset.pattern.permute.xlu0 0
        %5410 = vperm.xlu0 %5409, %v4783
        %v5411 = vpop.permute.xlu0 %5410
        %5412 = vset.pattern.permute.xlu0 0
        %5413 = vperm.xlu0 %5412, %v4784
        %v5414 = vpop.permute.xlu0 %5413
        %5415 = vset.pattern.permute.xlu0 0
        %5416 = vperm.xlu0 %5415, %v4785
        %v5417 = vpop.permute.xlu0 %5416
        %5418 = vset.pattern.permute.xlu0 0
        %5419 = vperm.xlu0 %5418, %v4786
        %v5420 = vpop.permute.xlu0 %5419
        %5421 = vset.pattern.permute.xlu0 0
        %5422 = vperm.xlu0 %5421, %v4787
        %v5423 = vpop.permute.xlu0 %5422
        %5424 = vset.pattern.permute.xlu0 0
        %5425 = vperm.xlu0 %5424, %v4788
        %v5426 = vpop.permute.xlu0 %5425
        %5427 = vset.pattern.permute.xlu0 0
        %5428 = vperm.xlu0 %5427, %v4789
        %v5429 = vpop.permute.xlu0 %5428
        %5430 = vset.pattern.permute.xlu0 0
        %5431 = vperm.xlu0 %5430, %v4790
        %v5432 = vpop.permute.xlu0 %5431
        %5433 = vset.pattern.permute.xlu0 0
        %5434 = vperm.xlu0 %5433, %v4791
        %v5435 = vpop.permute.xlu0 %5434
        %5436 = vset.pattern.permute.xlu0 0
        %5437 = vperm.xlu0 %5436, %v4792
        %v5438 = vpop.permute.xlu0 %5437
        %5439 = vset.pattern.permute.xlu0 0
        %5440 = vperm.xlu0 %5439, %v4793
        %v5441 = vpop.permute.xlu0 %5440
        %5442 = vset.pattern.permute.xlu0 0
        %5443 = vperm.xlu0 %5442, %v4794
        %v5444 = vpop.permute.xlu0 %5443
        %5445 = vset.pattern.permute.xlu0 0
        %5446 = vperm.xlu0 %5445, %v4795
        %v5447 = vpop.permute.xlu0 %5446
        %5448 = vset.pattern.permute.xlu0 0
        %5449 = vperm.xlu0 %5448, %v4796
        %v5450 = vpop.permute.xlu0 %5449
        %5451 = vset.pattern.permute.xlu0 0
        %5452 = vperm.xlu0 %5451, %v4797
        %v5453 = vpop.permute.xlu0 %5452
        %5454 = vset.pattern.permute.xlu0 0
        %5455 = vperm.xlu0 %5454, %v4798
        %v5456 = vpop.permute.xlu0 %5455
        %5457 = vset.pattern.permute.xlu0 0
        %5458 = vperm.xlu0 %5457, %v4799
        %v5459 = vpop.permute.xlu0 %5458
        %5460 = vset.pattern.permute.xlu0 0
        %5461 = vperm.xlu0 %5460, %v4800
        %v5462 = vpop.permute.xlu0 %5461
        %5463 = vset.pattern.permute.xlu0 0
        %5464 = vperm.xlu0 %5463, %v4801
        %v5465 = vpop.permute.xlu0 %5464
        %5466 = vset.pattern.permute.xlu0 0
        %5467 = vperm.xlu0 %5466, %v4802
        %v5468 = vpop.permute.xlu0 %5467
        %5469 = vset.pattern.permute.xlu0 0
        %5470 = vperm.xlu0 %5469, %v4803
        %v5471 = vpop.permute.xlu0 %5470
        %5472 = vset.pattern.permute.xlu0 0
        %5473 = vperm.xlu0 %5472, %v4804
        %v5474 = vpop.permute.xlu0 %5473
        %5475 = vset.pattern.permute.xlu0 0
        %5476 = vperm.xlu0 %5475, %v4805
        %v5477 = vpop.permute.xlu0 %5476
        %5478 = vset.pattern.permute.xlu0 0
        %5479 = vperm.xlu0 %5478, %v4806
        %v5480 = vpop.permute.xlu0 %5479
        %5481 = vset.pattern.permute.xlu0 0
        %5482 = vperm.xlu0 %5481, %v4807
        %v5483 = vpop.permute.xlu0 %5482
        %5484 = vset.pattern.permute.xlu0 0
        %5485 = vperm.xlu0 %5484, %v4808
        %v5486 = vpop.permute.xlu0 %5485
        %5487 = vset.pattern.permute.xlu0 0
        %5488 = vperm.xlu0 %5487, %v4809
        %v5489 = vpop.permute.xlu0 %5488
        %5490 = vset.pattern.permute.xlu0 0
        %5491 = vperm.xlu0 %5490, %v4810
        %v5492 = vpop.permute.xlu0 %5491
        %5493 = vset.pattern.permute.xlu0 0
        %5494 = vperm.xlu0 %5493, %v4811
        %v5495 = vpop.permute.xlu0 %5494
        %5496 = vset.pattern.permute.xlu0 0
        %5497 = vperm.xlu0 %5496, %v4812
        %v5498 = vpop.permute.xlu0 %5497
        %5499 = vset.pattern.permute.xlu0 0
        %5500 = vperm.xlu0 %5499, %v4813
        %v5501 = vpop.permute.xlu0 %5500
        %5502 = vset.pattern.permute.xlu0 0
        %5503 = vperm.xlu0 %5502, %v4814
        %v5504 = vpop.permute.xlu0 %5503
        %5505 = vset.pattern.permute.xlu0 0
        %5506 = vperm.xlu0 %5505, %v4815
        %v5507 = vpop.permute.xlu0 %5506
        %5508 = vset.pattern.permute.xlu0 0
        %5509 = vperm.xlu0 %5508, %v4816
        %v5510 = vpop.permute.xlu0 %5509
        %5511 = vset.pattern.permute.xlu0 0
        %5512 = vperm.xlu0 %5511, %v4817
        %v5513 = vpop.permute.xlu0 %5512
        %5514 = vset.pattern.permute.xlu0 0
        %5515 = vperm.xlu0 %5514, %v4818
        %v5516 = vpop.permute.xlu0 %5515
        %5517 = vset.pattern.permute.xlu0 0
        %5518 = vperm.xlu0 %5517, %v4819
        %v5519 = vpop.permute.xlu0 %5518
        %5520 = vset.pattern.permute.xlu0 0
        %5521 = vperm.xlu0 %5520, %v4820
        %v5522 = vpop.permute.xlu0 %5521
        %5523 = vset.pattern.permute.xlu0 0
        %5524 = vperm.xlu0 %5523, %v4821
        %v5525 = vpop.permute.xlu0 %5524
        %5526 = vset.pattern.permute.xlu0 0
        %5527 = vperm.xlu0 %5526, %v4822
        %v5528 = vpop.permute.xlu0 %5527
        %5529 = vset.pattern.permute.xlu0 0
        %5530 = vperm.xlu0 %5529, %v4823
        %v5531 = vpop.permute.xlu0 %5530
        %5532 = vset.pattern.permute.xlu0 0
        %5533 = vperm.xlu0 %5532, %v4824
        %v5534 = vpop.permute.xlu0 %5533
        %5535 = vset.pattern.permute.xlu0 0
        %5536 = vperm.xlu0 %5535, %v4825
        %v5537 = vpop.permute.xlu0 %5536
        %5538 = vset.pattern.permute.xlu0 0
        %5539 = vperm.xlu0 %5538, %v4826
        %v5540 = vpop.permute.xlu0 %5539
        %5541 = vset.pattern.permute.xlu0 0
        %5542 = vperm.xlu0 %5541, %v4827
        %v5543 = vpop.permute.xlu0 %5542
        %5544 = vset.pattern.permute.xlu0 0
        %5545 = vperm.xlu0 %5544, %v4828
        %v5546 = vpop.permute.xlu0 %5545
        %5547 = vset.pattern.permute.xlu0 0
        %5548 = vperm.xlu0 %5547, %v4829
        %v5549 = vpop.permute.xlu0 %5548
        %5550 = vset.pattern.permute.xlu0 0
        %5551 = vperm.xlu0 %5550, %v4830
        %v5552 = vpop.permute.xlu0 %5551
        %5553 = vset.pattern.permute.xlu0 0
        %5554 = vperm.xlu0 %5553, %v4831
        %v5555 = vpop.permute.xlu0 %5554
        %5556 = vset.pattern.permute.xlu0 0
        %5557 = vperm.xlu0 %5556, %v4832
        %v5558 = vpop.permute.xlu0 %5557
        %5559 = vset.pattern.permute.xlu0 0
        %5560 = vperm.xlu0 %5559, %v4833
        %v5561 = vpop.permute.xlu0 %5560
        %5562 = vset.pattern.permute.xlu0 0
        %5563 = vperm.xlu0 %5562, %v4834
        %v5564 = vpop.permute.xlu0 %5563
        %5565 = vset.pattern.permute.xlu0 0
        %5566 = vperm.xlu0 %5565, %v4835
        %v5567 = vpop.permute.xlu0 %5566
        %5568 = vset.pattern.permute.xlu0 0
        %5569 = vperm.xlu0 %5568, %v4836
        %v5570 = vpop.permute.xlu0 %5569
        %5571 = vset.pattern.permute.xlu0 0
        %5572 = vperm.xlu0 %5571, %v4837
        %v5573 = vpop.permute.xlu0 %5572
        %5574 = vset.pattern.permute.xlu0 0
        %5575 = vperm.xlu0 %5574, %v4838
        %v5576 = vpop.permute.xlu0 %5575
        %5577 = vset.pattern.permute.xlu0 0
        %5578 = vperm.xlu0 %5577, %v4839
        %v5579 = vpop.permute.xlu0 %5578
        %5580 = vset.pattern.permute.xlu0 0
        %5581 = vperm.xlu0 %5580, %v4840
        %v5582 = vpop.permute.xlu0 %5581
        %5583 = vset.pattern.permute.xlu0 0
        %5584 = vperm.xlu0 %5583, %v4841
        %v5585 = vpop.permute.xlu0 %5584
        %5586 = vset.pattern.permute.xlu0 0
        %5587 = vperm.xlu0 %5586, %v4842
        %v5588 = vpop.permute.xlu0 %5587
        %5589 = vset.pattern.permute.xlu0 0
        %5590 = vperm.xlu0 %5589, %v4843
        %v5591 = vpop.permute.xlu0 %5590
        %5592 = vset.pattern.permute.xlu0 0
        %5593 = vperm.xlu0 %5592, %v4844
        %v5594 = vpop.permute.xlu0 %5593
        %5595 = vset.pattern.permute.xlu0 0
        %5596 = vperm.xlu0 %5595, %v4845
        %v5597 = vpop.permute.xlu0 %5596
        %5598 = vset.pattern.permute.xlu0 0
        %5599 = vperm.xlu0 %5598, %v4846
        %v5600 = vpop.permute.xlu0 %5599
        %5601 = vset.pattern.permute.xlu0 0
        %5602 = vperm.xlu0 %5601, %v4847
        %v5603 = vpop.permute.xlu0 %5602
        %5604 = vset.pattern.permute.xlu0 0
        %5605 = vperm.xlu0 %5604, %v4848
        %v5606 = vpop.permute.xlu0 %5605
        %5607 = vset.pattern.permute.xlu0 0
        %5608 = vperm.xlu0 %5607, %v4849
        %v5609 = vpop.permute.xlu0 %5608
        %5610 = vset.pattern.permute.xlu0 0
        %5611 = vperm.xlu0 %5610, %v4850
        %v5612 = vpop.permute.xlu0 %5611
        %5613 = vset.pattern.permute.xlu0 0
        %5614 = vperm.xlu0 %5613, %v4851
        %v5615 = vpop.permute.xlu0 %5614
        %5616 = vset.pattern.permute.xlu0 0
        %5617 = vperm.xlu0 %5616, %v4852
        %v5618 = vpop.permute.xlu0 %5617
        %5619 = vset.pattern.permute.xlu0 0
        %5620 = vperm.xlu0 %5619, %v4853
        %v5621 = vpop.permute.xlu0 %5620
        %5622 = vset.pattern.permute.xlu0 0
        %5623 = vperm.xlu0 %5622, %v4854
        %v5624 = vpop.permute.xlu0 %5623
        %5625 = vset.pattern.permute.xlu0 0
        %5626 = vperm.xlu0 %5625, %v4855
        %v5627 = vpop.permute.xlu0 %5626
        %5628 = vset.pattern.permute.xlu0 0
        %5629 = vperm.xlu0 %5628, %v4856
        %v5630 = vpop.permute.xlu0 %5629
        %5631 = vset.pattern.permute.xlu0 0
        %5632 = vperm.xlu0 %5631, %v4857
        %v5633 = vpop.permute.xlu0 %5632
        %5634 = vset.pattern.permute.xlu0 0
        %5635 = vperm.xlu0 %5634, %v4858
        %v5636 = vpop.permute.xlu0 %5635
        %5637 = vset.pattern.permute.xlu0 0
        %5638 = vperm.xlu0 %5637, %v4859
        %v5639 = vpop.permute.xlu0 %5638
        %5640 = vset.pattern.permute.xlu0 0
        %5641 = vperm.xlu0 %5640, %v4860
        %v5642 = vpop.permute.xlu0 %5641
        %5643 = vset.pattern.permute.xlu0 0
        %5644 = vperm.xlu0 %5643, %v4861
        %v5645 = vpop.permute.xlu0 %5644
        %5646 = vset.pattern.permute.xlu0 0
        %5647 = vperm.xlu0 %5646, %v4862
        %v5648 = vpop.permute.xlu0 %5647
        %5649 = vset.pattern.permute.xlu0 0
        %5650 = vperm.xlu0 %5649, %v4863
        %v5651 = vpop.permute.xlu0 %5650
        %5652 = vset.pattern.permute.xlu0 0
        %5653 = vperm.xlu0 %5652, %v4864
        %v5654 = vpop.permute.xlu0 %5653
        %5655 = vset.pattern.permute.xlu0 0
        %5656 = vperm.xlu0 %5655, %v4865
        %v5657 = vpop.permute.xlu0 %5656
        %5658 = vset.pattern.permute.xlu0 0
        %5659 = vperm.xlu0 %5658, %v4866
        %v5660 = vpop.permute.xlu0 %5659
        %5661 = vset.pattern.permute.xlu0 0
        %5662 = vperm.xlu0 %5661, %v4867
        %v5663 = vpop.permute.xlu0 %5662
        %5664 = vset.pattern.permute.xlu0 0
        %5665 = vperm.xlu0 %5664, %v4868
        %v5666 = vpop.permute.xlu0 %5665
        %5667 = vset.pattern.permute.xlu0 0
        %5668 = vperm.xlu0 %5667, %v4869
        %v5669 = vpop.permute.xlu0 %5668
        %5670 = vset.pattern.permute.xlu0 0
        %5671 = vperm.xlu0 %5670, %v4870
        %v5672 = vpop.permute.xlu0 %5671
        %5673 = vset.pattern.permute.xlu0 0
        %5674 = vperm.xlu0 %5673, %v4871
        %v5675 = vpop.permute.xlu0 %5674
        %5676 = vset.pattern.permute.xlu0 0
        %5677 = vperm.xlu0 %5676, %v4872
        %v5678 = vpop.permute.xlu0 %5677
        %5679 = vset.pattern.permute.xlu0 0
        %5680 = vperm.xlu0 %5679, %v4873
        %v5681 = vpop.permute.xlu0 %5680
        %5682 = vset.pattern.permute.xlu0 0
        %5683 = vperm.xlu0 %5682, %v4874
        %v5684 = vpop.permute.xlu0 %5683
        %5685 = vset.pattern.permute.xlu0 0
        %5686 = vperm.xlu0 %5685, %v4875
        %v5687 = vpop.permute.xlu0 %5686
        %5688 = vset.pattern.permute.xlu0 0
        %5689 = vperm.xlu0 %5688, %v4876
        %v5690 = vpop.permute.xlu0 %5689
        %5691 = vset.pattern.permute.xlu0 0
        %5692 = vperm.xlu0 %5691, %v4877
        %v5693 = vpop.permute.xlu0 %5692
        %5694 = vset.pattern.permute.xlu0 0
        %5695 = vperm.xlu0 %5694, %v4878
        %v5696 = vpop.permute.xlu0 %5695
        %5697 = vset.pattern.permute.xlu0 0
        %5698 = vperm.xlu0 %5697, %v4879
        %v5699 = vpop.permute.xlu0 %5698
        %5700 = vset.pattern.permute.xlu0 0
        %5701 = vperm.xlu0 %5700, %v4880
        %v5702 = vpop.permute.xlu0 %5701
        %5703 = vset.pattern.permute.xlu0 0
        %5704 = vperm.xlu0 %5703, %v4881
        %v5705 = vpop.permute.xlu0 %5704
        %5706 = vset.pattern.permute.xlu0 0
        %5707 = vperm.xlu0 %5706, %v4882
        %v5708 = vpop.permute.xlu0 %5707
        %5709 = vset.pattern.permute.xlu0 0
        %5710 = vperm.xlu0 %5709, %v4883
        %v5711 = vpop.permute.xlu0 %5710
        %5712 = vset.pattern.permute.xlu0 0
        %5713 = vperm.xlu0 %5712, %v4884
        %v5714 = vpop.permute.xlu0 %5713
        %5715 = vset.pattern.permute.xlu0 0
        %5716 = vperm.xlu0 %5715, %v4885
        %v5717 = vpop.permute.xlu0 %5716
        %5718 = vset.pattern.permute.xlu0 0
        %5719 = vperm.xlu0 %5718, %v4886
        %v5720 = vpop.permute.xlu0 %5719
        %5721 = vset.pattern.permute.xlu0 0
        %5722 = vperm.xlu0 %5721, %v4887
        %v5723 = vpop.permute.xlu0 %5722
        %5724 = vset.pattern.permute.xlu0 0
        %5725 = vperm.xlu0 %5724, %v4888
        %v5726 = vpop.permute.xlu0 %5725
        %5727 = vset.pattern.permute.xlu0 0
        %5728 = vperm.xlu0 %5727, %v4889
        %v5729 = vpop.permute.xlu0 %5728
        %5730 = vset.pattern.permute.xlu0 0
        %5731 = vperm.xlu0 %5730, %v4890
        %v5732 = vpop.permute.xlu0 %5731
        %5733 = vset.pattern.permute.xlu0 0
        %5734 = vperm.xlu0 %5733, %v4891
        %v5735 = vpop.permute.xlu0 %5734
        %5736 = vset.pattern.permute.xlu0 0
        %5737 = vperm.xlu0 %5736, %v4892
        %v5738 = vpop.permute.xlu0 %5737
        %5739 = vset.pattern.permute.xlu0 0
        %5740 = vperm.xlu0 %5739, %v4893
        %v5741 = vpop.permute.xlu0 %5740
        %5742 = vset.pattern.permute.xlu0 0
        %5743 = vperm.xlu0 %5742, %v4894
        %v5744 = vpop.permute.xlu0 %5743
        %5745 = vset.pattern.permute.xlu0 0
        %5746 = vperm.xlu0 %5745, %v4895
        %v5747 = vpop.permute.xlu0 %5746
        %5748 = vset.pattern.permute.xlu0 0
        %5749 = vperm.xlu0 %5748, %v4896
        %v5750 = vpop.permute.xlu0 %5749
        %5751 = vset.pattern.permute.xlu0 0
        %5752 = vperm.xlu0 %5751, %v4897
        %v5753 = vpop.permute.xlu0 %5752
        %5754 = vset.pattern.permute.xlu0 0
        %5755 = vperm.xlu0 %5754, %v4898
        %v5756 = vpop.permute.xlu0 %5755
        %5757 = vset.pattern.permute.xlu0 0
        %5758 = vperm.xlu0 %5757, %v4899
        %v5759 = vpop.permute.xlu0 %5758
        %5760 = vset.pattern.permute.xlu0 0
        %5761 = vperm.xlu0 %5760, %v4900
        %v5762 = vpop.permute.xlu0 %5761
        %5763 = vset.pattern.permute.xlu0 0
        %5764 = vperm.xlu0 %5763, %v4901
        %v5765 = vpop.permute.xlu0 %5764
        %5766 = vset.pattern.permute.xlu0 0
        %5767 = vperm.xlu0 %5766, %v4902
        %v5768 = vpop.permute.xlu0 %5767
        %5769 = vset.pattern.permute.xlu0 0
        %5770 = vperm.xlu0 %5769, %v4903
        %v5771 = vpop.permute.xlu0 %5770
        %5772 = vset.pattern.permute.xlu0 0
        %5773 = vperm.xlu0 %5772, %v4904
        %v5774 = vpop.permute.xlu0 %5773
        %5775 = vset.pattern.permute.xlu0 0
        %5776 = vperm.xlu0 %5775, %v4905
        %v5777 = vpop.permute.xlu0 %5776
        %5778 = vset.pattern.permute.xlu0 0
        %5779 = vperm.xlu0 %5778, %v4906
        %v5780 = vpop.permute.xlu0 %5779
        %5781 = vset.pattern.permute.xlu0 0
        %5782 = vperm.xlu0 %5781, %v4907
        %v5783 = vpop.permute.xlu0 %5782
        %5784 = vset.pattern.permute.xlu0 0
        %5785 = vperm.xlu0 %5784, %v4908
        %v5786 = vpop.permute.xlu0 %5785
        %5787 = vset.pattern.permute.xlu0 0
        %5788 = vperm.xlu0 %5787, %v4909
        %v5789 = vpop.permute.xlu0 %5788
        %5790 = vset.pattern.permute.xlu0 0
        %5791 = vperm.xlu0 %5790, %v4910
        %v5792 = vpop.permute.xlu0 %5791
        %5793 = vset.pattern.permute.xlu0 0
        %5794 = vperm.xlu0 %5793, %v4911
        %v5795 = vpop.permute.xlu0 %5794
        %5796 = vset.pattern.permute.xlu0 0
        %5797 = vperm.xlu0 %5796, %v4912
        %v5798 = vpop.permute.xlu0 %5797
        %5799 = vset.pattern.permute.xlu0 0
        %5800 = vperm.xlu0 %5799, %v4913
        %v5801 = vpop.permute.xlu0 %5800
        %5802 = vset.pattern.permute.xlu0 0
        %5803 = vperm.xlu0 %5802, %v4914
        %v5804 = vpop.permute.xlu0 %5803
        %5805 = vset.pattern.permute.xlu0 0
        %5806 = vperm.xlu0 %5805, %v4915
        %v5807 = vpop.permute.xlu0 %5806
        %5808 = vset.pattern.permute.xlu0 0
        %5809 = vperm.xlu0 %5808, %v4916
        %v5810 = vpop.permute.xlu0 %5809
        %5811 = vset.pattern.permute.xlu0 0
        %5812 = vperm.xlu0 %5811, %v4917
        %v5813 = vpop.permute.xlu0 %5812
        %5814 = vset.pattern.permute.xlu0 0
        %5815 = vperm.xlu0 %5814, %v4918
        %v5816 = vpop.permute.xlu0 %5815
        %5817 = vset.pattern.permute.xlu0 0
        %5818 = vperm.xlu0 %5817, %v4919
        %v5819 = vpop.permute.xlu0 %5818
        %5820 = vset.pattern.permute.xlu0 0
        %5821 = vperm.xlu0 %5820, %v4920
        %v5822 = vpop.permute.xlu0 %5821
        %5823 = vset.pattern.permute.xlu0 0
        %5824 = vperm.xlu0 %5823, %v4921
        %v5825 = vpop.permute.xlu0 %5824
        %5826 = vset.pattern.permute.xlu0 0
        %5827 = vperm.xlu0 %5826, %v4922
        %v5828 = vpop.permute.xlu0 %5827
        %5829 = vset.pattern.permute.xlu0 0
        %5830 = vperm.xlu0 %5829, %v4923
        %v5831 = vpop.permute.xlu0 %5830
        %5832 = vset.pattern.permute.xlu0 0
        %5833 = vperm.xlu0 %5832, %v4924
        %v5834 = vpop.permute.xlu0 %5833
        %5835 = vset.pattern.permute.xlu0 0
        %5836 = vperm.xlu0 %5835, %v4925
        %v5837 = vpop.permute.xlu0 %5836
        %5838 = vset.pattern.permute.xlu0 0
        %5839 = vperm.xlu0 %5838, %v4926
        %v5840 = vpop.permute.xlu0 %5839
        %5841 = vset.pattern.permute.xlu0 0
        %5842 = vperm.xlu0 %5841, %v4927
        %v5843 = vpop.permute.xlu0 %5842
        %5844 = vset.pattern.permute.xlu0 0
        %5845 = vperm.xlu0 %5844, %v4928
        %v5846 = vpop.permute.xlu0 %5845
        %5847 = vset.pattern.permute.xlu0 0
        %5848 = vperm.xlu0 %5847, %v4929
        %v5849 = vpop.permute.xlu0 %5848
        %5850 = vset.pattern.permute.xlu0 0
        %5851 = vperm.xlu0 %5850, %v4930
        %v5852 = vpop.permute.xlu0 %5851
        %5853 = vset.pattern.permute.xlu0 0
        %5854 = vperm.xlu0 %5853, %v4931
        %v5855 = vpop.permute.xlu0 %5854
        %5856 = vset.pattern.permute.xlu0 0
        %5857 = vperm.xlu0 %5856, %v4932
        %v5858 = vpop.permute.xlu0 %5857
        %5859 = vset.pattern.permute.xlu0 0
        %5860 = vperm.xlu0 %5859, %v4933
        %v5861 = vpop.permute.xlu0 %5860
        %5862 = vset.pattern.permute.xlu0 0
        %5863 = vperm.xlu0 %5862, %v4934
        %v5864 = vpop.permute.xlu0 %5863
        %5865 = vset.pattern.permute.xlu0 0
        %5866 = vperm.xlu0 %5865, %v4935
        %v5867 = vpop.permute.xlu0 %5866
        %5868 = vset.pattern.permute.xlu0 0
        %5869 = vperm.xlu0 %5868, %v4936
        %v5870 = vpop.permute.xlu0 %5869
        %5871 = vset.pattern.permute.xlu0 0
        %5872 = vperm.xlu0 %5871, %v4937
        %v5873 = vpop.permute.xlu0 %5872
        %5874 = vset.pattern.permute.xlu0 0
        %5875 = vperm.xlu0 %5874, %v4938
        %v5876 = vpop.permute.xlu0 %5875
        %5877 = vset.pattern.permute.xlu0 0
        %5878 = vperm.xlu0 %5877, %v4939
        %v5879 = vpop.permute.xlu0 %5878
        %5880 = vset.pattern.permute.xlu0 0
        %5881 = vperm.xlu0 %5880, %v4940
        %v5882 = vpop.permute.xlu0 %5881
        %5883 = vset.pattern.permute.xlu0 0
        %5884 = vperm.xlu0 %5883, %v4941
        %v5885 = vpop.permute.xlu0 %5884
        %5886 = vset.pattern.permute.xlu0 0
        %5887 = vperm.xlu0 %5886, %v4942
        %v5888 = vpop.permute.xlu0 %5887
        %5889 = vset.pattern.permute.xlu0 0
        %5890 = vperm.xlu0 %5889, %v4943
        %v5891 = vpop.permute.xlu0 %5890
        %5892 = vset.pattern.permute.xlu0 0
        %5893 = vperm.xlu0 %5892, %v4944
        %v5894 = vpop.permute.xlu0 %5893
        %5895 = vset.pattern.permute.xlu0 0
        %5896 = vperm.xlu0 %5895, %v4945
        %v5897 = vpop.permute.xlu0 %5896
        %5898 = vset.pattern.permute.xlu0 0
        %5899 = vperm.xlu0 %5898, %v4946
        %v5900 = vpop.permute.xlu0 %5899
        %5901 = vset.pattern.permute.xlu0 0
        %5902 = vperm.xlu0 %5901, %v4947
        %v5903 = vpop.permute.xlu0 %5902
        %5904 = vset.pattern.permute.xlu0 0
        %5905 = vperm.xlu0 %5904, %v4948
        %v5906 = vpop.permute.xlu0 %5905
        %5907 = vset.pattern.permute.xlu0 0
        %5908 = vperm.xlu0 %5907, %v4949
        %v5909 = vpop.permute.xlu0 %5908
        %5910 = vset.pattern.permute.xlu0 0
        %5911 = vperm.xlu0 %5910, %v4950
        %v5912 = vpop.permute.xlu0 %5911
        %5913 = vset.pattern.permute.xlu0 0
        %5914 = vperm.xlu0 %5913, %v4951
        %v5915 = vpop.permute.xlu0 %5914
        %5916 = vset.pattern.permute.xlu0 0
        %5917 = vperm.xlu0 %5916, %v4952
        %v5918 = vpop.permute.xlu0 %5917
        %5919 = vset.pattern.permute.xlu0 0
        %5920 = vperm.xlu0 %5919, %v4953
        %v5921 = vpop.permute.xlu0 %5920
        %5922 = vset.pattern.permute.xlu0 0
        %5923 = vperm.xlu0 %5922, %v4954
        %v5924 = vpop.permute.xlu0 %5923
        %5925 = vset.pattern.permute.xlu0 0
        %5926 = vperm.xlu0 %5925, %v4955
        %v5927 = vpop.permute.xlu0 %5926
        %5928 = vset.pattern.permute.xlu0 0
        %5929 = vperm.xlu0 %5928, %v4956
        %v5930 = vpop.permute.xlu0 %5929
        %5931 = vset.pattern.permute.xlu0 0
        %5932 = vperm.xlu0 %5931, %v4957
        %v5933 = vpop.permute.xlu0 %5932
        %5934 = vset.pattern.permute.xlu0 0
        %5935 = vperm.xlu0 %5934, %v4958
        %v5936 = vpop.permute.xlu0 %5935
        %5937 = vset.pattern.permute.xlu0 0
        %5938 = vperm.xlu0 %5937, %v4959
        %v5939 = vpop.permute.xlu0 %5938
        %5940 = vset.pattern.permute.xlu0 0
        %5941 = vperm.xlu0 %5940, %v4960
        %v5942 = vpop.permute.xlu0 %5941
        %5943 = vset.pattern.permute.xlu0 0
        %5944 = vperm.xlu0 %5943, %v4961
        %v5945 = vpop.permute.xlu0 %5944
        %5946 = vset.pattern.permute.xlu0 0
        %5947 = vperm.xlu0 %5946, %v4962
        %v5948 = vpop.permute.xlu0 %5947
        %5949 = vset.pattern.permute.xlu0 0
        %5950 = vperm.xlu0 %5949, %v4963
        %v5951 = vpop.permute.xlu0 %5950
        %5952 = vset.pattern.permute.xlu0 0
        %5953 = vperm.xlu0 %5952, %v4964
        %v5954 = vpop.permute.xlu0 %5953
        %5955 = vset.pattern.permute.xlu0 0
        %5956 = vperm.xlu0 %5955, %v4965
        %v5957 = vpop.permute.xlu0 %5956
        %5958 = vset.pattern.permute.xlu0 0
        %5959 = vperm.xlu0 %5958, %v4966
        %v5960 = vpop.permute.xlu0 %5959
        %5961 = vset.pattern.permute.xlu0 0
        %5962 = vperm.xlu0 %5961, %v4967
        %v5963 = vpop.permute.xlu0 %5962
        %5964 = vset.pattern.permute.xlu0 0
        %5965 = vperm.xlu0 %5964, %v4968
        %v5966 = vpop.permute.xlu0 %5965
        %5967 = vset.pattern.permute.xlu0 0
        %5968 = vperm.xlu0 %5967, %v4969
        %v5969 = vpop.permute.xlu0 %5968
        %5970 = vset.pattern.permute.xlu0 0
        %5971 = vperm.xlu0 %5970, %v4970
        %v5972 = vpop.permute.xlu0 %5971
        %5973 = vset.pattern.permute.xlu0 0
        %5974 = vperm.xlu0 %5973, %v4971
        %v5975 = vpop.permute.xlu0 %5974
        %5976 = vset.pattern.permute.xlu0 0
        %5977 = vperm.xlu0 %5976, %v4972
        %v5978 = vpop.permute.xlu0 %5977
        %5979 = vset.pattern.permute.xlu0 0
        %5980 = vperm.xlu0 %5979, %v4973
        %v5981 = vpop.permute.xlu0 %5980
        %5982 = vset.pattern.permute.xlu0 0
        %5983 = vperm.xlu0 %5982, %v4974
        %v5984 = vpop.permute.xlu0 %5983
        %5985 = vset.pattern.permute.xlu0 0
        %5986 = vperm.xlu0 %5985, %v4975
        %v5987 = vpop.permute.xlu0 %5986
        %5988 = vset.pattern.permute.xlu0 0
        %5989 = vperm.xlu0 %5988, %v4976
        %v5990 = vpop.permute.xlu0 %5989
        %5991 = vset.pattern.permute.xlu0 0
        %5992 = vperm.xlu0 %5991, %v4977
        %v5993 = vpop.permute.xlu0 %5992
        %5994 = vset.pattern.permute.xlu0 0
        %5995 = vperm.xlu0 %5994, %v4978
        %v5996 = vpop.permute.xlu0 %5995
        %5997 = vset.pattern.permute.xlu0 0
        %5998 = vperm.xlu0 %5997, %v4979
        %v5999 = vpop.permute.xlu0 %5998
        %6000 = vset.pattern.permute.xlu0 0
        %6001 = vperm.xlu0 %6000, %v4980
        %v6002 = vpop.permute.xlu0 %6001
        %6003 = vset.pattern.permute.xlu0 0
        %6004 = vperm.xlu0 %6003, %v4981
        %v6005 = vpop.permute.xlu0 %6004
        %v6006 = vlaneseq
        %v6007 = vand.u32 %v6006, 127
        %v6008 = vlaneseq
        %v6009 = vshrl.u32 %v6008, 7
        %v6010 = vsub.s32 %v6007, %v6009
        %v6011 = vrot.slane %v5240, %v6010
        %v6012 = vadd.s32 %v6007, 4294967288
        %v6013 = vlaneseq
        %v6014 = vshrl.u32 %v6013, 7
        %v6015 = vsub.s32 %v6012, %v6014
        %v6016 = vrot.slane %v5243, %v6015
        %vm6017 = vcmask 130112
        %v6018 = vsel %vm6017, %v6016, %v6011
        %v6019 = vadd.s32 %v6007, 4294967280
        %v6020 = vlaneseq
        %v6021 = vshrl.u32 %v6020, 7
        %v6022 = vsub.s32 %v6019, %v6021
        %v6023 = vrot.slane %v5246, %v6022
        %vm6024 = vcmask 195712
        %v6025 = vsel %vm6024, %v6023, %v6018
        %v6026 = vadd.s32 %v6007, 4294967272
        %v6027 = vlaneseq
        %v6028 = vshrl.u32 %v6027, 7
        %v6029 = vsub.s32 %v6026, %v6028
        %v6030 = vrot.slane %v5249, %v6029
        %vm6031 = vcmask 261312
        %v6032 = vsel %vm6031, %v6030, %v6025
        %v6033 = vadd.s32 %v6007, 4294967264
        %v6034 = vlaneseq
        %v6035 = vshrl.u32 %v6034, 7
        %v6036 = vsub.s32 %v6033, %v6035
        %v6037 = vrot.slane %v5252, %v6036
        %vm6038 = vcmask 326912
        %v6039 = vsel %vm6038, %v6037, %v6032
        %v6040 = vadd.s32 %v6007, 4294967256
        %v6041 = vlaneseq
        %v6042 = vshrl.u32 %v6041, 7
        %v6043 = vsub.s32 %v6040, %v6042
        %v6044 = vrot.slane %v5255, %v6043
        %vm6045 = vcmask 392512
        %v6046 = vsel %vm6045, %v6044, %v6039
        %v6047 = vadd.s32 %v6007, 4294967248
        %v6048 = vlaneseq
        %v6049 = vshrl.u32 %v6048, 7
        %v6050 = vsub.s32 %v6047, %v6049
        %v6051 = vrot.slane %v5258, %v6050
        %vm6052 = vcmask 458112
        %v6053 = vsel %vm6052, %v6051, %v6046
        %v6054 = vadd.s32 %v6007, 4294967240
        %v6055 = vlaneseq
        %v6056 = vshrl.u32 %v6055, 7
        %v6057 = vsub.s32 %v6054, %v6056
        %v6058 = vrot.slane %v5261, %v6057
        %vm6059 = vcmask 523712
        %v6060 = vsel %vm6059, %v6058, %v6053
        %v6061 = vadd.s32 %v6007, 4294967232
        %v6062 = vlaneseq
        %v6063 = vshrl.u32 %v6062, 7
        %v6064 = vsub.s32 %v6061, %v6063
        %v6065 = vrot.slane %v5264, %v6064
        %vm6066 = vcmask 589312
        %v6067 = vsel %vm6066, %v6065, %v6060
        %v6068 = vadd.s32 %v6007, 4294967224
        %v6069 = vlaneseq
        %v6070 = vshrl.u32 %v6069, 7
        %v6071 = vsub.s32 %v6068, %v6070
        %v6072 = vrot.slane %v5267, %v6071
        %vm6073 = vcmask 654912
        %v6074 = vsel %vm6073, %v6072, %v6067
        %v6075 = vadd.s32 %v6007, 4294967216
        %v6076 = vlaneseq
        %v6077 = vshrl.u32 %v6076, 7
        %v6078 = vsub.s32 %v6075, %v6077
        %v6079 = vrot.slane %v5270, %v6078
        %vm6080 = vcmask 720512
        %v6081 = vsel %vm6080, %v6079, %v6074
        %v6082 = vadd.s32 %v6007, 4294967208
        %v6083 = vlaneseq
        %v6084 = vshrl.u32 %v6083, 7
        %v6085 = vsub.s32 %v6082, %v6084
        %v6086 = vrot.slane %v5273, %v6085
        %vm6087 = vcmask 786112
        %v6088 = vsel %vm6087, %v6086, %v6081
        %v6089 = vadd.s32 %v6007, 4294967200
        %v6090 = vlaneseq
        %v6091 = vshrl.u32 %v6090, 7
        %v6092 = vsub.s32 %v6089, %v6091
        %v6093 = vrot.slane %v5276, %v6092
        %vm6094 = vcmask 851712
        %v6095 = vsel %vm6094, %v6093, %v6088
        %v6096 = vadd.s32 %v6007, 4294967192
        %v6097 = vlaneseq
        %v6098 = vshrl.u32 %v6097, 7
        %v6099 = vsub.s32 %v6096, %v6098
        %v6100 = vrot.slane %v5279, %v6099
        %vm6101 = vcmask 917312
        %v6102 = vsel %vm6101, %v6100, %v6095
        %v6103 = vadd.s32 %v6007, 4294967184
        %v6104 = vlaneseq
        %v6105 = vshrl.u32 %v6104, 7
        %v6106 = vsub.s32 %v6103, %v6105
        %v6107 = vrot.slane %v5282, %v6106
        %vm6108 = vcmask 982912
        %v6109 = vsel %vm6108, %v6107, %v6102
        %v6110 = vadd.s32 %v6007, 4294967176
        %v6111 = vlaneseq
        %v6112 = vshrl.u32 %v6111, 7
        %v6113 = vsub.s32 %v6110, %v6112
        %v6114 = vrot.slane %v5285, %v6113
        %vm6115 = vcmask 1048512
        %v6116 = vsel %vm6115, %v6114, %v6109
        %v6117 = vlaneseq
        %v6118 = vshrl.u32 %v6117, 7
        %v6119 = vsub.s32 %v6007, %v6118
        %v6120 = vrot.slane %v5288, %v6119
        %v6121 = vlaneseq
        %v6122 = vshrl.u32 %v6121, 7
        %v6123 = vsub.s32 %v6012, %v6122
        %v6124 = vrot.slane %v5291, %v6123
        %v6125 = vsel %vm6017, %v6124, %v6120
        %v6126 = vlaneseq
        %v6127 = vshrl.u32 %v6126, 7
        %v6128 = vsub.s32 %v6019, %v6127
        %v6129 = vrot.slane %v5294, %v6128
        %v6130 = vsel %vm6024, %v6129, %v6125
        %v6131 = vlaneseq
        %v6132 = vshrl.u32 %v6131, 7
        %v6133 = vsub.s32 %v6026, %v6132
        %v6134 = vrot.slane %v5297, %v6133
        %v6135 = vsel %vm6031, %v6134, %v6130
        %v6136 = vlaneseq
        %v6137 = vshrl.u32 %v6136, 7
        %v6138 = vsub.s32 %v6033, %v6137
        %v6139 = vrot.slane %v5300, %v6138
        %v6140 = vsel %vm6038, %v6139, %v6135
        %v6141 = vlaneseq
        %v6142 = vshrl.u32 %v6141, 7
        %v6143 = vsub.s32 %v6040, %v6142
        %v6144 = vrot.slane %v5303, %v6143
        %v6145 = vsel %vm6045, %v6144, %v6140
        %v6146 = vlaneseq
        %v6147 = vshrl.u32 %v6146, 7
        %v6148 = vsub.s32 %v6047, %v6147
        %v6149 = vrot.slane %v5306, %v6148
        %v6150 = vsel %vm6052, %v6149, %v6145
        %v6151 = vlaneseq
        %v6152 = vshrl.u32 %v6151, 7
        %v6153 = vsub.s32 %v6054, %v6152
        %v6154 = vrot.slane %v5309, %v6153
        %v6155 = vsel %vm6059, %v6154, %v6150
        %v6156 = vlaneseq
        %v6157 = vshrl.u32 %v6156, 7
        %v6158 = vsub.s32 %v6061, %v6157
        %v6159 = vrot.slane %v5312, %v6158
        %v6160 = vsel %vm6066, %v6159, %v6155
        %v6161 = vlaneseq
        %v6162 = vshrl.u32 %v6161, 7
        %v6163 = vsub.s32 %v6068, %v6162
        %v6164 = vrot.slane %v5315, %v6163
        %v6165 = vsel %vm6073, %v6164, %v6160
        %v6166 = vlaneseq
        %v6167 = vshrl.u32 %v6166, 7
        %v6168 = vsub.s32 %v6075, %v6167
        %v6169 = vrot.slane %v5318, %v6168
        %v6170 = vsel %vm6080, %v6169, %v6165
        %v6171 = vlaneseq
        %v6172 = vshrl.u32 %v6171, 7
        %v6173 = vsub.s32 %v6082, %v6172
        %v6174 = vrot.slane %v5321, %v6173
        %v6175 = vsel %vm6087, %v6174, %v6170
        %v6176 = vlaneseq
        %v6177 = vshrl.u32 %v6176, 7
        %v6178 = vsub.s32 %v6089, %v6177
        %v6179 = vrot.slane %v5324, %v6178
        %v6180 = vsel %vm6094, %v6179, %v6175
        %v6181 = vlaneseq
        %v6182 = vshrl.u32 %v6181, 7
        %v6183 = vsub.s32 %v6096, %v6182
        %v6184 = vrot.slane %v5327, %v6183
        %v6185 = vsel %vm6101, %v6184, %v6180
        %v6186 = vlaneseq
        %v6187 = vshrl.u32 %v6186, 7
        %v6188 = vsub.s32 %v6103, %v6187
        %v6189 = vrot.slane %v5330, %v6188
        %v6190 = vsel %vm6108, %v6189, %v6185
        %v6191 = vlaneseq
        %v6192 = vshrl.u32 %v6191, 7
        %v6193 = vsub.s32 %v6110, %v6192
        %v6194 = vrot.slane %v5333, %v6193
        %v6195 = vsel %vm6115, %v6194, %v6190
        %v6196 = vlaneseq
        %v6197 = vshrl.u32 %v6196, 7
        %v6198 = vsub.s32 %v6007, %v6197
        %v6199 = vrot.slane %v5336, %v6198
        %v6200 = vlaneseq
        %v6201 = vshrl.u32 %v6200, 7
        %v6202 = vsub.s32 %v6012, %v6201
        %v6203 = vrot.slane %v5339, %v6202
        %v6204 = vsel %vm6017, %v6203, %v6199
        %v6205 = vlaneseq
        %v6206 = vshrl.u32 %v6205, 7
        %v6207 = vsub.s32 %v6019, %v6206
        %v6208 = vrot.slane %v5342, %v6207
        %v6209 = vsel %vm6024, %v6208, %v6204
        %v6210 = vlaneseq
        %v6211 = vshrl.u32 %v6210, 7
        %v6212 = vsub.s32 %v6026, %v6211
        %v6213 = vrot.slane %v5345, %v6212
        %v6214 = vsel %vm6031, %v6213, %v6209
        %v6215 = vlaneseq
        %v6216 = vshrl.u32 %v6215, 7
        %v6217 = vsub.s32 %v6033, %v6216
        %v6218 = vrot.slane %v5348, %v6217
        %v6219 = vsel %vm6038, %v6218, %v6214
        %v6220 = vlaneseq
        %v6221 = vshrl.u32 %v6220, 7
        %v6222 = vsub.s32 %v6040, %v6221
        %v6223 = vrot.slane %v5351, %v6222
        %v6224 = vsel %vm6045, %v6223, %v6219
        %v6225 = vlaneseq
        %v6226 = vshrl.u32 %v6225, 7
        %v6227 = vsub.s32 %v6047, %v6226
        %v6228 = vrot.slane %v5354, %v6227
        %v6229 = vsel %vm6052, %v6228, %v6224
        %v6230 = vlaneseq
        %v6231 = vshrl.u32 %v6230, 7
        %v6232 = vsub.s32 %v6054, %v6231
        %v6233 = vrot.slane %v5357, %v6232
        %v6234 = vsel %vm6059, %v6233, %v6229
        %v6235 = vlaneseq
        %v6236 = vshrl.u32 %v6235, 7
        %v6237 = vsub.s32 %v6061, %v6236
        %v6238 = vrot.slane %v5360, %v6237
        %v6239 = vsel %vm6066, %v6238, %v6234
        %v6240 = vlaneseq
        %v6241 = vshrl.u32 %v6240, 7
        %v6242 = vsub.s32 %v6068, %v6241
        %v6243 = vrot.slane %v5363, %v6242
        %v6244 = vsel %vm6073, %v6243, %v6239
        %v6245 = vlaneseq
        %v6246 = vshrl.u32 %v6245, 7
        %v6247 = vsub.s32 %v6075, %v6246
        %v6248 = vrot.slane %v5366, %v6247
        %v6249 = vsel %vm6080, %v6248, %v6244
        %v6250 = vlaneseq
        %v6251 = vshrl.u32 %v6250, 7
        %v6252 = vsub.s32 %v6082, %v6251
        %v6253 = vrot.slane %v5369, %v6252
        %v6254 = vsel %vm6087, %v6253, %v6249
        %v6255 = vlaneseq
        %v6256 = vshrl.u32 %v6255, 7
        %v6257 = vsub.s32 %v6089, %v6256
        %v6258 = vrot.slane %v5372, %v6257
        %v6259 = vsel %vm6094, %v6258, %v6254
        %v6260 = vlaneseq
        %v6261 = vshrl.u32 %v6260, 7
        %v6262 = vsub.s32 %v6096, %v6261
        %v6263 = vrot.slane %v5375, %v6262
        %v6264 = vsel %vm6101, %v6263, %v6259
        %v6265 = vlaneseq
        %v6266 = vshrl.u32 %v6265, 7
        %v6267 = vsub.s32 %v6103, %v6266
        %v6268 = vrot.slane %v5378, %v6267
        %v6269 = vsel %vm6108, %v6268, %v6264
        %v6270 = vlaneseq
        %v6271 = vshrl.u32 %v6270, 7
        %v6272 = vsub.s32 %v6110, %v6271
        %v6273 = vrot.slane %v5381, %v6272
        %v6274 = vsel %vm6115, %v6273, %v6269
        %v6275 = vlaneseq
        %v6276 = vshrl.u32 %v6275, 7
        %v6277 = vsub.s32 %v6007, %v6276
        %v6278 = vrot.slane %v5384, %v6277
        %v6279 = vlaneseq
        %v6280 = vshrl.u32 %v6279, 7
        %v6281 = vsub.s32 %v6012, %v6280
        %v6282 = vrot.slane %v5387, %v6281
        %v6283 = vsel %vm6017, %v6282, %v6278
        %v6284 = vlaneseq
        %v6285 = vshrl.u32 %v6284, 7
        %v6286 = vsub.s32 %v6019, %v6285
        %v6287 = vrot.slane %v5390, %v6286
        %v6288 = vsel %vm6024, %v6287, %v6283
        %v6289 = vlaneseq
        %v6290 = vshrl.u32 %v6289, 7
        %v6291 = vsub.s32 %v6026, %v6290
        %v6292 = vrot.slane %v5393, %v6291
        %v6293 = vsel %vm6031, %v6292, %v6288
        %v6294 = vlaneseq
        %v6295 = vshrl.u32 %v6294, 7
        %v6296 = vsub.s32 %v6033, %v6295
        %v6297 = vrot.slane %v5396, %v6296
        %v6298 = vsel %vm6038, %v6297, %v6293
        %v6299 = vlaneseq
        %v6300 = vshrl.u32 %v6299, 7
        %v6301 = vsub.s32 %v6040, %v6300
        %v6302 = vrot.slane %v5399, %v6301
        %v6303 = vsel %vm6045, %v6302, %v6298
        %v6304 = vlaneseq
        %v6305 = vshrl.u32 %v6304, 7
        %v6306 = vsub.s32 %v6047, %v6305
        %v6307 = vrot.slane %v5402, %v6306
        %v6308 = vsel %vm6052, %v6307, %v6303
        %v6309 = vlaneseq
        %v6310 = vshrl.u32 %v6309, 7
        %v6311 = vsub.s32 %v6054, %v6310
        %v6312 = vrot.slane %v5405, %v6311
        %v6313 = vsel %vm6059, %v6312, %v6308
        %v6314 = vlaneseq
        %v6315 = vshrl.u32 %v6314, 7
        %v6316 = vsub.s32 %v6061, %v6315
        %v6317 = vrot.slane %v5408, %v6316
        %v6318 = vsel %vm6066, %v6317, %v6313
        %v6319 = vlaneseq
        %v6320 = vshrl.u32 %v6319, 7
        %v6321 = vsub.s32 %v6068, %v6320
        %v6322 = vrot.slane %v5411, %v6321
        %v6323 = vsel %vm6073, %v6322, %v6318
        %v6324 = vlaneseq
        %v6325 = vshrl.u32 %v6324, 7
        %v6326 = vsub.s32 %v6075, %v6325
        %v6327 = vrot.slane %v5414, %v6326
        %v6328 = vsel %vm6080, %v6327, %v6323
        %v6329 = vlaneseq
        %v6330 = vshrl.u32 %v6329, 7
        %v6331 = vsub.s32 %v6082, %v6330
        %v6332 = vrot.slane %v5417, %v6331
        %v6333 = vsel %vm6087, %v6332, %v6328
        %v6334 = vlaneseq
        %v6335 = vshrl.u32 %v6334, 7
        %v6336 = vsub.s32 %v6089, %v6335
        %v6337 = vrot.slane %v5420, %v6336
        %v6338 = vsel %vm6094, %v6337, %v6333
        %v6339 = vlaneseq
        %v6340 = vshrl.u32 %v6339, 7
        %v6341 = vsub.s32 %v6096, %v6340
        %v6342 = vrot.slane %v5423, %v6341
        %v6343 = vsel %vm6101, %v6342, %v6338
        %v6344 = vlaneseq
        %v6345 = vshrl.u32 %v6344, 7
        %v6346 = vsub.s32 %v6103, %v6345
        %v6347 = vrot.slane %v5426, %v6346
        %v6348 = vsel %vm6108, %v6347, %v6343
        %v6349 = vlaneseq
        %v6350 = vshrl.u32 %v6349, 7
        %v6351 = vsub.s32 %v6110, %v6350
        %v6352 = vrot.slane %v5429, %v6351
        %v6353 = vsel %vm6115, %v6352, %v6348
        %v6354 = vlaneseq
        %v6355 = vshrl.u32 %v6354, 7
        %v6356 = vsub.s32 %v6007, %v6355
        %v6357 = vrot.slane %v5432, %v6356
        %v6358 = vlaneseq
        %v6359 = vshrl.u32 %v6358, 7
        %v6360 = vsub.s32 %v6012, %v6359
        %v6361 = vrot.slane %v5435, %v6360
        %v6362 = vsel %vm6017, %v6361, %v6357
        %v6363 = vlaneseq
        %v6364 = vshrl.u32 %v6363, 7
        %v6365 = vsub.s32 %v6019, %v6364
        %v6366 = vrot.slane %v5438, %v6365
        %v6367 = vsel %vm6024, %v6366, %v6362
        %v6368 = vlaneseq
        %v6369 = vshrl.u32 %v6368, 7
        %v6370 = vsub.s32 %v6026, %v6369
        %v6371 = vrot.slane %v5441, %v6370
        %v6372 = vsel %vm6031, %v6371, %v6367
        %v6373 = vlaneseq
        %v6374 = vshrl.u32 %v6373, 7
        %v6375 = vsub.s32 %v6033, %v6374
        %v6376 = vrot.slane %v5444, %v6375
        %v6377 = vsel %vm6038, %v6376, %v6372
        %v6378 = vlaneseq
        %v6379 = vshrl.u32 %v6378, 7
        %v6380 = vsub.s32 %v6040, %v6379
        %v6381 = vrot.slane %v5447, %v6380
        %v6382 = vsel %vm6045, %v6381, %v6377
        %v6383 = vlaneseq
        %v6384 = vshrl.u32 %v6383, 7
        %v6385 = vsub.s32 %v6047, %v6384
        %v6386 = vrot.slane %v5450, %v6385
        %v6387 = vsel %vm6052, %v6386, %v6382
        %v6388 = vlaneseq
        %v6389 = vshrl.u32 %v6388, 7
        %v6390 = vsub.s32 %v6054, %v6389
        %v6391 = vrot.slane %v5453, %v6390
        %v6392 = vsel %vm6059, %v6391, %v6387
        %v6393 = vlaneseq
        %v6394 = vshrl.u32 %v6393, 7
        %v6395 = vsub.s32 %v6061, %v6394
        %v6396 = vrot.slane %v5456, %v6395
        %v6397 = vsel %vm6066, %v6396, %v6392
        %v6398 = vlaneseq
        %v6399 = vshrl.u32 %v6398, 7
        %v6400 = vsub.s32 %v6068, %v6399
        %v6401 = vrot.slane %v5459, %v6400
        %v6402 = vsel %vm6073, %v6401, %v6397
        %v6403 = vlaneseq
        %v6404 = vshrl.u32 %v6403, 7
        %v6405 = vsub.s32 %v6075, %v6404
        %v6406 = vrot.slane %v5462, %v6405
        %v6407 = vsel %vm6080, %v6406, %v6402
        %v6408 = vlaneseq
        %v6409 = vshrl.u32 %v6408, 7
        %v6410 = vsub.s32 %v6082, %v6409
        %v6411 = vrot.slane %v5465, %v6410
        %v6412 = vsel %vm6087, %v6411, %v6407
        %v6413 = vlaneseq
        %v6414 = vshrl.u32 %v6413, 7
        %v6415 = vsub.s32 %v6089, %v6414
        %v6416 = vrot.slane %v5468, %v6415
        %v6417 = vsel %vm6094, %v6416, %v6412
        %v6418 = vlaneseq
        %v6419 = vshrl.u32 %v6418, 7
        %v6420 = vsub.s32 %v6096, %v6419
        %v6421 = vrot.slane %v5471, %v6420
        %v6422 = vsel %vm6101, %v6421, %v6417
        %v6423 = vlaneseq
        %v6424 = vshrl.u32 %v6423, 7
        %v6425 = vsub.s32 %v6103, %v6424
        %v6426 = vrot.slane %v5474, %v6425
        %v6427 = vsel %vm6108, %v6426, %v6422
        %v6428 = vlaneseq
        %v6429 = vshrl.u32 %v6428, 7
        %v6430 = vsub.s32 %v6110, %v6429
        %v6431 = vrot.slane %v5477, %v6430
        %v6432 = vsel %vm6115, %v6431, %v6427
        %v6433 = vlaneseq
        %v6434 = vshrl.u32 %v6433, 7
        %v6435 = vsub.s32 %v6007, %v6434
        %v6436 = vrot.slane %v5480, %v6435
        %v6437 = vlaneseq
        %v6438 = vshrl.u32 %v6437, 7
        %v6439 = vsub.s32 %v6012, %v6438
        %v6440 = vrot.slane %v5483, %v6439
        %v6441 = vsel %vm6017, %v6440, %v6436
        %v6442 = vlaneseq
        %v6443 = vshrl.u32 %v6442, 7
        %v6444 = vsub.s32 %v6019, %v6443
        %v6445 = vrot.slane %v5486, %v6444
        %v6446 = vsel %vm6024, %v6445, %v6441
        %v6447 = vlaneseq
        %v6448 = vshrl.u32 %v6447, 7
        %v6449 = vsub.s32 %v6026, %v6448
        %v6450 = vrot.slane %v5489, %v6449
        %v6451 = vsel %vm6031, %v6450, %v6446
        %v6452 = vlaneseq
        %v6453 = vshrl.u32 %v6452, 7
        %v6454 = vsub.s32 %v6033, %v6453
        %v6455 = vrot.slane %v5492, %v6454
        %v6456 = vsel %vm6038, %v6455, %v6451
        %v6457 = vlaneseq
        %v6458 = vshrl.u32 %v6457, 7
        %v6459 = vsub.s32 %v6040, %v6458
        %v6460 = vrot.slane %v5495, %v6459
        %v6461 = vsel %vm6045, %v6460, %v6456
        %v6462 = vlaneseq
        %v6463 = vshrl.u32 %v6462, 7
        %v6464 = vsub.s32 %v6047, %v6463
        %v6465 = vrot.slane %v5498, %v6464
        %v6466 = vsel %vm6052, %v6465, %v6461
        %v6467 = vlaneseq
        %v6468 = vshrl.u32 %v6467, 7
        %v6469 = vsub.s32 %v6054, %v6468
        %v6470 = vrot.slane %v5501, %v6469
        %v6471 = vsel %vm6059, %v6470, %v6466
        %v6472 = vlaneseq
        %v6473 = vshrl.u32 %v6472, 7
        %v6474 = vsub.s32 %v6061, %v6473
        %v6475 = vrot.slane %v5504, %v6474
        %v6476 = vsel %vm6066, %v6475, %v6471
        %v6477 = vlaneseq
        %v6478 = vshrl.u32 %v6477, 7
        %v6479 = vsub.s32 %v6068, %v6478
        %v6480 = vrot.slane %v5507, %v6479
        %v6481 = vsel %vm6073, %v6480, %v6476
        %v6482 = vlaneseq
        %v6483 = vshrl.u32 %v6482, 7
        %v6484 = vsub.s32 %v6075, %v6483
        %v6485 = vrot.slane %v5510, %v6484
        %v6486 = vsel %vm6080, %v6485, %v6481
        %v6487 = vlaneseq
        %v6488 = vshrl.u32 %v6487, 7
        %v6489 = vsub.s32 %v6082, %v6488
        %v6490 = vrot.slane %v5513, %v6489
        %v6491 = vsel %vm6087, %v6490, %v6486
        %v6492 = vlaneseq
        %v6493 = vshrl.u32 %v6492, 7
        %v6494 = vsub.s32 %v6089, %v6493
        %v6495 = vrot.slane %v5516, %v6494
        %v6496 = vsel %vm6094, %v6495, %v6491
        %v6497 = vlaneseq
        %v6498 = vshrl.u32 %v6497, 7
        %v6499 = vsub.s32 %v6096, %v6498
        %v6500 = vrot.slane %v5519, %v6499
        %v6501 = vsel %vm6101, %v6500, %v6496
        %v6502 = vlaneseq
        %v6503 = vshrl.u32 %v6502, 7
        %v6504 = vsub.s32 %v6103, %v6503
        %v6505 = vrot.slane %v5522, %v6504
        %v6506 = vsel %vm6108, %v6505, %v6501
        %v6507 = vlaneseq
        %v6508 = vshrl.u32 %v6507, 7
        %v6509 = vsub.s32 %v6110, %v6508
        %v6510 = vrot.slane %v5525, %v6509
        %v6511 = vsel %vm6115, %v6510, %v6506
        %v6512 = vlaneseq
        %v6513 = vshrl.u32 %v6512, 7
        %v6514 = vsub.s32 %v6007, %v6513
        %v6515 = vrot.slane %v5528, %v6514
        %v6516 = vlaneseq
        %v6517 = vshrl.u32 %v6516, 7
        %v6518 = vsub.s32 %v6012, %v6517
        %v6519 = vrot.slane %v5531, %v6518
        %v6520 = vsel %vm6017, %v6519, %v6515
        %v6521 = vlaneseq
        %v6522 = vshrl.u32 %v6521, 7
        %v6523 = vsub.s32 %v6019, %v6522
        %v6524 = vrot.slane %v5534, %v6523
        %v6525 = vsel %vm6024, %v6524, %v6520
        %v6526 = vlaneseq
        %v6527 = vshrl.u32 %v6526, 7
        %v6528 = vsub.s32 %v6026, %v6527
        %v6529 = vrot.slane %v5537, %v6528
        %v6530 = vsel %vm6031, %v6529, %v6525
        %v6531 = vlaneseq
        %v6532 = vshrl.u32 %v6531, 7
        %v6533 = vsub.s32 %v6033, %v6532
        %v6534 = vrot.slane %v5540, %v6533
        %v6535 = vsel %vm6038, %v6534, %v6530
        %v6536 = vlaneseq
        %v6537 = vshrl.u32 %v6536, 7
        %v6538 = vsub.s32 %v6040, %v6537
        %v6539 = vrot.slane %v5543, %v6538
        %v6540 = vsel %vm6045, %v6539, %v6535
        %v6541 = vlaneseq
        %v6542 = vshrl.u32 %v6541, 7
        %v6543 = vsub.s32 %v6047, %v6542
        %v6544 = vrot.slane %v5546, %v6543
        %v6545 = vsel %vm6052, %v6544, %v6540
        %v6546 = vlaneseq
        %v6547 = vshrl.u32 %v6546, 7
        %v6548 = vsub.s32 %v6054, %v6547
        %v6549 = vrot.slane %v5549, %v6548
        %v6550 = vsel %vm6059, %v6549, %v6545
        %v6551 = vlaneseq
        %v6552 = vshrl.u32 %v6551, 7
        %v6553 = vsub.s32 %v6061, %v6552
        %v6554 = vrot.slane %v5552, %v6553
        %v6555 = vsel %vm6066, %v6554, %v6550
        %v6556 = vlaneseq
        %v6557 = vshrl.u32 %v6556, 7
        %v6558 = vsub.s32 %v6068, %v6557
        %v6559 = vrot.slane %v5555, %v6558
        %v6560 = vsel %vm6073, %v6559, %v6555
        %v6561 = vlaneseq
        %v6562 = vshrl.u32 %v6561, 7
        %v6563 = vsub.s32 %v6075, %v6562
        %v6564 = vrot.slane %v5558, %v6563
        %v6565 = vsel %vm6080, %v6564, %v6560
        %v6566 = vlaneseq
        %v6567 = vshrl.u32 %v6566, 7
        %v6568 = vsub.s32 %v6082, %v6567
        %v6569 = vrot.slane %v5561, %v6568
        %v6570 = vsel %vm6087, %v6569, %v6565
        %v6571 = vlaneseq
        %v6572 = vshrl.u32 %v6571, 7
        %v6573 = vsub.s32 %v6089, %v6572
        %v6574 = vrot.slane %v5564, %v6573
        %v6575 = vsel %vm6094, %v6574, %v6570
        %v6576 = vlaneseq
        %v6577 = vshrl.u32 %v6576, 7
        %v6578 = vsub.s32 %v6096, %v6577
        %v6579 = vrot.slane %v5567, %v6578
        %v6580 = vsel %vm6101, %v6579, %v6575
        %v6581 = vlaneseq
        %v6582 = vshrl.u32 %v6581, 7
        %v6583 = vsub.s32 %v6103, %v6582
        %v6584 = vrot.slane %v5570, %v6583
        %v6585 = vsel %vm6108, %v6584, %v6580
        %v6586 = vlaneseq
        %v6587 = vshrl.u32 %v6586, 7
        %v6588 = vsub.s32 %v6110, %v6587
        %v6589 = vrot.slane %v5573, %v6588
        %v6590 = vsel %vm6115, %v6589, %v6585
        %v6591 = vlaneseq
        %v6592 = vshrl.u32 %v6591, 7
        %v6593 = vsub.s32 %v6007, %v6592
        %v6594 = vrot.slane %v5576, %v6593
        %v6595 = vlaneseq
        %v6596 = vshrl.u32 %v6595, 7
        %v6597 = vsub.s32 %v6012, %v6596
        %v6598 = vrot.slane %v5579, %v6597
        %v6599 = vsel %vm6017, %v6598, %v6594
        %v6600 = vlaneseq
        %v6601 = vshrl.u32 %v6600, 7
        %v6602 = vsub.s32 %v6019, %v6601
        %v6603 = vrot.slane %v5582, %v6602
        %v6604 = vsel %vm6024, %v6603, %v6599
        %v6605 = vlaneseq
        %v6606 = vshrl.u32 %v6605, 7
        %v6607 = vsub.s32 %v6026, %v6606
        %v6608 = vrot.slane %v5585, %v6607
        %v6609 = vsel %vm6031, %v6608, %v6604
        %v6610 = vlaneseq
        %v6611 = vshrl.u32 %v6610, 7
        %v6612 = vsub.s32 %v6033, %v6611
        %v6613 = vrot.slane %v5588, %v6612
        %v6614 = vsel %vm6038, %v6613, %v6609
        %v6615 = vlaneseq
        %v6616 = vshrl.u32 %v6615, 7
        %v6617 = vsub.s32 %v6040, %v6616
        %v6618 = vrot.slane %v5591, %v6617
        %v6619 = vsel %vm6045, %v6618, %v6614
        %v6620 = vlaneseq
        %v6621 = vshrl.u32 %v6620, 7
        %v6622 = vsub.s32 %v6047, %v6621
        %v6623 = vrot.slane %v5594, %v6622
        %v6624 = vsel %vm6052, %v6623, %v6619
        %v6625 = vlaneseq
        %v6626 = vshrl.u32 %v6625, 7
        %v6627 = vsub.s32 %v6054, %v6626
        %v6628 = vrot.slane %v5597, %v6627
        %v6629 = vsel %vm6059, %v6628, %v6624
        %v6630 = vlaneseq
        %v6631 = vshrl.u32 %v6630, 7
        %v6632 = vsub.s32 %v6061, %v6631
        %v6633 = vrot.slane %v5600, %v6632
        %v6634 = vsel %vm6066, %v6633, %v6629
        %v6635 = vlaneseq
        %v6636 = vshrl.u32 %v6635, 7
        %v6637 = vsub.s32 %v6068, %v6636
        %v6638 = vrot.slane %v5603, %v6637
        %v6639 = vsel %vm6073, %v6638, %v6634
        %v6640 = vlaneseq
        %v6641 = vshrl.u32 %v6640, 7
        %v6642 = vsub.s32 %v6075, %v6641
        %v6643 = vrot.slane %v5606, %v6642
        %v6644 = vsel %vm6080, %v6643, %v6639
        %v6645 = vlaneseq
        %v6646 = vshrl.u32 %v6645, 7
        %v6647 = vsub.s32 %v6082, %v6646
        %v6648 = vrot.slane %v5609, %v6647
        %v6649 = vsel %vm6087, %v6648, %v6644
        %v6650 = vlaneseq
        %v6651 = vshrl.u32 %v6650, 7
        %v6652 = vsub.s32 %v6089, %v6651
        %v6653 = vrot.slane %v5612, %v6652
        %v6654 = vsel %vm6094, %v6653, %v6649
        %v6655 = vlaneseq
        %v6656 = vshrl.u32 %v6655, 7
        %v6657 = vsub.s32 %v6096, %v6656
        %v6658 = vrot.slane %v5615, %v6657
        %v6659 = vsel %vm6101, %v6658, %v6654
        %v6660 = vlaneseq
        %v6661 = vshrl.u32 %v6660, 7
        %v6662 = vsub.s32 %v6103, %v6661
        %v6663 = vrot.slane %v5618, %v6662
        %v6664 = vsel %vm6108, %v6663, %v6659
        %v6665 = vlaneseq
        %v6666 = vshrl.u32 %v6665, 7
        %v6667 = vsub.s32 %v6110, %v6666
        %v6668 = vrot.slane %v5621, %v6667
        %v6669 = vsel %vm6115, %v6668, %v6664
        %v6670 = vlaneseq
        %v6671 = vshrl.u32 %v6670, 7
        %v6672 = vsub.s32 %v6007, %v6671
        %v6673 = vrot.slane %v5624, %v6672
        %v6674 = vlaneseq
        %v6675 = vshrl.u32 %v6674, 7
        %v6676 = vsub.s32 %v6012, %v6675
        %v6677 = vrot.slane %v5627, %v6676
        %v6678 = vsel %vm6017, %v6677, %v6673
        %v6679 = vlaneseq
        %v6680 = vshrl.u32 %v6679, 7
        %v6681 = vsub.s32 %v6019, %v6680
        %v6682 = vrot.slane %v5630, %v6681
        %v6683 = vsel %vm6024, %v6682, %v6678
        %v6684 = vlaneseq
        %v6685 = vshrl.u32 %v6684, 7
        %v6686 = vsub.s32 %v6026, %v6685
        %v6687 = vrot.slane %v5633, %v6686
        %v6688 = vsel %vm6031, %v6687, %v6683
        %v6689 = vlaneseq
        %v6690 = vshrl.u32 %v6689, 7
        %v6691 = vsub.s32 %v6033, %v6690
        %v6692 = vrot.slane %v5636, %v6691
        %v6693 = vsel %vm6038, %v6692, %v6688
        %v6694 = vlaneseq
        %v6695 = vshrl.u32 %v6694, 7
        %v6696 = vsub.s32 %v6040, %v6695
        %v6697 = vrot.slane %v5639, %v6696
        %v6698 = vsel %vm6045, %v6697, %v6693
        %v6699 = vlaneseq
        %v6700 = vshrl.u32 %v6699, 7
        %v6701 = vsub.s32 %v6047, %v6700
        %v6702 = vrot.slane %v5642, %v6701
        %v6703 = vsel %vm6052, %v6702, %v6698
        %v6704 = vlaneseq
        %v6705 = vshrl.u32 %v6704, 7
        %v6706 = vsub.s32 %v6054, %v6705
        %v6707 = vrot.slane %v5645, %v6706
        %v6708 = vsel %vm6059, %v6707, %v6703
        %v6709 = vlaneseq
        %v6710 = vshrl.u32 %v6709, 7
        %v6711 = vsub.s32 %v6061, %v6710
        %v6712 = vrot.slane %v5648, %v6711
        %v6713 = vsel %vm6066, %v6712, %v6708
        %v6714 = vlaneseq
        %v6715 = vshrl.u32 %v6714, 7
        %v6716 = vsub.s32 %v6068, %v6715
        %v6717 = vrot.slane %v5651, %v6716
        %v6718 = vsel %vm6073, %v6717, %v6713
        %v6719 = vlaneseq
        %v6720 = vshrl.u32 %v6719, 7
        %v6721 = vsub.s32 %v6075, %v6720
        %v6722 = vrot.slane %v5654, %v6721
        %v6723 = vsel %vm6080, %v6722, %v6718
        %v6724 = vlaneseq
        %v6725 = vshrl.u32 %v6724, 7
        %v6726 = vsub.s32 %v6082, %v6725
        %v6727 = vrot.slane %v5657, %v6726
        %v6728 = vsel %vm6087, %v6727, %v6723
        %v6729 = vlaneseq
        %v6730 = vshrl.u32 %v6729, 7
        %v6731 = vsub.s32 %v6089, %v6730
        %v6732 = vrot.slane %v5660, %v6731
        %v6733 = vsel %vm6094, %v6732, %v6728
        %v6734 = vlaneseq
        %v6735 = vshrl.u32 %v6734, 7
        %v6736 = vsub.s32 %v6096, %v6735
        %v6737 = vrot.slane %v5663, %v6736
        %v6738 = vsel %vm6101, %v6737, %v6733
        %v6739 = vlaneseq
        %v6740 = vshrl.u32 %v6739, 7
        %v6741 = vsub.s32 %v6103, %v6740
        %v6742 = vrot.slane %v5666, %v6741
        %v6743 = vsel %vm6108, %v6742, %v6738
        %v6744 = vlaneseq
        %v6745 = vshrl.u32 %v6744, 7
        %v6746 = vsub.s32 %v6110, %v6745
        %v6747 = vrot.slane %v5669, %v6746
        %v6748 = vsel %vm6115, %v6747, %v6743
        %v6749 = vlaneseq
        %v6750 = vshrl.u32 %v6749, 7
        %v6751 = vsub.s32 %v6007, %v6750
        %v6752 = vrot.slane %v5672, %v6751
        %v6753 = vlaneseq
        %v6754 = vshrl.u32 %v6753, 7
        %v6755 = vsub.s32 %v6012, %v6754
        %v6756 = vrot.slane %v5675, %v6755
        %v6757 = vsel %vm6017, %v6756, %v6752
        %v6758 = vlaneseq
        %v6759 = vshrl.u32 %v6758, 7
        %v6760 = vsub.s32 %v6019, %v6759
        %v6761 = vrot.slane %v5678, %v6760
        %v6762 = vsel %vm6024, %v6761, %v6757
        %v6763 = vlaneseq
        %v6764 = vshrl.u32 %v6763, 7
        %v6765 = vsub.s32 %v6026, %v6764
        %v6766 = vrot.slane %v5681, %v6765
        %v6767 = vsel %vm6031, %v6766, %v6762
        %v6768 = vlaneseq
        %v6769 = vshrl.u32 %v6768, 7
        %v6770 = vsub.s32 %v6033, %v6769
        %v6771 = vrot.slane %v5684, %v6770
        %v6772 = vsel %vm6038, %v6771, %v6767
        %v6773 = vlaneseq
        %v6774 = vshrl.u32 %v6773, 7
        %v6775 = vsub.s32 %v6040, %v6774
        %v6776 = vrot.slane %v5687, %v6775
        %v6777 = vsel %vm6045, %v6776, %v6772
        %v6778 = vlaneseq
        %v6779 = vshrl.u32 %v6778, 7
        %v6780 = vsub.s32 %v6047, %v6779
        %v6781 = vrot.slane %v5690, %v6780
        %v6782 = vsel %vm6052, %v6781, %v6777
        %v6783 = vlaneseq
        %v6784 = vshrl.u32 %v6783, 7
        %v6785 = vsub.s32 %v6054, %v6784
        %v6786 = vrot.slane %v5693, %v6785
        %v6787 = vsel %vm6059, %v6786, %v6782
        %v6788 = vlaneseq
        %v6789 = vshrl.u32 %v6788, 7
        %v6790 = vsub.s32 %v6061, %v6789
        %v6791 = vrot.slane %v5696, %v6790
        %v6792 = vsel %vm6066, %v6791, %v6787
        %v6793 = vlaneseq
        %v6794 = vshrl.u32 %v6793, 7
        %v6795 = vsub.s32 %v6068, %v6794
        %v6796 = vrot.slane %v5699, %v6795
        %v6797 = vsel %vm6073, %v6796, %v6792
        %v6798 = vlaneseq
        %v6799 = vshrl.u32 %v6798, 7
        %v6800 = vsub.s32 %v6075, %v6799
        %v6801 = vrot.slane %v5702, %v6800
        %v6802 = vsel %vm6080, %v6801, %v6797
        %v6803 = vlaneseq
        %v6804 = vshrl.u32 %v6803, 7
        %v6805 = vsub.s32 %v6082, %v6804
        %v6806 = vrot.slane %v5705, %v6805
        %v6807 = vsel %vm6087, %v6806, %v6802
        %v6808 = vlaneseq
        %v6809 = vshrl.u32 %v6808, 7
        %v6810 = vsub.s32 %v6089, %v6809
        %v6811 = vrot.slane %v5708, %v6810
        %v6812 = vsel %vm6094, %v6811, %v6807
        %v6813 = vlaneseq
        %v6814 = vshrl.u32 %v6813, 7
        %v6815 = vsub.s32 %v6096, %v6814
        %v6816 = vrot.slane %v5711, %v6815
        %v6817 = vsel %vm6101, %v6816, %v6812
        %v6818 = vlaneseq
        %v6819 = vshrl.u32 %v6818, 7
        %v6820 = vsub.s32 %v6103, %v6819
        %v6821 = vrot.slane %v5714, %v6820
        %v6822 = vsel %vm6108, %v6821, %v6817
        %v6823 = vlaneseq
        %v6824 = vshrl.u32 %v6823, 7
        %v6825 = vsub.s32 %v6110, %v6824
        %v6826 = vrot.slane %v5717, %v6825
        %v6827 = vsel %vm6115, %v6826, %v6822
        %v6828 = vlaneseq
        %v6829 = vshrl.u32 %v6828, 7
        %v6830 = vsub.s32 %v6007, %v6829
        %v6831 = vrot.slane %v5720, %v6830
        %v6832 = vlaneseq
        %v6833 = vshrl.u32 %v6832, 7
        %v6834 = vsub.s32 %v6012, %v6833
        %v6835 = vrot.slane %v5723, %v6834
        %v6836 = vsel %vm6017, %v6835, %v6831
        %v6837 = vlaneseq
        %v6838 = vshrl.u32 %v6837, 7
        %v6839 = vsub.s32 %v6019, %v6838
        %v6840 = vrot.slane %v5726, %v6839
        %v6841 = vsel %vm6024, %v6840, %v6836
        %v6842 = vlaneseq
        %v6843 = vshrl.u32 %v6842, 7
        %v6844 = vsub.s32 %v6026, %v6843
        %v6845 = vrot.slane %v5729, %v6844
        %v6846 = vsel %vm6031, %v6845, %v6841
        %v6847 = vlaneseq
        %v6848 = vshrl.u32 %v6847, 7
        %v6849 = vsub.s32 %v6033, %v6848
        %v6850 = vrot.slane %v5732, %v6849
        %v6851 = vsel %vm6038, %v6850, %v6846
        %v6852 = vlaneseq
        %v6853 = vshrl.u32 %v6852, 7
        %v6854 = vsub.s32 %v6040, %v6853
        %v6855 = vrot.slane %v5735, %v6854
        %v6856 = vsel %vm6045, %v6855, %v6851
        %v6857 = vlaneseq
        %v6858 = vshrl.u32 %v6857, 7
        %v6859 = vsub.s32 %v6047, %v6858
        %v6860 = vrot.slane %v5738, %v6859
        %v6861 = vsel %vm6052, %v6860, %v6856
        %v6862 = vlaneseq
        %v6863 = vshrl.u32 %v6862, 7
        %v6864 = vsub.s32 %v6054, %v6863
        %v6865 = vrot.slane %v5741, %v6864
        %v6866 = vsel %vm6059, %v6865, %v6861
        %v6867 = vlaneseq
        %v6868 = vshrl.u32 %v6867, 7
        %v6869 = vsub.s32 %v6061, %v6868
        %v6870 = vrot.slane %v5744, %v6869
        %v6871 = vsel %vm6066, %v6870, %v6866
        %v6872 = vlaneseq
        %v6873 = vshrl.u32 %v6872, 7
        %v6874 = vsub.s32 %v6068, %v6873
        %v6875 = vrot.slane %v5747, %v6874
        %v6876 = vsel %vm6073, %v6875, %v6871
        %v6877 = vlaneseq
        %v6878 = vshrl.u32 %v6877, 7
        %v6879 = vsub.s32 %v6075, %v6878
        %v6880 = vrot.slane %v5750, %v6879
        %v6881 = vsel %vm6080, %v6880, %v6876
        %v6882 = vlaneseq
        %v6883 = vshrl.u32 %v6882, 7
        %v6884 = vsub.s32 %v6082, %v6883
        %v6885 = vrot.slane %v5753, %v6884
        %v6886 = vsel %vm6087, %v6885, %v6881
        %v6887 = vlaneseq
        %v6888 = vshrl.u32 %v6887, 7
        %v6889 = vsub.s32 %v6089, %v6888
        %v6890 = vrot.slane %v5756, %v6889
        %v6891 = vsel %vm6094, %v6890, %v6886
        %v6892 = vlaneseq
        %v6893 = vshrl.u32 %v6892, 7
        %v6894 = vsub.s32 %v6096, %v6893
        %v6895 = vrot.slane %v5759, %v6894
        %v6896 = vsel %vm6101, %v6895, %v6891
        %v6897 = vlaneseq
        %v6898 = vshrl.u32 %v6897, 7
        %v6899 = vsub.s32 %v6103, %v6898
        %v6900 = vrot.slane %v5762, %v6899
        %v6901 = vsel %vm6108, %v6900, %v6896
        %v6902 = vlaneseq
        %v6903 = vshrl.u32 %v6902, 7
        %v6904 = vsub.s32 %v6110, %v6903
        %v6905 = vrot.slane %v5765, %v6904
        %v6906 = vsel %vm6115, %v6905, %v6901
        %v6907 = vlaneseq
        %v6908 = vshrl.u32 %v6907, 7
        %v6909 = vsub.s32 %v6007, %v6908
        %v6910 = vrot.slane %v5768, %v6909
        %v6911 = vlaneseq
        %v6912 = vshrl.u32 %v6911, 7
        %v6913 = vsub.s32 %v6012, %v6912
        %v6914 = vrot.slane %v5771, %v6913
        %v6915 = vsel %vm6017, %v6914, %v6910
        %v6916 = vlaneseq
        %v6917 = vshrl.u32 %v6916, 7
        %v6918 = vsub.s32 %v6019, %v6917
        %v6919 = vrot.slane %v5774, %v6918
        %v6920 = vsel %vm6024, %v6919, %v6915
        %v6921 = vlaneseq
        %v6922 = vshrl.u32 %v6921, 7
        %v6923 = vsub.s32 %v6026, %v6922
        %v6924 = vrot.slane %v5777, %v6923
        %v6925 = vsel %vm6031, %v6924, %v6920
        %v6926 = vlaneseq
        %v6927 = vshrl.u32 %v6926, 7
        %v6928 = vsub.s32 %v6033, %v6927
        %v6929 = vrot.slane %v5780, %v6928
        %v6930 = vsel %vm6038, %v6929, %v6925
        %v6931 = vlaneseq
        %v6932 = vshrl.u32 %v6931, 7
        %v6933 = vsub.s32 %v6040, %v6932
        %v6934 = vrot.slane %v5783, %v6933
        %v6935 = vsel %vm6045, %v6934, %v6930
        %v6936 = vlaneseq
        %v6937 = vshrl.u32 %v6936, 7
        %v6938 = vsub.s32 %v6047, %v6937
        %v6939 = vrot.slane %v5786, %v6938
        %v6940 = vsel %vm6052, %v6939, %v6935
        %v6941 = vlaneseq
        %v6942 = vshrl.u32 %v6941, 7
        %v6943 = vsub.s32 %v6054, %v6942
        %v6944 = vrot.slane %v5789, %v6943
        %v6945 = vsel %vm6059, %v6944, %v6940
        %v6946 = vlaneseq
        %v6947 = vshrl.u32 %v6946, 7
        %v6948 = vsub.s32 %v6061, %v6947
        %v6949 = vrot.slane %v5792, %v6948
        %v6950 = vsel %vm6066, %v6949, %v6945
        %v6951 = vlaneseq
        %v6952 = vshrl.u32 %v6951, 7
        %v6953 = vsub.s32 %v6068, %v6952
        %v6954 = vrot.slane %v5795, %v6953
        %v6955 = vsel %vm6073, %v6954, %v6950
        %v6956 = vlaneseq
        %v6957 = vshrl.u32 %v6956, 7
        %v6958 = vsub.s32 %v6075, %v6957
        %v6959 = vrot.slane %v5798, %v6958
        %v6960 = vsel %vm6080, %v6959, %v6955
        %v6961 = vlaneseq
        %v6962 = vshrl.u32 %v6961, 7
        %v6963 = vsub.s32 %v6082, %v6962
        %v6964 = vrot.slane %v5801, %v6963
        %v6965 = vsel %vm6087, %v6964, %v6960
        %v6966 = vlaneseq
        %v6967 = vshrl.u32 %v6966, 7
        %v6968 = vsub.s32 %v6089, %v6967
        %v6969 = vrot.slane %v5804, %v6968
        %v6970 = vsel %vm6094, %v6969, %v6965
        %v6971 = vlaneseq
        %v6972 = vshrl.u32 %v6971, 7
        %v6973 = vsub.s32 %v6096, %v6972
        %v6974 = vrot.slane %v5807, %v6973
        %v6975 = vsel %vm6101, %v6974, %v6970
        %v6976 = vlaneseq
        %v6977 = vshrl.u32 %v6976, 7
        %v6978 = vsub.s32 %v6103, %v6977
        %v6979 = vrot.slane %v5810, %v6978
        %v6980 = vsel %vm6108, %v6979, %v6975
        %v6981 = vlaneseq
        %v6982 = vshrl.u32 %v6981, 7
        %v6983 = vsub.s32 %v6110, %v6982
        %v6984 = vrot.slane %v5813, %v6983
        %v6985 = vsel %vm6115, %v6984, %v6980
        %v6986 = vlaneseq
        %v6987 = vshrl.u32 %v6986, 7
        %v6988 = vsub.s32 %v6007, %v6987
        %v6989 = vrot.slane %v5816, %v6988
        %v6990 = vlaneseq
        %v6991 = vshrl.u32 %v6990, 7
        %v6992 = vsub.s32 %v6012, %v6991
        %v6993 = vrot.slane %v5819, %v6992
        %v6994 = vsel %vm6017, %v6993, %v6989
        %v6995 = vlaneseq
        %v6996 = vshrl.u32 %v6995, 7
        %v6997 = vsub.s32 %v6019, %v6996
        %v6998 = vrot.slane %v5822, %v6997
        %v6999 = vsel %vm6024, %v6998, %v6994
        %v7000 = vlaneseq
        %v7001 = vshrl.u32 %v7000, 7
        %v7002 = vsub.s32 %v6026, %v7001
        %v7003 = vrot.slane %v5825, %v7002
        %v7004 = vsel %vm6031, %v7003, %v6999
        %v7005 = vlaneseq
        %v7006 = vshrl.u32 %v7005, 7
        %v7007 = vsub.s32 %v6033, %v7006
        %v7008 = vrot.slane %v5828, %v7007
        %v7009 = vsel %vm6038, %v7008, %v7004
        %v7010 = vlaneseq
        %v7011 = vshrl.u32 %v7010, 7
        %v7012 = vsub.s32 %v6040, %v7011
        %v7013 = vrot.slane %v5831, %v7012
        %v7014 = vsel %vm6045, %v7013, %v7009
        %v7015 = vlaneseq
        %v7016 = vshrl.u32 %v7015, 7
        %v7017 = vsub.s32 %v6047, %v7016
        %v7018 = vrot.slane %v5834, %v7017
        %v7019 = vsel %vm6052, %v7018, %v7014
        %v7020 = vlaneseq
        %v7021 = vshrl.u32 %v7020, 7
        %v7022 = vsub.s32 %v6054, %v7021
        %v7023 = vrot.slane %v5837, %v7022
        %v7024 = vsel %vm6059, %v7023, %v7019
        %v7025 = vlaneseq
        %v7026 = vshrl.u32 %v7025, 7
        %v7027 = vsub.s32 %v6061, %v7026
        %v7028 = vrot.slane %v5840, %v7027
        %v7029 = vsel %vm6066, %v7028, %v7024
        %v7030 = vlaneseq
        %v7031 = vshrl.u32 %v7030, 7
        %v7032 = vsub.s32 %v6068, %v7031
        %v7033 = vrot.slane %v5843, %v7032
        %v7034 = vsel %vm6073, %v7033, %v7029
        %v7035 = vlaneseq
        %v7036 = vshrl.u32 %v7035, 7
        %v7037 = vsub.s32 %v6075, %v7036
        %v7038 = vrot.slane %v5846, %v7037
        %v7039 = vsel %vm6080, %v7038, %v7034
        %v7040 = vlaneseq
        %v7041 = vshrl.u32 %v7040, 7
        %v7042 = vsub.s32 %v6082, %v7041
        %v7043 = vrot.slane %v5849, %v7042
        %v7044 = vsel %vm6087, %v7043, %v7039
        %v7045 = vlaneseq
        %v7046 = vshrl.u32 %v7045, 7
        %v7047 = vsub.s32 %v6089, %v7046
        %v7048 = vrot.slane %v5852, %v7047
        %v7049 = vsel %vm6094, %v7048, %v7044
        %v7050 = vlaneseq
        %v7051 = vshrl.u32 %v7050, 7
        %v7052 = vsub.s32 %v6096, %v7051
        %v7053 = vrot.slane %v5855, %v7052
        %v7054 = vsel %vm6101, %v7053, %v7049
        %v7055 = vlaneseq
        %v7056 = vshrl.u32 %v7055, 7
        %v7057 = vsub.s32 %v6103, %v7056
        %v7058 = vrot.slane %v5858, %v7057
        %v7059 = vsel %vm6108, %v7058, %v7054
        %v7060 = vlaneseq
        %v7061 = vshrl.u32 %v7060, 7
        %v7062 = vsub.s32 %v6110, %v7061
        %v7063 = vrot.slane %v5861, %v7062
        %v7064 = vsel %vm6115, %v7063, %v7059
        %v7065 = vlaneseq
        %v7066 = vshrl.u32 %v7065, 7
        %v7067 = vsub.s32 %v6007, %v7066
        %v7068 = vrot.slane %v5864, %v7067
        %v7069 = vlaneseq
        %v7070 = vshrl.u32 %v7069, 7
        %v7071 = vsub.s32 %v6012, %v7070
        %v7072 = vrot.slane %v5867, %v7071
        %v7073 = vsel %vm6017, %v7072, %v7068
        %v7074 = vlaneseq
        %v7075 = vshrl.u32 %v7074, 7
        %v7076 = vsub.s32 %v6019, %v7075
        %v7077 = vrot.slane %v5870, %v7076
        %v7078 = vsel %vm6024, %v7077, %v7073
        %v7079 = vlaneseq
        %v7080 = vshrl.u32 %v7079, 7
        %v7081 = vsub.s32 %v6026, %v7080
        %v7082 = vrot.slane %v5873, %v7081
        %v7083 = vsel %vm6031, %v7082, %v7078
        %v7084 = vlaneseq
        %v7085 = vshrl.u32 %v7084, 7
        %v7086 = vsub.s32 %v6033, %v7085
        %v7087 = vrot.slane %v5876, %v7086
        %v7088 = vsel %vm6038, %v7087, %v7083
        %v7089 = vlaneseq
        %v7090 = vshrl.u32 %v7089, 7
        %v7091 = vsub.s32 %v6040, %v7090
        %v7092 = vrot.slane %v5879, %v7091
        %v7093 = vsel %vm6045, %v7092, %v7088
        %v7094 = vlaneseq
        %v7095 = vshrl.u32 %v7094, 7
        %v7096 = vsub.s32 %v6047, %v7095
        %v7097 = vrot.slane %v5882, %v7096
        %v7098 = vsel %vm6052, %v7097, %v7093
        %v7099 = vlaneseq
        %v7100 = vshrl.u32 %v7099, 7
        %v7101 = vsub.s32 %v6054, %v7100
        %v7102 = vrot.slane %v5885, %v7101
        %v7103 = vsel %vm6059, %v7102, %v7098
        %v7104 = vlaneseq
        %v7105 = vshrl.u32 %v7104, 7
        %v7106 = vsub.s32 %v6061, %v7105
        %v7107 = vrot.slane %v5888, %v7106
        %v7108 = vsel %vm6066, %v7107, %v7103
        %v7109 = vlaneseq
        %v7110 = vshrl.u32 %v7109, 7
        %v7111 = vsub.s32 %v6068, %v7110
        %v7112 = vrot.slane %v5891, %v7111
        %v7113 = vsel %vm6073, %v7112, %v7108
        %v7114 = vlaneseq
        %v7115 = vshrl.u32 %v7114, 7
        %v7116 = vsub.s32 %v6075, %v7115
        %v7117 = vrot.slane %v5894, %v7116
        %v7118 = vsel %vm6080, %v7117, %v7113
        %v7119 = vlaneseq
        %v7120 = vshrl.u32 %v7119, 7
        %v7121 = vsub.s32 %v6082, %v7120
        %v7122 = vrot.slane %v5897, %v7121
        %v7123 = vsel %vm6087, %v7122, %v7118
        %v7124 = vlaneseq
        %v7125 = vshrl.u32 %v7124, 7
        %v7126 = vsub.s32 %v6089, %v7125
        %v7127 = vrot.slane %v5900, %v7126
        %v7128 = vsel %vm6094, %v7127, %v7123
        %v7129 = vlaneseq
        %v7130 = vshrl.u32 %v7129, 7
        %v7131 = vsub.s32 %v6096, %v7130
        %v7132 = vrot.slane %v5903, %v7131
        %v7133 = vsel %vm6101, %v7132, %v7128
        %v7134 = vlaneseq
        %v7135 = vshrl.u32 %v7134, 7
        %v7136 = vsub.s32 %v6103, %v7135
        %v7137 = vrot.slane %v5906, %v7136
        %v7138 = vsel %vm6108, %v7137, %v7133
        %v7139 = vlaneseq
        %v7140 = vshrl.u32 %v7139, 7
        %v7141 = vsub.s32 %v6110, %v7140
        %v7142 = vrot.slane %v5909, %v7141
        %v7143 = vsel %vm6115, %v7142, %v7138
        %v7144 = vlaneseq
        %v7145 = vshrl.u32 %v7144, 7
        %v7146 = vsub.s32 %v6007, %v7145
        %v7147 = vrot.slane %v5912, %v7146
        %v7148 = vlaneseq
        %v7149 = vshrl.u32 %v7148, 7
        %v7150 = vsub.s32 %v6012, %v7149
        %v7151 = vrot.slane %v5915, %v7150
        %v7152 = vsel %vm6017, %v7151, %v7147
        %v7153 = vlaneseq
        %v7154 = vshrl.u32 %v7153, 7
        %v7155 = vsub.s32 %v6019, %v7154
        %v7156 = vrot.slane %v5918, %v7155
        %v7157 = vsel %vm6024, %v7156, %v7152
        %v7158 = vlaneseq
        %v7159 = vshrl.u32 %v7158, 7
        %v7160 = vsub.s32 %v6026, %v7159
        %v7161 = vrot.slane %v5921, %v7160
        %v7162 = vsel %vm6031, %v7161, %v7157
        %v7163 = vlaneseq
        %v7164 = vshrl.u32 %v7163, 7
        %v7165 = vsub.s32 %v6033, %v7164
        %v7166 = vrot.slane %v5924, %v7165
        %v7167 = vsel %vm6038, %v7166, %v7162
        %v7168 = vlaneseq
        %v7169 = vshrl.u32 %v7168, 7
        %v7170 = vsub.s32 %v6040, %v7169
        %v7171 = vrot.slane %v5927, %v7170
        %v7172 = vsel %vm6045, %v7171, %v7167
        %v7173 = vlaneseq
        %v7174 = vshrl.u32 %v7173, 7
        %v7175 = vsub.s32 %v6047, %v7174
        %v7176 = vrot.slane %v5930, %v7175
        %v7177 = vsel %vm6052, %v7176, %v7172
        %v7178 = vlaneseq
        %v7179 = vshrl.u32 %v7178, 7
        %v7180 = vsub.s32 %v6054, %v7179
        %v7181 = vrot.slane %v5933, %v7180
        %v7182 = vsel %vm6059, %v7181, %v7177
        %v7183 = vlaneseq
        %v7184 = vshrl.u32 %v7183, 7
        %v7185 = vsub.s32 %v6061, %v7184
        %v7186 = vrot.slane %v5936, %v7185
        %v7187 = vsel %vm6066, %v7186, %v7182
        %v7188 = vlaneseq
        %v7189 = vshrl.u32 %v7188, 7
        %v7190 = vsub.s32 %v6068, %v7189
        %v7191 = vrot.slane %v5939, %v7190
        %v7192 = vsel %vm6073, %v7191, %v7187
        %v7193 = vlaneseq
        %v7194 = vshrl.u32 %v7193, 7
        %v7195 = vsub.s32 %v6075, %v7194
        %v7196 = vrot.slane %v5942, %v7195
        %v7197 = vsel %vm6080, %v7196, %v7192
        %v7198 = vlaneseq
        %v7199 = vshrl.u32 %v7198, 7
        %v7200 = vsub.s32 %v6082, %v7199
        %v7201 = vrot.slane %v5945, %v7200
        %v7202 = vsel %vm6087, %v7201, %v7197
        %v7203 = vlaneseq
        %v7204 = vshrl.u32 %v7203, 7
        %v7205 = vsub.s32 %v6089, %v7204
        %v7206 = vrot.slane %v5948, %v7205
        %v7207 = vsel %vm6094, %v7206, %v7202
        %v7208 = vlaneseq
        %v7209 = vshrl.u32 %v7208, 7
        %v7210 = vsub.s32 %v6096, %v7209
        %v7211 = vrot.slane %v5951, %v7210
        %v7212 = vsel %vm6101, %v7211, %v7207
        %v7213 = vlaneseq
        %v7214 = vshrl.u32 %v7213, 7
        %v7215 = vsub.s32 %v6103, %v7214
        %v7216 = vrot.slane %v5954, %v7215
        %v7217 = vsel %vm6108, %v7216, %v7212
        %v7218 = vlaneseq
        %v7219 = vshrl.u32 %v7218, 7
        %v7220 = vsub.s32 %v6110, %v7219
        %v7221 = vrot.slane %v5957, %v7220
        %v7222 = vsel %vm6115, %v7221, %v7217
        %v7223 = vlaneseq
        %v7224 = vshrl.u32 %v7223, 7
        %v7225 = vsub.s32 %v6007, %v7224
        %v7226 = vrot.slane %v5960, %v7225
        %v7227 = vlaneseq
        %v7228 = vshrl.u32 %v7227, 7
        %v7229 = vsub.s32 %v6012, %v7228
        %v7230 = vrot.slane %v5963, %v7229
        %v7231 = vsel %vm6017, %v7230, %v7226
        %v7232 = vlaneseq
        %v7233 = vshrl.u32 %v7232, 7
        %v7234 = vsub.s32 %v6019, %v7233
        %v7235 = vrot.slane %v5966, %v7234
        %v7236 = vsel %vm6024, %v7235, %v7231
        %v7237 = vlaneseq
        %v7238 = vshrl.u32 %v7237, 7
        %v7239 = vsub.s32 %v6026, %v7238
        %v7240 = vrot.slane %v5969, %v7239
        %v7241 = vsel %vm6031, %v7240, %v7236
        %v7242 = vlaneseq
        %v7243 = vshrl.u32 %v7242, 7
        %v7244 = vsub.s32 %v6033, %v7243
        %v7245 = vrot.slane %v5972, %v7244
        %v7246 = vsel %vm6038, %v7245, %v7241
        %v7247 = vlaneseq
        %v7248 = vshrl.u32 %v7247, 7
        %v7249 = vsub.s32 %v6040, %v7248
        %v7250 = vrot.slane %v5975, %v7249
        %v7251 = vsel %vm6045, %v7250, %v7246
        %v7252 = vlaneseq
        %v7253 = vshrl.u32 %v7252, 7
        %v7254 = vsub.s32 %v6047, %v7253
        %v7255 = vrot.slane %v5978, %v7254
        %v7256 = vsel %vm6052, %v7255, %v7251
        %v7257 = vlaneseq
        %v7258 = vshrl.u32 %v7257, 7
        %v7259 = vsub.s32 %v6054, %v7258
        %v7260 = vrot.slane %v5981, %v7259
        %v7261 = vsel %vm6059, %v7260, %v7256
        %v7262 = vlaneseq
        %v7263 = vshrl.u32 %v7262, 7
        %v7264 = vsub.s32 %v6061, %v7263
        %v7265 = vrot.slane %v5984, %v7264
        %v7266 = vsel %vm6066, %v7265, %v7261
        %v7267 = vlaneseq
        %v7268 = vshrl.u32 %v7267, 7
        %v7269 = vsub.s32 %v6068, %v7268
        %v7270 = vrot.slane %v5987, %v7269
        %v7271 = vsel %vm6073, %v7270, %v7266
        %v7272 = vlaneseq
        %v7273 = vshrl.u32 %v7272, 7
        %v7274 = vsub.s32 %v6075, %v7273
        %v7275 = vrot.slane %v5990, %v7274
        %v7276 = vsel %vm6080, %v7275, %v7271
        %v7277 = vlaneseq
        %v7278 = vshrl.u32 %v7277, 7
        %v7279 = vsub.s32 %v6082, %v7278
        %v7280 = vrot.slane %v5993, %v7279
        %v7281 = vsel %vm6087, %v7280, %v7276
        %v7282 = vlaneseq
        %v7283 = vshrl.u32 %v7282, 7
        %v7284 = vsub.s32 %v6089, %v7283
        %v7285 = vrot.slane %v5996, %v7284
        %v7286 = vsel %vm6094, %v7285, %v7281
        %v7287 = vlaneseq
        %v7288 = vshrl.u32 %v7287, 7
        %v7289 = vsub.s32 %v6096, %v7288
        %v7290 = vrot.slane %v5999, %v7289
        %v7291 = vsel %vm6101, %v7290, %v7286
        %v7292 = vlaneseq
        %v7293 = vshrl.u32 %v7292, 7
        %v7294 = vsub.s32 %v6103, %v7293
        %v7295 = vrot.slane %v6002, %v7294
        %v7296 = vsel %vm6108, %v7295, %v7291
        %v7297 = vlaneseq
        %v7298 = vshrl.u32 %v7297, 7
        %v7299 = vsub.s32 %v6110, %v7298
        %v7300 = vrot.slane %v6005, %v7299
        %v7301 = vsel %vm6115, %v7300, %v7296
        %vm7302 = vcmask 1041409
        %v7303 = vsel %vm7302, %v6274, %v6116
        %vm7304 = vcmask 1042434
        %v7305 = vsel %vm7304, %v6432, %v7303
        %vm7306 = vcmask 1043459
        %v7307 = vsel %vm7306, %v6590, %v7305
        %vm7308 = vcmask 1044484
        %v7309 = vsel %vm7308, %v6748, %v7307
        %vm7310 = vcmask 1045509
        %v7311 = vsel %vm7310, %v6906, %v7309
        %vm7312 = vcmask 1046534
        %v7313 = vsel %vm7312, %v7064, %v7311
        %vm7314 = vcmask 1047559
        %v7315 = vsel %vm7314, %v7222, %v7313
        %v7316 = vsel %vm7302, %v6353, %v6195
        %v7317 = vsel %vm7304, %v6511, %v7316
        %v7318 = vsel %vm7306, %v6669, %v7317
        %v7319 = vsel %vm7308, %v6827, %v7318
        %v7320 = vsel %vm7310, %v6985, %v7319
        %v7321 = vsel %vm7312, %v7143, %v7320
        %v7322 = vsel %vm7314, %v7301, %v7321
        %v7325 = vadd.f32 %v7315, %v7322
        %7326 = vadd.xlane.f32.xlu0 %v7325
        %v7327 = vpop.xlane.xlu0 %7326
        %s7328 = sld [smem:[#allocation2]]
        %v7329 = vstv %s7328
        %v7330 = vadd.f32 %v7327, %v7329
        %vm7331 = vcmask 7168
        %7332 = vst.msk [vmem:[%s204] sm:$0xff] %vm7331, %v7330
        %p7333 = scmp.lt.s32.totalorder %s19, 1
        %s7334 = scalar_select %p7333, %s19, 1
        %s7335 = smul.addr %s7334, 8
        %s7336 = scalar_lea.vmem %s3, %s7335
        // Predicated region
        $region41: #{tpu_custom_call.1} parent=31 // pred_check
          %p7337 = pneg %p105
        $region42: #{tpu_custom_call.1} parent=31 // pred_check_branch
          %7339 = sbr.rel (%p7337) target = $region44
        $region43: #{tpu_custom_call.1} parent=31 // pred_region
          _
        $region44: #{tpu_custom_call.1} parent=31 // pred_fallthru
          _
      $region32: #{tpu_custom_call.1} parent=5 // pred_fallthru
        _
      %p7340 = scmp.le.s32.totalorder 2, %s14
      // Predicated region
      $region45: #{tpu_custom_call.1} parent=5 // pred_check
        %p7341 = pneg %p7340
      $region46: #{tpu_custom_call.1} parent=5 // pred_check_branch
        %7343 = sbr.rel (%p7341) target = $region48
      $region47: #{tpu_custom_call.1} parent=5 // pred_region
        %s7344 = ssub.s32 %s14, 2
        // Predicated region
        $region49: #{tpu_custom_call.1} parent=47 // pred_check
          %p7345 = pneg %p111
        $region50: #{tpu_custom_call.1} parent=47 // pred_check_branch
          %7347 = sbr.rel (%p7345) target = $region52
        $region51: #{tpu_custom_call.1} parent=47 // pred_region
          %p7348 = scmp.lt.s32.totalorder %s20, 1
          %s7349 = scalar_select %p7348, %s20, 1
          %s7350 = smul.addr %s7349, 8
          %s7351 = scalar_lea.vmem %s3, %s7350
        $region52: #{tpu_custom_call.1} parent=47 // pred_fallthru
          _
      $region48: #{tpu_custom_call.1} parent=5 // pred_fallthru
        _
    $region6: #{tpu_custom_call.1} parent=1 // loop_footer
      %s18 = sadd.s32 1, %s14
    $region7: #{tpu_custom_call.1} parent=1 // loop_footer_branch
      %13 = sbr.rel target = $region3
    $region8: #{tpu_custom_call.1} parent=1 // loop_exit
      _
    %7352 = vsyncpa [#allocation4], 1
    %s7353 = scalar_lea.sflag [#allocation4], 1
    %7354 = vsyncpa %s7353, 1
    %7355 = vsyncpa [#allocation6], 1

</llo_original>
